<compile_context>
chip_gen: v7x
topology: tpu7x:2x2x1
jax: 0.10.0
libtpu: 0.0.40
codegen_flags: <defaults>
</compile_context>

<pallas_src>
import jax
import jax.numpy as jnp
from jax import lax
from jax.experimental import pallas as pl
from jax.experimental.pallas import tpu as pltpu


# --------------------------- in-kernel helpers --------------------------------
def _up2(a):
    # Nearest-neighbour 2x upsample of (n, h, w, c) along h and w.
    # All reshapes keep the minor (lane) dim c fixed; the only sublane-touching
    # reshape is the (.., w, 2, c) -> (.., 2w, c) merge (same class as the
    # (H, W, C) -> (H*W, C) reshape that is known to lower).
    n, h, w, c = a.shape
    a = a.reshape(n * h, w, c)
    a = jnp.broadcast_to(a[:, None, :, :], (n * h, 2, w, c)).reshape(n * h * 2, w, c)
    a = jnp.broadcast_to(a[:, :, None, :], (n * h * 2, w, 2, c)).reshape(n * h * 2, 2 * w, c)
    return a.reshape(n, 2 * h, 2 * w, c)


def _unpool2x2(x, idx):
    # x, idx: (N, Hin, Win, C); idx holds flat row-major indices into the
    # (2*Hin, 2*Win) plane (PyTorch MaxPool2d(2,2) return_indices convention).
    # Returns (N, 2*Hin, 2*Win, C): value kept only at its recorded position.
    _, _, w, _ = x.shape
    wout = 2 * w
    xu = _up2(x)
    iu = _up2(idx)
    rr = lax.broadcasted_iota(jnp.int32, iu.shape, 1)
    ss = lax.broadcasted_iota(jnp.int32, iu.shape, 2)
    return jnp.where(iu == rr * wout + ss, xu, 0.0)


def _im2col(pad_ref, hh, ww):
    # pad_ref: (N, hh+2, ww+2, Cin) zero-padded activation in VMEM.
    # Returns (N*hh*ww, 9*Cin) patch matrix; column order = (kh, kw, cin),
    # matching the (3,3,Cin,Cout).reshape(9*Cin, Cout) weight layout.
    n = pad_ref.shape[0]
    cin = pad_ref.shape[3]
    cols = []
    for kh in range(3):           # static unrolled taps
        for kw in range(3):
            cols.append(pad_ref[:, kh:kh + hh, kw:kw + ww, :].reshape(n * hh * ww, cin))
    return jnp.concatenate(cols, axis=1)


# ------------------------------ fused kernel ----------------------------------
def _decoder_kernel(x_ref, idx2_ref, idx1_ref, w1_ref, p1_ref, w2_ref, p2_ref,
                    o_ref, pad1_ref, pad2_ref):
    n, h0, w0, _ = x_ref.shape          # (N, 4, 4, 16) latent, NHWC
    hh1, ww1 = 2 * h0, 2 * w0           # 8, 8
    c1 = w1_ref.shape[1]                # 8
    hh2, ww2 = 2 * hh1, 2 * ww1         # 16, 16

    # ---- MaxUnpool2d(2,2): (N,4,4,16) -> zero-padded (N,10,10,16) scratch ----
    pad1_ref[...] = jnp.zeros_like(pad1_ref)
    pad1_ref[:, 1:1 + hh1, 1:1 + ww1, :] = _unpool2x2(x_ref[...], idx2_ref[...])

    # ---- ConvTranspose2d(16->8,k3,s1,p1) as one im2col matmul + BN + ReLU ----
    patches1 = _im2col(pad1_ref, hh1, ww1)                                 # (128, 144)
    a1 = jnp.dot(patches1, w1_ref[...], preferred_element_type=jnp.float32)  # (128, 8)
    a1 = a1 + p1_ref[0:1, :]                                               # conv bias
    mu1 = jnp.mean(a1, axis=0, keepdims=True)                              # stats over (N,H,W)
    var1 = jnp.mean((a1 - mu1) ** 2, axis=0, keepdims=True)
    a1 = (a1 - mu1) * lax.rsqrt(var1 + 1e-5) * p1_ref[1:2, :] + p1_ref[2:3, :]
    a1 = jnp.maximum(a1, 0.0).reshape(n, hh1, ww1, c1)                     # NHWC

    # ---- MaxUnpool2d(2,2): (N,8,8,8) -> zero-padded (N,18,18,8) scratch ----
    pad2_ref[...] = jnp.zeros_like(pad2_ref)
    pad2_ref[:, 1:1 + hh2, 1:1 + ww2, :] = _unpool2x2(a1, idx1_ref[...])

    # ---- ConvTranspose2d(8->4) + BN + ReLU, lane-dense (Cout, N*H*W) output ----
    patches2 = _im2col(pad2_ref, hh2, ww2)                                 # (512, 72)
    # (4,72) x (512,72)^T -> (4, 512): contraction on both last dims (A @ B.T)
    a2 = lax.dot_general(w2_ref[...], patches2, (((1,), (1,)), ((), ())),
                         preferred_element_type=jnp.float32)
    a2 = a2 + p2_ref[:, 0:1]
    mu2 = jnp.mean(a2, axis=1, keepdims=True)
    var2 = jnp.mean((a2 - mu2) ** 2, axis=1, keepdims=True)
    a2 = (a2 - mu2) * lax.rsqrt(var2 + 1e-5) * p2_ref[:, 1:2] + p2_ref[:, 2:3]
    o_ref[...] = jnp.maximum(a2, 0.0)                                      # (4, 512)


# --------------------------------- wrapper -------------------------------------
@jax.jit
def ae_decoder_forward(x, pool_indices, params):
    """x: (N, 16, 4, 4) NCHW latent; pool_indices in ENCODER order (as in PyTorch)."""
    n, c0, h0, w0 = x.shape
    idxs = list(reversed(pool_indices))
    idx_unpool1, idx_unpool2 = idxs[0], idxs[1]      # (N,16,4,4), (N,8,8,8)

    c1 = params["wt1"].shape[1]                      # 8
    c2 = params["wt2"].shape[1]                      # 4
    hh1, ww1 = 2 * h0, 2 * w0                        # 8, 8
    hh2, ww2 = 2 * hh1, 2 * ww1                      # 16, 16

    # tiny boundary layout changes only (activations stay in VMEM inside the kernel)
    x_nhwc = jnp.transpose(x, (0, 2, 3, 1)).astype(jnp.float32)
    idx2_n = jnp.transpose(idx_unpool1, (0, 2, 3, 1)).astype(jnp.int32)
    idx1_n = jnp.transpose(idx_unpool2, (0, 2, 3, 1)).astype(jnp.int32)

    def to_same_conv(wt):
        # ConvTranspose2d weight (Cin, Cout, 3, 3) -> equivalent "same"-conv
        # im2col weight (9*Cin, Cout): spatial flip + channel swap.
        return jnp.transpose(wt[:, :, ::-1, ::-1], (2, 3, 0, 1)).reshape(-1, wt.shape[1])

    w1_mat = to_same_conv(params["wt1"])             # (144, 8)
    w2_mat = to_same_conv(params["wt2"]).T           # (4, 72) -> lane-dense output
    p1 = jnp.stack([params["b1"], params["g1"], params["beta1"]], axis=0)   # (3, 8)
    p2 = jnp.stack([params["b2"], params["g2"], params["beta2"]], axis=1)   # (4, 3)

    out = pl.pallas_call(
        _decoder_kernel,
        out_shape=jax.ShapeDtypeStruct((c2, n * hh2 * ww2), jnp.float32),
        grid=(1,),
        in_specs=[
            pl.BlockSpec((n, h0, w0, c0), lambda i: (0, 0, 0, 0)),
            pl.BlockSpec((n, h0, w0, c0), lambda i: (0, 0, 0, 0)),
            pl.BlockSpec((n, hh1, ww1, c1), lambda i: (0, 0, 0, 0)),
            pl.BlockSpec((9 * c0, c1), lambda i: (0, 0)),
            pl.BlockSpec((3, c1), lambda i: (0, 0)),
            pl.BlockSpec((c2, 9 * c1), lambda i: (0, 0)),
            pl.BlockSpec((c2, 3), lambda i: (0, 0)),
        ],
        out_specs=pl.BlockSpec((c2, n * hh2 * ww2), lambda i: (0, 0)),
        scratch_shapes=[
            pltpu.VMEM((n, hh1 + 2, ww1 + 2, c0), jnp.float32),   # padded unpool-1 output
            pltpu.VMEM((n, hh2 + 2, ww2 + 2, c1), jnp.float32),   # padded unpool-2 output
        ],
        compiler_params=pltpu.CompilerParams(dimension_semantics=("arbitrary",)),
    )(x_nhwc, idx2_n, idx1_n, w1_mat, p1, w2_mat, p2)

    # (Cout, N*H*W) -> NCHW
    return out.reshape(c2, n, hh2, ww2).transpose(1, 0, 2, 3)


# --------------------------- pure-JAX reference --------------------------------
def _ref_forward(x, pool_indices, params):
    def unpool(v, idx):
        nb, c, h, w = v.shape
        p = 4 * h * w
        vf = v.reshape(nb, c, h * w)
        idf = idx.reshape(nb, c, h * w).astype(jnp.int32)
        onehot = (idf[..., None] == jnp.arange(p, dtype=jnp.int32)).astype(v.dtype)
        return jnp.sum(vf[..., None] * onehot, axis=2).reshape(nb, c, 2 * h, 2 * w)

    def conv_t(v, wt, b):
        w_hwio = jnp.transpose(wt[:, :, ::-1, ::-1], (2, 3, 0, 1))
        y = lax.conv_general_dilated(v, w_hwio, (1, 1), "SAME",
                                     dimension_numbers=("NCHW", "HWIO", "NCHW"))
        return y + b[None, :, None, None]

    def bn_relu(v, g, bt):
        m = jnp.mean(v, axis=(0, 2, 3), keepdims=True)
        var = jnp.mean((v - m) ** 2, axis=(0, 2, 3), keepdims=True)
        return jnp.maximum((v - m) * lax.rsqrt(var + 1e-5) * g[None, :, None, None]
                           + bt[None, :, None, None], 0.0)

    idxs = list(reversed(pool_indices))
    v = unpool(x, idxs[0])
    v = bn_relu(conv_t(v, params["wt1"], params["b1"]), params["g1"], params["beta1"])
    v = unpool(v, idxs[1])
    v = bn_relu(conv_t(v, params["wt2"], params["b2"]), params["g2"], params["beta2"])
    return v


def make_pool_indices(key, N, C, Hp, Wp):
    # Synthetic MaxPool2d(2,2) return_indices: one flat index per 2x2 window
    # into the unpooled (2*Hp, 2*Wp) plane (disjoint across windows).
    off = jax.random.randint(key, (N, C, Hp, Wp), 0, 4)
    i = jnp.arange(Hp)[None, None, :, None]
    j = jnp.arange(Wp)[None, None, None, :]
    row = 2 * i + off // 2
    col = 2 * j + off % 2
    return (row * (2 * Wp) + col).astype(jnp.int32)


if __name__ == "__main__":
    key = jax.random.PRNGKey(0)
    keys = jax.random.split(key, 11)
    N = 2
    # latent from the assumed encoder applied to a (2, 4, 16, 16) image
    x = jax.random.normal(keys[0], (N, 16, 4, 4), jnp.float32)
    pool_idx1 = make_pool_indices(keys[1], N, 8, 8, 8)     # first MaxPool (unpools to 16x16)
    pool_idx2 = make_pool_indices(keys[2], N, 16, 4, 4)    # second MaxPool (unpools to 8x8)

    params = dict(
        wt1=0.1 * jax.random.normal(keys[3], (16, 8, 3, 3), jnp.float32),
        b1=0.1 * jax.random.normal(keys[4], (8,), jnp.float32),
        g1=1.0 + 0.1 * jax.random.normal(keys[5], (8,), jnp.float32),
        beta1=0.1 * jax.random.normal(keys[6], (8,), jnp.float32),
        wt2=0.1 * jax.random.normal(keys[7], (8, 3, 3), jnp.float32).reshape(8, 1, 3, 3).repeat(4, axis=1)
        if False else 0.1 * jax.random.normal(keys[7], (8, 4, 3, 3), jnp.float32),
        b2=0.1 * jax.random.normal(keys[8], (4,), jnp.float32),
        g2=1.0 + 0.1 * jax.random.normal(keys[9], (4,), jnp.float32),
        beta2=0.1 * jax.random.normal(keys[10], (4,), jnp.float32),
    )

    out = ae_decoder_forward(x, [pool_idx1, pool_idx2], params)
    out = jax.block_until_ready(out)
    assert out.shape == (N, 4, 16, 16), out.shape
    assert bool(jnp.all(jnp.isfinite(out)))

    ref = _ref_forward(x, [pool_idx1, pool_idx2], params)
    max_err = float(jnp.max(jnp.abs(out - ref)))
    assert max_err < 1e-1, f"max abs error vs reference: {max_err}"

    print("KERNEL_OK")
</pallas_src>

<mosaic_0001>
module attributes {stable_mosaic.version = 11 : i64} {
  func.func @_decoder_kernel(%arg0: i32, %arg1: memref<2x4x4x16xf32, #tpu.memory_space<vmem>>, %arg2: memref<2x4x4x16xi32, #tpu.memory_space<vmem>>, %arg3: memref<2x8x8x8xi32, #tpu.memory_space<vmem>>, %arg4: memref<144x8xf32, #tpu.memory_space<vmem>>, %arg5: memref<3x8xf32, #tpu.memory_space<vmem>>, %arg6: memref<4x72xf32, #tpu.memory_space<vmem>>, %arg7: memref<4x3xf32, #tpu.memory_space<vmem>>, %arg8: memref<4x512xf32, #tpu.memory_space<vmem>>, %arg9: memref<2x10x10x16xf32, #tpu.memory_space<vmem>>, %arg10: memref<2x18x18x8xf32, #tpu.memory_space<vmem>>) attributes {dimension_semantics = [#tpu.dimension_semantics<arbitrary>], iteration_bounds = array<i64: 1>, scalar_prefetch = 0 : i64, scratch_operands = 2 : i64, tpu.core_type = #tpu.core_type<tc>, window_params = [{pipeline_mode = #tpu.pipeline_mode<synchronous>, transform_indices = @transform_0, window_bounds = array<i64: 2, 4, 4, 16>}, {pipeline_mode = #tpu.pipeline_mode<synchronous>, transform_indices = @transform_1, window_bounds = array<i64: 2, 4, 4, 16>}, {pipeline_mode = #tpu.pipeline_mode<synchronous>, transform_indices = @transform_2, window_bounds = array<i64: 2, 8, 8, 8>}, {pipeline_mode = #tpu.pipeline_mode<synchronous>, transform_indices = @transform_3, window_bounds = array<i64: 144, 8>}, {pipeline_mode = #tpu.pipeline_mode<synchronous>, transform_indices = @transform_4, window_bounds = array<i64: 3, 8>}, {pipeline_mode = #tpu.pipeline_mode<synchronous>, transform_indices = @transform_5, window_bounds = array<i64: 4, 72>}, {pipeline_mode = #tpu.pipeline_mode<synchronous>, transform_indices = @transform_6, window_bounds = array<i64: 4, 3>}, {pipeline_mode = #tpu.pipeline_mode<synchronous>, transform_indices = @transform_7, window_bounds = array<i64: 4, 512>}]} {
    %cst = arith.constant 0.000000e+00 : f32
    %0 = vector.broadcast %cst : f32 to vector<2x10x10x16xf32>
    %c0 = arith.constant 0 : index
    %c0_0 = arith.constant 0 : index
    %c0_1 = arith.constant 0 : index
    %c0_2 = arith.constant 0 : index
    %1 = vector.load %arg9[%c0, %c0_0, %c0_1, %c0_2] : memref<2x10x10x16xf32, #tpu.memory_space<vmem>>, vector<2x10x10x16xf32>
    tpu.vector_store %arg9[%c0, %c0_0, %c0_1, %c0_2], %0 {strides = array<i32>} : memref<2x10x10x16xf32, #tpu.memory_space<vmem>>, vector<2x10x10x16xf32>,
    %c0_3 = arith.constant 0 : index
    %c0_4 = arith.constant 0 : index
    %c0_5 = arith.constant 0 : index
    %c0_6 = arith.constant 0 : index
    %2 = vector.load %arg1[%c0_3, %c0_4, %c0_5, %c0_6] : memref<2x4x4x16xf32, #tpu.memory_space<vmem>>, vector<2x4x4x16xf32>
    %c0_7 = arith.constant 0 : index
    %c0_8 = arith.constant 0 : index
    %c0_9 = arith.constant 0 : index
    %c0_10 = arith.constant 0 : index
    %3 = vector.load %arg2[%c0_7, %c0_8, %c0_9, %c0_10] : memref<2x4x4x16xi32, #tpu.memory_space<vmem>>, vector<2x4x4x16xi32>
    %4 = vector.shape_cast %2 : vector<2x4x4x16xf32> to vector<8x4x16xf32>
    %5 = vector.shape_cast %4 : vector<8x4x16xf32> to vector<8x1x4x16xf32>
    %6 = vector.shape_cast %5 : vector<8x1x4x16xf32> to vector<8x1x4x16xf32>
    %7 = vector.broadcast %6 : vector<8x1x4x16xf32> to vector<8x2x4x16xf32>
    %8 = vector.shape_cast %7 : vector<8x2x4x16xf32> to vector<16x4x16xf32>
    %9 = vector.shape_cast %8 : vector<16x4x16xf32> to vector<16x4x1x16xf32>
    %10 = vector.shape_cast %9 : vector<16x4x1x16xf32> to vector<16x4x1x16xf32>
    %11 = vector.broadcast %10 : vector<16x4x1x16xf32> to vector<16x4x2x16xf32>
    %12 = vector.shape_cast %11 : vector<16x4x2x16xf32> to vector<16x8x16xf32>
    %13 = vector.shape_cast %12 : vector<16x8x16xf32> to vector<2x8x8x16xf32>
    %14 = vector.shape_cast %3 : vector<2x4x4x16xi32> to vector<8x4x16xi32>
    %15 = vector.shape_cast %14 : vector<8x4x16xi32> to vector<8x1x4x16xi32>
    %16 = vector.shape_cast %15 : vector<8x1x4x16xi32> to vector<8x1x4x16xi32>
    %17 = vector.broadcast %16 : vector<8x1x4x16xi32> to vector<8x2x4x16xi32>
    %18 = vector.shape_cast %17 : vector<8x2x4x16xi32> to vector<16x4x16xi32>
    %19 = vector.shape_cast %18 : vector<16x4x16xi32> to vector<16x4x1x16xi32>
    %20 = vector.shape_cast %19 : vector<16x4x1x16xi32> to vector<16x4x1x16xi32>
    %21 = vector.broadcast %20 : vector<16x4x1x16xi32> to vector<16x4x2x16xi32>
    %22 = vector.shape_cast %21 : vector<16x4x2x16xi32> to vector<16x8x16xi32>
    %23 = vector.shape_cast %22 : vector<16x8x16xi32> to vector<2x8x8x16xi32>
    %24 = tpu.iota {dimensions = array<i32: 1>} : vector<2x8x8x16xi32>
    %25 = tpu.iota {dimensions = array<i32: 2>} : vector<2x8x8x16xi32>
    %c8_i32 = arith.constant 8 : i32
    %26 = vector.broadcast %c8_i32 : i32 to vector<2x8x8x16xi32>
    %27 = arith.muli %24, %26 : vector<2x8x8x16xi32>
    %28 = arith.addi %27, %25 : vector<2x8x8x16xi32>
    %29 = arith.cmpi eq, %23, %28 : vector<2x8x8x16xi32>
    %cst_11 = arith.constant 0.000000e+00 : f32
    %30 = vector.broadcast %cst_11 : f32 to vector<2x8x8x16xf32>
    %31 = arith.select %29, %13, %30 : vector<2x8x8x16xi1>, vector<2x8x8x16xf32>
    %c0_12 = arith.constant 0 : index
    %c1 = arith.constant 1 : index
    %c1_13 = arith.constant 1 : index
    %c0_14 = arith.constant 0 : index
    %32 = vector.load %arg9[%c0_12, %c1, %c1_13, %c0_14] : memref<2x10x10x16xf32, #tpu.memory_space<vmem>>, vector<2x8x8x16xf32>
    tpu.vector_store %arg9[%c0_12, %c1, %c1_13, %c0_14], %31 {strides = array<i32>} : memref<2x10x10x16xf32, #tpu.memory_space<vmem>>, vector<2x8x8x16xf32>,
    %c0_15 = arith.constant 0 : index
    %c0_16 = arith.constant 0 : index
    %c0_17 = arith.constant 0 : index
    %c0_18 = arith.constant 0 : index
    %33 = vector.load %arg9[%c0_15, %c0_16, %c0_17, %c0_18] : memref<2x10x10x16xf32, #tpu.memory_space<vmem>>, vector<2x8x8x16xf32>
    %34 = vector.shape_cast %33 : vector<2x8x8x16xf32> to vector<128x16xf32>
    %c0_19 = arith.constant 0 : index
    %c0_20 = arith.constant 0 : index
    %c1_21 = arith.constant 1 : index
    %c0_22 = arith.constant 0 : index
    %35 = vector.load %arg9[%c0_19, %c0_20, %c1_21, %c0_22] : memref<2x10x10x16xf32, #tpu.memory_space<vmem>>, vector<2x8x8x16xf32>
    %36 = vector.shape_cast %35 : vector<2x8x8x16xf32> to vector<128x16xf32>
    %c0_23 = arith.constant 0 : index
    %c0_24 = arith.constant 0 : index
    %c2 = arith.constant 2 : index
    %c0_25 = arith.constant 0 : index
    %37 = vector.load %arg9[%c0_23, %c0_24, %c2, %c0_25] : memref<2x10x10x16xf32, #tpu.memory_space<vmem>>, vector<2x8x8x16xf32>
    %38 = vector.shape_cast %37 : vector<2x8x8x16xf32> to vector<128x16xf32>
    %c0_26 = arith.constant 0 : index
    %c1_27 = arith.constant 1 : index
    %c0_28 = arith.constant 0 : index
    %c0_29 = arith.constant 0 : index
    %39 = vector.load %arg9[%c0_26, %c1_27, %c0_28, %c0_29] : memref<2x10x10x16xf32, #tpu.memory_space<vmem>>, vector<2x8x8x16xf32>
    %40 = vector.shape_cast %39 : vector<2x8x8x16xf32> to vector<128x16xf32>
    %c0_30 = arith.constant 0 : index
    %c1_31 = arith.constant 1 : index
    %c1_32 = arith.constant 1 : index
    %c0_33 = arith.constant 0 : index
    %41 = vector.load %arg9[%c0_30, %c1_31, %c1_32, %c0_33] : memref<2x10x10x16xf32, #tpu.memory_space<vmem>>, vector<2x8x8x16xf32>
    %42 = vector.shape_cast %41 : vector<2x8x8x16xf32> to vector<128x16xf32>
    %c0_34 = arith.constant 0 : index
    %c1_35 = arith.constant 1 : index
    %c2_36 = arith.constant 2 : index
    %c0_37 = arith.constant 0 : index
    %43 = vector.load %arg9[%c0_34, %c1_35, %c2_36, %c0_37] : memref<2x10x10x16xf32, #tpu.memory_space<vmem>>, vector<2x8x8x16xf32>
    %44 = vector.shape_cast %43 : vector<2x8x8x16xf32> to vector<128x16xf32>
    %c0_38 = arith.constant 0 : index
    %c2_39 = arith.constant 2 : index
    %c0_40 = arith.constant 0 : index
    %c0_41 = arith.constant 0 : index
    %45 = vector.load %arg9[%c0_38, %c2_39, %c0_40, %c0_41] : memref<2x10x10x16xf32, #tpu.memory_space<vmem>>, vector<2x8x8x16xf32>
    %46 = vector.shape_cast %45 : vector<2x8x8x16xf32> to vector<128x16xf32>
    %c0_42 = arith.constant 0 : index
    %c2_43 = arith.constant 2 : index
    %c1_44 = arith.constant 1 : index
    %c0_45 = arith.constant 0 : index
    %47 = vector.load %arg9[%c0_42, %c2_43, %c1_44, %c0_45] : memref<2x10x10x16xf32, #tpu.memory_space<vmem>>, vector<2x8x8x16xf32>
    %48 = vector.shape_cast %47 : vector<2x8x8x16xf32> to vector<128x16xf32>
    %c0_46 = arith.constant 0 : index
    %c2_47 = arith.constant 2 : index
    %c2_48 = arith.constant 2 : index
    %c0_49 = arith.constant 0 : index
    %49 = vector.load %arg9[%c0_46, %c2_47, %c2_48, %c0_49] : memref<2x10x10x16xf32, #tpu.memory_space<vmem>>, vector<2x8x8x16xf32>
    %50 = vector.shape_cast %49 : vector<2x8x8x16xf32> to vector<128x16xf32>
    %51 = tpu.concatenate %34, %36, %38, %40, %42, %44, %46, %48, %50 in 1 : vector<128x16xf32>, vector<128x16xf32>, vector<128x16xf32>, vector<128x16xf32>, vector<128x16xf32>, vector<128x16xf32>, vector<128x16xf32>, vector<128x16xf32>, vector<128x16xf32> -> vector<128x144xf32>
    %c0_50 = arith.constant 0 : index
    %c0_51 = arith.constant 0 : index
    %52 = vector.load %arg4[%c0_50, %c0_51] : memref<144x8xf32, #tpu.memory_space<vmem>>, vector<144x8xf32>
    %cst_52 = arith.constant dense<0.000000e+00> : vector<128x8xf32>
    %53 = tpu.matmul %51, %52, %cst_52 {dimension_numbers = #tpu.dot_dimension_numbers<[1], [0], [0], [1], [0, 0, 1, 1], [], []>} : vector<128x144xf32>, vector<144x8xf32>, vector<128x8xf32> -> vector<128x8xf32>
    %c0_53 = arith.constant 0 : index
    %c0_54 = arith.constant 0 : index
    %54 = vector.load %arg5[%c0_53, %c0_54] : memref<3x8xf32, #tpu.memory_space<vmem>>, vector<1x8xf32>
    %55 = vector.broadcast %54 : vector<1x8xf32> to vector<128x8xf32>
    %56 = arith.addf %53, %55 : vector<128x8xf32>
    %cst_55 = arith.constant dense<0.000000e+00> : vector<8xf32>
    %57 = vector.multi_reduction <add>, %56, %cst_55 [0] : vector<128x8xf32> to vector<8xf32>
    %58 = vector.shape_cast %57 : vector<8xf32> to vector<1x8xf32>
    %cst_56 = arith.constant 1.280000e+02 : f32
    %59 = vector.broadcast %cst_56 : f32 to vector<1x8xf32>
    %60 = arith.divf %58, %59 : vector<1x8xf32>
    %61 = vector.broadcast %60 : vector<1x8xf32> to vector<128x8xf32>
    %62 = arith.subf %56, %61 : vector<128x8xf32>
    %63 = arith.mulf %62, %62 : vector<128x8xf32>
    %cst_57 = arith.constant dense<0.000000e+00> : vector<8xf32>
    %64 = vector.multi_reduction <add>, %63, %cst_57 [0] : vector<128x8xf32> to vector<8xf32>
    %65 = vector.shape_cast %64 : vector<8xf32> to vector<1x8xf32>
    %cst_58 = arith.constant 1.280000e+02 : f32
    %66 = vector.broadcast %cst_58 : f32 to vector<1x8xf32>
    %67 = arith.divf %65, %66 : vector<1x8xf32>
    %68 = vector.broadcast %60 : vector<1x8xf32> to vector<128x8xf32>
    %69 = arith.subf %56, %68 : vector<128x8xf32>
    %cst_59 = arith.constant 9.99999974E-6 : f32
    %70 = vector.broadcast %cst_59 : f32 to vector<1x8xf32>
    %71 = arith.addf %67, %70 : vector<1x8xf32>
    %72 = math.rsqrt %71 : vector<1x8xf32>
    %73 = vector.broadcast %72 : vector<1x8xf32> to vector<128x8xf32>
    %74 = arith.mulf %69, %73 : vector<128x8xf32>
    %c1_60 = arith.constant 1 : index
    %c0_61 = arith.constant 0 : index
    %75 = vector.load %arg5[%c1_60, %c0_61] : memref<3x8xf32, #tpu.memory_space<vmem>>, vector<1x8xf32>
    %76 = vector.broadcast %75 : vector<1x8xf32> to vector<128x8xf32>
    %77 = arith.mulf %74, %76 : vector<128x8xf32>
    %c2_62 = arith.constant 2 : index
    %c0_63 = arith.constant 0 : index
    %78 = vector.load %arg5[%c2_62, %c0_63] : memref<3x8xf32, #tpu.memory_space<vmem>>, vector<1x8xf32>
    %79 = vector.broadcast %78 : vector<1x8xf32> to vector<128x8xf32>
    %80 = arith.addf %77, %79 : vector<128x8xf32>
    %cst_64 = arith.constant 0.000000e+00 : f32
    %81 = vector.broadcast %cst_64 : f32 to vector<128x8xf32>
    %82 = arith.maximumf %80, %81 : vector<128x8xf32>
    %83 = vector.shape_cast %82 : vector<128x8xf32> to vector<2x8x8x8xf32>
    %cst_65 = arith.constant 0.000000e+00 : f32
    %84 = vector.broadcast %cst_65 : f32 to vector<2x18x18x8xf32>
    %c0_66 = arith.constant 0 : index
    %c0_67 = arith.constant 0 : index
    %c0_68 = arith.constant 0 : index
    %c0_69 = arith.constant 0 : index
    %85 = vector.load %arg10[%c0_66, %c0_67, %c0_68, %c0_69] : memref<2x18x18x8xf32, #tpu.memory_space<vmem>>, vector<2x18x18x8xf32>
    tpu.vector_store %arg10[%c0_66, %c0_67, %c0_68, %c0_69], %84 {strides = array<i32>} : memref<2x18x18x8xf32, #tpu.memory_space<vmem>>, vector<2x18x18x8xf32>,
    %c0_70 = arith.constant 0 : index
    %c0_71 = arith.constant 0 : index
    %c0_72 = arith.constant 0 : index
    %c0_73 = arith.constant 0 : index
    %86 = vector.load %arg3[%c0_70, %c0_71, %c0_72, %c0_73] : memref<2x8x8x8xi32, #tpu.memory_space<vmem>>, vector<2x8x8x8xi32>
    %87 = vector.shape_cast %83 : vector<2x8x8x8xf32> to vector<16x8x8xf32>
    %88 = vector.shape_cast %87 : vector<16x8x8xf32> to vector<16x1x8x8xf32>
    %89 = vector.shape_cast %88 : vector<16x1x8x8xf32> to vector<16x1x8x8xf32>
    %90 = vector.broadcast %89 : vector<16x1x8x8xf32> to vector<16x2x8x8xf32>
    %91 = vector.shape_cast %90 : vector<16x2x8x8xf32> to vector<32x8x8xf32>
    %92 = vector.shape_cast %91 : vector<32x8x8xf32> to vector<32x8x1x8xf32>
    %93 = vector.shape_cast %92 : vector<32x8x1x8xf32> to vector<32x8x1x8xf32>
    %94 = vector.broadcast %93 : vector<32x8x1x8xf32> to vector<32x8x2x8xf32>
    %95 = vector.shape_cast %94 : vector<32x8x2x8xf32> to vector<32x16x8xf32>
    %96 = vector.shape_cast %95 : vector<32x16x8xf32> to vector<2x16x16x8xf32>
    %97 = vector.shape_cast %86 : vector<2x8x8x8xi32> to vector<16x8x8xi32>
    %98 = vector.shape_cast %97 : vector<16x8x8xi32> to vector<16x1x8x8xi32>
    %99 = vector.shape_cast %98 : vector<16x1x8x8xi32> to vector<16x1x8x8xi32>
    %100 = vector.broadcast %99 : vector<16x1x8x8xi32> to vector<16x2x8x8xi32>
    %101 = vector.shape_cast %100 : vector<16x2x8x8xi32> to vector<32x8x8xi32>
    %102 = vector.shape_cast %101 : vector<32x8x8xi32> to vector<32x8x1x8xi32>
    %103 = vector.shape_cast %102 : vector<32x8x1x8xi32> to vector<32x8x1x8xi32>
    %104 = vector.broadcast %103 : vector<32x8x1x8xi32> to vector<32x8x2x8xi32>
    %105 = vector.shape_cast %104 : vector<32x8x2x8xi32> to vector<32x16x8xi32>
    %106 = vector.shape_cast %105 : vector<32x16x8xi32> to vector<2x16x16x8xi32>
    %107 = tpu.iota {dimensions = array<i32: 1>} : vector<2x16x16x8xi32>
    %108 = tpu.iota {dimensions = array<i32: 2>} : vector<2x16x16x8xi32>
    %c16_i32 = arith.constant 16 : i32
    %109 = vector.broadcast %c16_i32 : i32 to vector<2x16x16x8xi32>
    %110 = arith.muli %107, %109 : vector<2x16x16x8xi32>
    %111 = arith.addi %110, %108 : vector<2x16x16x8xi32>
    %112 = arith.cmpi eq, %106, %111 : vector<2x16x16x8xi32>
    %cst_74 = arith.constant 0.000000e+00 : f32
    %113 = vector.broadcast %cst_74 : f32 to vector<2x16x16x8xf32>
    %114 = arith.select %112, %96, %113 : vector<2x16x16x8xi1>, vector<2x16x16x8xf32>
    %c0_75 = arith.constant 0 : index
    %c1_76 = arith.constant 1 : index
    %c1_77 = arith.constant 1 : index
    %c0_78 = arith.constant 0 : index
    %115 = vector.load %arg10[%c0_75, %c1_76, %c1_77, %c0_78] : memref<2x18x18x8xf32, #tpu.memory_space<vmem>>, vector<2x16x16x8xf32>
    tpu.vector_store %arg10[%c0_75, %c1_76, %c1_77, %c0_78], %114 {strides = array<i32>} : memref<2x18x18x8xf32, #tpu.memory_space<vmem>>, vector<2x16x16x8xf32>,
    %c0_79 = arith.constant 0 : index
    %c0_80 = arith.constant 0 : index
    %c0_81 = arith.constant 0 : index
    %c0_82 = arith.constant 0 : index
    %116 = vector.load %arg10[%c0_79, %c0_80, %c0_81, %c0_82] : memref<2x18x18x8xf32, #tpu.memory_space<vmem>>, vector<2x16x16x8xf32>
    %117 = vector.shape_cast %116 : vector<2x16x16x8xf32> to vector<512x8xf32>
    %c0_83 = arith.constant 0 : index
    %c0_84 = arith.constant 0 : index
    %c1_85 = arith.constant 1 : index
    %c0_86 = arith.constant 0 : index
    %118 = vector.load %arg10[%c0_83, %c0_84, %c1_85, %c0_86] : memref<2x18x18x8xf32, #tpu.memory_space<vmem>>, vector<2x16x16x8xf32>
    %119 = vector.shape_cast %118 : vector<2x16x16x8xf32> to vector<512x8xf32>
    %c0_87 = arith.constant 0 : index
    %c0_88 = arith.constant 0 : index
    %c2_89 = arith.constant 2 : index
    %c0_90 = arith.constant 0 : index
    %120 = vector.load %arg10[%c0_87, %c0_88, %c2_89, %c0_90] : memref<2x18x18x8xf32, #tpu.memory_space<vmem>>, vector<2x16x16x8xf32>
    %121 = vector.shape_cast %120 : vector<2x16x16x8xf32> to vector<512x8xf32>
    %c0_91 = arith.constant 0 : index
    %c1_92 = arith.constant 1 : index
    %c0_93 = arith.constant 0 : index
    %c0_94 = arith.constant 0 : index
    %122 = vector.load %arg10[%c0_91, %c1_92, %c0_93, %c0_94] : memref<2x18x18x8xf32, #tpu.memory_space<vmem>>, vector<2x16x16x8xf32>
    %123 = vector.shape_cast %122 : vector<2x16x16x8xf32> to vector<512x8xf32>
    %c0_95 = arith.constant 0 : index
    %c1_96 = arith.constant 1 : index
    %c1_97 = arith.constant 1 : index
    %c0_98 = arith.constant 0 : index
    %124 = vector.load %arg10[%c0_95, %c1_96, %c1_97, %c0_98] : memref<2x18x18x8xf32, #tpu.memory_space<vmem>>, vector<2x16x16x8xf32>
    %125 = vector.shape_cast %124 : vector<2x16x16x8xf32> to vector<512x8xf32>
    %c0_99 = arith.constant 0 : index
    %c1_100 = arith.constant 1 : index
    %c2_101 = arith.constant 2 : index
    %c0_102 = arith.constant 0 : index
    %126 = vector.load %arg10[%c0_99, %c1_100, %c2_101, %c0_102] : memref<2x18x18x8xf32, #tpu.memory_space<vmem>>, vector<2x16x16x8xf32>
    %127 = vector.shape_cast %126 : vector<2x16x16x8xf32> to vector<512x8xf32>
    %c0_103 = arith.constant 0 : index
    %c2_104 = arith.constant 2 : index
    %c0_105 = arith.constant 0 : index
    %c0_106 = arith.constant 0 : index
    %128 = vector.load %arg10[%c0_103, %c2_104, %c0_105, %c0_106] : memref<2x18x18x8xf32, #tpu.memory_space<vmem>>, vector<2x16x16x8xf32>
    %129 = vector.shape_cast %128 : vector<2x16x16x8xf32> to vector<512x8xf32>
    %c0_107 = arith.constant 0 : index
    %c2_108 = arith.constant 2 : index
    %c1_109 = arith.constant 1 : index
    %c0_110 = arith.constant 0 : index
    %130 = vector.load %arg10[%c0_107, %c2_108, %c1_109, %c0_110] : memref<2x18x18x8xf32, #tpu.memory_space<vmem>>, vector<2x16x16x8xf32>
    %131 = vector.shape_cast %130 : vector<2x16x16x8xf32> to vector<512x8xf32>
    %c0_111 = arith.constant 0 : index
    %c2_112 = arith.constant 2 : index
    %c2_113 = arith.constant 2 : index
    %c0_114 = arith.constant 0 : index
    %132 = vector.load %arg10[%c0_111, %c2_112, %c2_113, %c0_114] : memref<2x18x18x8xf32, #tpu.memory_space<vmem>>, vector<2x16x16x8xf32>
    %133 = vector.shape_cast %132 : vector<2x16x16x8xf32> to vector<512x8xf32>
    %134 = tpu.concatenate %117, %119, %121, %123, %125, %127, %129, %131, %133 in 1 : vector<512x8xf32>, vector<512x8xf32>, vector<512x8xf32>, vector<512x8xf32>, vector<512x8xf32>, vector<512x8xf32>, vector<512x8xf32>, vector<512x8xf32>, vector<512x8xf32> -> vector<512x72xf32>
    %c0_115 = arith.constant 0 : index
    %c0_116 = arith.constant 0 : index
    %135 = vector.load %arg6[%c0_115, %c0_116] : memref<4x72xf32, #tpu.memory_space<vmem>>, vector<4x72xf32>
    %cst_117 = arith.constant dense<0.000000e+00> : vector<4x512xf32>
    %136 = tpu.matmul %135, %134, %cst_117 {dimension_numbers = #tpu.dot_dimension_numbers<[1], [1], [0], [0], [0, 0, 1, 0], [], []>} : vector<4x72xf32>, vector<512x72xf32>, vector<4x512xf32> -> vector<4x512xf32>
    %c0_118 = arith.constant 0 : index
    %c0_119 = arith.constant 0 : index
    %137 = vector.load %arg7[%c0_118, %c0_119] : memref<4x3xf32, #tpu.memory_space<vmem>>, vector<4x1xf32>
    %138 = vector.broadcast %137 : vector<4x1xf32> to vector<4x512xf32>
    %139 = arith.addf %136, %138 : vector<4x512xf32>
    %cst_120 = arith.constant dense<0.000000e+00> : vector<4xf32>
    %140 = vector.multi_reduction <add>, %139, %cst_120 [1] : vector<4x512xf32> to vector<4xf32>
    %141 = vector.shape_cast %140 : vector<4xf32> to vector<4x1xf32>
    %cst_121 = arith.constant 5.120000e+02 : f32
    %142 = vector.broadcast %cst_121 : f32 to vector<4x1xf32>
    %143 = arith.divf %141, %142 : vector<4x1xf32>
    %144 = vector.broadcast %143 : vector<4x1xf32> to vector<4x512xf32>
    %145 = arith.subf %139, %144 : vector<4x512xf32>
    %146 = arith.mulf %145, %145 : vector<4x512xf32>
    %cst_122 = arith.constant dense<0.000000e+00> : vector<4xf32>
    %147 = vector.multi_reduction <add>, %146, %cst_122 [1] : vector<4x512xf32> to vector<4xf32>
    %148 = vector.shape_cast %147 : vector<4xf32> to vector<4x1xf32>
    %cst_123 = arith.constant 5.120000e+02 : f32
    %149 = vector.broadcast %cst_123 : f32 to vector<4x1xf32>
    %150 = arith.divf %148, %149 : vector<4x1xf32>
    %151 = vector.broadcast %143 : vector<4x1xf32> to vector<4x512xf32>
    %152 = arith.subf %139, %151 : vector<4x512xf32>
    %cst_124 = arith.constant 9.99999974E-6 : f32
    %153 = vector.broadcast %cst_124 : f32 to vector<4x1xf32>
    %154 = arith.addf %150, %153 : vector<4x1xf32>
    %155 = math.rsqrt %154 : vector<4x1xf32>
    %156 = vector.broadcast %155 : vector<4x1xf32> to vector<4x512xf32>
    %157 = arith.mulf %152, %156 : vector<4x512xf32>
    %c0_125 = arith.constant 0 : index
    %c1_126 = arith.constant 1 : index
    %158 = vector.load %arg7[%c0_125, %c1_126] : memref<4x3xf32, #tpu.memory_space<vmem>>, vector<4x1xf32>
    %159 = vector.broadcast %158 : vector<4x1xf32> to vector<4x512xf32>
    %160 = arith.mulf %157, %159 : vector<4x512xf32>
    %c0_127 = arith.constant 0 : index
    %c2_128 = arith.constant 2 : index
    %161 = vector.load %arg7[%c0_127, %c2_128] : memref<4x3xf32, #tpu.memory_space<vmem>>, vector<4x1xf32>
    %162 = vector.broadcast %161 : vector<4x1xf32> to vector<4x512xf32>
    %163 = arith.addf %160, %162 : vector<4x512xf32>
    %cst_129 = arith.constant 0.000000e+00 : f32
    %164 = vector.broadcast %cst_129 : f32 to vector<4x512xf32>
    %165 = arith.maximumf %163, %164 : vector<4x512xf32>
    %c0_130 = arith.constant 0 : index
    %c0_131 = arith.constant 0 : index
    %166 = vector.load %arg8[%c0_130, %c0_131] : memref<4x512xf32, #tpu.memory_space<vmem>>, vector<4x512xf32>
    tpu.vector_store %arg8[%c0_130, %c0_131], %165 {strides = array<i32>} : memref<4x512xf32, #tpu.memory_space<vmem>>, vector<4x512xf32>,
    return
  }
  func.func @transform_0(%arg0: i32) -> (i32, i32, i32, i32) {
    %c0_i32 = arith.constant 0 : i32
    %c0_i32_0 = arith.constant 0 : i32
    %c0_i32_1 = arith.constant 0 : i32
    %c0_i32_2 = arith.constant 0 : i32
    %c0_i32_3 = arith.constant 0 : i32
    return %c0_i32, %c0_i32_0, %c0_i32_1, %c0_i32_2 : i32, i32, i32, i32
  }
  func.func @transform_1(%arg0: i32) -> (i32, i32, i32, i32) {
    %c0_i32 = arith.constant 0 : i32
    %c0_i32_0 = arith.constant 0 : i32
    %c0_i32_1 = arith.constant 0 : i32
    %c0_i32_2 = arith.constant 0 : i32
    %c0_i32_3 = arith.constant 0 : i32
    return %c0_i32, %c0_i32_0, %c0_i32_1, %c0_i32_2 : i32, i32, i32, i32
  }
  func.func @transform_2(%arg0: i32) -> (i32, i32, i32, i32) {
    %c0_i32 = arith.constant 0 : i32
    %c0_i32_0 = arith.constant 0 : i32
    %c0_i32_1 = arith.constant 0 : i32
    %c0_i32_2 = arith.constant 0 : i32
    %c0_i32_3 = arith.constant 0 : i32
    return %c0_i32, %c0_i32_0, %c0_i32_1, %c0_i32_2 : i32, i32, i32, i32
  }
  func.func @transform_3(%arg0: i32) -> (i32, i32) {
    %c0_i32 = arith.constant 0 : i32
    %c0_i32_0 = arith.constant 0 : i32
    %c0_i32_1 = arith.constant 0 : i32
    return %c0_i32, %c0_i32_0 : i32, i32
  }
  func.func @transform_4(%arg0: i32) -> (i32, i32) {
    %c0_i32 = arith.constant 0 : i32
    %c0_i32_0 = arith.constant 0 : i32
    %c0_i32_1 = arith.constant 0 : i32
    return %c0_i32, %c0_i32_0 : i32, i32
  }
  func.func @transform_5(%arg0: i32) -> (i32, i32) {
    %c0_i32 = arith.constant 0 : i32
    %c0_i32_0 = arith.constant 0 : i32
    %c0_i32_1 = arith.constant 0 : i32
    return %c0_i32, %c0_i32_0 : i32, i32
  }
  func.func @transform_6(%arg0: i32) -> (i32, i32) {
    %c0_i32 = arith.constant 0 : i32
    %c0_i32_0 = arith.constant 0 : i32
    %c0_i32_1 = arith.constant 0 : i32
    return %c0_i32, %c0_i32_0 : i32, i32
  }
  func.func @transform_7(%arg0: i32) -> (i32, i32) {
    %c0_i32 = arith.constant 0 : i32
    %c0_i32_0 = arith.constant 0 : i32
    %c0_i32_1 = arith.constant 0 : i32
    return %c0_i32, %c0_i32_0 : i32, i32
  }
}

</mosaic_0001>

<llo_original>
// kernel: ae_decoder_forward.1
$region0: #{ae_decoder_forward.1}
  #allocation0 [shape = 'u32[]', space=smem, size = 0x4, offset = 0x4, fixed_abs, tag = 'smem constant byte address 0x4 - core index']
  #allocation1 [shape = 'u32[144,128]{1,0:T(1,128)}', space=vmem, size = 0x12000, scoped, tag = 'internal scratch']
  #allocation2 [shape = 'f32[2,10,10,16]{3,2,1,0:T(8,128)}', space=vmem, size = 0x28000, scoped, tag = 'scratch operand']
  #allocation3 [shape = 'f32[2,18,18,8]{3,2,1,0:T(8,128)}', space=vmem, size = 0x6c000, scoped, tag = 'scratch operand']
  %s0 = inlined_call_operand.vmem [shape: f32[2,4,4,16], index: 0, kind: input, shape index: {}]
  %s1 = inlined_call_operand.vmem [shape: s32[2,4,4,16], index: 1, kind: input, shape index: {}]
  %s2 = inlined_call_operand.vmem [shape: s32[2,8,8,8], index: 2, kind: input, shape index: {}]
  %s3 = inlined_call_operand.vmem [shape: f32[144,8], index: 3, kind: input, shape index: {}]
  %s4 = inlined_call_operand.vmem [shape: f32[3,8], index: 4, kind: input, shape index: {}]
  %s5 = inlined_call_operand.vmem [shape: f32[4,72], index: 5, kind: input, shape index: {}]
  %s6 = inlined_call_operand.vmem [shape: f32[4,3], index: 6, kind: input, shape index: {}]
  %s7 = inlined_call_operand.vmem [shape: f32[4,512], index: 7, kind: output, shape index: {}]
  %s8 = sld [smem:[#allocation0]]
  $region38: #{ae_decoder_forward.1} parent=0
    _
  %s10 = ssub.s32 1, %s8
  %s11 = scalar_select 0, %s10, %s8
  // Predicated region
  $region2: #{ae_decoder_forward.1} parent=0 // pred_check
    _
  $region3: #{ae_decoder_forward.1} parent=0 // pred_check_branch
    %13 = sbr.rel (0) target = $region5
  $region4: #{ae_decoder_forward.1} parent=0 // pred_region
    _
  $region5: #{ae_decoder_forward.1} parent=0 // pred_fallthru
    _
  // Predicated region
  $region6: #{ae_decoder_forward.1} parent=0 // pred_check
    _
  $region7: #{ae_decoder_forward.1} parent=0 // pred_check_branch
    %15 = sbr.rel (0) target = $region9
  $region8: #{ae_decoder_forward.1} parent=0 // pred_region
    _
  $region9: #{ae_decoder_forward.1} parent=0 // pred_fallthru
    _
  // Predicated region
  $region10: #{ae_decoder_forward.1} parent=0 // pred_check
    _
  $region11: #{ae_decoder_forward.1} parent=0 // pred_check_branch
    %17 = sbr.rel (0) target = $region13
  $region12: #{ae_decoder_forward.1} parent=0 // pred_region
    _
  $region13: #{ae_decoder_forward.1} parent=0 // pred_fallthru
    _
  // Predicated region
  $region14: #{ae_decoder_forward.1} parent=0 // pred_check
    _
  $region15: #{ae_decoder_forward.1} parent=0 // pred_check_branch
    %19 = sbr.rel (0) target = $region17
  $region16: #{ae_decoder_forward.1} parent=0 // pred_region
    _
  $region17: #{ae_decoder_forward.1} parent=0 // pred_fallthru
    _
  // Predicated region
  $region18: #{ae_decoder_forward.1} parent=0 // pred_check
    _
  $region19: #{ae_decoder_forward.1} parent=0 // pred_check_branch
    %21 = sbr.rel (0) target = $region21
  $region20: #{ae_decoder_forward.1} parent=0 // pred_region
    _
  $region21: #{ae_decoder_forward.1} parent=0 // pred_fallthru
    _
  // Predicated region
  $region22: #{ae_decoder_forward.1} parent=0 // pred_check
    _
  $region23: #{ae_decoder_forward.1} parent=0 // pred_check_branch
    %23 = sbr.rel (0) target = $region25
  $region24: #{ae_decoder_forward.1} parent=0 // pred_region
    _
  $region25: #{ae_decoder_forward.1} parent=0 // pred_fallthru
    _
  // Predicated region
  $region26: #{ae_decoder_forward.1} parent=0 // pred_check
    _
  $region27: #{ae_decoder_forward.1} parent=0 // pred_check_branch
    %25 = sbr.rel (0) target = $region29
  $region28: #{ae_decoder_forward.1} parent=0 // pred_region
    _
  $region29: #{ae_decoder_forward.1} parent=0 // pred_fallthru
    _
  %vm26 = vcmask 130048
  %27 = vst.msk [vmem:[#allocation2] sm:$0xff] %vm26, 0.0
  %vm28 = vcmask 123904
  %29 = vst.msk [vmem:[#allocation2 + $0x8] sm:$0x3] %vm28, 0.0
  %30 = vst.msk [vmem:[#allocation2 + $0x10] sm:$0xff] %vm26, 0.0
  %31 = vst.msk [vmem:[#allocation2 + $0x18] sm:$0x3] %vm28, 0.0
  %32 = vst.msk [vmem:[#allocation2 + $0x20] sm:$0xff] %vm26, 0.0
  %33 = vst.msk [vmem:[#allocation2 + $0x28] sm:$0x3] %vm28, 0.0
  %34 = vst.msk [vmem:[#allocation2 + $0x30] sm:$0xff] %vm26, 0.0
  %35 = vst.msk [vmem:[#allocation2 + $0x38] sm:$0x3] %vm28, 0.0
  %36 = vst.msk [vmem:[#allocation2 + $0x40] sm:$0xff] %vm26, 0.0
  %37 = vst.msk [vmem:[#allocation2 + $0x48] sm:$0x3] %vm28, 0.0
  %38 = vst.msk [vmem:[#allocation2 + $0x50] sm:$0xff] %vm26, 0.0
  %39 = vst.msk [vmem:[#allocation2 + $0x58] sm:$0x3] %vm28, 0.0
  %40 = vst.msk [vmem:[#allocation2 + $0x60] sm:$0xff] %vm26, 0.0
  %41 = vst.msk [vmem:[#allocation2 + $0x68] sm:$0x3] %vm28, 0.0
  %42 = vst.msk [vmem:[#allocation2 + $0x70] sm:$0xff] %vm26, 0.0
  %43 = vst.msk [vmem:[#allocation2 + $0x78] sm:$0x3] %vm28, 0.0
  %44 = vst.msk [vmem:[#allocation2 + $0x80] sm:$0xff] %vm26, 0.0
  %45 = vst.msk [vmem:[#allocation2 + $0x88] sm:$0x3] %vm28, 0.0
  %46 = vst.msk [vmem:[#allocation2 + $0x90] sm:$0xff] %vm26, 0.0
  %47 = vst.msk [vmem:[#allocation2 + $0x98] sm:$0x3] %vm28, 0.0
  %48 = vst.msk [vmem:[#allocation2 + $0xa0] sm:$0xff] %vm26, 0.0
  %49 = vst.msk [vmem:[#allocation2 + $0xa8] sm:$0x3] %vm28, 0.0
  %50 = vst.msk [vmem:[#allocation2 + $0xb0] sm:$0xff] %vm26, 0.0
  %51 = vst.msk [vmem:[#allocation2 + $0xb8] sm:$0x3] %vm28, 0.0
  %52 = vst.msk [vmem:[#allocation2 + $0xc0] sm:$0xff] %vm26, 0.0
  %53 = vst.msk [vmem:[#allocation2 + $0xc8] sm:$0x3] %vm28, 0.0
  %54 = vst.msk [vmem:[#allocation2 + $0xd0] sm:$0xff] %vm26, 0.0
  %55 = vst.msk [vmem:[#allocation2 + $0xd8] sm:$0x3] %vm28, 0.0
  %56 = vst.msk [vmem:[#allocation2 + $0xe0] sm:$0xff] %vm26, 0.0
  %57 = vst.msk [vmem:[#allocation2 + $0xe8] sm:$0x3] %vm28, 0.0
  %58 = vst.msk [vmem:[#allocation2 + $0xf0] sm:$0xff] %vm26, 0.0
  %59 = vst.msk [vmem:[#allocation2 + $0xf8] sm:$0x3] %vm28, 0.0
  %60 = vst.msk [vmem:[#allocation2 + $0x100] sm:$0xff] %vm26, 0.0
  %61 = vst.msk [vmem:[#allocation2 + $0x108] sm:$0x3] %vm28, 0.0
  %62 = vst.msk [vmem:[#allocation2 + $0x110] sm:$0xff] %vm26, 0.0
  %63 = vst.msk [vmem:[#allocation2 + $0x118] sm:$0x3] %vm28, 0.0
  %64 = vst.msk [vmem:[#allocation2 + $0x120] sm:$0xff] %vm26, 0.0
  %65 = vst.msk [vmem:[#allocation2 + $0x128] sm:$0x3] %vm28, 0.0
  %66 = vst.msk [vmem:[#allocation2 + $0x130] sm:$0xff] %vm26, 0.0
  %67 = vst.msk [vmem:[#allocation2 + $0x138] sm:$0x3] %vm28, 0.0
  %v68 = vld [vmem:[%s0] sm:$0xf]
  %v69 = vld [vmem:[%s0 + $0x4] sm:$0xf]
  %v70 = vld [vmem:[%s0 + $0x8] sm:$0xf]
  %v71 = vld [vmem:[%s0 + $0xc] sm:$0xf]
  %v72 = vld [vmem:[%s0 + $0x10] sm:$0xf]
  %v73 = vld [vmem:[%s0 + $0x14] sm:$0xf]
  %v74 = vld [vmem:[%s0 + $0x18] sm:$0xf]
  %v75 = vld [vmem:[%s0 + $0x1c] sm:$0xf]
  %v76 = vld [vmem:[%s1] sm:$0xf]
  %v77 = vld [vmem:[%s1 + $0x4] sm:$0xf]
  %v78 = vld [vmem:[%s1 + $0x8] sm:$0xf]
  %v79 = vld [vmem:[%s1 + $0xc] sm:$0xf]
  %v80 = vld [vmem:[%s1 + $0x10] sm:$0xf]
  %v81 = vld [vmem:[%s1 + $0x14] sm:$0xf]
  %v82 = vld [vmem:[%s1 + $0x18] sm:$0xf]
  %v83 = vld [vmem:[%s1 + $0x1c] sm:$0xf]
  %v93 = vunpack.c.l.s4 1966171168
  %v94 = vunpack.c.0.s8 %v93
  %v95 = vlaneseq
  %v96 = vshrl.u32 %v95, 7
  %v97 = vsub.s32 %v94, %v96
  %v98 = vrot.slane %v68, %v97
  %v99 = vcombine.high %v98, %v98
  %v101 = vunpack.c.l.s4 1966171168
  %v102 = vunpack.c.0.s8 %v101
  %v103 = vlaneseq
  %v104 = vshrl.u32 %v103, 7
  %v105 = vsub.s32 %v102, %v104
  %v106 = vrot.slane %v98, %v105
  %v108 = vunpack.c.l.s4 1966171168
  %v109 = vunpack.c.0.s8 %v108
  %v110 = vlaneseq
  %v111 = vshrl.u32 %v110, 7
  %v112 = vsub.s32 %v109, %v111
  %v113 = vrot.slane %v99, %v112
  %v114 = vcombine.high %v106, %v106
  %v115 = vcombine.high %v113, %v113
  %v117 = vunpack.c.l.s4 1966171168
  %v118 = vunpack.c.0.s8 %v117
  %v119 = vlaneseq
  %v120 = vshrl.u32 %v119, 7
  %v121 = vsub.s32 %v118, %v120
  %v122 = vrot.slane %v69, %v121
  %v123 = vcombine.high %v122, %v122
  %v125 = vunpack.c.l.s4 1966171168
  %v126 = vunpack.c.0.s8 %v125
  %v127 = vlaneseq
  %v128 = vshrl.u32 %v127, 7
  %v129 = vsub.s32 %v126, %v128
  %v130 = vrot.slane %v122, %v129
  %v132 = vunpack.c.l.s4 1966171168
  %v133 = vunpack.c.0.s8 %v132
  %v134 = vlaneseq
  %v135 = vshrl.u32 %v134, 7
  %v136 = vsub.s32 %v133, %v135
  %v137 = vrot.slane %v123, %v136
  %v138 = vcombine.high %v130, %v130
  %v139 = vcombine.high %v137, %v137
  %v141 = vunpack.c.l.s4 1966171168
  %v142 = vunpack.c.0.s8 %v141
  %v143 = vlaneseq
  %v144 = vshrl.u32 %v143, 7
  %v145 = vsub.s32 %v142, %v144
  %v146 = vrot.slane %v70, %v145
  %v147 = vcombine.high %v146, %v146
  %v149 = vunpack.c.l.s4 1966171168
  %v150 = vunpack.c.0.s8 %v149
  %v151 = vlaneseq
  %v152 = vshrl.u32 %v151, 7
  %v153 = vsub.s32 %v150, %v152
  %v154 = vrot.slane %v146, %v153
  %v156 = vunpack.c.l.s4 1966171168
  %v157 = vunpack.c.0.s8 %v156
  %v158 = vlaneseq
  %v159 = vshrl.u32 %v158, 7
  %v160 = vsub.s32 %v157, %v159
  %v161 = vrot.slane %v147, %v160
  %v162 = vcombine.high %v154, %v154
  %v163 = vcombine.high %v161, %v161
  %v165 = vunpack.c.l.s4 1966171168
  %v166 = vunpack.c.0.s8 %v165
  %v167 = vlaneseq
  %v168 = vshrl.u32 %v167, 7
  %v169 = vsub.s32 %v166, %v168
  %v170 = vrot.slane %v71, %v169
  %v171 = vcombine.high %v170, %v170
  %v173 = vunpack.c.l.s4 1966171168
  %v174 = vunpack.c.0.s8 %v173
  %v175 = vlaneseq
  %v176 = vshrl.u32 %v175, 7
  %v177 = vsub.s32 %v174, %v176
  %v178 = vrot.slane %v170, %v177
  %v180 = vunpack.c.l.s4 1966171168
  %v181 = vunpack.c.0.s8 %v180
  %v182 = vlaneseq
  %v183 = vshrl.u32 %v182, 7
  %v184 = vsub.s32 %v181, %v183
  %v185 = vrot.slane %v171, %v184
  %v186 = vcombine.high %v178, %v178
  %v187 = vcombine.high %v185, %v185
  %v189 = vunpack.c.l.s4 1966171168
  %v190 = vunpack.c.0.s8 %v189
  %v191 = vlaneseq
  %v192 = vshrl.u32 %v191, 7
  %v193 = vsub.s32 %v190, %v192
  %v194 = vrot.slane %v72, %v193
  %v195 = vcombine.high %v194, %v194
  %v197 = vunpack.c.l.s4 1966171168
  %v198 = vunpack.c.0.s8 %v197
  %v199 = vlaneseq
  %v200 = vshrl.u32 %v199, 7
  %v201 = vsub.s32 %v198, %v200
  %v202 = vrot.slane %v194, %v201
  %v204 = vunpack.c.l.s4 1966171168
  %v205 = vunpack.c.0.s8 %v204
  %v206 = vlaneseq
  %v207 = vshrl.u32 %v206, 7
  %v208 = vsub.s32 %v205, %v207
  %v209 = vrot.slane %v195, %v208
  %v210 = vcombine.high %v202, %v202
  %v211 = vcombine.high %v209, %v209
  %v213 = vunpack.c.l.s4 1966171168
  %v214 = vunpack.c.0.s8 %v213
  %v215 = vlaneseq
  %v216 = vshrl.u32 %v215, 7
  %v217 = vsub.s32 %v214, %v216
  %v218 = vrot.slane %v73, %v217
  %v219 = vcombine.high %v218, %v218
  %v221 = vunpack.c.l.s4 1966171168
  %v222 = vunpack.c.0.s8 %v221
  %v223 = vlaneseq
  %v224 = vshrl.u32 %v223, 7
  %v225 = vsub.s32 %v222, %v224
  %v226 = vrot.slane %v218, %v225
  %v228 = vunpack.c.l.s4 1966171168
  %v229 = vunpack.c.0.s8 %v228
  %v230 = vlaneseq
  %v231 = vshrl.u32 %v230, 7
  %v232 = vsub.s32 %v229, %v231
  %v233 = vrot.slane %v219, %v232
  %v234 = vcombine.high %v226, %v226
  %v235 = vcombine.high %v233, %v233
  %v237 = vunpack.c.l.s4 1966171168
  %v238 = vunpack.c.0.s8 %v237
  %v239 = vlaneseq
  %v240 = vshrl.u32 %v239, 7
  %v241 = vsub.s32 %v238, %v240
  %v242 = vrot.slane %v74, %v241
  %v243 = vcombine.high %v242, %v242
  %v245 = vunpack.c.l.s4 1966171168
  %v246 = vunpack.c.0.s8 %v245
  %v247 = vlaneseq
  %v248 = vshrl.u32 %v247, 7
  %v249 = vsub.s32 %v246, %v248
  %v250 = vrot.slane %v242, %v249
  %v252 = vunpack.c.l.s4 1966171168
  %v253 = vunpack.c.0.s8 %v252
  %v254 = vlaneseq
  %v255 = vshrl.u32 %v254, 7
  %v256 = vsub.s32 %v253, %v255
  %v257 = vrot.slane %v243, %v256
  %v258 = vcombine.high %v250, %v250
  %v259 = vcombine.high %v257, %v257
  %v261 = vunpack.c.l.s4 1966171168
  %v262 = vunpack.c.0.s8 %v261
  %v263 = vlaneseq
  %v264 = vshrl.u32 %v263, 7
  %v265 = vsub.s32 %v262, %v264
  %v266 = vrot.slane %v75, %v265
  %v267 = vcombine.high %v266, %v266
  %v269 = vunpack.c.l.s4 1966171168
  %v270 = vunpack.c.0.s8 %v269
  %v271 = vlaneseq
  %v272 = vshrl.u32 %v271, 7
  %v273 = vsub.s32 %v270, %v272
  %v274 = vrot.slane %v266, %v273
  %v276 = vunpack.c.l.s4 1966171168
  %v277 = vunpack.c.0.s8 %v276
  %v278 = vlaneseq
  %v279 = vshrl.u32 %v278, 7
  %v280 = vsub.s32 %v277, %v279
  %v281 = vrot.slane %v267, %v280
  %v282 = vcombine.high %v274, %v274
  %v283 = vcombine.high %v281, %v281
  %v284 = vlaneseq
  %v285 = vshrl.u32 %v284, 7
  %v286 = vsub.s32 0, %v285
  %v287 = vrot.slane %v106, %v286
  %v288 = vlaneseq
  %v289 = vshrl.u32 %v288, 7
  %v290 = vsub.s32 0, %v289
  %v291 = vrot.slane %v113, %v290
  %v292 = vlaneseq
  %v293 = vshrl.u32 %v292, 7
  %v294 = vsub.s32 0, %v293
  %v295 = vrot.slane %v114, %v294
  %v296 = vlaneseq
  %v297 = vshrl.u32 %v296, 7
  %v298 = vsub.s32 0, %v297
  %v299 = vrot.slane %v115, %v298
  %v300 = vlaneseq
  %v301 = vshrl.u32 %v300, 7
  %v302 = vsub.s32 0, %v301
  %v303 = vrot.slane %v130, %v302
  %v304 = vlaneseq
  %v305 = vshrl.u32 %v304, 7
  %v306 = vsub.s32 0, %v305
  %v307 = vrot.slane %v137, %v306
  %v308 = vlaneseq
  %v309 = vshrl.u32 %v308, 7
  %v310 = vsub.s32 0, %v309
  %v311 = vrot.slane %v138, %v310
  %v312 = vlaneseq
  %v313 = vshrl.u32 %v312, 7
  %v314 = vsub.s32 0, %v313
  %v315 = vrot.slane %v139, %v314
  %v316 = vlaneseq
  %v317 = vshrl.u32 %v316, 7
  %v318 = vsub.s32 0, %v317
  %v319 = vrot.slane %v154, %v318
  %v320 = vlaneseq
  %v321 = vshrl.u32 %v320, 7
  %v322 = vsub.s32 0, %v321
  %v323 = vrot.slane %v161, %v322
  %v324 = vlaneseq
  %v325 = vshrl.u32 %v324, 7
  %v326 = vsub.s32 0, %v325
  %v327 = vrot.slane %v162, %v326
  %v328 = vlaneseq
  %v329 = vshrl.u32 %v328, 7
  %v330 = vsub.s32 0, %v329
  %v331 = vrot.slane %v163, %v330
  %v332 = vlaneseq
  %v333 = vshrl.u32 %v332, 7
  %v334 = vsub.s32 0, %v333
  %v335 = vrot.slane %v178, %v334
  %v336 = vlaneseq
  %v337 = vshrl.u32 %v336, 7
  %v338 = vsub.s32 0, %v337
  %v339 = vrot.slane %v185, %v338
  %v340 = vlaneseq
  %v341 = vshrl.u32 %v340, 7
  %v342 = vsub.s32 0, %v341
  %v343 = vrot.slane %v186, %v342
  %v344 = vlaneseq
  %v345 = vshrl.u32 %v344, 7
  %v346 = vsub.s32 0, %v345
  %v347 = vrot.slane %v187, %v346
  %v348 = vlaneseq
  %v349 = vshrl.u32 %v348, 7
  %v350 = vsub.s32 0, %v349
  %v351 = vrot.slane %v202, %v350
  %v352 = vlaneseq
  %v353 = vshrl.u32 %v352, 7
  %v354 = vsub.s32 0, %v353
  %v355 = vrot.slane %v209, %v354
  %v356 = vlaneseq
  %v357 = vshrl.u32 %v356, 7
  %v358 = vsub.s32 0, %v357
  %v359 = vrot.slane %v210, %v358
  %v360 = vlaneseq
  %v361 = vshrl.u32 %v360, 7
  %v362 = vsub.s32 0, %v361
  %v363 = vrot.slane %v211, %v362
  %v364 = vlaneseq
  %v365 = vshrl.u32 %v364, 7
  %v366 = vsub.s32 0, %v365
  %v367 = vrot.slane %v226, %v366
  %v368 = vlaneseq
  %v369 = vshrl.u32 %v368, 7
  %v370 = vsub.s32 0, %v369
  %v371 = vrot.slane %v233, %v370
  %v372 = vlaneseq
  %v373 = vshrl.u32 %v372, 7
  %v374 = vsub.s32 0, %v373
  %v375 = vrot.slane %v234, %v374
  %v376 = vlaneseq
  %v377 = vshrl.u32 %v376, 7
  %v378 = vsub.s32 0, %v377
  %v379 = vrot.slane %v235, %v378
  %v380 = vlaneseq
  %v381 = vshrl.u32 %v380, 7
  %v382 = vsub.s32 0, %v381
  %v383 = vrot.slane %v250, %v382
  %v384 = vlaneseq
  %v385 = vshrl.u32 %v384, 7
  %v386 = vsub.s32 0, %v385
  %v387 = vrot.slane %v257, %v386
  %v388 = vlaneseq
  %v389 = vshrl.u32 %v388, 7
  %v390 = vsub.s32 0, %v389
  %v391 = vrot.slane %v258, %v390
  %v392 = vlaneseq
  %v393 = vshrl.u32 %v392, 7
  %v394 = vsub.s32 0, %v393
  %v395 = vrot.slane %v259, %v394
  %v396 = vlaneseq
  %v397 = vshrl.u32 %v396, 7
  %v398 = vsub.s32 0, %v397
  %v399 = vrot.slane %v274, %v398
  %v400 = vlaneseq
  %v401 = vshrl.u32 %v400, 7
  %v402 = vsub.s32 0, %v401
  %v403 = vrot.slane %v281, %v402
  %v404 = vlaneseq
  %v405 = vshrl.u32 %v404, 7
  %v406 = vsub.s32 0, %v405
  %v407 = vrot.slane %v282, %v406
  %v408 = vlaneseq
  %v409 = vshrl.u32 %v408, 7
  %v410 = vsub.s32 0, %v409
  %v411 = vrot.slane %v283, %v410
  %v445 = vunpack.c.l.s4 1966171168
  %v446 = vunpack.c.0.s8 %v445
  %v447 = vlaneseq
  %v448 = vshrl.u32 %v447, 7
  %v449 = vsub.s32 %v446, %v448
  %v450 = vrot.slane %v76, %v449
  %v451 = vcombine.high %v450, %v450
  %v453 = vunpack.c.l.s4 1966171168
  %v454 = vunpack.c.0.s8 %v453
  %v455 = vlaneseq
  %v456 = vshrl.u32 %v455, 7
  %v457 = vsub.s32 %v454, %v456
  %v458 = vrot.slane %v450, %v457
  %v460 = vunpack.c.l.s4 1966171168
  %v461 = vunpack.c.0.s8 %v460
  %v462 = vlaneseq
  %v463 = vshrl.u32 %v462, 7
  %v464 = vsub.s32 %v461, %v463
  %v465 = vrot.slane %v451, %v464
  %v466 = vcombine.high %v458, %v458
  %v467 = vcombine.high %v465, %v465
  %v469 = vunpack.c.l.s4 1966171168
  %v470 = vunpack.c.0.s8 %v469
  %v471 = vlaneseq
  %v472 = vshrl.u32 %v471, 7
  %v473 = vsub.s32 %v470, %v472
  %v474 = vrot.slane %v77, %v473
  %v475 = vcombine.high %v474, %v474
  %v477 = vunpack.c.l.s4 1966171168
  %v478 = vunpack.c.0.s8 %v477
  %v479 = vlaneseq
  %v480 = vshrl.u32 %v479, 7
  %v481 = vsub.s32 %v478, %v480
  %v482 = vrot.slane %v474, %v481
  %v484 = vunpack.c.l.s4 1966171168
  %v485 = vunpack.c.0.s8 %v484
  %v486 = vlaneseq
  %v487 = vshrl.u32 %v486, 7
  %v488 = vsub.s32 %v485, %v487
  %v489 = vrot.slane %v475, %v488
  %v490 = vcombine.high %v482, %v482
  %v491 = vcombine.high %v489, %v489
  %v493 = vunpack.c.l.s4 1966171168
  %v494 = vunpack.c.0.s8 %v493
  %v495 = vlaneseq
  %v496 = vshrl.u32 %v495, 7
  %v497 = vsub.s32 %v494, %v496
  %v498 = vrot.slane %v78, %v497
  %v499 = vcombine.high %v498, %v498
  %v501 = vunpack.c.l.s4 1966171168
  %v502 = vunpack.c.0.s8 %v501
  %v503 = vlaneseq
  %v504 = vshrl.u32 %v503, 7
  %v505 = vsub.s32 %v502, %v504
  %v506 = vrot.slane %v498, %v505
  %v508 = vunpack.c.l.s4 1966171168
  %v509 = vunpack.c.0.s8 %v508
  %v510 = vlaneseq
  %v511 = vshrl.u32 %v510, 7
  %v512 = vsub.s32 %v509, %v511
  %v513 = vrot.slane %v499, %v512
  %v514 = vcombine.high %v506, %v506
  %v515 = vcombine.high %v513, %v513
  %v517 = vunpack.c.l.s4 1966171168
  %v518 = vunpack.c.0.s8 %v517
  %v519 = vlaneseq
  %v520 = vshrl.u32 %v519, 7
  %v521 = vsub.s32 %v518, %v520
  %v522 = vrot.slane %v79, %v521
  %v523 = vcombine.high %v522, %v522
  %v525 = vunpack.c.l.s4 1966171168
  %v526 = vunpack.c.0.s8 %v525
  %v527 = vlaneseq
  %v528 = vshrl.u32 %v527, 7
  %v529 = vsub.s32 %v526, %v528
  %v530 = vrot.slane %v522, %v529
  %v532 = vunpack.c.l.s4 1966171168
  %v533 = vunpack.c.0.s8 %v532
  %v534 = vlaneseq
  %v535 = vshrl.u32 %v534, 7
  %v536 = vsub.s32 %v533, %v535
  %v537 = vrot.slane %v523, %v536
  %v538 = vcombine.high %v530, %v530
  %v539 = vcombine.high %v537, %v537
  %v541 = vunpack.c.l.s4 1966171168
  %v542 = vunpack.c.0.s8 %v541
  %v543 = vlaneseq
  %v544 = vshrl.u32 %v543, 7
  %v545 = vsub.s32 %v542, %v544
  %v546 = vrot.slane %v80, %v545
  %v547 = vcombine.high %v546, %v546
  %v549 = vunpack.c.l.s4 1966171168
  %v550 = vunpack.c.0.s8 %v549
  %v551 = vlaneseq
  %v552 = vshrl.u32 %v551, 7
  %v553 = vsub.s32 %v550, %v552
  %v554 = vrot.slane %v546, %v553
  %v556 = vunpack.c.l.s4 1966171168
  %v557 = vunpack.c.0.s8 %v556
  %v558 = vlaneseq
  %v559 = vshrl.u32 %v558, 7
  %v560 = vsub.s32 %v557, %v559
  %v561 = vrot.slane %v547, %v560
  %v562 = vcombine.high %v554, %v554
  %v563 = vcombine.high %v561, %v561
  %v565 = vunpack.c.l.s4 1966171168
  %v566 = vunpack.c.0.s8 %v565
  %v567 = vlaneseq
  %v568 = vshrl.u32 %v567, 7
  %v569 = vsub.s32 %v566, %v568
  %v570 = vrot.slane %v81, %v569
  %v571 = vcombine.high %v570, %v570
  %v573 = vunpack.c.l.s4 1966171168
  %v574 = vunpack.c.0.s8 %v573
  %v575 = vlaneseq
  %v576 = vshrl.u32 %v575, 7
  %v577 = vsub.s32 %v574, %v576
  %v578 = vrot.slane %v570, %v577
  %v580 = vunpack.c.l.s4 1966171168
  %v581 = vunpack.c.0.s8 %v580
  %v582 = vlaneseq
  %v583 = vshrl.u32 %v582, 7
  %v584 = vsub.s32 %v581, %v583
  %v585 = vrot.slane %v571, %v584
  %v586 = vcombine.high %v578, %v578
  %v587 = vcombine.high %v585, %v585
  %v589 = vunpack.c.l.s4 1966171168
  %v590 = vunpack.c.0.s8 %v589
  %v591 = vlaneseq
  %v592 = vshrl.u32 %v591, 7
  %v593 = vsub.s32 %v590, %v592
  %v594 = vrot.slane %v82, %v593
  %v595 = vcombine.high %v594, %v594
  %v597 = vunpack.c.l.s4 1966171168
  %v598 = vunpack.c.0.s8 %v597
  %v599 = vlaneseq
  %v600 = vshrl.u32 %v599, 7
  %v601 = vsub.s32 %v598, %v600
  %v602 = vrot.slane %v594, %v601
  %v604 = vunpack.c.l.s4 1966171168
  %v605 = vunpack.c.0.s8 %v604
  %v606 = vlaneseq
  %v607 = vshrl.u32 %v606, 7
  %v608 = vsub.s32 %v605, %v607
  %v609 = vrot.slane %v595, %v608
  %v610 = vcombine.high %v602, %v602
  %v611 = vcombine.high %v609, %v609
  %v613 = vunpack.c.l.s4 1966171168
  %v614 = vunpack.c.0.s8 %v613
  %v615 = vlaneseq
  %v616 = vshrl.u32 %v615, 7
  %v617 = vsub.s32 %v614, %v616
  %v618 = vrot.slane %v83, %v617
  %v619 = vcombine.high %v618, %v618
  %v621 = vunpack.c.l.s4 1966171168
  %v622 = vunpack.c.0.s8 %v621
  %v623 = vlaneseq
  %v624 = vshrl.u32 %v623, 7
  %v625 = vsub.s32 %v622, %v624
  %v626 = vrot.slane %v618, %v625
  %v628 = vunpack.c.l.s4 1966171168
  %v629 = vunpack.c.0.s8 %v628
  %v630 = vlaneseq
  %v631 = vshrl.u32 %v630, 7
  %v632 = vsub.s32 %v629, %v631
  %v633 = vrot.slane %v619, %v632
  %v634 = vcombine.high %v626, %v626
  %v635 = vcombine.high %v633, %v633
  %v636 = vlaneseq
  %v637 = vshrl.u32 %v636, 7
  %v638 = vsub.s32 0, %v637
  %v639 = vrot.slane %v458, %v638
  %v640 = vlaneseq
  %v641 = vshrl.u32 %v640, 7
  %v642 = vsub.s32 0, %v641
  %v643 = vrot.slane %v465, %v642
  %v644 = vlaneseq
  %v645 = vshrl.u32 %v644, 7
  %v646 = vsub.s32 0, %v645
  %v647 = vrot.slane %v466, %v646
  %v648 = vlaneseq
  %v649 = vshrl.u32 %v648, 7
  %v650 = vsub.s32 0, %v649
  %v651 = vrot.slane %v467, %v650
  %v652 = vlaneseq
  %v653 = vshrl.u32 %v652, 7
  %v654 = vsub.s32 0, %v653
  %v655 = vrot.slane %v482, %v654
  %v656 = vlaneseq
  %v657 = vshrl.u32 %v656, 7
  %v658 = vsub.s32 0, %v657
  %v659 = vrot.slane %v489, %v658
  %v660 = vlaneseq
  %v661 = vshrl.u32 %v660, 7
  %v662 = vsub.s32 0, %v661
  %v663 = vrot.slane %v490, %v662
  %v664 = vlaneseq
  %v665 = vshrl.u32 %v664, 7
  %v666 = vsub.s32 0, %v665
  %v667 = vrot.slane %v491, %v666
  %v668 = vlaneseq
  %v669 = vshrl.u32 %v668, 7
  %v670 = vsub.s32 0, %v669
  %v671 = vrot.slane %v506, %v670
  %v672 = vlaneseq
  %v673 = vshrl.u32 %v672, 7
  %v674 = vsub.s32 0, %v673
  %v675 = vrot.slane %v513, %v674
  %v676 = vlaneseq
  %v677 = vshrl.u32 %v676, 7
  %v678 = vsub.s32 0, %v677
  %v679 = vrot.slane %v514, %v678
  %v680 = vlaneseq
  %v681 = vshrl.u32 %v680, 7
  %v682 = vsub.s32 0, %v681
  %v683 = vrot.slane %v515, %v682
  %v684 = vlaneseq
  %v685 = vshrl.u32 %v684, 7
  %v686 = vsub.s32 0, %v685
  %v687 = vrot.slane %v530, %v686
  %v688 = vlaneseq
  %v689 = vshrl.u32 %v688, 7
  %v690 = vsub.s32 0, %v689
  %v691 = vrot.slane %v537, %v690
  %v692 = vlaneseq
  %v693 = vshrl.u32 %v692, 7
  %v694 = vsub.s32 0, %v693
  %v695 = vrot.slane %v538, %v694
  %v696 = vlaneseq
  %v697 = vshrl.u32 %v696, 7
  %v698 = vsub.s32 0, %v697
  %v699 = vrot.slane %v539, %v698
  %v700 = vlaneseq
  %v701 = vshrl.u32 %v700, 7
  %v702 = vsub.s32 0, %v701
  %v703 = vrot.slane %v554, %v702
  %v704 = vlaneseq
  %v705 = vshrl.u32 %v704, 7
  %v706 = vsub.s32 0, %v705
  %v707 = vrot.slane %v561, %v706
  %v708 = vlaneseq
  %v709 = vshrl.u32 %v708, 7
  %v710 = vsub.s32 0, %v709
  %v711 = vrot.slane %v562, %v710
  %v712 = vlaneseq
  %v713 = vshrl.u32 %v712, 7
  %v714 = vsub.s32 0, %v713
  %v715 = vrot.slane %v563, %v714
  %v716 = vlaneseq
  %v717 = vshrl.u32 %v716, 7
  %v718 = vsub.s32 0, %v717
  %v719 = vrot.slane %v578, %v718
  %v720 = vlaneseq
  %v721 = vshrl.u32 %v720, 7
  %v722 = vsub.s32 0, %v721
  %v723 = vrot.slane %v585, %v722
  %v724 = vlaneseq
  %v725 = vshrl.u32 %v724, 7
  %v726 = vsub.s32 0, %v725
  %v727 = vrot.slane %v586, %v726
  %v728 = vlaneseq
  %v729 = vshrl.u32 %v728, 7
  %v730 = vsub.s32 0, %v729
  %v731 = vrot.slane %v587, %v730
  %v732 = vlaneseq
  %v733 = vshrl.u32 %v732, 7
  %v734 = vsub.s32 0, %v733
  %v735 = vrot.slane %v602, %v734
  %v736 = vlaneseq
  %v737 = vshrl.u32 %v736, 7
  %v738 = vsub.s32 0, %v737
  %v739 = vrot.slane %v609, %v738
  %v740 = vlaneseq
  %v741 = vshrl.u32 %v740, 7
  %v742 = vsub.s32 0, %v741
  %v743 = vrot.slane %v610, %v742
  %v744 = vlaneseq
  %v745 = vshrl.u32 %v744, 7
  %v746 = vsub.s32 0, %v745
  %v747 = vrot.slane %v611, %v746
  %v748 = vlaneseq
  %v749 = vshrl.u32 %v748, 7
  %v750 = vsub.s32 0, %v749
  %v751 = vrot.slane %v626, %v750
  %v752 = vlaneseq
  %v753 = vshrl.u32 %v752, 7
  %v754 = vsub.s32 0, %v753
  %v755 = vrot.slane %v633, %v754
  %v756 = vlaneseq
  %v757 = vshrl.u32 %v756, 7
  %v758 = vsub.s32 0, %v757
  %v759 = vrot.slane %v634, %v758
  %v760 = vlaneseq
  %v761 = vshrl.u32 %v760, 7
  %v762 = vsub.s32 0, %v761
  %v763 = vrot.slane %v635, %v762
  %v764 = vlaneseq
  %v765 = vshrl.u32 %v764, 7
  %v766 = vadd.s32 %v765, 8
  %v767 = vadd.s32 %v765, 16
  %v768 = vadd.s32 %v765, 24
  %v769 = vadd.s32 %v765, 32
  %v770 = vadd.s32 %v765, 40
  %v771 = vadd.s32 %v765, 48
  %v772 = vadd.s32 %v765, 56
  %v774 = vunpack.c.l.s4 269488144
  %v775 = vunpack.c.0.s8 %v774
  %v776 = vlaneseq
  %v777 = vshrl.u32 %v776, 7
  %v778 = vsub.s32 %v775, %v777
  %v779 = vrot.slane %v765, %v778
  %v781 = vunpack.c.l.s4 842150450
  %v782 = vunpack.c.0.s8 %v781
  %v783 = vlaneseq
  %v784 = vshrl.u32 %v783, 7
  %v785 = vsub.s32 %v782, %v784
  %v786 = vrot.slane %v765, %v785
  %v788 = vunpack.c.l.s4 1414812756
  %v789 = vunpack.c.0.s8 %v788
  %v790 = vlaneseq
  %v791 = vshrl.u32 %v790, 7
  %v792 = vsub.s32 %v789, %v791
  %v793 = vrot.slane %v765, %v792
  %v795 = vunpack.c.l.s4 1987475062
  %v796 = vunpack.c.0.s8 %v795
  %v797 = vlaneseq
  %v798 = vshrl.u32 %v797, 7
  %v799 = vsub.s32 %v796, %v798
  %v800 = vrot.slane %v765, %v799
  %v802 = vunpack.c.l.s4 269488144
  %v803 = vunpack.c.0.s8 %v802
  %v804 = vlaneseq
  %v805 = vshrl.u32 %v804, 7
  %v806 = vsub.s32 %v803, %v805
  %v807 = vrot.slane %v766, %v806
  %v809 = vunpack.c.l.s4 842150450
  %v810 = vunpack.c.0.s8 %v809
  %v811 = vlaneseq
  %v812 = vshrl.u32 %v811, 7
  %v813 = vsub.s32 %v810, %v812
  %v814 = vrot.slane %v766, %v813
  %v816 = vunpack.c.l.s4 1414812756
  %v817 = vunpack.c.0.s8 %v816
  %v818 = vlaneseq
  %v819 = vshrl.u32 %v818, 7
  %v820 = vsub.s32 %v817, %v819
  %v821 = vrot.slane %v766, %v820
  %v823 = vunpack.c.l.s4 1987475062
  %v824 = vunpack.c.0.s8 %v823
  %v825 = vlaneseq
  %v826 = vshrl.u32 %v825, 7
  %v827 = vsub.s32 %v824, %v826
  %v828 = vrot.slane %v766, %v827
  %v830 = vunpack.c.l.s4 269488144
  %v831 = vunpack.c.0.s8 %v830
  %v832 = vlaneseq
  %v833 = vshrl.u32 %v832, 7
  %v834 = vsub.s32 %v831, %v833
  %v835 = vrot.slane %v767, %v834
  %v837 = vunpack.c.l.s4 842150450
  %v838 = vunpack.c.0.s8 %v837
  %v839 = vlaneseq
  %v840 = vshrl.u32 %v839, 7
  %v841 = vsub.s32 %v838, %v840
  %v842 = vrot.slane %v767, %v841
  %v844 = vunpack.c.l.s4 1414812756
  %v845 = vunpack.c.0.s8 %v844
  %v846 = vlaneseq
  %v847 = vshrl.u32 %v846, 7
  %v848 = vsub.s32 %v845, %v847
  %v849 = vrot.slane %v767, %v848
  %v851 = vunpack.c.l.s4 1987475062
  %v852 = vunpack.c.0.s8 %v851
  %v853 = vlaneseq
  %v854 = vshrl.u32 %v853, 7
  %v855 = vsub.s32 %v852, %v854
  %v856 = vrot.slane %v767, %v855
  %v858 = vunpack.c.l.s4 269488144
  %v859 = vunpack.c.0.s8 %v858
  %v860 = vlaneseq
  %v861 = vshrl.u32 %v860, 7
  %v862 = vsub.s32 %v859, %v861
  %v863 = vrot.slane %v768, %v862
  %v865 = vunpack.c.l.s4 842150450
  %v866 = vunpack.c.0.s8 %v865
  %v867 = vlaneseq
  %v868 = vshrl.u32 %v867, 7
  %v869 = vsub.s32 %v866, %v868
  %v870 = vrot.slane %v768, %v869
  %v872 = vunpack.c.l.s4 1414812756
  %v873 = vunpack.c.0.s8 %v872
  %v874 = vlaneseq
  %v875 = vshrl.u32 %v874, 7
  %v876 = vsub.s32 %v873, %v875
  %v877 = vrot.slane %v768, %v876
  %v879 = vunpack.c.l.s4 1987475062
  %v880 = vunpack.c.0.s8 %v879
  %v881 = vlaneseq
  %v882 = vshrl.u32 %v881, 7
  %v883 = vsub.s32 %v880, %v882
  %v884 = vrot.slane %v768, %v883
  %v886 = vunpack.c.l.s4 269488144
  %v887 = vunpack.c.0.s8 %v886
  %v888 = vlaneseq
  %v889 = vshrl.u32 %v888, 7
  %v890 = vsub.s32 %v887, %v889
  %v891 = vrot.slane %v769, %v890
  %v893 = vunpack.c.l.s4 842150450
  %v894 = vunpack.c.0.s8 %v893
  %v895 = vlaneseq
  %v896 = vshrl.u32 %v895, 7
  %v897 = vsub.s32 %v894, %v896
  %v898 = vrot.slane %v769, %v897
  %v900 = vunpack.c.l.s4 1414812756
  %v901 = vunpack.c.0.s8 %v900
  %v902 = vlaneseq
  %v903 = vshrl.u32 %v902, 7
  %v904 = vsub.s32 %v901, %v903
  %v905 = vrot.slane %v769, %v904
  %v907 = vunpack.c.l.s4 1987475062
  %v908 = vunpack.c.0.s8 %v907
  %v909 = vlaneseq
  %v910 = vshrl.u32 %v909, 7
  %v911 = vsub.s32 %v908, %v910
  %v912 = vrot.slane %v769, %v911
  %v914 = vunpack.c.l.s4 269488144
  %v915 = vunpack.c.0.s8 %v914
  %v916 = vlaneseq
  %v917 = vshrl.u32 %v916, 7
  %v918 = vsub.s32 %v915, %v917
  %v919 = vrot.slane %v770, %v918
  %v921 = vunpack.c.l.s4 842150450
  %v922 = vunpack.c.0.s8 %v921
  %v923 = vlaneseq
  %v924 = vshrl.u32 %v923, 7
  %v925 = vsub.s32 %v922, %v924
  %v926 = vrot.slane %v770, %v925
  %v928 = vunpack.c.l.s4 1414812756
  %v929 = vunpack.c.0.s8 %v928
  %v930 = vlaneseq
  %v931 = vshrl.u32 %v930, 7
  %v932 = vsub.s32 %v929, %v931
  %v933 = vrot.slane %v770, %v932
  %v935 = vunpack.c.l.s4 1987475062
  %v936 = vunpack.c.0.s8 %v935
  %v937 = vlaneseq
  %v938 = vshrl.u32 %v937, 7
  %v939 = vsub.s32 %v936, %v938
  %v940 = vrot.slane %v770, %v939
  %v942 = vunpack.c.l.s4 269488144
  %v943 = vunpack.c.0.s8 %v942
  %v944 = vlaneseq
  %v945 = vshrl.u32 %v944, 7
  %v946 = vsub.s32 %v943, %v945
  %v947 = vrot.slane %v771, %v946
  %v949 = vunpack.c.l.s4 842150450
  %v950 = vunpack.c.0.s8 %v949
  %v951 = vlaneseq
  %v952 = vshrl.u32 %v951, 7
  %v953 = vsub.s32 %v950, %v952
  %v954 = vrot.slane %v771, %v953
  %v956 = vunpack.c.l.s4 1414812756
  %v957 = vunpack.c.0.s8 %v956
  %v958 = vlaneseq
  %v959 = vshrl.u32 %v958, 7
  %v960 = vsub.s32 %v957, %v959
  %v961 = vrot.slane %v771, %v960
  %v963 = vunpack.c.l.s4 1987475062
  %v964 = vunpack.c.0.s8 %v963
  %v965 = vlaneseq
  %v966 = vshrl.u32 %v965, 7
  %v967 = vsub.s32 %v964, %v966
  %v968 = vrot.slane %v771, %v967
  %v970 = vunpack.c.l.s4 269488144
  %v971 = vunpack.c.0.s8 %v970
  %v972 = vlaneseq
  %v973 = vshrl.u32 %v972, 7
  %v974 = vsub.s32 %v971, %v973
  %v975 = vrot.slane %v772, %v974
  %v977 = vunpack.c.l.s4 842150450
  %v978 = vunpack.c.0.s8 %v977
  %v979 = vlaneseq
  %v980 = vshrl.u32 %v979, 7
  %v981 = vsub.s32 %v978, %v980
  %v982 = vrot.slane %v772, %v981
  %v984 = vunpack.c.l.s4 1414812756
  %v985 = vunpack.c.0.s8 %v984
  %v986 = vlaneseq
  %v987 = vshrl.u32 %v986, 7
  %v988 = vsub.s32 %v985, %v987
  %v989 = vrot.slane %v772, %v988
  %v991 = vunpack.c.l.s4 1987475062
  %v992 = vunpack.c.0.s8 %v991
  %v993 = vlaneseq
  %v994 = vshrl.u32 %v993, 7
  %v995 = vsub.s32 %v992, %v994
  %v996 = vrot.slane %v772, %v995
  %vm997 = vcmp.eq.s32.totalorder %v639, %v779
  %vm998 = vcmp.eq.s32.totalorder %v643, %v786
  %vm999 = vcmp.eq.s32.totalorder %v647, %v793
  %vm1000 = vcmp.eq.s32.totalorder %v651, %v800
  %vm1001 = vcmp.eq.s32.totalorder %v639, %v807
  %vm1002 = vcmp.eq.s32.totalorder %v643, %v814
  %vm1003 = vcmp.eq.s32.totalorder %v647, %v821
  %vm1004 = vcmp.eq.s32.totalorder %v651, %v828
  %vm1005 = vcmp.eq.s32.totalorder %v655, %v835
  %vm1006 = vcmp.eq.s32.totalorder %v659, %v842
  %vm1007 = vcmp.eq.s32.totalorder %v663, %v849
  %vm1008 = vcmp.eq.s32.totalorder %v667, %v856
  %vm1009 = vcmp.eq.s32.totalorder %v655, %v863
  %vm1010 = vcmp.eq.s32.totalorder %v659, %v870
  %vm1011 = vcmp.eq.s32.totalorder %v663, %v877
  %vm1012 = vcmp.eq.s32.totalorder %v667, %v884
  %vm1013 = vcmp.eq.s32.totalorder %v671, %v891
  %vm1014 = vcmp.eq.s32.totalorder %v675, %v898
  %vm1015 = vcmp.eq.s32.totalorder %v679, %v905
  %vm1016 = vcmp.eq.s32.totalorder %v683, %v912
  %vm1017 = vcmp.eq.s32.totalorder %v671, %v919
  %vm1018 = vcmp.eq.s32.totalorder %v675, %v926
  %vm1019 = vcmp.eq.s32.totalorder %v679, %v933
  %vm1020 = vcmp.eq.s32.totalorder %v683, %v940
  %vm1021 = vcmp.eq.s32.totalorder %v687, %v947
  %vm1022 = vcmp.eq.s32.totalorder %v691, %v954
  %vm1023 = vcmp.eq.s32.totalorder %v695, %v961
  %vm1024 = vcmp.eq.s32.totalorder %v699, %v968
  %vm1025 = vcmp.eq.s32.totalorder %v687, %v975
  %vm1026 = vcmp.eq.s32.totalorder %v691, %v982
  %vm1027 = vcmp.eq.s32.totalorder %v695, %v989
  %vm1028 = vcmp.eq.s32.totalorder %v699, %v996
  %vm1029 = vcmp.eq.s32.totalorder %v703, %v779
  %vm1030 = vcmp.eq.s32.totalorder %v707, %v786
  %vm1031 = vcmp.eq.s32.totalorder %v711, %v793
  %vm1032 = vcmp.eq.s32.totalorder %v715, %v800
  %vm1033 = vcmp.eq.s32.totalorder %v703, %v807
  %vm1034 = vcmp.eq.s32.totalorder %v707, %v814
  %vm1035 = vcmp.eq.s32.totalorder %v711, %v821
  %vm1036 = vcmp.eq.s32.totalorder %v715, %v828
  %vm1037 = vcmp.eq.s32.totalorder %v719, %v835
  %vm1038 = vcmp.eq.s32.totalorder %v723, %v842
  %vm1039 = vcmp.eq.s32.totalorder %v727, %v849
  %vm1040 = vcmp.eq.s32.totalorder %v731, %v856
  %vm1041 = vcmp.eq.s32.totalorder %v719, %v863
  %vm1042 = vcmp.eq.s32.totalorder %v723, %v870
  %vm1043 = vcmp.eq.s32.totalorder %v727, %v877
  %vm1044 = vcmp.eq.s32.totalorder %v731, %v884
  %vm1045 = vcmp.eq.s32.totalorder %v735, %v891
  %vm1046 = vcmp.eq.s32.totalorder %v739, %v898
  %vm1047 = vcmp.eq.s32.totalorder %v743, %v905
  %vm1048 = vcmp.eq.s32.totalorder %v747, %v912
  %vm1049 = vcmp.eq.s32.totalorder %v735, %v919
  %vm1050 = vcmp.eq.s32.totalorder %v739, %v926
  %vm1051 = vcmp.eq.s32.totalorder %v743, %v933
  %vm1052 = vcmp.eq.s32.totalorder %v747, %v940
  %vm1053 = vcmp.eq.s32.totalorder %v751, %v947
  %vm1054 = vcmp.eq.s32.totalorder %v755, %v954
  %vm1055 = vcmp.eq.s32.totalorder %v759, %v961
  %vm1056 = vcmp.eq.s32.totalorder %v763, %v968
  %vm1057 = vcmp.eq.s32.totalorder %v751, %v975
  %vm1058 = vcmp.eq.s32.totalorder %v755, %v982
  %vm1059 = vcmp.eq.s32.totalorder %v759, %v989
  %vm1060 = vcmp.eq.s32.totalorder %v763, %v996
  %v1061 = vsel %vm997, %v287, 0.0
  %v1062 = vsel %vm998, %v291, 0.0
  %v1063 = vsel %vm999, %v295, 0.0
  %v1064 = vsel %vm1000, %v299, 0.0
  %v1065 = vsel %vm1001, %v287, 0.0
  %v1066 = vsel %vm1002, %v291, 0.0
  %v1067 = vsel %vm1003, %v295, 0.0
  %v1068 = vsel %vm1004, %v299, 0.0
  %v1069 = vsel %vm1005, %v303, 0.0
  %v1070 = vsel %vm1006, %v307, 0.0
  %v1071 = vsel %vm1007, %v311, 0.0
  %v1072 = vsel %vm1008, %v315, 0.0
  %v1073 = vsel %vm1009, %v303, 0.0
  %v1074 = vsel %vm1010, %v307, 0.0
  %v1075 = vsel %vm1011, %v311, 0.0
  %v1076 = vsel %vm1012, %v315, 0.0
  %v1077 = vsel %vm1013, %v319, 0.0
  %v1078 = vsel %vm1014, %v323, 0.0
  %v1079 = vsel %vm1015, %v327, 0.0
  %v1080 = vsel %vm1016, %v331, 0.0
  %v1081 = vsel %vm1017, %v319, 0.0
  %v1082 = vsel %vm1018, %v323, 0.0
  %v1083 = vsel %vm1019, %v327, 0.0
  %v1084 = vsel %vm1020, %v331, 0.0
  %v1085 = vsel %vm1021, %v335, 0.0
  %v1086 = vsel %vm1022, %v339, 0.0
  %v1087 = vsel %vm1023, %v343, 0.0
  %v1088 = vsel %vm1024, %v347, 0.0
  %v1089 = vsel %vm1025, %v335, 0.0
  %v1090 = vsel %vm1026, %v339, 0.0
  %v1091 = vsel %vm1027, %v343, 0.0
  %v1092 = vsel %vm1028, %v347, 0.0
  %v1093 = vsel %vm1029, %v351, 0.0
  %v1094 = vsel %vm1030, %v355, 0.0
  %v1095 = vsel %vm1031, %v359, 0.0
  %v1096 = vsel %vm1032, %v363, 0.0
  %v1097 = vsel %vm1033, %v351, 0.0
  %v1098 = vsel %vm1034, %v355, 0.0
  %v1099 = vsel %vm1035, %v359, 0.0
  %v1100 = vsel %vm1036, %v363, 0.0
  %v1101 = vsel %vm1037, %v367, 0.0
  %v1102 = vsel %vm1038, %v371, 0.0
  %v1103 = vsel %vm1039, %v375, 0.0
  %v1104 = vsel %vm1040, %v379, 0.0
  %v1105 = vsel %vm1041, %v367, 0.0
  %v1106 = vsel %vm1042, %v371, 0.0
  %v1107 = vsel %vm1043, %v375, 0.0
  %v1108 = vsel %vm1044, %v379, 0.0
  %v1109 = vsel %vm1045, %v383, 0.0
  %v1110 = vsel %vm1046, %v387, 0.0
  %v1111 = vsel %vm1047, %v391, 0.0
  %v1112 = vsel %vm1048, %v395, 0.0
  %v1113 = vsel %vm1049, %v383, 0.0
  %v1114 = vsel %vm1050, %v387, 0.0
  %v1115 = vsel %vm1051, %v391, 0.0
  %v1116 = vsel %vm1052, %v395, 0.0
  %v1117 = vsel %vm1053, %v399, 0.0
  %v1118 = vsel %vm1054, %v403, 0.0
  %v1119 = vsel %vm1055, %v407, 0.0
  %v1120 = vsel %vm1056, %v411, 0.0
  %v1121 = vsel %vm1057, %v399, 0.0
  %v1122 = vsel %vm1058, %v403, 0.0
  %v1123 = vsel %vm1059, %v407, 0.0
  %v1124 = vsel %vm1060, %v411, 0.0
  %v1189 = vcombine.low %v1061, %v1062
  %v1190 = vcombine.low %v1063, %v1064
  %v1192 = vunpack.c.l.s4 1983009808
  %v1193 = vunpack.c.0.s8 %v1192
  %v1194 = vlaneseq
  %v1195 = vshrl.u32 %v1194, 7
  %v1196 = vsub.s32 %v1193, %v1195
  %v1197 = vrot.slane %v1189, %v1196
  %v1199 = vunpack.c.l.s4 1983009808
  %v1200 = vunpack.c.0.s8 %v1199
  %v1201 = vlaneseq
  %v1202 = vshrl.u32 %v1201, 7
  %v1203 = vsub.s32 %v1200, %v1202
  %v1204 = vrot.slane %v1190, %v1203
  %v1205 = vcombine.low %v1197, %v1204
  %v1206 = vcombine.low %v1065, %v1066
  %v1207 = vcombine.low %v1067, %v1068
  %v1209 = vunpack.c.l.s4 1983009808
  %v1210 = vunpack.c.0.s8 %v1209
  %v1211 = vlaneseq
  %v1212 = vshrl.u32 %v1211, 7
  %v1213 = vsub.s32 %v1210, %v1212
  %v1214 = vrot.slane %v1206, %v1213
  %v1216 = vunpack.c.l.s4 1983009808
  %v1217 = vunpack.c.0.s8 %v1216
  %v1218 = vlaneseq
  %v1219 = vshrl.u32 %v1218, 7
  %v1220 = vsub.s32 %v1217, %v1219
  %v1221 = vrot.slane %v1207, %v1220
  %v1222 = vcombine.low %v1214, %v1221
  %v1223 = vcombine.low %v1069, %v1070
  %v1224 = vcombine.low %v1071, %v1072
  %v1226 = vunpack.c.l.s4 1983009808
  %v1227 = vunpack.c.0.s8 %v1226
  %v1228 = vlaneseq
  %v1229 = vshrl.u32 %v1228, 7
  %v1230 = vsub.s32 %v1227, %v1229
  %v1231 = vrot.slane %v1223, %v1230
  %v1233 = vunpack.c.l.s4 1983009808
  %v1234 = vunpack.c.0.s8 %v1233
  %v1235 = vlaneseq
  %v1236 = vshrl.u32 %v1235, 7
  %v1237 = vsub.s32 %v1234, %v1236
  %v1238 = vrot.slane %v1224, %v1237
  %v1239 = vcombine.low %v1231, %v1238
  %v1240 = vcombine.low %v1073, %v1074
  %v1241 = vcombine.low %v1075, %v1076
  %v1243 = vunpack.c.l.s4 1983009808
  %v1244 = vunpack.c.0.s8 %v1243
  %v1245 = vlaneseq
  %v1246 = vshrl.u32 %v1245, 7
  %v1247 = vsub.s32 %v1244, %v1246
  %v1248 = vrot.slane %v1240, %v1247
  %v1250 = vunpack.c.l.s4 1983009808
  %v1251 = vunpack.c.0.s8 %v1250
  %v1252 = vlaneseq
  %v1253 = vshrl.u32 %v1252, 7
  %v1254 = vsub.s32 %v1251, %v1253
  %v1255 = vrot.slane %v1241, %v1254
  %v1256 = vcombine.low %v1248, %v1255
  %v1257 = vcombine.low %v1077, %v1078
  %v1258 = vcombine.low %v1079, %v1080
  %v1260 = vunpack.c.l.s4 1983009808
  %v1261 = vunpack.c.0.s8 %v1260
  %v1262 = vlaneseq
  %v1263 = vshrl.u32 %v1262, 7
  %v1264 = vsub.s32 %v1261, %v1263
  %v1265 = vrot.slane %v1257, %v1264
  %v1267 = vunpack.c.l.s4 1983009808
  %v1268 = vunpack.c.0.s8 %v1267
  %v1269 = vlaneseq
  %v1270 = vshrl.u32 %v1269, 7
  %v1271 = vsub.s32 %v1268, %v1270
  %v1272 = vrot.slane %v1258, %v1271
  %v1273 = vcombine.low %v1265, %v1272
  %v1274 = vcombine.low %v1081, %v1082
  %v1275 = vcombine.low %v1083, %v1084
  %v1277 = vunpack.c.l.s4 1983009808
  %v1278 = vunpack.c.0.s8 %v1277
  %v1279 = vlaneseq
  %v1280 = vshrl.u32 %v1279, 7
  %v1281 = vsub.s32 %v1278, %v1280
  %v1282 = vrot.slane %v1274, %v1281
  %v1284 = vunpack.c.l.s4 1983009808
  %v1285 = vunpack.c.0.s8 %v1284
  %v1286 = vlaneseq
  %v1287 = vshrl.u32 %v1286, 7
  %v1288 = vsub.s32 %v1285, %v1287
  %v1289 = vrot.slane %v1275, %v1288
  %v1290 = vcombine.low %v1282, %v1289
  %v1291 = vcombine.low %v1085, %v1086
  %v1292 = vcombine.low %v1087, %v1088
  %v1294 = vunpack.c.l.s4 1983009808
  %v1295 = vunpack.c.0.s8 %v1294
  %v1296 = vlaneseq
  %v1297 = vshrl.u32 %v1296, 7
  %v1298 = vsub.s32 %v1295, %v1297
  %v1299 = vrot.slane %v1291, %v1298
  %v1301 = vunpack.c.l.s4 1983009808
  %v1302 = vunpack.c.0.s8 %v1301
  %v1303 = vlaneseq
  %v1304 = vshrl.u32 %v1303, 7
  %v1305 = vsub.s32 %v1302, %v1304
  %v1306 = vrot.slane %v1292, %v1305
  %v1307 = vcombine.low %v1299, %v1306
  %v1308 = vcombine.low %v1089, %v1090
  %v1309 = vcombine.low %v1091, %v1092
  %v1311 = vunpack.c.l.s4 1983009808
  %v1312 = vunpack.c.0.s8 %v1311
  %v1313 = vlaneseq
  %v1314 = vshrl.u32 %v1313, 7
  %v1315 = vsub.s32 %v1312, %v1314
  %v1316 = vrot.slane %v1308, %v1315
  %v1318 = vunpack.c.l.s4 1983009808
  %v1319 = vunpack.c.0.s8 %v1318
  %v1320 = vlaneseq
  %v1321 = vshrl.u32 %v1320, 7
  %v1322 = vsub.s32 %v1319, %v1321
  %v1323 = vrot.slane %v1309, %v1322
  %v1324 = vcombine.low %v1316, %v1323
  %v1325 = vcombine.low %v1093, %v1094
  %v1326 = vcombine.low %v1095, %v1096
  %v1328 = vunpack.c.l.s4 1983009808
  %v1329 = vunpack.c.0.s8 %v1328
  %v1330 = vlaneseq
  %v1331 = vshrl.u32 %v1330, 7
  %v1332 = vsub.s32 %v1329, %v1331
  %v1333 = vrot.slane %v1325, %v1332
  %v1335 = vunpack.c.l.s4 1983009808
  %v1336 = vunpack.c.0.s8 %v1335
  %v1337 = vlaneseq
  %v1338 = vshrl.u32 %v1337, 7
  %v1339 = vsub.s32 %v1336, %v1338
  %v1340 = vrot.slane %v1326, %v1339
  %v1341 = vcombine.low %v1333, %v1340
  %v1342 = vcombine.low %v1097, %v1098
  %v1343 = vcombine.low %v1099, %v1100
  %v1345 = vunpack.c.l.s4 1983009808
  %v1346 = vunpack.c.0.s8 %v1345
  %v1347 = vlaneseq
  %v1348 = vshrl.u32 %v1347, 7
  %v1349 = vsub.s32 %v1346, %v1348
  %v1350 = vrot.slane %v1342, %v1349
  %v1352 = vunpack.c.l.s4 1983009808
  %v1353 = vunpack.c.0.s8 %v1352
  %v1354 = vlaneseq
  %v1355 = vshrl.u32 %v1354, 7
  %v1356 = vsub.s32 %v1353, %v1355
  %v1357 = vrot.slane %v1343, %v1356
  %v1358 = vcombine.low %v1350, %v1357
  %v1359 = vcombine.low %v1101, %v1102
  %v1360 = vcombine.low %v1103, %v1104
  %v1362 = vunpack.c.l.s4 1983009808
  %v1363 = vunpack.c.0.s8 %v1362
  %v1364 = vlaneseq
  %v1365 = vshrl.u32 %v1364, 7
  %v1366 = vsub.s32 %v1363, %v1365
  %v1367 = vrot.slane %v1359, %v1366
  %v1369 = vunpack.c.l.s4 1983009808
  %v1370 = vunpack.c.0.s8 %v1369
  %v1371 = vlaneseq
  %v1372 = vshrl.u32 %v1371, 7
  %v1373 = vsub.s32 %v1370, %v1372
  %v1374 = vrot.slane %v1360, %v1373
  %v1375 = vcombine.low %v1367, %v1374
  %v1376 = vcombine.low %v1105, %v1106
  %v1377 = vcombine.low %v1107, %v1108
  %v1379 = vunpack.c.l.s4 1983009808
  %v1380 = vunpack.c.0.s8 %v1379
  %v1381 = vlaneseq
  %v1382 = vshrl.u32 %v1381, 7
  %v1383 = vsub.s32 %v1380, %v1382
  %v1384 = vrot.slane %v1376, %v1383
  %v1386 = vunpack.c.l.s4 1983009808
  %v1387 = vunpack.c.0.s8 %v1386
  %v1388 = vlaneseq
  %v1389 = vshrl.u32 %v1388, 7
  %v1390 = vsub.s32 %v1387, %v1389
  %v1391 = vrot.slane %v1377, %v1390
  %v1392 = vcombine.low %v1384, %v1391
  %v1393 = vcombine.low %v1109, %v1110
  %v1394 = vcombine.low %v1111, %v1112
  %v1396 = vunpack.c.l.s4 1983009808
  %v1397 = vunpack.c.0.s8 %v1396
  %v1398 = vlaneseq
  %v1399 = vshrl.u32 %v1398, 7
  %v1400 = vsub.s32 %v1397, %v1399
  %v1401 = vrot.slane %v1393, %v1400
  %v1403 = vunpack.c.l.s4 1983009808
  %v1404 = vunpack.c.0.s8 %v1403
  %v1405 = vlaneseq
  %v1406 = vshrl.u32 %v1405, 7
  %v1407 = vsub.s32 %v1404, %v1406
  %v1408 = vrot.slane %v1394, %v1407
  %v1409 = vcombine.low %v1401, %v1408
  %v1410 = vcombine.low %v1113, %v1114
  %v1411 = vcombine.low %v1115, %v1116
  %v1413 = vunpack.c.l.s4 1983009808
  %v1414 = vunpack.c.0.s8 %v1413
  %v1415 = vlaneseq
  %v1416 = vshrl.u32 %v1415, 7
  %v1417 = vsub.s32 %v1414, %v1416
  %v1418 = vrot.slane %v1410, %v1417
  %v1420 = vunpack.c.l.s4 1983009808
  %v1421 = vunpack.c.0.s8 %v1420
  %v1422 = vlaneseq
  %v1423 = vshrl.u32 %v1422, 7
  %v1424 = vsub.s32 %v1421, %v1423
  %v1425 = vrot.slane %v1411, %v1424
  %v1426 = vcombine.low %v1418, %v1425
  %v1427 = vcombine.low %v1117, %v1118
  %v1428 = vcombine.low %v1119, %v1120
  %v1430 = vunpack.c.l.s4 1983009808
  %v1431 = vunpack.c.0.s8 %v1430
  %v1432 = vlaneseq
  %v1433 = vshrl.u32 %v1432, 7
  %v1434 = vsub.s32 %v1431, %v1433
  %v1435 = vrot.slane %v1427, %v1434
  %v1437 = vunpack.c.l.s4 1983009808
  %v1438 = vunpack.c.0.s8 %v1437
  %v1439 = vlaneseq
  %v1440 = vshrl.u32 %v1439, 7
  %v1441 = vsub.s32 %v1438, %v1440
  %v1442 = vrot.slane %v1428, %v1441
  %v1443 = vcombine.low %v1435, %v1442
  %v1444 = vcombine.low %v1121, %v1122
  %v1445 = vcombine.low %v1123, %v1124
  %v1447 = vunpack.c.l.s4 1983009808
  %v1448 = vunpack.c.0.s8 %v1447
  %v1449 = vlaneseq
  %v1450 = vshrl.u32 %v1449, 7
  %v1451 = vsub.s32 %v1448, %v1450
  %v1452 = vrot.slane %v1444, %v1451
  %v1454 = vunpack.c.l.s4 1983009808
  %v1455 = vunpack.c.0.s8 %v1454
  %v1456 = vlaneseq
  %v1457 = vshrl.u32 %v1456, 7
  %v1458 = vsub.s32 %v1455, %v1457
  %v1459 = vrot.slane %v1445, %v1458
  %v1460 = vcombine.low %v1452, %v1459
  %s1477 = scalar_lea.vmem [#allocation2], 16
  %1478 = vst.msk [vmem:[%s1477 + $0x1] sm:$0xff] %vm26, %v1205
  %1479 = vst.msk [vmem:[%s1477 + $0x11] sm:$0xff] %vm26, %v1222
  %1480 = vst.msk [vmem:[%s1477 + $0x21] sm:$0xff] %vm26, %v1239
  %1481 = vst.msk [vmem:[%s1477 + $0x31] sm:$0xff] %vm26, %v1256
  %1482 = vst.msk [vmem:[%s1477 + $0x41] sm:$0xff] %vm26, %v1273
  %1483 = vst.msk [vmem:[%s1477 + $0x51] sm:$0xff] %vm26, %v1290
  %1484 = vst.msk [vmem:[%s1477 + $0x61] sm:$0xff] %vm26, %v1307
  %1485 = vst.msk [vmem:[%s1477 + $0x71] sm:$0xff] %vm26, %v1324
  %1486 = vst.msk [vmem:[%s1477 + $0xa1] sm:$0xff] %vm26, %v1341
  %1487 = vst.msk [vmem:[%s1477 + $0xb1] sm:$0xff] %vm26, %v1358
  %1488 = vst.msk [vmem:[%s1477 + $0xc1] sm:$0xff] %vm26, %v1375
  %1489 = vst.msk [vmem:[%s1477 + $0xd1] sm:$0xff] %vm26, %v1392
  %1490 = vst.msk [vmem:[%s1477 + $0xe1] sm:$0xff] %vm26, %v1409
  %1491 = vst.msk [vmem:[%s1477 + $0xf1] sm:$0xff] %vm26, %v1426
  %1492 = vst.msk [vmem:[%s1477 + $0x101] sm:$0xff] %vm26, %v1443
  %1493 = vst.msk [vmem:[%s1477 + $0x111] sm:$0xff] %vm26, %v1460
  %v1494 = vld [vmem:[#allocation2] sm:$0xff]
  %v1495 = vld [vmem:[#allocation2 + $0x10] sm:$0xff]
  %v1496 = vld [vmem:[#allocation2 + $0x20] sm:$0xff]
  %v1497 = vld [vmem:[#allocation2 + $0x30] sm:$0xff]
  %v1498 = vld [vmem:[#allocation2 + $0x40] sm:$0xff]
  %v1499 = vld [vmem:[#allocation2 + $0x50] sm:$0xff]
  %v1500 = vld [vmem:[#allocation2 + $0x60] sm:$0xff]
  %v1501 = vld [vmem:[#allocation2 + $0x70] sm:$0xff]
  %v1502 = vld [vmem:[#allocation2 + $0xa0] sm:$0xff]
  %v1503 = vld [vmem:[#allocation2 + $0xb0] sm:$0xff]
  %v1504 = vld [vmem:[#allocation2 + $0xc0] sm:$0xff]
  %v1505 = vld [vmem:[#allocation2 + $0xd0] sm:$0xff]
  %v1506 = vld [vmem:[#allocation2 + $0xe0] sm:$0xff]
  %v1507 = vld [vmem:[#allocation2 + $0xf0] sm:$0xff]
  %v1508 = vld [vmem:[#allocation2 + $0x100] sm:$0xff]
  %v1509 = vld [vmem:[#allocation2 + $0x110] sm:$0xff]
  %v1510 = vld [vmem:[#allocation2 + $0x1] sm:$0xff]
  %v1511 = vld [vmem:[#allocation2 + $0x11] sm:$0xff]
  %v1512 = vld [vmem:[#allocation2 + $0x21] sm:$0xff]
  %v1513 = vld [vmem:[#allocation2 + $0x31] sm:$0xff]
  %v1514 = vld [vmem:[#allocation2 + $0x41] sm:$0xff]
  %v1515 = vld [vmem:[#allocation2 + $0x51] sm:$0xff]
  %v1516 = vld [vmem:[#allocation2 + $0x61] sm:$0xff]
  %v1517 = vld [vmem:[#allocation2 + $0x71] sm:$0xff]
  %v1518 = vld [vmem:[#allocation2 + $0xa1] sm:$0xff]
  %v1519 = vld [vmem:[#allocation2 + $0xb1] sm:$0xff]
  %v1520 = vld [vmem:[#allocation2 + $0xc1] sm:$0xff]
  %v1521 = vld [vmem:[#allocation2 + $0xd1] sm:$0xff]
  %v1522 = vld [vmem:[#allocation2 + $0xe1] sm:$0xff]
  %v1523 = vld [vmem:[#allocation2 + $0xf1] sm:$0xff]
  %v1524 = vld [vmem:[#allocation2 + $0x101] sm:$0xff]
  %v1525 = vld [vmem:[#allocation2 + $0x111] sm:$0xff]
  %v1526 = vld [vmem:[#allocation2 + $0x2] sm:$0xff]
  %v1527 = vld [vmem:[#allocation2 + $0x12] sm:$0xff]
  %v1528 = vld [vmem:[#allocation2 + $0x22] sm:$0xff]
  %v1529 = vld [vmem:[#allocation2 + $0x32] sm:$0xff]
  %v1530 = vld [vmem:[#allocation2 + $0x42] sm:$0xff]
  %v1531 = vld [vmem:[#allocation2 + $0x52] sm:$0xff]
  %v1532 = vld [vmem:[#allocation2 + $0x62] sm:$0xff]
  %v1533 = vld [vmem:[#allocation2 + $0x72] sm:$0xff]
  %v1534 = vld [vmem:[#allocation2 + $0xa2] sm:$0xff]
  %v1535 = vld [vmem:[#allocation2 + $0xb2] sm:$0xff]
  %v1536 = vld [vmem:[#allocation2 + $0xc2] sm:$0xff]
  %v1537 = vld [vmem:[#allocation2 + $0xd2] sm:$0xff]
  %v1538 = vld [vmem:[#allocation2 + $0xe2] sm:$0xff]
  %v1539 = vld [vmem:[#allocation2 + $0xf2] sm:$0xff]
  %v1540 = vld [vmem:[#allocation2 + $0x102] sm:$0xff]
  %v1541 = vld [vmem:[#allocation2 + $0x112] sm:$0xff]
  %v1542 = vld [vmem:[%s1477] sm:$0xff]
  %v1543 = vld [vmem:[%s1477 + $0x10] sm:$0xff]
  %v1544 = vld [vmem:[%s1477 + $0x20] sm:$0xff]
  %v1545 = vld [vmem:[%s1477 + $0x30] sm:$0xff]
  %v1546 = vld [vmem:[%s1477 + $0x40] sm:$0xff]
  %v1547 = vld [vmem:[%s1477 + $0x50] sm:$0xff]
  %v1548 = vld [vmem:[%s1477 + $0x60] sm:$0xff]
  %v1549 = vld [vmem:[%s1477 + $0x70] sm:$0xff]
  %v1550 = vld [vmem:[%s1477 + $0xa0] sm:$0xff]
  %v1551 = vld [vmem:[%s1477 + $0xb0] sm:$0xff]
  %v1552 = vld [vmem:[%s1477 + $0xc0] sm:$0xff]
  %v1553 = vld [vmem:[%s1477 + $0xd0] sm:$0xff]
  %v1554 = vld [vmem:[%s1477 + $0xe0] sm:$0xff]
  %v1555 = vld [vmem:[%s1477 + $0xf0] sm:$0xff]
  %v1556 = vld [vmem:[%s1477 + $0x100] sm:$0xff]
  %v1557 = vld [vmem:[%s1477 + $0x110] sm:$0xff]
  %v1558 = vld [vmem:[%s1477 + $0x1] sm:$0xff]
  %v1559 = vld [vmem:[%s1477 + $0x11] sm:$0xff]
  %v1560 = vld [vmem:[%s1477 + $0x21] sm:$0xff]
  %v1561 = vld [vmem:[%s1477 + $0x31] sm:$0xff]
  %v1562 = vld [vmem:[%s1477 + $0x41] sm:$0xff]
  %v1563 = vld [vmem:[%s1477 + $0x51] sm:$0xff]
  %v1564 = vld [vmem:[%s1477 + $0x61] sm:$0xff]
  %v1565 = vld [vmem:[%s1477 + $0x71] sm:$0xff]
  %v1566 = vld [vmem:[%s1477 + $0xa1] sm:$0xff]
  %v1567 = vld [vmem:[%s1477 + $0xb1] sm:$0xff]
  %v1568 = vld [vmem:[%s1477 + $0xc1] sm:$0xff]
  %v1569 = vld [vmem:[%s1477 + $0xd1] sm:$0xff]
  %v1570 = vld [vmem:[%s1477 + $0xe1] sm:$0xff]
  %v1571 = vld [vmem:[%s1477 + $0xf1] sm:$0xff]
  %v1572 = vld [vmem:[%s1477 + $0x101] sm:$0xff]
  %v1573 = vld [vmem:[%s1477 + $0x111] sm:$0xff]
  %v1574 = vld [vmem:[%s1477 + $0x2] sm:$0xff]
  %v1575 = vld [vmem:[%s1477 + $0x12] sm:$0xff]
  %v1576 = vld [vmem:[%s1477 + $0x22] sm:$0xff]
  %v1577 = vld [vmem:[%s1477 + $0x32] sm:$0xff]
  %v1578 = vld [vmem:[%s1477 + $0x42] sm:$0xff]
  %v1579 = vld [vmem:[%s1477 + $0x52] sm:$0xff]
  %v1580 = vld [vmem:[%s1477 + $0x62] sm:$0xff]
  %v1581 = vld [vmem:[%s1477 + $0x72] sm:$0xff]
  %v1582 = vld [vmem:[%s1477 + $0xa2] sm:$0xff]
  %v1583 = vld [vmem:[%s1477 + $0xb2] sm:$0xff]
  %v1584 = vld [vmem:[%s1477 + $0xc2] sm:$0xff]
  %v1585 = vld [vmem:[%s1477 + $0xd2] sm:$0xff]
  %v1586 = vld [vmem:[%s1477 + $0xe2] sm:$0xff]
  %v1587 = vld [vmem:[%s1477 + $0xf2] sm:$0xff]
  %v1588 = vld [vmem:[%s1477 + $0x102] sm:$0xff]
  %v1589 = vld [vmem:[%s1477 + $0x112] sm:$0xff]
  %s1590 = scalar_lea.vmem [#allocation2], 32
  %v1591 = vld [vmem:[%s1590] sm:$0xff]
  %v1592 = vld [vmem:[%s1590 + $0x10] sm:$0xff]
  %v1593 = vld [vmem:[%s1590 + $0x20] sm:$0xff]
  %v1594 = vld [vmem:[%s1590 + $0x30] sm:$0xff]
  %v1595 = vld [vmem:[%s1590 + $0x40] sm:$0xff]
  %v1596 = vld [vmem:[%s1590 + $0x50] sm:$0xff]
  %v1597 = vld [vmem:[%s1590 + $0x60] sm:$0xff]
  %v1598 = vld [vmem:[%s1590 + $0x70] sm:$0xff]
  %v1599 = vld [vmem:[%s1590 + $0xa0] sm:$0xff]
  %v1600 = vld [vmem:[%s1590 + $0xb0] sm:$0xff]
  %v1601 = vld [vmem:[%s1590 + $0xc0] sm:$0xff]
  %v1602 = vld [vmem:[%s1590 + $0xd0] sm:$0xff]
  %v1603 = vld [vmem:[%s1590 + $0xe0] sm:$0xff]
  %v1604 = vld [vmem:[%s1590 + $0xf0] sm:$0xff]
  %v1605 = vld [vmem:[%s1590 + $0x100] sm:$0xff]
  %v1606 = vld [vmem:[%s1590 + $0x110] sm:$0xff]
  %v1607 = vld [vmem:[%s1590 + $0x1] sm:$0xff]
  %v1608 = vld [vmem:[%s1590 + $0x11] sm:$0xff]
  %v1609 = vld [vmem:[%s1590 + $0x21] sm:$0xff]
  %v1610 = vld [vmem:[%s1590 + $0x31] sm:$0xff]
  %v1611 = vld [vmem:[%s1590 + $0x41] sm:$0xff]
  %v1612 = vld [vmem:[%s1590 + $0x51] sm:$0xff]
  %v1613 = vld [vmem:[%s1590 + $0x61] sm:$0xff]
  %v1614 = vld [vmem:[%s1590 + $0x71] sm:$0xff]
  %v1615 = vld [vmem:[%s1590 + $0xa1] sm:$0xff]
  %v1616 = vld [vmem:[%s1590 + $0xb1] sm:$0xff]
  %v1617 = vld [vmem:[%s1590 + $0xc1] sm:$0xff]
  %v1618 = vld [vmem:[%s1590 + $0xd1] sm:$0xff]
  %v1619 = vld [vmem:[%s1590 + $0xe1] sm:$0xff]
  %v1620 = vld [vmem:[%s1590 + $0xf1] sm:$0xff]
  %v1621 = vld [vmem:[%s1590 + $0x101] sm:$0xff]
  %v1622 = vld [vmem:[%s1590 + $0x111] sm:$0xff]
  %v1623 = vld [vmem:[%s1590 + $0x2] sm:$0xff]
  %v1624 = vld [vmem:[%s1590 + $0x12] sm:$0xff]
  %v1625 = vld [vmem:[%s1590 + $0x22] sm:$0xff]
  %v1626 = vld [vmem:[%s1590 + $0x32] sm:$0xff]
  %v1627 = vld [vmem:[%s1590 + $0x42] sm:$0xff]
  %v1628 = vld [vmem:[%s1590 + $0x52] sm:$0xff]
  %v1629 = vld [vmem:[%s1590 + $0x62] sm:$0xff]
  %v1630 = vld [vmem:[%s1590 + $0x72] sm:$0xff]
  %v1631 = vld [vmem:[%s1590 + $0xa2] sm:$0xff]
  %v1632 = vld [vmem:[%s1590 + $0xb2] sm:$0xff]
  %v1633 = vld [vmem:[%s1590 + $0xc2] sm:$0xff]
  %v1634 = vld [vmem:[%s1590 + $0xd2] sm:$0xff]
  %v1635 = vld [vmem:[%s1590 + $0xe2] sm:$0xff]
  %v1636 = vld [vmem:[%s1590 + $0xf2] sm:$0xff]
  %v1637 = vld [vmem:[%s1590 + $0x102] sm:$0xff]
  %v1638 = vld [vmem:[%s1590 + $0x112] sm:$0xff]
  %1655 = vrot.lane.b32.xlu0 %v1510, 16
  %v1656 = vpop.permute.xlu0 %1655
  %1657 = vrot.lane.b32.xlu0 %v1511, 16
  %v1658 = vpop.permute.xlu0 %1657
  %1659 = vrot.lane.b32.xlu0 %v1512, 16
  %v1660 = vpop.permute.xlu0 %1659
  %1661 = vrot.lane.b32.xlu0 %v1513, 16
  %v1662 = vpop.permute.xlu0 %1661
  %1663 = vrot.lane.b32.xlu0 %v1514, 16
  %v1664 = vpop.permute.xlu0 %1663
  %1665 = vrot.lane.b32.xlu0 %v1515, 16
  %v1666 = vpop.permute.xlu0 %1665
  %1667 = vrot.lane.b32.xlu0 %v1516, 16
  %v1668 = vpop.permute.xlu0 %1667
  %1669 = vrot.lane.b32.xlu0 %v1517, 16
  %v1670 = vpop.permute.xlu0 %1669
  %1671 = vrot.lane.b32.xlu0 %v1518, 16
  %v1672 = vpop.permute.xlu0 %1671
  %1673 = vrot.lane.b32.xlu0 %v1519, 16
  %v1674 = vpop.permute.xlu0 %1673
  %1675 = vrot.lane.b32.xlu0 %v1520, 16
  %v1676 = vpop.permute.xlu0 %1675
  %1677 = vrot.lane.b32.xlu0 %v1521, 16
  %v1678 = vpop.permute.xlu0 %1677
  %1679 = vrot.lane.b32.xlu0 %v1522, 16
  %v1680 = vpop.permute.xlu0 %1679
  %1681 = vrot.lane.b32.xlu0 %v1523, 16
  %v1682 = vpop.permute.xlu0 %1681
  %1683 = vrot.lane.b32.xlu0 %v1524, 16
  %v1684 = vpop.permute.xlu0 %1683
  %1685 = vrot.lane.b32.xlu0 %v1525, 16
  %v1686 = vpop.permute.xlu0 %1685
  %1719 = vrot.lane.b32.xlu0 %v1526, 32
  %v1720 = vpop.permute.xlu0 %1719
  %1721 = vrot.lane.b32.xlu0 %v1527, 32
  %v1722 = vpop.permute.xlu0 %1721
  %1723 = vrot.lane.b32.xlu0 %v1528, 32
  %v1724 = vpop.permute.xlu0 %1723
  %1725 = vrot.lane.b32.xlu0 %v1529, 32
  %v1726 = vpop.permute.xlu0 %1725
  %1727 = vrot.lane.b32.xlu0 %v1530, 32
  %v1728 = vpop.permute.xlu0 %1727
  %1729 = vrot.lane.b32.xlu0 %v1531, 32
  %v1730 = vpop.permute.xlu0 %1729
  %1731 = vrot.lane.b32.xlu0 %v1532, 32
  %v1732 = vpop.permute.xlu0 %1731
  %1733 = vrot.lane.b32.xlu0 %v1533, 32
  %v1734 = vpop.permute.xlu0 %1733
  %1735 = vrot.lane.b32.xlu0 %v1534, 32
  %v1736 = vpop.permute.xlu0 %1735
  %1737 = vrot.lane.b32.xlu0 %v1535, 32
  %v1738 = vpop.permute.xlu0 %1737
  %1739 = vrot.lane.b32.xlu0 %v1536, 32
  %v1740 = vpop.permute.xlu0 %1739
  %1741 = vrot.lane.b32.xlu0 %v1537, 32
  %v1742 = vpop.permute.xlu0 %1741
  %1743 = vrot.lane.b32.xlu0 %v1538, 32
  %v1744 = vpop.permute.xlu0 %1743
  %1745 = vrot.lane.b32.xlu0 %v1539, 32
  %v1746 = vpop.permute.xlu0 %1745
  %1747 = vrot.lane.b32.xlu0 %v1540, 32
  %v1748 = vpop.permute.xlu0 %1747
  %1749 = vrot.lane.b32.xlu0 %v1541, 32
  %v1750 = vpop.permute.xlu0 %1749
  %1783 = vrot.lane.b32.xlu0 %v1542, 48
  %v1784 = vpop.permute.xlu0 %1783
  %1785 = vrot.lane.b32.xlu0 %v1543, 48
  %v1786 = vpop.permute.xlu0 %1785
  %1787 = vrot.lane.b32.xlu0 %v1544, 48
  %v1788 = vpop.permute.xlu0 %1787
  %1789 = vrot.lane.b32.xlu0 %v1545, 48
  %v1790 = vpop.permute.xlu0 %1789
  %1791 = vrot.lane.b32.xlu0 %v1546, 48
  %v1792 = vpop.permute.xlu0 %1791
  %1793 = vrot.lane.b32.xlu0 %v1547, 48
  %v1794 = vpop.permute.xlu0 %1793
  %1795 = vrot.lane.b32.xlu0 %v1548, 48
  %v1796 = vpop.permute.xlu0 %1795
  %1797 = vrot.lane.b32.xlu0 %v1549, 48
  %v1798 = vpop.permute.xlu0 %1797
  %1799 = vrot.lane.b32.xlu0 %v1550, 48
  %v1800 = vpop.permute.xlu0 %1799
  %1801 = vrot.lane.b32.xlu0 %v1551, 48
  %v1802 = vpop.permute.xlu0 %1801
  %1803 = vrot.lane.b32.xlu0 %v1552, 48
  %v1804 = vpop.permute.xlu0 %1803
  %1805 = vrot.lane.b32.xlu0 %v1553, 48
  %v1806 = vpop.permute.xlu0 %1805
  %1807 = vrot.lane.b32.xlu0 %v1554, 48
  %v1808 = vpop.permute.xlu0 %1807
  %1809 = vrot.lane.b32.xlu0 %v1555, 48
  %v1810 = vpop.permute.xlu0 %1809
  %1811 = vrot.lane.b32.xlu0 %v1556, 48
  %v1812 = vpop.permute.xlu0 %1811
  %1813 = vrot.lane.b32.xlu0 %v1557, 48
  %v1814 = vpop.permute.xlu0 %1813
  %1847 = vrot.lane.b32.xlu0 %v1558, 64
  %v1848 = vpop.permute.xlu0 %1847
  %1849 = vrot.lane.b32.xlu0 %v1559, 64
  %v1850 = vpop.permute.xlu0 %1849
  %1851 = vrot.lane.b32.xlu0 %v1560, 64
  %v1852 = vpop.permute.xlu0 %1851
  %1853 = vrot.lane.b32.xlu0 %v1561, 64
  %v1854 = vpop.permute.xlu0 %1853
  %1855 = vrot.lane.b32.xlu0 %v1562, 64
  %v1856 = vpop.permute.xlu0 %1855
  %1857 = vrot.lane.b32.xlu0 %v1563, 64
  %v1858 = vpop.permute.xlu0 %1857
  %1859 = vrot.lane.b32.xlu0 %v1564, 64
  %v1860 = vpop.permute.xlu0 %1859
  %1861 = vrot.lane.b32.xlu0 %v1565, 64
  %v1862 = vpop.permute.xlu0 %1861
  %1863 = vrot.lane.b32.xlu0 %v1566, 64
  %v1864 = vpop.permute.xlu0 %1863
  %1865 = vrot.lane.b32.xlu0 %v1567, 64
  %v1866 = vpop.permute.xlu0 %1865
  %1867 = vrot.lane.b32.xlu0 %v1568, 64
  %v1868 = vpop.permute.xlu0 %1867
  %1869 = vrot.lane.b32.xlu0 %v1569, 64
  %v1870 = vpop.permute.xlu0 %1869
  %1871 = vrot.lane.b32.xlu0 %v1570, 64
  %v1872 = vpop.permute.xlu0 %1871
  %1873 = vrot.lane.b32.xlu0 %v1571, 64
  %v1874 = vpop.permute.xlu0 %1873
  %1875 = vrot.lane.b32.xlu0 %v1572, 64
  %v1876 = vpop.permute.xlu0 %1875
  %1877 = vrot.lane.b32.xlu0 %v1573, 64
  %v1878 = vpop.permute.xlu0 %1877
  %1911 = vrot.lane.b32.xlu0 %v1574, 80
  %v1912 = vpop.permute.xlu0 %1911
  %1913 = vrot.lane.b32.xlu0 %v1575, 80
  %v1914 = vpop.permute.xlu0 %1913
  %1915 = vrot.lane.b32.xlu0 %v1576, 80
  %v1916 = vpop.permute.xlu0 %1915
  %1917 = vrot.lane.b32.xlu0 %v1577, 80
  %v1918 = vpop.permute.xlu0 %1917
  %1919 = vrot.lane.b32.xlu0 %v1578, 80
  %v1920 = vpop.permute.xlu0 %1919
  %1921 = vrot.lane.b32.xlu0 %v1579, 80
  %v1922 = vpop.permute.xlu0 %1921
  %1923 = vrot.lane.b32.xlu0 %v1580, 80
  %v1924 = vpop.permute.xlu0 %1923
  %1925 = vrot.lane.b32.xlu0 %v1581, 80
  %v1926 = vpop.permute.xlu0 %1925
  %1927 = vrot.lane.b32.xlu0 %v1582, 80
  %v1928 = vpop.permute.xlu0 %1927
  %1929 = vrot.lane.b32.xlu0 %v1583, 80
  %v1930 = vpop.permute.xlu0 %1929
  %1931 = vrot.lane.b32.xlu0 %v1584, 80
  %v1932 = vpop.permute.xlu0 %1931
  %1933 = vrot.lane.b32.xlu0 %v1585, 80
  %v1934 = vpop.permute.xlu0 %1933
  %1935 = vrot.lane.b32.xlu0 %v1586, 80
  %v1936 = vpop.permute.xlu0 %1935
  %1937 = vrot.lane.b32.xlu0 %v1587, 80
  %v1938 = vpop.permute.xlu0 %1937
  %1939 = vrot.lane.b32.xlu0 %v1588, 80
  %v1940 = vpop.permute.xlu0 %1939
  %1941 = vrot.lane.b32.xlu0 %v1589, 80
  %v1942 = vpop.permute.xlu0 %1941
  %1975 = vrot.lane.b32.xlu0 %v1591, 96
  %v1976 = vpop.permute.xlu0 %1975
  %1977 = vrot.lane.b32.xlu0 %v1592, 96
  %v1978 = vpop.permute.xlu0 %1977
  %1979 = vrot.lane.b32.xlu0 %v1593, 96
  %v1980 = vpop.permute.xlu0 %1979
  %1981 = vrot.lane.b32.xlu0 %v1594, 96
  %v1982 = vpop.permute.xlu0 %1981
  %1983 = vrot.lane.b32.xlu0 %v1595, 96
  %v1984 = vpop.permute.xlu0 %1983
  %1985 = vrot.lane.b32.xlu0 %v1596, 96
  %v1986 = vpop.permute.xlu0 %1985
  %1987 = vrot.lane.b32.xlu0 %v1597, 96
  %v1988 = vpop.permute.xlu0 %1987
  %1989 = vrot.lane.b32.xlu0 %v1598, 96
  %v1990 = vpop.permute.xlu0 %1989
  %1991 = vrot.lane.b32.xlu0 %v1599, 96
  %v1992 = vpop.permute.xlu0 %1991
  %1993 = vrot.lane.b32.xlu0 %v1600, 96
  %v1994 = vpop.permute.xlu0 %1993
  %1995 = vrot.lane.b32.xlu0 %v1601, 96
  %v1996 = vpop.permute.xlu0 %1995
  %1997 = vrot.lane.b32.xlu0 %v1602, 96
  %v1998 = vpop.permute.xlu0 %1997
  %1999 = vrot.lane.b32.xlu0 %v1603, 96
  %v2000 = vpop.permute.xlu0 %1999
  %2001 = vrot.lane.b32.xlu0 %v1604, 96
  %v2002 = vpop.permute.xlu0 %2001
  %2003 = vrot.lane.b32.xlu0 %v1605, 96
  %v2004 = vpop.permute.xlu0 %2003
  %2005 = vrot.lane.b32.xlu0 %v1606, 96
  %v2006 = vpop.permute.xlu0 %2005
  %2039 = vrot.lane.b32.xlu0 %v1607, 112
  %v2040 = vpop.permute.xlu0 %2039
  %2041 = vrot.lane.b32.xlu0 %v1608, 112
  %v2042 = vpop.permute.xlu0 %2041
  %2043 = vrot.lane.b32.xlu0 %v1609, 112
  %v2044 = vpop.permute.xlu0 %2043
  %2045 = vrot.lane.b32.xlu0 %v1610, 112
  %v2046 = vpop.permute.xlu0 %2045
  %2047 = vrot.lane.b32.xlu0 %v1611, 112
  %v2048 = vpop.permute.xlu0 %2047
  %2049 = vrot.lane.b32.xlu0 %v1612, 112
  %v2050 = vpop.permute.xlu0 %2049
  %2051 = vrot.lane.b32.xlu0 %v1613, 112
  %v2052 = vpop.permute.xlu0 %2051
  %2053 = vrot.lane.b32.xlu0 %v1614, 112
  %v2054 = vpop.permute.xlu0 %2053
  %2055 = vrot.lane.b32.xlu0 %v1615, 112
  %v2056 = vpop.permute.xlu0 %2055
  %2057 = vrot.lane.b32.xlu0 %v1616, 112
  %v2058 = vpop.permute.xlu0 %2057
  %2059 = vrot.lane.b32.xlu0 %v1617, 112
  %v2060 = vpop.permute.xlu0 %2059
  %2061 = vrot.lane.b32.xlu0 %v1618, 112
  %v2062 = vpop.permute.xlu0 %2061
  %2063 = vrot.lane.b32.xlu0 %v1619, 112
  %v2064 = vpop.permute.xlu0 %2063
  %2065 = vrot.lane.b32.xlu0 %v1620, 112
  %v2066 = vpop.permute.xlu0 %2065
  %2067 = vrot.lane.b32.xlu0 %v1621, 112
  %v2068 = vpop.permute.xlu0 %2067
  %2069 = vrot.lane.b32.xlu0 %v1622, 112
  %v2070 = vpop.permute.xlu0 %2069
  %v2087 = vsel %vm26, %v1494, %v1656
  %v2088 = vsel %vm26, %v1495, %v1658
  %v2089 = vsel %vm26, %v1496, %v1660
  %v2090 = vsel %vm26, %v1497, %v1662
  %v2091 = vsel %vm26, %v1498, %v1664
  %v2092 = vsel %vm26, %v1499, %v1666
  %v2093 = vsel %vm26, %v1500, %v1668
  %v2094 = vsel %vm26, %v1501, %v1670
  %v2095 = vsel %vm26, %v1502, %v1672
  %v2096 = vsel %vm26, %v1503, %v1674
  %v2097 = vsel %vm26, %v1504, %v1676
  %v2098 = vsel %vm26, %v1505, %v1678
  %v2099 = vsel %vm26, %v1506, %v1680
  %v2100 = vsel %vm26, %v1507, %v1682
  %v2101 = vsel %vm26, %v1508, %v1684
  %v2102 = vsel %vm26, %v1509, %v1686
  %vm2103 = vcmask 261120
  %v2104 = vsel %vm2103, %v2087, %v1720
  %v2105 = vsel %vm2103, %v2088, %v1722
  %v2106 = vsel %vm2103, %v2089, %v1724
  %v2107 = vsel %vm2103, %v2090, %v1726
  %v2108 = vsel %vm2103, %v2091, %v1728
  %v2109 = vsel %vm2103, %v2092, %v1730
  %v2110 = vsel %vm2103, %v2093, %v1732
  %v2111 = vsel %vm2103, %v2094, %v1734
  %v2112 = vsel %vm2103, %v2095, %v1736
  %v2113 = vsel %vm2103, %v2096, %v1738
  %v2114 = vsel %vm2103, %v2097, %v1740
  %v2115 = vsel %vm2103, %v2098, %v1742
  %v2116 = vsel %vm2103, %v2099, %v1744
  %v2117 = vsel %vm2103, %v2100, %v1746
  %v2118 = vsel %vm2103, %v2101, %v1748
  %v2119 = vsel %vm2103, %v2102, %v1750
  %vm2120 = vcmask 392192
  %v2121 = vsel %vm2120, %v2104, %v1784
  %v2122 = vsel %vm2120, %v2105, %v1786
  %v2123 = vsel %vm2120, %v2106, %v1788
  %v2124 = vsel %vm2120, %v2107, %v1790
  %v2125 = vsel %vm2120, %v2108, %v1792
  %v2126 = vsel %vm2120, %v2109, %v1794
  %v2127 = vsel %vm2120, %v2110, %v1796
  %v2128 = vsel %vm2120, %v2111, %v1798
  %v2129 = vsel %vm2120, %v2112, %v1800
  %v2130 = vsel %vm2120, %v2113, %v1802
  %v2131 = vsel %vm2120, %v2114, %v1804
  %v2132 = vsel %vm2120, %v2115, %v1806
  %v2133 = vsel %vm2120, %v2116, %v1808
  %v2134 = vsel %vm2120, %v2117, %v1810
  %v2135 = vsel %vm2120, %v2118, %v1812
  %v2136 = vsel %vm2120, %v2119, %v1814
  %vm2137 = vcmask 523264
  %v2138 = vsel %vm2137, %v2121, %v1848
  %v2139 = vsel %vm2137, %v2122, %v1850
  %v2140 = vsel %vm2137, %v2123, %v1852
  %v2141 = vsel %vm2137, %v2124, %v1854
  %v2142 = vsel %vm2137, %v2125, %v1856
  %v2143 = vsel %vm2137, %v2126, %v1858
  %v2144 = vsel %vm2137, %v2127, %v1860
  %v2145 = vsel %vm2137, %v2128, %v1862
  %v2146 = vsel %vm2137, %v2129, %v1864
  %v2147 = vsel %vm2137, %v2130, %v1866
  %v2148 = vsel %vm2137, %v2131, %v1868
  %v2149 = vsel %vm2137, %v2132, %v1870
  %v2150 = vsel %vm2137, %v2133, %v1872
  %v2151 = vsel %vm2137, %v2134, %v1874
  %v2152 = vsel %vm2137, %v2135, %v1876
  %v2153 = vsel %vm2137, %v2136, %v1878
  %vm2154 = vcmask 654336
  %v2155 = vsel %vm2154, %v2138, %v1912
  %v2156 = vsel %vm2154, %v2139, %v1914
  %v2157 = vsel %vm2154, %v2140, %v1916
  %v2158 = vsel %vm2154, %v2141, %v1918
  %v2159 = vsel %vm2154, %v2142, %v1920
  %v2160 = vsel %vm2154, %v2143, %v1922
  %v2161 = vsel %vm2154, %v2144, %v1924
  %v2162 = vsel %vm2154, %v2145, %v1926
  %v2163 = vsel %vm2154, %v2146, %v1928
  %v2164 = vsel %vm2154, %v2147, %v1930
  %v2165 = vsel %vm2154, %v2148, %v1932
  %v2166 = vsel %vm2154, %v2149, %v1934
  %v2167 = vsel %vm2154, %v2150, %v1936
  %v2168 = vsel %vm2154, %v2151, %v1938
  %v2169 = vsel %vm2154, %v2152, %v1940
  %v2170 = vsel %vm2154, %v2153, %v1942
  %vm2171 = vcmask 785408
  %v2172 = vsel %vm2171, %v2155, %v1976
  %v2173 = vsel %vm2171, %v2156, %v1978
  %v2174 = vsel %vm2171, %v2157, %v1980
  %v2175 = vsel %vm2171, %v2158, %v1982
  %v2176 = vsel %vm2171, %v2159, %v1984
  %v2177 = vsel %vm2171, %v2160, %v1986
  %v2178 = vsel %vm2171, %v2161, %v1988
  %v2179 = vsel %vm2171, %v2162, %v1990
  %v2180 = vsel %vm2171, %v2163, %v1992
  %v2181 = vsel %vm2171, %v2164, %v1994
  %v2182 = vsel %vm2171, %v2165, %v1996
  %v2183 = vsel %vm2171, %v2166, %v1998
  %v2184 = vsel %vm2171, %v2167, %v2000
  %v2185 = vsel %vm2171, %v2168, %v2002
  %v2186 = vsel %vm2171, %v2169, %v2004
  %v2187 = vsel %vm2171, %v2170, %v2006
  %vm2188 = vcmask 916480
  %v2189 = vsel %vm2188, %v2172, %v2040
  %v2190 = vsel %vm2188, %v2173, %v2042
  %v2191 = vsel %vm2188, %v2174, %v2044
  %v2192 = vsel %vm2188, %v2175, %v2046
  %v2193 = vsel %vm2188, %v2176, %v2048
  %v2194 = vsel %vm2188, %v2177, %v2050
  %v2195 = vsel %vm2188, %v2178, %v2052
  %v2196 = vsel %vm2188, %v2179, %v2054
  %v2197 = vsel %vm2188, %v2180, %v2056
  %v2198 = vsel %vm2188, %v2181, %v2058
  %v2199 = vsel %vm2188, %v2182, %v2060
  %v2200 = vsel %vm2188, %v2183, %v2062
  %v2201 = vsel %vm2188, %v2184, %v2064
  %v2202 = vsel %vm2188, %v2185, %v2066
  %v2203 = vsel %vm2188, %v2186, %v2068
  %v2204 = vsel %vm2188, %v2187, %v2070
  %v2205 = vld [vmem:[%s3] sm:$0xff]
  %v2206 = vld [vmem:[%s3 + $0x8] sm:$0xff]
  %v2207 = vld [vmem:[%s3 + $0x10] sm:$0xff]
  %v2208 = vld [vmem:[%s3 + $0x18] sm:$0xff]
  %v2209 = vld [vmem:[%s3 + $0x20] sm:$0xff]
  %v2210 = vld [vmem:[%s3 + $0x28] sm:$0xff]
  %v2211 = vld [vmem:[%s3 + $0x30] sm:$0xff]
  %v2212 = vld [vmem:[%s3 + $0x38] sm:$0xff]
  %v2213 = vld [vmem:[%s3 + $0x40] sm:$0xff]
  %v2214 = vld [vmem:[%s3 + $0x48] sm:$0xff]
  %v2215 = vld [vmem:[%s3 + $0x50] sm:$0xff]
  %v2216 = vld [vmem:[%s3 + $0x58] sm:$0xff]
  %v2217 = vld [vmem:[%s3 + $0x60] sm:$0xff]
  %v2218 = vld [vmem:[%s3 + $0x68] sm:$0xff]
  %v2219 = vld [vmem:[%s3 + $0x70] sm:$0xff]
  %v2220 = vld [vmem:[%s3 + $0x78] sm:$0xff]
  %v2221 = vld [vmem:[%s3 + $0x80] sm:$0xff]
  %v2222 = vld [vmem:[%s3 + $0x88] sm:$0xff]
  %v2223 = vld [vmem:[%s4] sm:$0x1]
  %v2224 = vlaneseq
  %v2225 = vshrl.u32 %v2224, 7
  %v2226 = vsub.s32 0, %v2225
  %v2227 = vrot.slane %v2223, %v2226
  %v2229 = vsel %vm26, %v1623, 0
  %v2232 = vsel %vm26, %v1624, 0
  %v2235 = vsel %vm26, %v1625, 0
  %v2238 = vsel %vm26, %v1626, 0
  %v2241 = vsel %vm26, %v1627, 0
  %v2244 = vsel %vm26, %v1628, 0
  %v2247 = vsel %vm26, %v1629, 0
  %v2250 = vsel %vm26, %v1630, 0
  %v2253 = vsel %vm26, %v1631, 0
  %v2256 = vsel %vm26, %v1632, 0
  %v2259 = vsel %vm26, %v1633, 0
  %v2262 = vsel %vm26, %v1634, 0
  %v2265 = vsel %vm26, %v1635, 0
  %v2268 = vsel %vm26, %v1636, 0
  %v2271 = vsel %vm26, %v1637, 0
  %v2274 = vsel %vm26, %v1638, 0
  %2276 = vmatprep.subr.mxu0 0.0
  %2277 = vmatpush1.msra.mxu0 %v2205
  %2278 = vmatprep.subr.mxu0 0.0
  %2279 = vmatpush1.msra.mxu0 %v2206
  %2280 = vmatprep.subr.mxu0 0.0
  %2281 = vmatpush1.msra.mxu0 %v2207
  %2282 = vmatprep.subr.mxu0 0.0
  %2283 = vmatpush1.msra.mxu0 %v2208
  %2284 = vmatprep.subr.mxu0 0.0
  %2285 = vmatpush1.msra.mxu0 %v2209
  %2286 = vmatprep.subr.mxu0 0.0
  %2287 = vmatpush1.msra.mxu0 %v2210
  %2288 = vmatprep.subr.mxu0 0.0
  %2289 = vmatpush1.msra.mxu0 %v2211
  %2290 = vmatprep.subr.mxu0 0.0
  %2291 = vmatpush1.msra.mxu0 %v2212
  %2292 = vmatprep.subr.mxu0 0.0
  %2293 = vmatpush1.msra.mxu0 %v2213
  %2294 = vmatprep.subr.mxu0 0.0
  %2295 = vmatpush1.msra.mxu0 %v2214
  %2296 = vmatprep.subr.mxu0 0.0
  %2297 = vmatpush1.msra.mxu0 %v2215
  %2298 = vmatprep.subr.mxu0 0.0
  %2299 = vmatpush1.msra.mxu0 %v2216
  %2300 = vmatprep.subr.mxu0 0.0
  %2301 = vmatpush1.msra.mxu0 %v2217
  %2302 = vmatprep.subr.mxu0 0.0
  %2303 = vmatpush1.msra.mxu0 %v2218
  %2304 = vmatprep.subr.mxu0 0.0
  %2305 = vmatpush1.msra.mxu0 %v2219
  %2306 = vmatprep.subr.mxu0 0.0
  %2307 = vmatpush1.msra.mxu0 %v2220
  %2308 = vmatprep.subr.mxu0 0.0
  %2309 = vmatpush1.msra.mxu0 %v2221
  %2310 = vmatprep.subr.mxu0 0.0
  %2311 = vmatpush1.msra.mxu0 %v2222
  %2312 = vmatprep.subr.mxu0 0.0
  %2313 = vmatpush1.msra.mxu0 0.0
  %2314 = vmatprep.subr.mxu0 0.0
  %2315 = vmatpush1.msra.mxu0 0.0
  %2316 = vmatprep.subr.mxu0 0.0
  %2317 = vmatpush1.msra.mxu0 0.0
  %2318 = vmatprep.subr.mxu0 0.0
  %2319 = vmatpush1.msra.mxu0 0.0
  %2320 = vmatprep.subr.mxu0 0.0
  %2321 = vmatpush1.msra.mxu0 0.0
  %2322 = vmatprep.subr.mxu0 0.0
  %2323 = vmatpush1.msra.mxu0 0.0
  %2324 = vmatprep.subr.mxu0 0.0
  %2325 = vmatpush1.msra.mxu0 0.0
  %2326 = vmatprep.subr.mxu0 0.0
  %2327 = vmatpush1.msra.mxu0 0.0
  %2328 = vmatprep.subr.mxu0 0.0
  %2329 = vmatpush1.msra.mxu0 0.0
  %2330 = vmatprep.subr.mxu0 0.0
  %2331 = vmatpush1.msra.mxu0 0.0
  %2332 = vmatprep.subr.mxu0 0.0
  %2333 = vmatpush1.msra.mxu0 0.0
  %2334 = vmatprep.subr.mxu0 0.0
  %2335 = vmatpush1.msra.mxu0 0.0
  %2336 = vmatprep.subr.mxu0 0.0
  %2337 = vmatpush1.msra.mxu0 0.0
  %2338 = vmatprep.subr.mxu0 0.0
  %2339 = vmatpush1.msra.mxu0 0.0
  %2340 = vmatprep.mubr.f32.mxu0 %v2229
  %2341 = vmatmul.mubr.f32.gmra.mrb[0].mxu0 %v2189
  %v2342 = vpop.f32.mrb[0].mxu0
  %v2343 = vadd.f32 %v2227, %v2342
  %v2344 = vpop.f32.mrb[0].mxu0
  %2345 = vmatprep.mubr.f32.mxu0 %v2232
  %2346 = vmatmul.mubr.f32.gmra.mrb[0].mxu0 %v2190
  %v2347 = vpop.f32.mrb[0].mxu0
  %v2348 = vadd.f32 %v2227, %v2347
  %v2349 = vpop.f32.mrb[0].mxu0
  %2350 = vmatprep.mubr.f32.mxu0 %v2235
  %2351 = vmatmul.mubr.f32.gmra.mrb[0].mxu0 %v2191
  %v2352 = vpop.f32.mrb[0].mxu0
  %v2353 = vadd.f32 %v2227, %v2352
  %v2354 = vpop.f32.mrb[0].mxu0
  %2355 = vmatprep.mubr.f32.mxu0 %v2238
  %2356 = vmatmul.mubr.f32.gmra.mrb[0].mxu0 %v2192
  %v2357 = vpop.f32.mrb[0].mxu0
  %v2358 = vadd.f32 %v2227, %v2357
  %v2359 = vpop.f32.mrb[0].mxu0
  %2360 = vmatprep.mubr.f32.mxu0 %v2241
  %2361 = vmatmul.mubr.f32.gmra.mrb[0].mxu0 %v2193
  %v2362 = vpop.f32.mrb[0].mxu0
  %v2363 = vadd.f32 %v2227, %v2362
  %v2364 = vpop.f32.mrb[0].mxu0
  %2365 = vmatprep.mubr.f32.mxu0 %v2244
  %2366 = vmatmul.mubr.f32.gmra.mrb[0].mxu0 %v2194
  %v2367 = vpop.f32.mrb[0].mxu0
  %v2368 = vadd.f32 %v2227, %v2367
  %v2369 = vpop.f32.mrb[0].mxu0
  %2370 = vmatprep.mubr.f32.mxu0 %v2247
  %2371 = vmatmul.mubr.f32.gmra.mrb[0].mxu0 %v2195
  %v2372 = vpop.f32.mrb[0].mxu0
  %v2373 = vadd.f32 %v2227, %v2372
  %v2374 = vpop.f32.mrb[0].mxu0
  %2375 = vmatprep.mubr.f32.mxu0 %v2250
  %2376 = vmatmul.mubr.f32.gmra.mrb[0].mxu0 %v2196
  %v2377 = vpop.f32.mrb[0].mxu0
  %v2378 = vadd.f32 %v2227, %v2377
  %v2379 = vpop.f32.mrb[0].mxu0
  %2380 = vmatprep.mubr.f32.mxu0 %v2253
  %2381 = vmatmul.mubr.f32.gmra.mrb[0].mxu0 %v2197
  %v2382 = vpop.f32.mrb[0].mxu0
  %v2383 = vadd.f32 %v2227, %v2382
  %v2384 = vpop.f32.mrb[0].mxu0
  %2385 = vmatprep.mubr.f32.mxu0 %v2256
  %2386 = vmatmul.mubr.f32.gmra.mrb[0].mxu0 %v2198
  %v2387 = vpop.f32.mrb[0].mxu0
  %v2388 = vadd.f32 %v2227, %v2387
  %v2389 = vpop.f32.mrb[0].mxu0
  %2390 = vmatprep.mubr.f32.mxu0 %v2259
  %2391 = vmatmul.mubr.f32.gmra.mrb[0].mxu0 %v2199
  %v2392 = vpop.f32.mrb[0].mxu0
  %v2393 = vadd.f32 %v2227, %v2392
  %v2394 = vpop.f32.mrb[0].mxu0
  %2395 = vmatprep.mubr.f32.mxu0 %v2262
  %2396 = vmatmul.mubr.f32.gmra.mrb[0].mxu0 %v2200
  %v2397 = vpop.f32.mrb[0].mxu0
  %v2398 = vadd.f32 %v2227, %v2397
  %v2399 = vpop.f32.mrb[0].mxu0
  %2400 = vmatprep.mubr.f32.mxu0 %v2265
  %2401 = vmatmul.mubr.f32.gmra.mrb[0].mxu0 %v2201
  %v2402 = vpop.f32.mrb[0].mxu0
  %v2403 = vadd.f32 %v2227, %v2402
  %v2404 = vpop.f32.mrb[0].mxu0
  %2405 = vmatprep.mubr.f32.mxu0 %v2268
  %2406 = vmatmul.mubr.f32.gmra.mrb[0].mxu0 %v2202
  %v2407 = vpop.f32.mrb[0].mxu0
  %v2408 = vadd.f32 %v2227, %v2407
  %v2409 = vpop.f32.mrb[0].mxu0
  %2410 = vmatprep.mubr.f32.mxu0 %v2271
  %2411 = vmatmul.mubr.f32.gmra.mrb[0].mxu0 %v2203
  %v2412 = vpop.f32.mrb[0].mxu0
  %v2413 = vadd.f32 %v2227, %v2412
  %v2414 = vpop.f32.mrb[0].mxu0
  %2415 = vmatprep.mubr.f32.mxu0 %v2274
  %2416 = vmatmul.mubr.f32.gmra.mrb[0].mxu0 %v2204
  %v2417 = vpop.f32.mrb[0].mxu0
  %v2418 = vadd.f32 %v2227, %v2417
  %v2419 = vpop.f32.mrb[0].mxu0
  %2420 = vdwg.mxu0
  %vm2421 = vcmask 64512
  %v2422 = vsel %vm2421, %v2343, 0.0
  %v2423 = vsel %vm2421, %v2348, 0.0
  %v2424 = vadd.f32 %v2422, %v2423
  %v2425 = vsel %vm2421, %v2353, 0.0
  %v2426 = vadd.f32 %v2424, %v2425
  %v2427 = vsel %vm2421, %v2358, 0.0
  %v2428 = vadd.f32 %v2426, %v2427
  %v2429 = vsel %vm2421, %v2363, 0.0
  %v2430 = vadd.f32 %v2428, %v2429
  %v2431 = vsel %vm2421, %v2368, 0.0
  %v2432 = vadd.f32 %v2430, %v2431
  %v2433 = vsel %vm2421, %v2373, 0.0
  %v2434 = vadd.f32 %v2432, %v2433
  %v2435 = vsel %vm2421, %v2378, 0.0
  %v2436 = vadd.f32 %v2434, %v2435
  %v2437 = vsel %vm2421, %v2383, 0.0
  %v2438 = vadd.f32 %v2436, %v2437
  %v2439 = vsel %vm2421, %v2388, 0.0
  %v2440 = vadd.f32 %v2438, %v2439
  %v2441 = vsel %vm2421, %v2393, 0.0
  %v2442 = vadd.f32 %v2440, %v2441
  %v2443 = vsel %vm2421, %v2398, 0.0
  %v2444 = vadd.f32 %v2442, %v2443
  %v2445 = vsel %vm2421, %v2403, 0.0
  %v2446 = vadd.f32 %v2444, %v2445
  %v2447 = vsel %vm2421, %v2408, 0.0
  %v2448 = vadd.f32 %v2446, %v2447
  %v2449 = vsel %vm2421, %v2413, 0.0
  %v2450 = vadd.f32 %v2448, %v2449
  %v2451 = vsel %vm2421, %v2418, 0.0
  %v2452 = vadd.f32 %v2450, %v2451
  %v2453 = vrot.slane %v2452, 4
  %v2454 = vadd.f32 %v2452, %v2453
  %v2455 = vrot.slane %v2454, 2
  %v2456 = vadd.f32 %v2454, %v2455
  %v2457 = vrot.slane %v2456, 1
  %v2458 = vadd.f32 %v2456, %v2457
  %v2459 = vrcp.pop 128.0
  %v2460 = vmul.f32 %v2458, %v2459
  %v2461 = vsub.f32 %v2343, %v2460
  %v2462 = vsub.f32 %v2348, %v2460
  %v2463 = vsub.f32 %v2353, %v2460
  %v2464 = vsub.f32 %v2358, %v2460
  %v2465 = vsub.f32 %v2363, %v2460
  %v2466 = vsub.f32 %v2368, %v2460
  %v2467 = vsub.f32 %v2373, %v2460
  %v2468 = vsub.f32 %v2378, %v2460
  %v2469 = vsub.f32 %v2383, %v2460
  %v2470 = vsub.f32 %v2388, %v2460
  %v2471 = vsub.f32 %v2393, %v2460
  %v2472 = vsub.f32 %v2398, %v2460
  %v2473 = vsub.f32 %v2403, %v2460
  %v2474 = vsub.f32 %v2408, %v2460
  %v2475 = vsub.f32 %v2413, %v2460
  %v2476 = vsub.f32 %v2418, %v2460
  %v2477 = vmul.f32 %v2461, %v2461
  %v2478 = vmul.f32 %v2462, %v2462
  %v2479 = vmul.f32 %v2463, %v2463
  %v2480 = vmul.f32 %v2464, %v2464
  %v2481 = vmul.f32 %v2465, %v2465
  %v2482 = vmul.f32 %v2466, %v2466
  %v2483 = vmul.f32 %v2467, %v2467
  %v2484 = vmul.f32 %v2468, %v2468
  %v2485 = vmul.f32 %v2469, %v2469
  %v2486 = vmul.f32 %v2470, %v2470
  %v2487 = vmul.f32 %v2471, %v2471
  %v2488 = vmul.f32 %v2472, %v2472
  %v2489 = vmul.f32 %v2473, %v2473
  %v2490 = vmul.f32 %v2474, %v2474
  %v2491 = vmul.f32 %v2475, %v2475
  %v2492 = vmul.f32 %v2476, %v2476
  %v2493 = vsel %vm2421, %v2477, 0.0
  %v2494 = vsel %vm2421, %v2478, 0.0
  %v2495 = vadd.f32 %v2493, %v2494
  %v2496 = vsel %vm2421, %v2479, 0.0
  %v2497 = vadd.f32 %v2495, %v2496
  %v2498 = vsel %vm2421, %v2480, 0.0
  %v2499 = vadd.f32 %v2497, %v2498
  %v2500 = vsel %vm2421, %v2481, 0.0
  %v2501 = vadd.f32 %v2499, %v2500
  %v2502 = vsel %vm2421, %v2482, 0.0
  %v2503 = vadd.f32 %v2501, %v2502
  %v2504 = vsel %vm2421, %v2483, 0.0
  %v2505 = vadd.f32 %v2503, %v2504
  %v2506 = vsel %vm2421, %v2484, 0.0
  %v2507 = vadd.f32 %v2505, %v2506
  %v2508 = vsel %vm2421, %v2485, 0.0
  %v2509 = vadd.f32 %v2507, %v2508
  %v2510 = vsel %vm2421, %v2486, 0.0
  %v2511 = vadd.f32 %v2509, %v2510
  %v2512 = vsel %vm2421, %v2487, 0.0
  %v2513 = vadd.f32 %v2511, %v2512
  %v2514 = vsel %vm2421, %v2488, 0.0
  %v2515 = vadd.f32 %v2513, %v2514
  %v2516 = vsel %vm2421, %v2489, 0.0
  %v2517 = vadd.f32 %v2515, %v2516
  %v2518 = vsel %vm2421, %v2490, 0.0
  %v2519 = vadd.f32 %v2517, %v2518
  %v2520 = vsel %vm2421, %v2491, 0.0
  %v2521 = vadd.f32 %v2519, %v2520
  %v2522 = vsel %vm2421, %v2492, 0.0
  %v2523 = vadd.f32 %v2521, %v2522
  %v2524 = vrot.slane %v2523, 4
  %v2525 = vadd.f32 %v2523, %v2524
  %v2526 = vrot.slane %v2525, 2
  %v2527 = vadd.f32 %v2525, %v2526
  %v2528 = vrot.slane %v2527, 1
  %v2529 = vadd.f32 %v2527, %v2528
  %v2530 = vmul.f32 %v2529, %v2459
  %v2531 = vadd.f32 %v2530, 1e-05
  %v2532 = vrsqrt.pop %v2531
  %v2533 = vmul.f32 %v2461, %v2532
  %v2534 = vmul.f32 %v2462, %v2532
  %v2535 = vmul.f32 %v2463, %v2532
  %v2536 = vmul.f32 %v2464, %v2532
  %v2537 = vmul.f32 %v2465, %v2532
  %v2538 = vmul.f32 %v2466, %v2532
  %v2539 = vmul.f32 %v2467, %v2532
  %v2540 = vmul.f32 %v2468, %v2532
  %v2541 = vmul.f32 %v2469, %v2532
  %v2542 = vmul.f32 %v2470, %v2532
  %v2543 = vmul.f32 %v2471, %v2532
  %v2544 = vmul.f32 %v2472, %v2532
  %v2545 = vmul.f32 %v2473, %v2532
  %v2546 = vmul.f32 %v2474, %v2532
  %v2547 = vmul.f32 %v2475, %v2532
  %v2548 = vmul.f32 %v2476, %v2532
  %v2549 = vld [vmem:[%s4 + $0x1] sm:$0x1]
  %v2550 = vlaneseq
  %v2551 = vshrl.u32 %v2550, 7
  %v2552 = vsub.s32 0, %v2551
  %v2553 = vrot.slane %v2549, %v2552
  %v2554 = vmul.f32 %v2533, %v2553
  %v2555 = vmul.f32 %v2534, %v2553
  %v2556 = vmul.f32 %v2535, %v2553
  %v2557 = vmul.f32 %v2536, %v2553
  %v2558 = vmul.f32 %v2537, %v2553
  %v2559 = vmul.f32 %v2538, %v2553
  %v2560 = vmul.f32 %v2539, %v2553
  %v2561 = vmul.f32 %v2540, %v2553
  %v2562 = vmul.f32 %v2541, %v2553
  %v2563 = vmul.f32 %v2542, %v2553
  %v2564 = vmul.f32 %v2543, %v2553
  %v2565 = vmul.f32 %v2544, %v2553
  %v2566 = vmul.f32 %v2545, %v2553
  %v2567 = vmul.f32 %v2546, %v2553
  %v2568 = vmul.f32 %v2547, %v2553
  %v2569 = vmul.f32 %v2548, %v2553
  %v2570 = vld [vmem:[%s4 + $0x2] sm:$0x1]
  %v2571 = vlaneseq
  %v2572 = vshrl.u32 %v2571, 7
  %v2573 = vsub.s32 0, %v2572
  %v2574 = vrot.slane %v2570, %v2573
  %v2575 = vadd.f32 %v2554, %v2574
  %v2576 = vadd.f32 %v2555, %v2574
  %v2577 = vadd.f32 %v2556, %v2574
  %v2578 = vadd.f32 %v2557, %v2574
  %v2579 = vadd.f32 %v2558, %v2574
  %v2580 = vadd.f32 %v2559, %v2574
  %v2581 = vadd.f32 %v2560, %v2574
  %v2582 = vadd.f32 %v2561, %v2574
  %v2583 = vadd.f32 %v2562, %v2574
  %v2584 = vadd.f32 %v2563, %v2574
  %v2585 = vadd.f32 %v2564, %v2574
  %v2586 = vadd.f32 %v2565, %v2574
  %v2587 = vadd.f32 %v2566, %v2574
  %v2588 = vadd.f32 %v2567, %v2574
  %v2589 = vadd.f32 %v2568, %v2574
  %v2590 = vadd.f32 %v2569, %v2574
  %v2591 = vmax.f32 %v2575, 0.0
  %v2592 = vmax.f32 %v2576, 0.0
  %v2593 = vmax.f32 %v2577, 0.0
  %v2594 = vmax.f32 %v2578, 0.0
  %v2595 = vmax.f32 %v2579, 0.0
  %v2596 = vmax.f32 %v2580, 0.0
  %v2597 = vmax.f32 %v2581, 0.0
  %v2598 = vmax.f32 %v2582, 0.0
  %v2599 = vmax.f32 %v2583, 0.0
  %v2600 = vmax.f32 %v2584, 0.0
  %v2601 = vmax.f32 %v2585, 0.0
  %v2602 = vmax.f32 %v2586, 0.0
  %v2603 = vmax.f32 %v2587, 0.0
  %v2604 = vmax.f32 %v2588, 0.0
  %v2605 = vmax.f32 %v2589, 0.0
  %v2606 = vmax.f32 %v2590, 0.0
  %2607 = vst.msk [vmem:[#allocation3] sm:$0xff] %vm2421, 0.0
  %2608 = vst.msk [vmem:[#allocation3 + $0x8] sm:$0xff] %vm2421, 0.0
  %vm2609 = vcmask 58368
  %2610 = vst.msk [vmem:[#allocation3 + $0x10] sm:$0x3] %vm2609, 0.0
  %2611 = vst.msk [vmem:[#allocation3 + $0x18] sm:$0xff] %vm2421, 0.0
  %2612 = vst.msk [vmem:[#allocation3 + $0x20] sm:$0xff] %vm2421, 0.0
  %2613 = vst.msk [vmem:[#allocation3 + $0x28] sm:$0x3] %vm2609, 0.0
  %2614 = vst.msk [vmem:[#allocation3 + $0x30] sm:$0xff] %vm2421, 0.0
  %2615 = vst.msk [vmem:[#allocation3 + $0x38] sm:$0xff] %vm2421, 0.0
  %2616 = vst.msk [vmem:[#allocation3 + $0x40] sm:$0x3] %vm2609, 0.0
  %2617 = vst.msk [vmem:[#allocation3 + $0x48] sm:$0xff] %vm2421, 0.0
  %2618 = vst.msk [vmem:[#allocation3 + $0x50] sm:$0xff] %vm2421, 0.0
  %2619 = vst.msk [vmem:[#allocation3 + $0x58] sm:$0x3] %vm2609, 0.0
  %2620 = vst.msk [vmem:[#allocation3 + $0x60] sm:$0xff] %vm2421, 0.0
  %2621 = vst.msk [vmem:[#allocation3 + $0x68] sm:$0xff] %vm2421, 0.0
  %2622 = vst.msk [vmem:[#allocation3 + $0x70] sm:$0x3] %vm2609, 0.0
  %2623 = vst.msk [vmem:[#allocation3 + $0x78] sm:$0xff] %vm2421, 0.0
  %2624 = vst.msk [vmem:[#allocation3 + $0x80] sm:$0xff] %vm2421, 0.0
  %2625 = vst.msk [vmem:[#allocation3 + $0x88] sm:$0x3] %vm2609, 0.0
  %2626 = vst.msk [vmem:[#allocation3 + $0x90] sm:$0xff] %vm2421, 0.0
  %2627 = vst.msk [vmem:[#allocation3 + $0x98] sm:$0xff] %vm2421, 0.0
  %2628 = vst.msk [vmem:[#allocation3 + $0xa0] sm:$0x3] %vm2609, 0.0
  %2629 = vst.msk [vmem:[#allocation3 + $0xa8] sm:$0xff] %vm2421, 0.0
  %2630 = vst.msk [vmem:[#allocation3 + $0xb0] sm:$0xff] %vm2421, 0.0
  %2631 = vst.msk [vmem:[#allocation3 + $0xb8] sm:$0x3] %vm2609, 0.0
  %2632 = vst.msk [vmem:[#allocation3 + $0xc0] sm:$0xff] %vm2421, 0.0
  %2633 = vst.msk [vmem:[#allocation3 + $0xc8] sm:$0xff] %vm2421, 0.0
  %2634 = vst.msk [vmem:[#allocation3 + $0xd0] sm:$0x3] %vm2609, 0.0
  %2635 = vst.msk [vmem:[#allocation3 + $0xd8] sm:$0xff] %vm2421, 0.0
  %2636 = vst.msk [vmem:[#allocation3 + $0xe0] sm:$0xff] %vm2421, 0.0
  %2637 = vst.msk [vmem:[#allocation3 + $0xe8] sm:$0x3] %vm2609, 0.0
  %2638 = vst.msk [vmem:[#allocation3 + $0xf0] sm:$0xff] %vm2421, 0.0
  %2639 = vst.msk [vmem:[#allocation3 + $0xf8] sm:$0xff] %vm2421, 0.0
  %2640 = vst.msk [vmem:[#allocation3 + $0x100] sm:$0x3] %vm2609, 0.0
  %2641 = vst.msk [vmem:[#allocation3 + $0x108] sm:$0xff] %vm2421, 0.0
  %2642 = vst.msk [vmem:[#allocation3 + $0x110] sm:$0xff] %vm2421, 0.0
  %2643 = vst.msk [vmem:[#allocation3 + $0x118] sm:$0x3] %vm2609, 0.0
  %2644 = vst.msk [vmem:[#allocation3 + $0x120] sm:$0xff] %vm2421, 0.0
  %2645 = vst.msk [vmem:[#allocation3 + $0x128] sm:$0xff] %vm2421, 0.0
  %2646 = vst.msk [vmem:[#allocation3 + $0x130] sm:$0x3] %vm2609, 0.0
  %2647 = vst.msk [vmem:[#allocation3 + $0x138] sm:$0xff] %vm2421, 0.0
  %2648 = vst.msk [vmem:[#allocation3 + $0x140] sm:$0xff] %vm2421, 0.0
  %2649 = vst.msk [vmem:[#allocation3 + $0x148] sm:$0x3] %vm2609, 0.0
  %2650 = vst.msk [vmem:[#allocation3 + $0x150] sm:$0xff] %vm2421, 0.0
  %2651 = vst.msk [vmem:[#allocation3 + $0x158] sm:$0xff] %vm2421, 0.0
  %2652 = vst.msk [vmem:[#allocation3 + $0x160] sm:$0x3] %vm2609, 0.0
  %2653 = vst.msk [vmem:[#allocation3 + $0x168] sm:$0xff] %vm2421, 0.0
  %2654 = vst.msk [vmem:[#allocation3 + $0x170] sm:$0xff] %vm2421, 0.0
  %2655 = vst.msk [vmem:[#allocation3 + $0x178] sm:$0x3] %vm2609, 0.0
  %2656 = vst.msk [vmem:[#allocation3 + $0x180] sm:$0xff] %vm2421, 0.0
  %2657 = vst.msk [vmem:[#allocation3 + $0x188] sm:$0xff] %vm2421, 0.0
  %2658 = vst.msk [vmem:[#allocation3 + $0x190] sm:$0x3] %vm2609, 0.0
  %2659 = vst.msk [vmem:[#allocation3 + $0x198] sm:$0xff] %vm2421, 0.0
  %2660 = vst.msk [vmem:[#allocation3 + $0x1a0] sm:$0xff] %vm2421, 0.0
  %2661 = vst.msk [vmem:[#allocation3 + $0x1a8] sm:$0x3] %vm2609, 0.0
  %2662 = vst.msk [vmem:[#allocation3 + $0x1b0] sm:$0xff] %vm2421, 0.0
  %2663 = vst.msk [vmem:[#allocation3 + $0x1b8] sm:$0xff] %vm2421, 0.0
  %2664 = vst.msk [vmem:[#allocation3 + $0x1c0] sm:$0x3] %vm2609, 0.0
  %2665 = vst.msk [vmem:[#allocation3 + $0x1c8] sm:$0xff] %vm2421, 0.0
  %2666 = vst.msk [vmem:[#allocation3 + $0x1d0] sm:$0xff] %vm2421, 0.0
  %2667 = vst.msk [vmem:[#allocation3 + $0x1d8] sm:$0x3] %vm2609, 0.0
  %2668 = vst.msk [vmem:[#allocation3 + $0x1e0] sm:$0xff] %vm2421, 0.0
  %2669 = vst.msk [vmem:[#allocation3 + $0x1e8] sm:$0xff] %vm2421, 0.0
  %2670 = vst.msk [vmem:[#allocation3 + $0x1f0] sm:$0x3] %vm2609, 0.0
  %2671 = vst.msk [vmem:[#allocation3 + $0x1f8] sm:$0xff] %vm2421, 0.0
  %2672 = vst.msk [vmem:[#allocation3 + $0x200] sm:$0xff] %vm2421, 0.0
  %2673 = vst.msk [vmem:[#allocation3 + $0x208] sm:$0x3] %vm2609, 0.0
  %2674 = vst.msk [vmem:[#allocation3 + $0x210] sm:$0xff] %vm2421, 0.0
  %2675 = vst.msk [vmem:[#allocation3 + $0x218] sm:$0xff] %vm2421, 0.0
  %2676 = vst.msk [vmem:[#allocation3 + $0x220] sm:$0x3] %vm2609, 0.0
  %2677 = vst.msk [vmem:[#allocation3 + $0x228] sm:$0xff] %vm2421, 0.0
  %2678 = vst.msk [vmem:[#allocation3 + $0x230] sm:$0xff] %vm2421, 0.0
  %2679 = vst.msk [vmem:[#allocation3 + $0x238] sm:$0x3] %vm2609, 0.0
  %2680 = vst.msk [vmem:[#allocation3 + $0x240] sm:$0xff] %vm2421, 0.0
  %2681 = vst.msk [vmem:[#allocation3 + $0x248] sm:$0xff] %vm2421, 0.0
  %2682 = vst.msk [vmem:[#allocation3 + $0x250] sm:$0x3] %vm2609, 0.0
  %2683 = vst.msk [vmem:[#allocation3 + $0x258] sm:$0xff] %vm2421, 0.0
  %2684 = vst.msk [vmem:[#allocation3 + $0x260] sm:$0xff] %vm2421, 0.0
  %2685 = vst.msk [vmem:[#allocation3 + $0x268] sm:$0x3] %vm2609, 0.0
  %2686 = vst.msk [vmem:[#allocation3 + $0x270] sm:$0xff] %vm2421, 0.0
  %2687 = vst.msk [vmem:[#allocation3 + $0x278] sm:$0xff] %vm2421, 0.0
  %2688 = vst.msk [vmem:[#allocation3 + $0x280] sm:$0x3] %vm2609, 0.0
  %2689 = vst.msk [vmem:[#allocation3 + $0x288] sm:$0xff] %vm2421, 0.0
  %2690 = vst.msk [vmem:[#allocation3 + $0x290] sm:$0xff] %vm2421, 0.0
  %2691 = vst.msk [vmem:[#allocation3 + $0x298] sm:$0x3] %vm2609, 0.0
  %2692 = vst.msk [vmem:[#allocation3 + $0x2a0] sm:$0xff] %vm2421, 0.0
  %2693 = vst.msk [vmem:[#allocation3 + $0x2a8] sm:$0xff] %vm2421, 0.0
  %2694 = vst.msk [vmem:[#allocation3 + $0x2b0] sm:$0x3] %vm2609, 0.0
  %2695 = vst.msk [vmem:[#allocation3 + $0x2b8] sm:$0xff] %vm2421, 0.0
  %2696 = vst.msk [vmem:[#allocation3 + $0x2c0] sm:$0xff] %vm2421, 0.0
  %2697 = vst.msk [vmem:[#allocation3 + $0x2c8] sm:$0x3] %vm2609, 0.0
  %2698 = vst.msk [vmem:[#allocation3 + $0x2d0] sm:$0xff] %vm2421, 0.0
  %2699 = vst.msk [vmem:[#allocation3 + $0x2d8] sm:$0xff] %vm2421, 0.0
  %2700 = vst.msk [vmem:[#allocation3 + $0x2e0] sm:$0x3] %vm2609, 0.0
  %2701 = vst.msk [vmem:[#allocation3 + $0x2e8] sm:$0xff] %vm2421, 0.0
  %2702 = vst.msk [vmem:[#allocation3 + $0x2f0] sm:$0xff] %vm2421, 0.0
  %2703 = vst.msk [vmem:[#allocation3 + $0x2f8] sm:$0x3] %vm2609, 0.0
  %2704 = vst.msk [vmem:[#allocation3 + $0x300] sm:$0xff] %vm2421, 0.0
  %2705 = vst.msk [vmem:[#allocation3 + $0x308] sm:$0xff] %vm2421, 0.0
  %2706 = vst.msk [vmem:[#allocation3 + $0x310] sm:$0x3] %vm2609, 0.0
  %2707 = vst.msk [vmem:[#allocation3 + $0x318] sm:$0xff] %vm2421, 0.0
  %2708 = vst.msk [vmem:[#allocation3 + $0x320] sm:$0xff] %vm2421, 0.0
  %2709 = vst.msk [vmem:[#allocation3 + $0x328] sm:$0x3] %vm2609, 0.0
  %2710 = vst.msk [vmem:[#allocation3 + $0x330] sm:$0xff] %vm2421, 0.0
  %2711 = vst.msk [vmem:[#allocation3 + $0x338] sm:$0xff] %vm2421, 0.0
  %2712 = vst.msk [vmem:[#allocation3 + $0x340] sm:$0x3] %vm2609, 0.0
  %2713 = vst.msk [vmem:[#allocation3 + $0x348] sm:$0xff] %vm2421, 0.0
  %2714 = vst.msk [vmem:[#allocation3 + $0x350] sm:$0xff] %vm2421, 0.0
  %2715 = vst.msk [vmem:[#allocation3 + $0x358] sm:$0x3] %vm2609, 0.0
  %v2716 = vld [vmem:[%s2] sm:$0xff]
  %v2717 = vld [vmem:[%s2 + $0x8] sm:$0xff]
  %v2718 = vld [vmem:[%s2 + $0x10] sm:$0xff]
  %v2719 = vld [vmem:[%s2 + $0x18] sm:$0xff]
  %v2720 = vld [vmem:[%s2 + $0x20] sm:$0xff]
  %v2721 = vld [vmem:[%s2 + $0x28] sm:$0xff]
  %v2722 = vld [vmem:[%s2 + $0x30] sm:$0xff]
  %v2723 = vld [vmem:[%s2 + $0x38] sm:$0xff]
  %v2724 = vld [vmem:[%s2 + $0x40] sm:$0xff]
  %v2725 = vld [vmem:[%s2 + $0x48] sm:$0xff]
  %v2726 = vld [vmem:[%s2 + $0x50] sm:$0xff]
  %v2727 = vld [vmem:[%s2 + $0x58] sm:$0xff]
  %v2728 = vld [vmem:[%s2 + $0x60] sm:$0xff]
  %v2729 = vld [vmem:[%s2 + $0x68] sm:$0xff]
  %v2730 = vld [vmem:[%s2 + $0x70] sm:$0xff]
  %v2731 = vld [vmem:[%s2 + $0x78] sm:$0xff]
  %v2748 = vcombine.high %v2591, %v2591
  %v2750 = vunpack.c.l.s4 1966171168
  %v2751 = vunpack.c.0.s8 %v2750
  %v2752 = vlaneseq
  %v2753 = vshrl.u32 %v2752, 7
  %v2754 = vsub.s32 %v2751, %v2753
  %v2755 = vrot.slane %v2591, %v2754
  %v2757 = vunpack.c.l.s4 1966171168
  %v2758 = vunpack.c.0.s8 %v2757
  %v2759 = vlaneseq
  %v2760 = vshrl.u32 %v2759, 7
  %v2761 = vsub.s32 %v2758, %v2760
  %v2762 = vrot.slane %v2748, %v2761
  %v2763 = vcombine.high %v2755, %v2755
  %v2764 = vcombine.high %v2762, %v2762
  %v2766 = vunpack.c.l.s4 1966171168
  %v2767 = vunpack.c.0.s8 %v2766
  %v2768 = vlaneseq
  %v2769 = vshrl.u32 %v2768, 7
  %v2770 = vsub.s32 %v2767, %v2769
  %v2771 = vrot.slane %v2755, %v2770
  %v2773 = vunpack.c.l.s4 1966171168
  %v2774 = vunpack.c.0.s8 %v2773
  %v2775 = vlaneseq
  %v2776 = vshrl.u32 %v2775, 7
  %v2777 = vsub.s32 %v2774, %v2776
  %v2778 = vrot.slane %v2762, %v2777
  %v2780 = vunpack.c.l.s4 1966171168
  %v2781 = vunpack.c.0.s8 %v2780
  %v2782 = vlaneseq
  %v2783 = vshrl.u32 %v2782, 7
  %v2784 = vsub.s32 %v2781, %v2783
  %v2785 = vrot.slane %v2763, %v2784
  %v2787 = vunpack.c.l.s4 1966171168
  %v2788 = vunpack.c.0.s8 %v2787
  %v2789 = vlaneseq
  %v2790 = vshrl.u32 %v2789, 7
  %v2791 = vsub.s32 %v2788, %v2790
  %v2792 = vrot.slane %v2764, %v2791
  %v2793 = vcombine.high %v2771, %v2771
  %v2794 = vcombine.high %v2778, %v2778
  %v2795 = vcombine.high %v2785, %v2785
  %v2796 = vcombine.high %v2792, %v2792
  %v2797 = vcombine.high %v2592, %v2592
  %v2799 = vunpack.c.l.s4 1966171168
  %v2800 = vunpack.c.0.s8 %v2799
  %v2801 = vlaneseq
  %v2802 = vshrl.u32 %v2801, 7
  %v2803 = vsub.s32 %v2800, %v2802
  %v2804 = vrot.slane %v2592, %v2803
  %v2806 = vunpack.c.l.s4 1966171168
  %v2807 = vunpack.c.0.s8 %v2806
  %v2808 = vlaneseq
  %v2809 = vshrl.u32 %v2808, 7
  %v2810 = vsub.s32 %v2807, %v2809
  %v2811 = vrot.slane %v2797, %v2810
  %v2812 = vcombine.high %v2804, %v2804
  %v2813 = vcombine.high %v2811, %v2811
  %v2815 = vunpack.c.l.s4 1966171168
  %v2816 = vunpack.c.0.s8 %v2815
  %v2817 = vlaneseq
  %v2818 = vshrl.u32 %v2817, 7
  %v2819 = vsub.s32 %v2816, %v2818
  %v2820 = vrot.slane %v2804, %v2819
  %v2822 = vunpack.c.l.s4 1966171168
  %v2823 = vunpack.c.0.s8 %v2822
  %v2824 = vlaneseq
  %v2825 = vshrl.u32 %v2824, 7
  %v2826 = vsub.s32 %v2823, %v2825
  %v2827 = vrot.slane %v2811, %v2826
  %v2829 = vunpack.c.l.s4 1966171168
  %v2830 = vunpack.c.0.s8 %v2829
  %v2831 = vlaneseq
  %v2832 = vshrl.u32 %v2831, 7
  %v2833 = vsub.s32 %v2830, %v2832
  %v2834 = vrot.slane %v2812, %v2833
  %v2836 = vunpack.c.l.s4 1966171168
  %v2837 = vunpack.c.0.s8 %v2836
  %v2838 = vlaneseq
  %v2839 = vshrl.u32 %v2838, 7
  %v2840 = vsub.s32 %v2837, %v2839
  %v2841 = vrot.slane %v2813, %v2840
  %v2842 = vcombine.high %v2820, %v2820
  %v2843 = vcombine.high %v2827, %v2827
  %v2844 = vcombine.high %v2834, %v2834
  %v2845 = vcombine.high %v2841, %v2841
  %v2846 = vcombine.high %v2593, %v2593
  %v2848 = vunpack.c.l.s4 1966171168
  %v2849 = vunpack.c.0.s8 %v2848
  %v2850 = vlaneseq
  %v2851 = vshrl.u32 %v2850, 7
  %v2852 = vsub.s32 %v2849, %v2851
  %v2853 = vrot.slane %v2593, %v2852
  %v2855 = vunpack.c.l.s4 1966171168
  %v2856 = vunpack.c.0.s8 %v2855
  %v2857 = vlaneseq
  %v2858 = vshrl.u32 %v2857, 7
  %v2859 = vsub.s32 %v2856, %v2858
  %v2860 = vrot.slane %v2846, %v2859
  %v2861 = vcombine.high %v2853, %v2853
  %v2862 = vcombine.high %v2860, %v2860
  %v2864 = vunpack.c.l.s4 1966171168
  %v2865 = vunpack.c.0.s8 %v2864
  %v2866 = vlaneseq
  %v2867 = vshrl.u32 %v2866, 7
  %v2868 = vsub.s32 %v2865, %v2867
  %v2869 = vrot.slane %v2853, %v2868
  %v2871 = vunpack.c.l.s4 1966171168
  %v2872 = vunpack.c.0.s8 %v2871
  %v2873 = vlaneseq
  %v2874 = vshrl.u32 %v2873, 7
  %v2875 = vsub.s32 %v2872, %v2874
  %v2876 = vrot.slane %v2860, %v2875
  %v2878 = vunpack.c.l.s4 1966171168
  %v2879 = vunpack.c.0.s8 %v2878
  %v2880 = vlaneseq
  %v2881 = vshrl.u32 %v2880, 7
  %v2882 = vsub.s32 %v2879, %v2881
  %v2883 = vrot.slane %v2861, %v2882
  %v2885 = vunpack.c.l.s4 1966171168
  %v2886 = vunpack.c.0.s8 %v2885
  %v2887 = vlaneseq
  %v2888 = vshrl.u32 %v2887, 7
  %v2889 = vsub.s32 %v2886, %v2888
  %v2890 = vrot.slane %v2862, %v2889
  %v2891 = vcombine.high %v2869, %v2869
  %v2892 = vcombine.high %v2876, %v2876
  %v2893 = vcombine.high %v2883, %v2883
  %v2894 = vcombine.high %v2890, %v2890
  %v2895 = vcombine.high %v2594, %v2594
  %v2897 = vunpack.c.l.s4 1966171168
  %v2898 = vunpack.c.0.s8 %v2897
  %v2899 = vlaneseq
  %v2900 = vshrl.u32 %v2899, 7
  %v2901 = vsub.s32 %v2898, %v2900
  %v2902 = vrot.slane %v2594, %v2901
  %v2904 = vunpack.c.l.s4 1966171168
  %v2905 = vunpack.c.0.s8 %v2904
  %v2906 = vlaneseq
  %v2907 = vshrl.u32 %v2906, 7
  %v2908 = vsub.s32 %v2905, %v2907
  %v2909 = vrot.slane %v2895, %v2908
  %v2910 = vcombine.high %v2902, %v2902
  %v2911 = vcombine.high %v2909, %v2909
  %v2913 = vunpack.c.l.s4 1966171168
  %v2914 = vunpack.c.0.s8 %v2913
  %v2915 = vlaneseq
  %v2916 = vshrl.u32 %v2915, 7
  %v2917 = vsub.s32 %v2914, %v2916
  %v2918 = vrot.slane %v2902, %v2917
  %v2920 = vunpack.c.l.s4 1966171168
  %v2921 = vunpack.c.0.s8 %v2920
  %v2922 = vlaneseq
  %v2923 = vshrl.u32 %v2922, 7
  %v2924 = vsub.s32 %v2921, %v2923
  %v2925 = vrot.slane %v2909, %v2924
  %v2927 = vunpack.c.l.s4 1966171168
  %v2928 = vunpack.c.0.s8 %v2927
  %v2929 = vlaneseq
  %v2930 = vshrl.u32 %v2929, 7
  %v2931 = vsub.s32 %v2928, %v2930
  %v2932 = vrot.slane %v2910, %v2931
  %v2934 = vunpack.c.l.s4 1966171168
  %v2935 = vunpack.c.0.s8 %v2934
  %v2936 = vlaneseq
  %v2937 = vshrl.u32 %v2936, 7
  %v2938 = vsub.s32 %v2935, %v2937
  %v2939 = vrot.slane %v2911, %v2938
  %v2940 = vcombine.high %v2918, %v2918
  %v2941 = vcombine.high %v2925, %v2925
  %v2942 = vcombine.high %v2932, %v2932
  %v2943 = vcombine.high %v2939, %v2939
  %v2944 = vcombine.high %v2595, %v2595
  %v2946 = vunpack.c.l.s4 1966171168
  %v2947 = vunpack.c.0.s8 %v2946
  %v2948 = vlaneseq
  %v2949 = vshrl.u32 %v2948, 7
  %v2950 = vsub.s32 %v2947, %v2949
  %v2951 = vrot.slane %v2595, %v2950
  %v2953 = vunpack.c.l.s4 1966171168
  %v2954 = vunpack.c.0.s8 %v2953
  %v2955 = vlaneseq
  %v2956 = vshrl.u32 %v2955, 7
  %v2957 = vsub.s32 %v2954, %v2956
  %v2958 = vrot.slane %v2944, %v2957
  %v2959 = vcombine.high %v2951, %v2951
  %v2960 = vcombine.high %v2958, %v2958
  %v2962 = vunpack.c.l.s4 1966171168
  %v2963 = vunpack.c.0.s8 %v2962
  %v2964 = vlaneseq
  %v2965 = vshrl.u32 %v2964, 7
  %v2966 = vsub.s32 %v2963, %v2965
  %v2967 = vrot.slane %v2951, %v2966
  %v2969 = vunpack.c.l.s4 1966171168
  %v2970 = vunpack.c.0.s8 %v2969
  %v2971 = vlaneseq
  %v2972 = vshrl.u32 %v2971, 7
  %v2973 = vsub.s32 %v2970, %v2972
  %v2974 = vrot.slane %v2958, %v2973
  %v2976 = vunpack.c.l.s4 1966171168
  %v2977 = vunpack.c.0.s8 %v2976
  %v2978 = vlaneseq
  %v2979 = vshrl.u32 %v2978, 7
  %v2980 = vsub.s32 %v2977, %v2979
  %v2981 = vrot.slane %v2959, %v2980
  %v2983 = vunpack.c.l.s4 1966171168
  %v2984 = vunpack.c.0.s8 %v2983
  %v2985 = vlaneseq
  %v2986 = vshrl.u32 %v2985, 7
  %v2987 = vsub.s32 %v2984, %v2986
  %v2988 = vrot.slane %v2960, %v2987
  %v2989 = vcombine.high %v2967, %v2967
  %v2990 = vcombine.high %v2974, %v2974
  %v2991 = vcombine.high %v2981, %v2981
  %v2992 = vcombine.high %v2988, %v2988
  %v2993 = vcombine.high %v2596, %v2596
  %v2995 = vunpack.c.l.s4 1966171168
  %v2996 = vunpack.c.0.s8 %v2995
  %v2997 = vlaneseq
  %v2998 = vshrl.u32 %v2997, 7
  %v2999 = vsub.s32 %v2996, %v2998
  %v3000 = vrot.slane %v2596, %v2999
  %v3002 = vunpack.c.l.s4 1966171168
  %v3003 = vunpack.c.0.s8 %v3002
  %v3004 = vlaneseq
  %v3005 = vshrl.u32 %v3004, 7
  %v3006 = vsub.s32 %v3003, %v3005
  %v3007 = vrot.slane %v2993, %v3006
  %v3008 = vcombine.high %v3000, %v3000
  %v3009 = vcombine.high %v3007, %v3007
  %v3011 = vunpack.c.l.s4 1966171168
  %v3012 = vunpack.c.0.s8 %v3011
  %v3013 = vlaneseq
  %v3014 = vshrl.u32 %v3013, 7
  %v3015 = vsub.s32 %v3012, %v3014
  %v3016 = vrot.slane %v3000, %v3015
  %v3018 = vunpack.c.l.s4 1966171168
  %v3019 = vunpack.c.0.s8 %v3018
  %v3020 = vlaneseq
  %v3021 = vshrl.u32 %v3020, 7
  %v3022 = vsub.s32 %v3019, %v3021
  %v3023 = vrot.slane %v3007, %v3022
  %v3025 = vunpack.c.l.s4 1966171168
  %v3026 = vunpack.c.0.s8 %v3025
  %v3027 = vlaneseq
  %v3028 = vshrl.u32 %v3027, 7
  %v3029 = vsub.s32 %v3026, %v3028
  %v3030 = vrot.slane %v3008, %v3029
  %v3032 = vunpack.c.l.s4 1966171168
  %v3033 = vunpack.c.0.s8 %v3032
  %v3034 = vlaneseq
  %v3035 = vshrl.u32 %v3034, 7
  %v3036 = vsub.s32 %v3033, %v3035
  %v3037 = vrot.slane %v3009, %v3036
  %v3038 = vcombine.high %v3016, %v3016
  %v3039 = vcombine.high %v3023, %v3023
  %v3040 = vcombine.high %v3030, %v3030
  %v3041 = vcombine.high %v3037, %v3037
  %v3042 = vcombine.high %v2597, %v2597
  %v3044 = vunpack.c.l.s4 1966171168
  %v3045 = vunpack.c.0.s8 %v3044
  %v3046 = vlaneseq
  %v3047 = vshrl.u32 %v3046, 7
  %v3048 = vsub.s32 %v3045, %v3047
  %v3049 = vrot.slane %v2597, %v3048
  %v3051 = vunpack.c.l.s4 1966171168
  %v3052 = vunpack.c.0.s8 %v3051
  %v3053 = vlaneseq
  %v3054 = vshrl.u32 %v3053, 7
  %v3055 = vsub.s32 %v3052, %v3054
  %v3056 = vrot.slane %v3042, %v3055
  %v3057 = vcombine.high %v3049, %v3049
  %v3058 = vcombine.high %v3056, %v3056
  %v3060 = vunpack.c.l.s4 1966171168
  %v3061 = vunpack.c.0.s8 %v3060
  %v3062 = vlaneseq
  %v3063 = vshrl.u32 %v3062, 7
  %v3064 = vsub.s32 %v3061, %v3063
  %v3065 = vrot.slane %v3049, %v3064
  %v3067 = vunpack.c.l.s4 1966171168
  %v3068 = vunpack.c.0.s8 %v3067
  %v3069 = vlaneseq
  %v3070 = vshrl.u32 %v3069, 7
  %v3071 = vsub.s32 %v3068, %v3070
  %v3072 = vrot.slane %v3056, %v3071
  %v3074 = vunpack.c.l.s4 1966171168
  %v3075 = vunpack.c.0.s8 %v3074
  %v3076 = vlaneseq
  %v3077 = vshrl.u32 %v3076, 7
  %v3078 = vsub.s32 %v3075, %v3077
  %v3079 = vrot.slane %v3057, %v3078
  %v3081 = vunpack.c.l.s4 1966171168
  %v3082 = vunpack.c.0.s8 %v3081
  %v3083 = vlaneseq
  %v3084 = vshrl.u32 %v3083, 7
  %v3085 = vsub.s32 %v3082, %v3084
  %v3086 = vrot.slane %v3058, %v3085
  %v3087 = vcombine.high %v3065, %v3065
  %v3088 = vcombine.high %v3072, %v3072
  %v3089 = vcombine.high %v3079, %v3079
  %v3090 = vcombine.high %v3086, %v3086
  %v3091 = vcombine.high %v2598, %v2598
  %v3093 = vunpack.c.l.s4 1966171168
  %v3094 = vunpack.c.0.s8 %v3093
  %v3095 = vlaneseq
  %v3096 = vshrl.u32 %v3095, 7
  %v3097 = vsub.s32 %v3094, %v3096
  %v3098 = vrot.slane %v2598, %v3097
  %v3100 = vunpack.c.l.s4 1966171168
  %v3101 = vunpack.c.0.s8 %v3100
  %v3102 = vlaneseq
  %v3103 = vshrl.u32 %v3102, 7
  %v3104 = vsub.s32 %v3101, %v3103
  %v3105 = vrot.slane %v3091, %v3104
  %v3106 = vcombine.high %v3098, %v3098
  %v3107 = vcombine.high %v3105, %v3105
  %v3109 = vunpack.c.l.s4 1966171168
  %v3110 = vunpack.c.0.s8 %v3109
  %v3111 = vlaneseq
  %v3112 = vshrl.u32 %v3111, 7
  %v3113 = vsub.s32 %v3110, %v3112
  %v3114 = vrot.slane %v3098, %v3113
  %v3116 = vunpack.c.l.s4 1966171168
  %v3117 = vunpack.c.0.s8 %v3116
  %v3118 = vlaneseq
  %v3119 = vshrl.u32 %v3118, 7
  %v3120 = vsub.s32 %v3117, %v3119
  %v3121 = vrot.slane %v3105, %v3120
  %v3123 = vunpack.c.l.s4 1966171168
  %v3124 = vunpack.c.0.s8 %v3123
  %v3125 = vlaneseq
  %v3126 = vshrl.u32 %v3125, 7
  %v3127 = vsub.s32 %v3124, %v3126
  %v3128 = vrot.slane %v3106, %v3127
  %v3130 = vunpack.c.l.s4 1966171168
  %v3131 = vunpack.c.0.s8 %v3130
  %v3132 = vlaneseq
  %v3133 = vshrl.u32 %v3132, 7
  %v3134 = vsub.s32 %v3131, %v3133
  %v3135 = vrot.slane %v3107, %v3134
  %v3136 = vcombine.high %v3114, %v3114
  %v3137 = vcombine.high %v3121, %v3121
  %v3138 = vcombine.high %v3128, %v3128
  %v3139 = vcombine.high %v3135, %v3135
  %v3140 = vcombine.high %v2599, %v2599
  %v3142 = vunpack.c.l.s4 1966171168
  %v3143 = vunpack.c.0.s8 %v3142
  %v3144 = vlaneseq
  %v3145 = vshrl.u32 %v3144, 7
  %v3146 = vsub.s32 %v3143, %v3145
  %v3147 = vrot.slane %v2599, %v3146
  %v3149 = vunpack.c.l.s4 1966171168
  %v3150 = vunpack.c.0.s8 %v3149
  %v3151 = vlaneseq
  %v3152 = vshrl.u32 %v3151, 7
  %v3153 = vsub.s32 %v3150, %v3152
  %v3154 = vrot.slane %v3140, %v3153
  %v3155 = vcombine.high %v3147, %v3147
  %v3156 = vcombine.high %v3154, %v3154
  %v3158 = vunpack.c.l.s4 1966171168
  %v3159 = vunpack.c.0.s8 %v3158
  %v3160 = vlaneseq
  %v3161 = vshrl.u32 %v3160, 7
  %v3162 = vsub.s32 %v3159, %v3161
  %v3163 = vrot.slane %v3147, %v3162
  %v3165 = vunpack.c.l.s4 1966171168
  %v3166 = vunpack.c.0.s8 %v3165
  %v3167 = vlaneseq
  %v3168 = vshrl.u32 %v3167, 7
  %v3169 = vsub.s32 %v3166, %v3168
  %v3170 = vrot.slane %v3154, %v3169
  %v3172 = vunpack.c.l.s4 1966171168
  %v3173 = vunpack.c.0.s8 %v3172
  %v3174 = vlaneseq
  %v3175 = vshrl.u32 %v3174, 7
  %v3176 = vsub.s32 %v3173, %v3175
  %v3177 = vrot.slane %v3155, %v3176
  %v3179 = vunpack.c.l.s4 1966171168
  %v3180 = vunpack.c.0.s8 %v3179
  %v3181 = vlaneseq
  %v3182 = vshrl.u32 %v3181, 7
  %v3183 = vsub.s32 %v3180, %v3182
  %v3184 = vrot.slane %v3156, %v3183
  %v3185 = vcombine.high %v3163, %v3163
  %v3186 = vcombine.high %v3170, %v3170
  %v3187 = vcombine.high %v3177, %v3177
  %v3188 = vcombine.high %v3184, %v3184
  %v3189 = vcombine.high %v2600, %v2600
  %v3191 = vunpack.c.l.s4 1966171168
  %v3192 = vunpack.c.0.s8 %v3191
  %v3193 = vlaneseq
  %v3194 = vshrl.u32 %v3193, 7
  %v3195 = vsub.s32 %v3192, %v3194
  %v3196 = vrot.slane %v2600, %v3195
  %v3198 = vunpack.c.l.s4 1966171168
  %v3199 = vunpack.c.0.s8 %v3198
  %v3200 = vlaneseq
  %v3201 = vshrl.u32 %v3200, 7
  %v3202 = vsub.s32 %v3199, %v3201
  %v3203 = vrot.slane %v3189, %v3202
  %v3204 = vcombine.high %v3196, %v3196
  %v3205 = vcombine.high %v3203, %v3203
  %v3207 = vunpack.c.l.s4 1966171168
  %v3208 = vunpack.c.0.s8 %v3207
  %v3209 = vlaneseq
  %v3210 = vshrl.u32 %v3209, 7
  %v3211 = vsub.s32 %v3208, %v3210
  %v3212 = vrot.slane %v3196, %v3211
  %v3214 = vunpack.c.l.s4 1966171168
  %v3215 = vunpack.c.0.s8 %v3214
  %v3216 = vlaneseq
  %v3217 = vshrl.u32 %v3216, 7
  %v3218 = vsub.s32 %v3215, %v3217
  %v3219 = vrot.slane %v3203, %v3218
  %v3221 = vunpack.c.l.s4 1966171168
  %v3222 = vunpack.c.0.s8 %v3221
  %v3223 = vlaneseq
  %v3224 = vshrl.u32 %v3223, 7
  %v3225 = vsub.s32 %v3222, %v3224
  %v3226 = vrot.slane %v3204, %v3225
  %v3228 = vunpack.c.l.s4 1966171168
  %v3229 = vunpack.c.0.s8 %v3228
  %v3230 = vlaneseq
  %v3231 = vshrl.u32 %v3230, 7
  %v3232 = vsub.s32 %v3229, %v3231
  %v3233 = vrot.slane %v3205, %v3232
  %v3234 = vcombine.high %v3212, %v3212
  %v3235 = vcombine.high %v3219, %v3219
  %v3236 = vcombine.high %v3226, %v3226
  %v3237 = vcombine.high %v3233, %v3233
  %v3238 = vcombine.high %v2601, %v2601
  %v3240 = vunpack.c.l.s4 1966171168
  %v3241 = vunpack.c.0.s8 %v3240
  %v3242 = vlaneseq
  %v3243 = vshrl.u32 %v3242, 7
  %v3244 = vsub.s32 %v3241, %v3243
  %v3245 = vrot.slane %v2601, %v3244
  %v3247 = vunpack.c.l.s4 1966171168
  %v3248 = vunpack.c.0.s8 %v3247
  %v3249 = vlaneseq
  %v3250 = vshrl.u32 %v3249, 7
  %v3251 = vsub.s32 %v3248, %v3250
  %v3252 = vrot.slane %v3238, %v3251
  %v3253 = vcombine.high %v3245, %v3245
  %v3254 = vcombine.high %v3252, %v3252
  %v3256 = vunpack.c.l.s4 1966171168
  %v3257 = vunpack.c.0.s8 %v3256
  %v3258 = vlaneseq
  %v3259 = vshrl.u32 %v3258, 7
  %v3260 = vsub.s32 %v3257, %v3259
  %v3261 = vrot.slane %v3245, %v3260
  %v3263 = vunpack.c.l.s4 1966171168
  %v3264 = vunpack.c.0.s8 %v3263
  %v3265 = vlaneseq
  %v3266 = vshrl.u32 %v3265, 7
  %v3267 = vsub.s32 %v3264, %v3266
  %v3268 = vrot.slane %v3252, %v3267
  %v3270 = vunpack.c.l.s4 1966171168
  %v3271 = vunpack.c.0.s8 %v3270
  %v3272 = vlaneseq
  %v3273 = vshrl.u32 %v3272, 7
  %v3274 = vsub.s32 %v3271, %v3273
  %v3275 = vrot.slane %v3253, %v3274
  %v3277 = vunpack.c.l.s4 1966171168
  %v3278 = vunpack.c.0.s8 %v3277
  %v3279 = vlaneseq
  %v3280 = vshrl.u32 %v3279, 7
  %v3281 = vsub.s32 %v3278, %v3280
  %v3282 = vrot.slane %v3254, %v3281
  %v3283 = vcombine.high %v3261, %v3261
  %v3284 = vcombine.high %v3268, %v3268
  %v3285 = vcombine.high %v3275, %v3275
  %v3286 = vcombine.high %v3282, %v3282
  %v3287 = vcombine.high %v2602, %v2602
  %v3289 = vunpack.c.l.s4 1966171168
  %v3290 = vunpack.c.0.s8 %v3289
  %v3291 = vlaneseq
  %v3292 = vshrl.u32 %v3291, 7
  %v3293 = vsub.s32 %v3290, %v3292
  %v3294 = vrot.slane %v2602, %v3293
  %v3296 = vunpack.c.l.s4 1966171168
  %v3297 = vunpack.c.0.s8 %v3296
  %v3298 = vlaneseq
  %v3299 = vshrl.u32 %v3298, 7
  %v3300 = vsub.s32 %v3297, %v3299
  %v3301 = vrot.slane %v3287, %v3300
  %v3302 = vcombine.high %v3294, %v3294
  %v3303 = vcombine.high %v3301, %v3301
  %v3305 = vunpack.c.l.s4 1966171168
  %v3306 = vunpack.c.0.s8 %v3305
  %v3307 = vlaneseq
  %v3308 = vshrl.u32 %v3307, 7
  %v3309 = vsub.s32 %v3306, %v3308
  %v3310 = vrot.slane %v3294, %v3309
  %v3312 = vunpack.c.l.s4 1966171168
  %v3313 = vunpack.c.0.s8 %v3312
  %v3314 = vlaneseq
  %v3315 = vshrl.u32 %v3314, 7
  %v3316 = vsub.s32 %v3313, %v3315
  %v3317 = vrot.slane %v3301, %v3316
  %v3319 = vunpack.c.l.s4 1966171168
  %v3320 = vunpack.c.0.s8 %v3319
  %v3321 = vlaneseq
  %v3322 = vshrl.u32 %v3321, 7
  %v3323 = vsub.s32 %v3320, %v3322
  %v3324 = vrot.slane %v3302, %v3323
  %v3326 = vunpack.c.l.s4 1966171168
  %v3327 = vunpack.c.0.s8 %v3326
  %v3328 = vlaneseq
  %v3329 = vshrl.u32 %v3328, 7
  %v3330 = vsub.s32 %v3327, %v3329
  %v3331 = vrot.slane %v3303, %v3330
  %v3332 = vcombine.high %v3310, %v3310
  %v3333 = vcombine.high %v3317, %v3317
  %v3334 = vcombine.high %v3324, %v3324
  %v3335 = vcombine.high %v3331, %v3331
  %v3336 = vcombine.high %v2603, %v2603
  %v3338 = vunpack.c.l.s4 1966171168
  %v3339 = vunpack.c.0.s8 %v3338
  %v3340 = vlaneseq
  %v3341 = vshrl.u32 %v3340, 7
  %v3342 = vsub.s32 %v3339, %v3341
  %v3343 = vrot.slane %v2603, %v3342
  %v3345 = vunpack.c.l.s4 1966171168
  %v3346 = vunpack.c.0.s8 %v3345
  %v3347 = vlaneseq
  %v3348 = vshrl.u32 %v3347, 7
  %v3349 = vsub.s32 %v3346, %v3348
  %v3350 = vrot.slane %v3336, %v3349
  %v3351 = vcombine.high %v3343, %v3343
  %v3352 = vcombine.high %v3350, %v3350
  %v3354 = vunpack.c.l.s4 1966171168
  %v3355 = vunpack.c.0.s8 %v3354
  %v3356 = vlaneseq
  %v3357 = vshrl.u32 %v3356, 7
  %v3358 = vsub.s32 %v3355, %v3357
  %v3359 = vrot.slane %v3343, %v3358
  %v3361 = vunpack.c.l.s4 1966171168
  %v3362 = vunpack.c.0.s8 %v3361
  %v3363 = vlaneseq
  %v3364 = vshrl.u32 %v3363, 7
  %v3365 = vsub.s32 %v3362, %v3364
  %v3366 = vrot.slane %v3350, %v3365
  %v3368 = vunpack.c.l.s4 1966171168
  %v3369 = vunpack.c.0.s8 %v3368
  %v3370 = vlaneseq
  %v3371 = vshrl.u32 %v3370, 7
  %v3372 = vsub.s32 %v3369, %v3371
  %v3373 = vrot.slane %v3351, %v3372
  %v3375 = vunpack.c.l.s4 1966171168
  %v3376 = vunpack.c.0.s8 %v3375
  %v3377 = vlaneseq
  %v3378 = vshrl.u32 %v3377, 7
  %v3379 = vsub.s32 %v3376, %v3378
  %v3380 = vrot.slane %v3352, %v3379
  %v3381 = vcombine.high %v3359, %v3359
  %v3382 = vcombine.high %v3366, %v3366
  %v3383 = vcombine.high %v3373, %v3373
  %v3384 = vcombine.high %v3380, %v3380
  %v3385 = vcombine.high %v2604, %v2604
  %v3387 = vunpack.c.l.s4 1966171168
  %v3388 = vunpack.c.0.s8 %v3387
  %v3389 = vlaneseq
  %v3390 = vshrl.u32 %v3389, 7
  %v3391 = vsub.s32 %v3388, %v3390
  %v3392 = vrot.slane %v2604, %v3391
  %v3394 = vunpack.c.l.s4 1966171168
  %v3395 = vunpack.c.0.s8 %v3394
  %v3396 = vlaneseq
  %v3397 = vshrl.u32 %v3396, 7
  %v3398 = vsub.s32 %v3395, %v3397
  %v3399 = vrot.slane %v3385, %v3398
  %v3400 = vcombine.high %v3392, %v3392
  %v3401 = vcombine.high %v3399, %v3399
  %v3403 = vunpack.c.l.s4 1966171168
  %v3404 = vunpack.c.0.s8 %v3403
  %v3405 = vlaneseq
  %v3406 = vshrl.u32 %v3405, 7
  %v3407 = vsub.s32 %v3404, %v3406
  %v3408 = vrot.slane %v3392, %v3407
  %v3410 = vunpack.c.l.s4 1966171168
  %v3411 = vunpack.c.0.s8 %v3410
  %v3412 = vlaneseq
  %v3413 = vshrl.u32 %v3412, 7
  %v3414 = vsub.s32 %v3411, %v3413
  %v3415 = vrot.slane %v3399, %v3414
  %v3417 = vunpack.c.l.s4 1966171168
  %v3418 = vunpack.c.0.s8 %v3417
  %v3419 = vlaneseq
  %v3420 = vshrl.u32 %v3419, 7
  %v3421 = vsub.s32 %v3418, %v3420
  %v3422 = vrot.slane %v3400, %v3421
  %v3424 = vunpack.c.l.s4 1966171168
  %v3425 = vunpack.c.0.s8 %v3424
  %v3426 = vlaneseq
  %v3427 = vshrl.u32 %v3426, 7
  %v3428 = vsub.s32 %v3425, %v3427
  %v3429 = vrot.slane %v3401, %v3428
  %v3430 = vcombine.high %v3408, %v3408
  %v3431 = vcombine.high %v3415, %v3415
  %v3432 = vcombine.high %v3422, %v3422
  %v3433 = vcombine.high %v3429, %v3429
  %v3434 = vcombine.high %v2605, %v2605
  %v3436 = vunpack.c.l.s4 1966171168
  %v3437 = vunpack.c.0.s8 %v3436
  %v3438 = vlaneseq
  %v3439 = vshrl.u32 %v3438, 7
  %v3440 = vsub.s32 %v3437, %v3439
  %v3441 = vrot.slane %v2605, %v3440
  %v3443 = vunpack.c.l.s4 1966171168
  %v3444 = vunpack.c.0.s8 %v3443
  %v3445 = vlaneseq
  %v3446 = vshrl.u32 %v3445, 7
  %v3447 = vsub.s32 %v3444, %v3446
  %v3448 = vrot.slane %v3434, %v3447
  %v3449 = vcombine.high %v3441, %v3441
  %v3450 = vcombine.high %v3448, %v3448
  %v3452 = vunpack.c.l.s4 1966171168
  %v3453 = vunpack.c.0.s8 %v3452
  %v3454 = vlaneseq
  %v3455 = vshrl.u32 %v3454, 7
  %v3456 = vsub.s32 %v3453, %v3455
  %v3457 = vrot.slane %v3441, %v3456
  %v3459 = vunpack.c.l.s4 1966171168
  %v3460 = vunpack.c.0.s8 %v3459
  %v3461 = vlaneseq
  %v3462 = vshrl.u32 %v3461, 7
  %v3463 = vsub.s32 %v3460, %v3462
  %v3464 = vrot.slane %v3448, %v3463
  %v3466 = vunpack.c.l.s4 1966171168
  %v3467 = vunpack.c.0.s8 %v3466
  %v3468 = vlaneseq
  %v3469 = vshrl.u32 %v3468, 7
  %v3470 = vsub.s32 %v3467, %v3469
  %v3471 = vrot.slane %v3449, %v3470
  %v3473 = vunpack.c.l.s4 1966171168
  %v3474 = vunpack.c.0.s8 %v3473
  %v3475 = vlaneseq
  %v3476 = vshrl.u32 %v3475, 7
  %v3477 = vsub.s32 %v3474, %v3476
  %v3478 = vrot.slane %v3450, %v3477
  %v3479 = vcombine.high %v3457, %v3457
  %v3480 = vcombine.high %v3464, %v3464
  %v3481 = vcombine.high %v3471, %v3471
  %v3482 = vcombine.high %v3478, %v3478
  %v3483 = vcombine.high %v2606, %v2606
  %v3485 = vunpack.c.l.s4 1966171168
  %v3486 = vunpack.c.0.s8 %v3485
  %v3487 = vlaneseq
  %v3488 = vshrl.u32 %v3487, 7
  %v3489 = vsub.s32 %v3486, %v3488
  %v3490 = vrot.slane %v2606, %v3489
  %v3492 = vunpack.c.l.s4 1966171168
  %v3493 = vunpack.c.0.s8 %v3492
  %v3494 = vlaneseq
  %v3495 = vshrl.u32 %v3494, 7
  %v3496 = vsub.s32 %v3493, %v3495
  %v3497 = vrot.slane %v3483, %v3496
  %v3498 = vcombine.high %v3490, %v3490
  %v3499 = vcombine.high %v3497, %v3497
  %v3501 = vunpack.c.l.s4 1966171168
  %v3502 = vunpack.c.0.s8 %v3501
  %v3503 = vlaneseq
  %v3504 = vshrl.u32 %v3503, 7
  %v3505 = vsub.s32 %v3502, %v3504
  %v3506 = vrot.slane %v3490, %v3505
  %v3508 = vunpack.c.l.s4 1966171168
  %v3509 = vunpack.c.0.s8 %v3508
  %v3510 = vlaneseq
  %v3511 = vshrl.u32 %v3510, 7
  %v3512 = vsub.s32 %v3509, %v3511
  %v3513 = vrot.slane %v3497, %v3512
  %v3515 = vunpack.c.l.s4 1966171168
  %v3516 = vunpack.c.0.s8 %v3515
  %v3517 = vlaneseq
  %v3518 = vshrl.u32 %v3517, 7
  %v3519 = vsub.s32 %v3516, %v3518
  %v3520 = vrot.slane %v3498, %v3519
  %v3522 = vunpack.c.l.s4 1966171168
  %v3523 = vunpack.c.0.s8 %v3522
  %v3524 = vlaneseq
  %v3525 = vshrl.u32 %v3524, 7
  %v3526 = vsub.s32 %v3523, %v3525
  %v3527 = vrot.slane %v3499, %v3526
  %v3528 = vcombine.high %v3506, %v3506
  %v3529 = vcombine.high %v3513, %v3513
  %v3530 = vcombine.high %v3520, %v3520
  %v3531 = vcombine.high %v3527, %v3527
  %v3532 = vlaneseq
  %v3533 = vshrl.u32 %v3532, 7
  %v3534 = vsub.s32 0, %v3533
  %v3535 = vrot.slane %v2771, %v3534
  %v3536 = vlaneseq
  %v3537 = vshrl.u32 %v3536, 7
  %v3538 = vsub.s32 0, %v3537
  %v3539 = vrot.slane %v2785, %v3538
  %v3540 = vlaneseq
  %v3541 = vshrl.u32 %v3540, 7
  %v3542 = vsub.s32 0, %v3541
  %v3543 = vrot.slane %v2793, %v3542
  %v3544 = vlaneseq
  %v3545 = vshrl.u32 %v3544, 7
  %v3546 = vsub.s32 0, %v3545
  %v3547 = vrot.slane %v2795, %v3546
  %v3548 = vlaneseq
  %v3549 = vshrl.u32 %v3548, 7
  %v3550 = vsub.s32 0, %v3549
  %v3551 = vrot.slane %v2778, %v3550
  %v3552 = vlaneseq
  %v3553 = vshrl.u32 %v3552, 7
  %v3554 = vsub.s32 0, %v3553
  %v3555 = vrot.slane %v2792, %v3554
  %v3556 = vlaneseq
  %v3557 = vshrl.u32 %v3556, 7
  %v3558 = vsub.s32 0, %v3557
  %v3559 = vrot.slane %v2794, %v3558
  %v3560 = vlaneseq
  %v3561 = vshrl.u32 %v3560, 7
  %v3562 = vsub.s32 0, %v3561
  %v3563 = vrot.slane %v2796, %v3562
  %v3564 = vlaneseq
  %v3565 = vshrl.u32 %v3564, 7
  %v3566 = vsub.s32 0, %v3565
  %v3567 = vrot.slane %v2820, %v3566
  %v3568 = vlaneseq
  %v3569 = vshrl.u32 %v3568, 7
  %v3570 = vsub.s32 0, %v3569
  %v3571 = vrot.slane %v2834, %v3570
  %v3572 = vlaneseq
  %v3573 = vshrl.u32 %v3572, 7
  %v3574 = vsub.s32 0, %v3573
  %v3575 = vrot.slane %v2842, %v3574
  %v3576 = vlaneseq
  %v3577 = vshrl.u32 %v3576, 7
  %v3578 = vsub.s32 0, %v3577
  %v3579 = vrot.slane %v2844, %v3578
  %v3580 = vlaneseq
  %v3581 = vshrl.u32 %v3580, 7
  %v3582 = vsub.s32 0, %v3581
  %v3583 = vrot.slane %v2827, %v3582
  %v3584 = vlaneseq
  %v3585 = vshrl.u32 %v3584, 7
  %v3586 = vsub.s32 0, %v3585
  %v3587 = vrot.slane %v2841, %v3586
  %v3588 = vlaneseq
  %v3589 = vshrl.u32 %v3588, 7
  %v3590 = vsub.s32 0, %v3589
  %v3591 = vrot.slane %v2843, %v3590
  %v3592 = vlaneseq
  %v3593 = vshrl.u32 %v3592, 7
  %v3594 = vsub.s32 0, %v3593
  %v3595 = vrot.slane %v2845, %v3594
  %v3596 = vlaneseq
  %v3597 = vshrl.u32 %v3596, 7
  %v3598 = vsub.s32 0, %v3597
  %v3599 = vrot.slane %v2869, %v3598
  %v3600 = vlaneseq
  %v3601 = vshrl.u32 %v3600, 7
  %v3602 = vsub.s32 0, %v3601
  %v3603 = vrot.slane %v2883, %v3602
  %v3604 = vlaneseq
  %v3605 = vshrl.u32 %v3604, 7
  %v3606 = vsub.s32 0, %v3605
  %v3607 = vrot.slane %v2891, %v3606
  %v3608 = vlaneseq
  %v3609 = vshrl.u32 %v3608, 7
  %v3610 = vsub.s32 0, %v3609
  %v3611 = vrot.slane %v2893, %v3610
  %v3612 = vlaneseq
  %v3613 = vshrl.u32 %v3612, 7
  %v3614 = vsub.s32 0, %v3613
  %v3615 = vrot.slane %v2876, %v3614
  %v3616 = vlaneseq
  %v3617 = vshrl.u32 %v3616, 7
  %v3618 = vsub.s32 0, %v3617
  %v3619 = vrot.slane %v2890, %v3618
  %v3620 = vlaneseq
  %v3621 = vshrl.u32 %v3620, 7
  %v3622 = vsub.s32 0, %v3621
  %v3623 = vrot.slane %v2892, %v3622
  %v3624 = vlaneseq
  %v3625 = vshrl.u32 %v3624, 7
  %v3626 = vsub.s32 0, %v3625
  %v3627 = vrot.slane %v2894, %v3626
  %v3628 = vlaneseq
  %v3629 = vshrl.u32 %v3628, 7
  %v3630 = vsub.s32 0, %v3629
  %v3631 = vrot.slane %v2918, %v3630
  %v3632 = vlaneseq
  %v3633 = vshrl.u32 %v3632, 7
  %v3634 = vsub.s32 0, %v3633
  %v3635 = vrot.slane %v2932, %v3634
  %v3636 = vlaneseq
  %v3637 = vshrl.u32 %v3636, 7
  %v3638 = vsub.s32 0, %v3637
  %v3639 = vrot.slane %v2940, %v3638
  %v3640 = vlaneseq
  %v3641 = vshrl.u32 %v3640, 7
  %v3642 = vsub.s32 0, %v3641
  %v3643 = vrot.slane %v2942, %v3642
  %v3644 = vlaneseq
  %v3645 = vshrl.u32 %v3644, 7
  %v3646 = vsub.s32 0, %v3645
  %v3647 = vrot.slane %v2925, %v3646
  %v3648 = vlaneseq
  %v3649 = vshrl.u32 %v3648, 7
  %v3650 = vsub.s32 0, %v3649
  %v3651 = vrot.slane %v2939, %v3650
  %v3652 = vlaneseq
  %v3653 = vshrl.u32 %v3652, 7
  %v3654 = vsub.s32 0, %v3653
  %v3655 = vrot.slane %v2941, %v3654
  %v3656 = vlaneseq
  %v3657 = vshrl.u32 %v3656, 7
  %v3658 = vsub.s32 0, %v3657
  %v3659 = vrot.slane %v2943, %v3658
  %v3660 = vlaneseq
  %v3661 = vshrl.u32 %v3660, 7
  %v3662 = vsub.s32 0, %v3661
  %v3663 = vrot.slane %v2967, %v3662
  %v3664 = vlaneseq
  %v3665 = vshrl.u32 %v3664, 7
  %v3666 = vsub.s32 0, %v3665
  %v3667 = vrot.slane %v2981, %v3666
  %v3668 = vlaneseq
  %v3669 = vshrl.u32 %v3668, 7
  %v3670 = vsub.s32 0, %v3669
  %v3671 = vrot.slane %v2989, %v3670
  %v3672 = vlaneseq
  %v3673 = vshrl.u32 %v3672, 7
  %v3674 = vsub.s32 0, %v3673
  %v3675 = vrot.slane %v2991, %v3674
  %v3676 = vlaneseq
  %v3677 = vshrl.u32 %v3676, 7
  %v3678 = vsub.s32 0, %v3677
  %v3679 = vrot.slane %v2974, %v3678
  %v3680 = vlaneseq
  %v3681 = vshrl.u32 %v3680, 7
  %v3682 = vsub.s32 0, %v3681
  %v3683 = vrot.slane %v2988, %v3682
  %v3684 = vlaneseq
  %v3685 = vshrl.u32 %v3684, 7
  %v3686 = vsub.s32 0, %v3685
  %v3687 = vrot.slane %v2990, %v3686
  %v3688 = vlaneseq
  %v3689 = vshrl.u32 %v3688, 7
  %v3690 = vsub.s32 0, %v3689
  %v3691 = vrot.slane %v2992, %v3690
  %v3692 = vlaneseq
  %v3693 = vshrl.u32 %v3692, 7
  %v3694 = vsub.s32 0, %v3693
  %v3695 = vrot.slane %v3016, %v3694
  %v3696 = vlaneseq
  %v3697 = vshrl.u32 %v3696, 7
  %v3698 = vsub.s32 0, %v3697
  %v3699 = vrot.slane %v3030, %v3698
  %v3700 = vlaneseq
  %v3701 = vshrl.u32 %v3700, 7
  %v3702 = vsub.s32 0, %v3701
  %v3703 = vrot.slane %v3038, %v3702
  %v3704 = vlaneseq
  %v3705 = vshrl.u32 %v3704, 7
  %v3706 = vsub.s32 0, %v3705
  %v3707 = vrot.slane %v3040, %v3706
  %v3708 = vlaneseq
  %v3709 = vshrl.u32 %v3708, 7
  %v3710 = vsub.s32 0, %v3709
  %v3711 = vrot.slane %v3023, %v3710
  %v3712 = vlaneseq
  %v3713 = vshrl.u32 %v3712, 7
  %v3714 = vsub.s32 0, %v3713
  %v3715 = vrot.slane %v3037, %v3714
  %v3716 = vlaneseq
  %v3717 = vshrl.u32 %v3716, 7
  %v3718 = vsub.s32 0, %v3717
  %v3719 = vrot.slane %v3039, %v3718
  %v3720 = vlaneseq
  %v3721 = vshrl.u32 %v3720, 7
  %v3722 = vsub.s32 0, %v3721
  %v3723 = vrot.slane %v3041, %v3722
  %v3724 = vlaneseq
  %v3725 = vshrl.u32 %v3724, 7
  %v3726 = vsub.s32 0, %v3725
  %v3727 = vrot.slane %v3065, %v3726
  %v3728 = vlaneseq
  %v3729 = vshrl.u32 %v3728, 7
  %v3730 = vsub.s32 0, %v3729
  %v3731 = vrot.slane %v3079, %v3730
  %v3732 = vlaneseq
  %v3733 = vshrl.u32 %v3732, 7
  %v3734 = vsub.s32 0, %v3733
  %v3735 = vrot.slane %v3087, %v3734
  %v3736 = vlaneseq
  %v3737 = vshrl.u32 %v3736, 7
  %v3738 = vsub.s32 0, %v3737
  %v3739 = vrot.slane %v3089, %v3738
  %v3740 = vlaneseq
  %v3741 = vshrl.u32 %v3740, 7
  %v3742 = vsub.s32 0, %v3741
  %v3743 = vrot.slane %v3072, %v3742
  %v3744 = vlaneseq
  %v3745 = vshrl.u32 %v3744, 7
  %v3746 = vsub.s32 0, %v3745
  %v3747 = vrot.slane %v3086, %v3746
  %v3748 = vlaneseq
  %v3749 = vshrl.u32 %v3748, 7
  %v3750 = vsub.s32 0, %v3749
  %v3751 = vrot.slane %v3088, %v3750
  %v3752 = vlaneseq
  %v3753 = vshrl.u32 %v3752, 7
  %v3754 = vsub.s32 0, %v3753
  %v3755 = vrot.slane %v3090, %v3754
  %v3756 = vlaneseq
  %v3757 = vshrl.u32 %v3756, 7
  %v3758 = vsub.s32 0, %v3757
  %v3759 = vrot.slane %v3114, %v3758
  %v3760 = vlaneseq
  %v3761 = vshrl.u32 %v3760, 7
  %v3762 = vsub.s32 0, %v3761
  %v3763 = vrot.slane %v3128, %v3762
  %v3764 = vlaneseq
  %v3765 = vshrl.u32 %v3764, 7
  %v3766 = vsub.s32 0, %v3765
  %v3767 = vrot.slane %v3136, %v3766
  %v3768 = vlaneseq
  %v3769 = vshrl.u32 %v3768, 7
  %v3770 = vsub.s32 0, %v3769
  %v3771 = vrot.slane %v3138, %v3770
  %v3772 = vlaneseq
  %v3773 = vshrl.u32 %v3772, 7
  %v3774 = vsub.s32 0, %v3773
  %v3775 = vrot.slane %v3121, %v3774
  %v3776 = vlaneseq
  %v3777 = vshrl.u32 %v3776, 7
  %v3778 = vsub.s32 0, %v3777
  %v3779 = vrot.slane %v3135, %v3778
  %v3780 = vlaneseq
  %v3781 = vshrl.u32 %v3780, 7
  %v3782 = vsub.s32 0, %v3781
  %v3783 = vrot.slane %v3137, %v3782
  %v3784 = vlaneseq
  %v3785 = vshrl.u32 %v3784, 7
  %v3786 = vsub.s32 0, %v3785
  %v3787 = vrot.slane %v3139, %v3786
  %v3788 = vlaneseq
  %v3789 = vshrl.u32 %v3788, 7
  %v3790 = vsub.s32 0, %v3789
  %v3791 = vrot.slane %v3163, %v3790
  %v3792 = vlaneseq
  %v3793 = vshrl.u32 %v3792, 7
  %v3794 = vsub.s32 0, %v3793
  %v3795 = vrot.slane %v3177, %v3794
  %v3796 = vlaneseq
  %v3797 = vshrl.u32 %v3796, 7
  %v3798 = vsub.s32 0, %v3797
  %v3799 = vrot.slane %v3185, %v3798
  %v3800 = vlaneseq
  %v3801 = vshrl.u32 %v3800, 7
  %v3802 = vsub.s32 0, %v3801
  %v3803 = vrot.slane %v3187, %v3802
  %v3804 = vlaneseq
  %v3805 = vshrl.u32 %v3804, 7
  %v3806 = vsub.s32 0, %v3805
  %v3807 = vrot.slane %v3170, %v3806
  %v3808 = vlaneseq
  %v3809 = vshrl.u32 %v3808, 7
  %v3810 = vsub.s32 0, %v3809
  %v3811 = vrot.slane %v3184, %v3810
  %v3812 = vlaneseq
  %v3813 = vshrl.u32 %v3812, 7
  %v3814 = vsub.s32 0, %v3813
  %v3815 = vrot.slane %v3186, %v3814
  %v3816 = vlaneseq
  %v3817 = vshrl.u32 %v3816, 7
  %v3818 = vsub.s32 0, %v3817
  %v3819 = vrot.slane %v3188, %v3818
  %v3820 = vlaneseq
  %v3821 = vshrl.u32 %v3820, 7
  %v3822 = vsub.s32 0, %v3821
  %v3823 = vrot.slane %v3212, %v3822
  %v3824 = vlaneseq
  %v3825 = vshrl.u32 %v3824, 7
  %v3826 = vsub.s32 0, %v3825
  %v3827 = vrot.slane %v3226, %v3826
  %v3828 = vlaneseq
  %v3829 = vshrl.u32 %v3828, 7
  %v3830 = vsub.s32 0, %v3829
  %v3831 = vrot.slane %v3234, %v3830
  %v3832 = vlaneseq
  %v3833 = vshrl.u32 %v3832, 7
  %v3834 = vsub.s32 0, %v3833
  %v3835 = vrot.slane %v3236, %v3834
  %v3836 = vlaneseq
  %v3837 = vshrl.u32 %v3836, 7
  %v3838 = vsub.s32 0, %v3837
  %v3839 = vrot.slane %v3219, %v3838
  %v3840 = vlaneseq
  %v3841 = vshrl.u32 %v3840, 7
  %v3842 = vsub.s32 0, %v3841
  %v3843 = vrot.slane %v3233, %v3842
  %v3844 = vlaneseq
  %v3845 = vshrl.u32 %v3844, 7
  %v3846 = vsub.s32 0, %v3845
  %v3847 = vrot.slane %v3235, %v3846
  %v3848 = vlaneseq
  %v3849 = vshrl.u32 %v3848, 7
  %v3850 = vsub.s32 0, %v3849
  %v3851 = vrot.slane %v3237, %v3850
  %v3852 = vlaneseq
  %v3853 = vshrl.u32 %v3852, 7
  %v3854 = vsub.s32 0, %v3853
  %v3855 = vrot.slane %v3261, %v3854
  %v3856 = vlaneseq
  %v3857 = vshrl.u32 %v3856, 7
  %v3858 = vsub.s32 0, %v3857
  %v3859 = vrot.slane %v3275, %v3858
  %v3860 = vlaneseq
  %v3861 = vshrl.u32 %v3860, 7
  %v3862 = vsub.s32 0, %v3861
  %v3863 = vrot.slane %v3283, %v3862
  %v3864 = vlaneseq
  %v3865 = vshrl.u32 %v3864, 7
  %v3866 = vsub.s32 0, %v3865
  %v3867 = vrot.slane %v3285, %v3866
  %v3868 = vlaneseq
  %v3869 = vshrl.u32 %v3868, 7
  %v3870 = vsub.s32 0, %v3869
  %v3871 = vrot.slane %v3268, %v3870
  %v3872 = vlaneseq
  %v3873 = vshrl.u32 %v3872, 7
  %v3874 = vsub.s32 0, %v3873
  %v3875 = vrot.slane %v3282, %v3874
  %v3876 = vlaneseq
  %v3877 = vshrl.u32 %v3876, 7
  %v3878 = vsub.s32 0, %v3877
  %v3879 = vrot.slane %v3284, %v3878
  %v3880 = vlaneseq
  %v3881 = vshrl.u32 %v3880, 7
  %v3882 = vsub.s32 0, %v3881
  %v3883 = vrot.slane %v3286, %v3882
  %v3884 = vlaneseq
  %v3885 = vshrl.u32 %v3884, 7
  %v3886 = vsub.s32 0, %v3885
  %v3887 = vrot.slane %v3310, %v3886
  %v3888 = vlaneseq
  %v3889 = vshrl.u32 %v3888, 7
  %v3890 = vsub.s32 0, %v3889
  %v3891 = vrot.slane %v3324, %v3890
  %v3892 = vlaneseq
  %v3893 = vshrl.u32 %v3892, 7
  %v3894 = vsub.s32 0, %v3893
  %v3895 = vrot.slane %v3332, %v3894
  %v3896 = vlaneseq
  %v3897 = vshrl.u32 %v3896, 7
  %v3898 = vsub.s32 0, %v3897
  %v3899 = vrot.slane %v3334, %v3898
  %v3900 = vlaneseq
  %v3901 = vshrl.u32 %v3900, 7
  %v3902 = vsub.s32 0, %v3901
  %v3903 = vrot.slane %v3317, %v3902
  %v3904 = vlaneseq
  %v3905 = vshrl.u32 %v3904, 7
  %v3906 = vsub.s32 0, %v3905
  %v3907 = vrot.slane %v3331, %v3906
  %v3908 = vlaneseq
  %v3909 = vshrl.u32 %v3908, 7
  %v3910 = vsub.s32 0, %v3909
  %v3911 = vrot.slane %v3333, %v3910
  %v3912 = vlaneseq
  %v3913 = vshrl.u32 %v3912, 7
  %v3914 = vsub.s32 0, %v3913
  %v3915 = vrot.slane %v3335, %v3914
  %v3916 = vlaneseq
  %v3917 = vshrl.u32 %v3916, 7
  %v3918 = vsub.s32 0, %v3917
  %v3919 = vrot.slane %v3359, %v3918
  %v3920 = vlaneseq
  %v3921 = vshrl.u32 %v3920, 7
  %v3922 = vsub.s32 0, %v3921
  %v3923 = vrot.slane %v3373, %v3922
  %v3924 = vlaneseq
  %v3925 = vshrl.u32 %v3924, 7
  %v3926 = vsub.s32 0, %v3925
  %v3927 = vrot.slane %v3381, %v3926
  %v3928 = vlaneseq
  %v3929 = vshrl.u32 %v3928, 7
  %v3930 = vsub.s32 0, %v3929
  %v3931 = vrot.slane %v3383, %v3930
  %v3932 = vlaneseq
  %v3933 = vshrl.u32 %v3932, 7
  %v3934 = vsub.s32 0, %v3933
  %v3935 = vrot.slane %v3366, %v3934
  %v3936 = vlaneseq
  %v3937 = vshrl.u32 %v3936, 7
  %v3938 = vsub.s32 0, %v3937
  %v3939 = vrot.slane %v3380, %v3938
  %v3940 = vlaneseq
  %v3941 = vshrl.u32 %v3940, 7
  %v3942 = vsub.s32 0, %v3941
  %v3943 = vrot.slane %v3382, %v3942
  %v3944 = vlaneseq
  %v3945 = vshrl.u32 %v3944, 7
  %v3946 = vsub.s32 0, %v3945
  %v3947 = vrot.slane %v3384, %v3946
  %v3948 = vlaneseq
  %v3949 = vshrl.u32 %v3948, 7
  %v3950 = vsub.s32 0, %v3949
  %v3951 = vrot.slane %v3408, %v3950
  %v3952 = vlaneseq
  %v3953 = vshrl.u32 %v3952, 7
  %v3954 = vsub.s32 0, %v3953
  %v3955 = vrot.slane %v3422, %v3954
  %v3956 = vlaneseq
  %v3957 = vshrl.u32 %v3956, 7
  %v3958 = vsub.s32 0, %v3957
  %v3959 = vrot.slane %v3430, %v3958
  %v3960 = vlaneseq
  %v3961 = vshrl.u32 %v3960, 7
  %v3962 = vsub.s32 0, %v3961
  %v3963 = vrot.slane %v3432, %v3962
  %v3964 = vlaneseq
  %v3965 = vshrl.u32 %v3964, 7
  %v3966 = vsub.s32 0, %v3965
  %v3967 = vrot.slane %v3415, %v3966
  %v3968 = vlaneseq
  %v3969 = vshrl.u32 %v3968, 7
  %v3970 = vsub.s32 0, %v3969
  %v3971 = vrot.slane %v3429, %v3970
  %v3972 = vlaneseq
  %v3973 = vshrl.u32 %v3972, 7
  %v3974 = vsub.s32 0, %v3973
  %v3975 = vrot.slane %v3431, %v3974
  %v3976 = vlaneseq
  %v3977 = vshrl.u32 %v3976, 7
  %v3978 = vsub.s32 0, %v3977
  %v3979 = vrot.slane %v3433, %v3978
  %v3980 = vlaneseq
  %v3981 = vshrl.u32 %v3980, 7
  %v3982 = vsub.s32 0, %v3981
  %v3983 = vrot.slane %v3457, %v3982
  %v3984 = vlaneseq
  %v3985 = vshrl.u32 %v3984, 7
  %v3986 = vsub.s32 0, %v3985
  %v3987 = vrot.slane %v3471, %v3986
  %v3988 = vlaneseq
  %v3989 = vshrl.u32 %v3988, 7
  %v3990 = vsub.s32 0, %v3989
  %v3991 = vrot.slane %v3479, %v3990
  %v3992 = vlaneseq
  %v3993 = vshrl.u32 %v3992, 7
  %v3994 = vsub.s32 0, %v3993
  %v3995 = vrot.slane %v3481, %v3994
  %v3996 = vlaneseq
  %v3997 = vshrl.u32 %v3996, 7
  %v3998 = vsub.s32 0, %v3997
  %v3999 = vrot.slane %v3464, %v3998
  %v4000 = vlaneseq
  %v4001 = vshrl.u32 %v4000, 7
  %v4002 = vsub.s32 0, %v4001
  %v4003 = vrot.slane %v3478, %v4002
  %v4004 = vlaneseq
  %v4005 = vshrl.u32 %v4004, 7
  %v4006 = vsub.s32 0, %v4005
  %v4007 = vrot.slane %v3480, %v4006
  %v4008 = vlaneseq
  %v4009 = vshrl.u32 %v4008, 7
  %v4010 = vsub.s32 0, %v4009
  %v4011 = vrot.slane %v3482, %v4010
  %v4012 = vlaneseq
  %v4013 = vshrl.u32 %v4012, 7
  %v4014 = vsub.s32 0, %v4013
  %v4015 = vrot.slane %v3506, %v4014
  %v4016 = vlaneseq
  %v4017 = vshrl.u32 %v4016, 7
  %v4018 = vsub.s32 0, %v4017
  %v4019 = vrot.slane %v3520, %v4018
  %v4020 = vlaneseq
  %v4021 = vshrl.u32 %v4020, 7
  %v4022 = vsub.s32 0, %v4021
  %v4023 = vrot.slane %v3528, %v4022
  %v4024 = vlaneseq
  %v4025 = vshrl.u32 %v4024, 7
  %v4026 = vsub.s32 0, %v4025
  %v4027 = vrot.slane %v3530, %v4026
  %v4028 = vlaneseq
  %v4029 = vshrl.u32 %v4028, 7
  %v4030 = vsub.s32 0, %v4029
  %v4031 = vrot.slane %v3513, %v4030
  %v4032 = vlaneseq
  %v4033 = vshrl.u32 %v4032, 7
  %v4034 = vsub.s32 0, %v4033
  %v4035 = vrot.slane %v3527, %v4034
  %v4036 = vlaneseq
  %v4037 = vshrl.u32 %v4036, 7
  %v4038 = vsub.s32 0, %v4037
  %v4039 = vrot.slane %v3529, %v4038
  %v4040 = vlaneseq
  %v4041 = vshrl.u32 %v4040, 7
  %v4042 = vsub.s32 0, %v4041
  %v4043 = vrot.slane %v3531, %v4042
  %v4172 = vcombine.high %v2716, %v2716
  %v4174 = vunpack.c.l.s4 1966171168
  %v4175 = vunpack.c.0.s8 %v4174
  %v4176 = vlaneseq
  %v4177 = vshrl.u32 %v4176, 7
  %v4178 = vsub.s32 %v4175, %v4177
  %v4179 = vrot.slane %v2716, %v4178
  %v4181 = vunpack.c.l.s4 1966171168
  %v4182 = vunpack.c.0.s8 %v4181
  %v4183 = vlaneseq
  %v4184 = vshrl.u32 %v4183, 7
  %v4185 = vsub.s32 %v4182, %v4184
  %v4186 = vrot.slane %v4172, %v4185
  %v4187 = vcombine.high %v4179, %v4179
  %v4188 = vcombine.high %v4186, %v4186
  %v4190 = vunpack.c.l.s4 1966171168
  %v4191 = vunpack.c.0.s8 %v4190
  %v4192 = vlaneseq
  %v4193 = vshrl.u32 %v4192, 7
  %v4194 = vsub.s32 %v4191, %v4193
  %v4195 = vrot.slane %v4179, %v4194
  %v4197 = vunpack.c.l.s4 1966171168
  %v4198 = vunpack.c.0.s8 %v4197
  %v4199 = vlaneseq
  %v4200 = vshrl.u32 %v4199, 7
  %v4201 = vsub.s32 %v4198, %v4200
  %v4202 = vrot.slane %v4186, %v4201
  %v4204 = vunpack.c.l.s4 1966171168
  %v4205 = vunpack.c.0.s8 %v4204
  %v4206 = vlaneseq
  %v4207 = vshrl.u32 %v4206, 7
  %v4208 = vsub.s32 %v4205, %v4207
  %v4209 = vrot.slane %v4187, %v4208
  %v4211 = vunpack.c.l.s4 1966171168
  %v4212 = vunpack.c.0.s8 %v4211
  %v4213 = vlaneseq
  %v4214 = vshrl.u32 %v4213, 7
  %v4215 = vsub.s32 %v4212, %v4214
  %v4216 = vrot.slane %v4188, %v4215
  %v4217 = vcombine.high %v4195, %v4195
  %v4218 = vcombine.high %v4202, %v4202
  %v4219 = vcombine.high %v4209, %v4209
  %v4220 = vcombine.high %v4216, %v4216
  %v4221 = vcombine.high %v2717, %v2717
  %v4223 = vunpack.c.l.s4 1966171168
  %v4224 = vunpack.c.0.s8 %v4223
  %v4225 = vlaneseq
  %v4226 = vshrl.u32 %v4225, 7
  %v4227 = vsub.s32 %v4224, %v4226
  %v4228 = vrot.slane %v2717, %v4227
  %v4230 = vunpack.c.l.s4 1966171168
  %v4231 = vunpack.c.0.s8 %v4230
  %v4232 = vlaneseq
  %v4233 = vshrl.u32 %v4232, 7
  %v4234 = vsub.s32 %v4231, %v4233
  %v4235 = vrot.slane %v4221, %v4234
  %v4236 = vcombine.high %v4228, %v4228
  %v4237 = vcombine.high %v4235, %v4235
  %v4239 = vunpack.c.l.s4 1966171168
  %v4240 = vunpack.c.0.s8 %v4239
  %v4241 = vlaneseq
  %v4242 = vshrl.u32 %v4241, 7
  %v4243 = vsub.s32 %v4240, %v4242
  %v4244 = vrot.slane %v4228, %v4243
  %v4246 = vunpack.c.l.s4 1966171168
  %v4247 = vunpack.c.0.s8 %v4246
  %v4248 = vlaneseq
  %v4249 = vshrl.u32 %v4248, 7
  %v4250 = vsub.s32 %v4247, %v4249
  %v4251 = vrot.slane %v4235, %v4250
  %v4253 = vunpack.c.l.s4 1966171168
  %v4254 = vunpack.c.0.s8 %v4253
  %v4255 = vlaneseq
  %v4256 = vshrl.u32 %v4255, 7
  %v4257 = vsub.s32 %v4254, %v4256
  %v4258 = vrot.slane %v4236, %v4257
  %v4260 = vunpack.c.l.s4 1966171168
  %v4261 = vunpack.c.0.s8 %v4260
  %v4262 = vlaneseq
  %v4263 = vshrl.u32 %v4262, 7
  %v4264 = vsub.s32 %v4261, %v4263
  %v4265 = vrot.slane %v4237, %v4264
  %v4266 = vcombine.high %v4244, %v4244
  %v4267 = vcombine.high %v4251, %v4251
  %v4268 = vcombine.high %v4258, %v4258
  %v4269 = vcombine.high %v4265, %v4265
  %v4270 = vcombine.high %v2718, %v2718
  %v4272 = vunpack.c.l.s4 1966171168
  %v4273 = vunpack.c.0.s8 %v4272
  %v4274 = vlaneseq
  %v4275 = vshrl.u32 %v4274, 7
  %v4276 = vsub.s32 %v4273, %v4275
  %v4277 = vrot.slane %v2718, %v4276
  %v4279 = vunpack.c.l.s4 1966171168
  %v4280 = vunpack.c.0.s8 %v4279
  %v4281 = vlaneseq
  %v4282 = vshrl.u32 %v4281, 7
  %v4283 = vsub.s32 %v4280, %v4282
  %v4284 = vrot.slane %v4270, %v4283
  %v4285 = vcombine.high %v4277, %v4277
  %v4286 = vcombine.high %v4284, %v4284
  %v4288 = vunpack.c.l.s4 1966171168
  %v4289 = vunpack.c.0.s8 %v4288
  %v4290 = vlaneseq
  %v4291 = vshrl.u32 %v4290, 7
  %v4292 = vsub.s32 %v4289, %v4291
  %v4293 = vrot.slane %v4277, %v4292
  %v4295 = vunpack.c.l.s4 1966171168
  %v4296 = vunpack.c.0.s8 %v4295
  %v4297 = vlaneseq
  %v4298 = vshrl.u32 %v4297, 7
  %v4299 = vsub.s32 %v4296, %v4298
  %v4300 = vrot.slane %v4284, %v4299
  %v4302 = vunpack.c.l.s4 1966171168
  %v4303 = vunpack.c.0.s8 %v4302
  %v4304 = vlaneseq
  %v4305 = vshrl.u32 %v4304, 7
  %v4306 = vsub.s32 %v4303, %v4305
  %v4307 = vrot.slane %v4285, %v4306
  %v4309 = vunpack.c.l.s4 1966171168
  %v4310 = vunpack.c.0.s8 %v4309
  %v4311 = vlaneseq
  %v4312 = vshrl.u32 %v4311, 7
  %v4313 = vsub.s32 %v4310, %v4312
  %v4314 = vrot.slane %v4286, %v4313
  %v4315 = vcombine.high %v4293, %v4293
  %v4316 = vcombine.high %v4300, %v4300
  %v4317 = vcombine.high %v4307, %v4307
  %v4318 = vcombine.high %v4314, %v4314
  %v4319 = vcombine.high %v2719, %v2719
  %v4321 = vunpack.c.l.s4 1966171168
  %v4322 = vunpack.c.0.s8 %v4321
  %v4323 = vlaneseq
  %v4324 = vshrl.u32 %v4323, 7
  %v4325 = vsub.s32 %v4322, %v4324
  %v4326 = vrot.slane %v2719, %v4325
  %v4328 = vunpack.c.l.s4 1966171168
  %v4329 = vunpack.c.0.s8 %v4328
  %v4330 = vlaneseq
  %v4331 = vshrl.u32 %v4330, 7
  %v4332 = vsub.s32 %v4329, %v4331
  %v4333 = vrot.slane %v4319, %v4332
  %v4334 = vcombine.high %v4326, %v4326
  %v4335 = vcombine.high %v4333, %v4333
  %v4337 = vunpack.c.l.s4 1966171168
  %v4338 = vunpack.c.0.s8 %v4337
  %v4339 = vlaneseq
  %v4340 = vshrl.u32 %v4339, 7
  %v4341 = vsub.s32 %v4338, %v4340
  %v4342 = vrot.slane %v4326, %v4341
  %v4344 = vunpack.c.l.s4 1966171168
  %v4345 = vunpack.c.0.s8 %v4344
  %v4346 = vlaneseq
  %v4347 = vshrl.u32 %v4346, 7
  %v4348 = vsub.s32 %v4345, %v4347
  %v4349 = vrot.slane %v4333, %v4348
  %v4351 = vunpack.c.l.s4 1966171168
  %v4352 = vunpack.c.0.s8 %v4351
  %v4353 = vlaneseq
  %v4354 = vshrl.u32 %v4353, 7
  %v4355 = vsub.s32 %v4352, %v4354
  %v4356 = vrot.slane %v4334, %v4355
  %v4358 = vunpack.c.l.s4 1966171168
  %v4359 = vunpack.c.0.s8 %v4358
  %v4360 = vlaneseq
  %v4361 = vshrl.u32 %v4360, 7
  %v4362 = vsub.s32 %v4359, %v4361
  %v4363 = vrot.slane %v4335, %v4362
  %v4364 = vcombine.high %v4342, %v4342
  %v4365 = vcombine.high %v4349, %v4349
  %v4366 = vcombine.high %v4356, %v4356
  %v4367 = vcombine.high %v4363, %v4363
  %v4368 = vcombine.high %v2720, %v2720
  %v4370 = vunpack.c.l.s4 1966171168
  %v4371 = vunpack.c.0.s8 %v4370
  %v4372 = vlaneseq
  %v4373 = vshrl.u32 %v4372, 7
  %v4374 = vsub.s32 %v4371, %v4373
  %v4375 = vrot.slane %v2720, %v4374
  %v4377 = vunpack.c.l.s4 1966171168
  %v4378 = vunpack.c.0.s8 %v4377
  %v4379 = vlaneseq
  %v4380 = vshrl.u32 %v4379, 7
  %v4381 = vsub.s32 %v4378, %v4380
  %v4382 = vrot.slane %v4368, %v4381
  %v4383 = vcombine.high %v4375, %v4375
  %v4384 = vcombine.high %v4382, %v4382
  %v4386 = vunpack.c.l.s4 1966171168
  %v4387 = vunpack.c.0.s8 %v4386
  %v4388 = vlaneseq
  %v4389 = vshrl.u32 %v4388, 7
  %v4390 = vsub.s32 %v4387, %v4389
  %v4391 = vrot.slane %v4375, %v4390
  %v4393 = vunpack.c.l.s4 1966171168
  %v4394 = vunpack.c.0.s8 %v4393
  %v4395 = vlaneseq
  %v4396 = vshrl.u32 %v4395, 7
  %v4397 = vsub.s32 %v4394, %v4396
  %v4398 = vrot.slane %v4382, %v4397
  %v4400 = vunpack.c.l.s4 1966171168
  %v4401 = vunpack.c.0.s8 %v4400
  %v4402 = vlaneseq
  %v4403 = vshrl.u32 %v4402, 7
  %v4404 = vsub.s32 %v4401, %v4403
  %v4405 = vrot.slane %v4383, %v4404
  %v4407 = vunpack.c.l.s4 1966171168
  %v4408 = vunpack.c.0.s8 %v4407
  %v4409 = vlaneseq
  %v4410 = vshrl.u32 %v4409, 7
  %v4411 = vsub.s32 %v4408, %v4410
  %v4412 = vrot.slane %v4384, %v4411
  %v4413 = vcombine.high %v4391, %v4391
  %v4414 = vcombine.high %v4398, %v4398
  %v4415 = vcombine.high %v4405, %v4405
  %v4416 = vcombine.high %v4412, %v4412
  %v4417 = vcombine.high %v2721, %v2721
  %v4419 = vunpack.c.l.s4 1966171168
  %v4420 = vunpack.c.0.s8 %v4419
  %v4421 = vlaneseq
  %v4422 = vshrl.u32 %v4421, 7
  %v4423 = vsub.s32 %v4420, %v4422
  %v4424 = vrot.slane %v2721, %v4423
  %v4426 = vunpack.c.l.s4 1966171168
  %v4427 = vunpack.c.0.s8 %v4426
  %v4428 = vlaneseq
  %v4429 = vshrl.u32 %v4428, 7
  %v4430 = vsub.s32 %v4427, %v4429
  %v4431 = vrot.slane %v4417, %v4430
  %v4432 = vcombine.high %v4424, %v4424
  %v4433 = vcombine.high %v4431, %v4431
  %v4435 = vunpack.c.l.s4 1966171168
  %v4436 = vunpack.c.0.s8 %v4435
  %v4437 = vlaneseq
  %v4438 = vshrl.u32 %v4437, 7
  %v4439 = vsub.s32 %v4436, %v4438
  %v4440 = vrot.slane %v4424, %v4439
  %v4442 = vunpack.c.l.s4 1966171168
  %v4443 = vunpack.c.0.s8 %v4442
  %v4444 = vlaneseq
  %v4445 = vshrl.u32 %v4444, 7
  %v4446 = vsub.s32 %v4443, %v4445
  %v4447 = vrot.slane %v4431, %v4446
  %v4449 = vunpack.c.l.s4 1966171168
  %v4450 = vunpack.c.0.s8 %v4449
  %v4451 = vlaneseq
  %v4452 = vshrl.u32 %v4451, 7
  %v4453 = vsub.s32 %v4450, %v4452
  %v4454 = vrot.slane %v4432, %v4453
  %v4456 = vunpack.c.l.s4 1966171168
  %v4457 = vunpack.c.0.s8 %v4456
  %v4458 = vlaneseq
  %v4459 = vshrl.u32 %v4458, 7
  %v4460 = vsub.s32 %v4457, %v4459
  %v4461 = vrot.slane %v4433, %v4460
  %v4462 = vcombine.high %v4440, %v4440
  %v4463 = vcombine.high %v4447, %v4447
  %v4464 = vcombine.high %v4454, %v4454
  %v4465 = vcombine.high %v4461, %v4461
  %v4466 = vcombine.high %v2722, %v2722
  %v4468 = vunpack.c.l.s4 1966171168
  %v4469 = vunpack.c.0.s8 %v4468
  %v4470 = vlaneseq
  %v4471 = vshrl.u32 %v4470, 7
  %v4472 = vsub.s32 %v4469, %v4471
  %v4473 = vrot.slane %v2722, %v4472
  %v4475 = vunpack.c.l.s4 1966171168
  %v4476 = vunpack.c.0.s8 %v4475
  %v4477 = vlaneseq
  %v4478 = vshrl.u32 %v4477, 7
  %v4479 = vsub.s32 %v4476, %v4478
  %v4480 = vrot.slane %v4466, %v4479
  %v4481 = vcombine.high %v4473, %v4473
  %v4482 = vcombine.high %v4480, %v4480
  %v4484 = vunpack.c.l.s4 1966171168
  %v4485 = vunpack.c.0.s8 %v4484
  %v4486 = vlaneseq
  %v4487 = vshrl.u32 %v4486, 7
  %v4488 = vsub.s32 %v4485, %v4487
  %v4489 = vrot.slane %v4473, %v4488
  %v4491 = vunpack.c.l.s4 1966171168
  %v4492 = vunpack.c.0.s8 %v4491
  %v4493 = vlaneseq
  %v4494 = vshrl.u32 %v4493, 7
  %v4495 = vsub.s32 %v4492, %v4494
  %v4496 = vrot.slane %v4480, %v4495
  %v4498 = vunpack.c.l.s4 1966171168
  %v4499 = vunpack.c.0.s8 %v4498
  %v4500 = vlaneseq
  %v4501 = vshrl.u32 %v4500, 7
  %v4502 = vsub.s32 %v4499, %v4501
  %v4503 = vrot.slane %v4481, %v4502
  %v4505 = vunpack.c.l.s4 1966171168
  %v4506 = vunpack.c.0.s8 %v4505
  %v4507 = vlaneseq
  %v4508 = vshrl.u32 %v4507, 7
  %v4509 = vsub.s32 %v4506, %v4508
  %v4510 = vrot.slane %v4482, %v4509
  %v4511 = vcombine.high %v4489, %v4489
  %v4512 = vcombine.high %v4496, %v4496
  %v4513 = vcombine.high %v4503, %v4503
  %v4514 = vcombine.high %v4510, %v4510
  %v4515 = vcombine.high %v2723, %v2723
  %v4517 = vunpack.c.l.s4 1966171168
  %v4518 = vunpack.c.0.s8 %v4517
  %v4519 = vlaneseq
  %v4520 = vshrl.u32 %v4519, 7
  %v4521 = vsub.s32 %v4518, %v4520
  %v4522 = vrot.slane %v2723, %v4521
  %v4524 = vunpack.c.l.s4 1966171168
  %v4525 = vunpack.c.0.s8 %v4524
  %v4526 = vlaneseq
  %v4527 = vshrl.u32 %v4526, 7
  %v4528 = vsub.s32 %v4525, %v4527
  %v4529 = vrot.slane %v4515, %v4528
  %v4530 = vcombine.high %v4522, %v4522
  %v4531 = vcombine.high %v4529, %v4529
  %v4533 = vunpack.c.l.s4 1966171168
  %v4534 = vunpack.c.0.s8 %v4533
  %v4535 = vlaneseq
  %v4536 = vshrl.u32 %v4535, 7
  %v4537 = vsub.s32 %v4534, %v4536
  %v4538 = vrot.slane %v4522, %v4537
  %v4540 = vunpack.c.l.s4 1966171168
  %v4541 = vunpack.c.0.s8 %v4540
  %v4542 = vlaneseq
  %v4543 = vshrl.u32 %v4542, 7
  %v4544 = vsub.s32 %v4541, %v4543
  %v4545 = vrot.slane %v4529, %v4544
  %v4547 = vunpack.c.l.s4 1966171168
  %v4548 = vunpack.c.0.s8 %v4547
  %v4549 = vlaneseq
  %v4550 = vshrl.u32 %v4549, 7
  %v4551 = vsub.s32 %v4548, %v4550
  %v4552 = vrot.slane %v4530, %v4551
  %v4554 = vunpack.c.l.s4 1966171168
  %v4555 = vunpack.c.0.s8 %v4554
  %v4556 = vlaneseq
  %v4557 = vshrl.u32 %v4556, 7
  %v4558 = vsub.s32 %v4555, %v4557
  %v4559 = vrot.slane %v4531, %v4558
  %v4560 = vcombine.high %v4538, %v4538
  %v4561 = vcombine.high %v4545, %v4545
  %v4562 = vcombine.high %v4552, %v4552
  %v4563 = vcombine.high %v4559, %v4559
  %v4564 = vcombine.high %v2724, %v2724
  %v4566 = vunpack.c.l.s4 1966171168
  %v4567 = vunpack.c.0.s8 %v4566
  %v4568 = vlaneseq
  %v4569 = vshrl.u32 %v4568, 7
  %v4570 = vsub.s32 %v4567, %v4569
  %v4571 = vrot.slane %v2724, %v4570
  %v4573 = vunpack.c.l.s4 1966171168
  %v4574 = vunpack.c.0.s8 %v4573
  %v4575 = vlaneseq
  %v4576 = vshrl.u32 %v4575, 7
  %v4577 = vsub.s32 %v4574, %v4576
  %v4578 = vrot.slane %v4564, %v4577
  %v4579 = vcombine.high %v4571, %v4571
  %v4580 = vcombine.high %v4578, %v4578
  %v4582 = vunpack.c.l.s4 1966171168
  %v4583 = vunpack.c.0.s8 %v4582
  %v4584 = vlaneseq
  %v4585 = vshrl.u32 %v4584, 7
  %v4586 = vsub.s32 %v4583, %v4585
  %v4587 = vrot.slane %v4571, %v4586
  %v4589 = vunpack.c.l.s4 1966171168
  %v4590 = vunpack.c.0.s8 %v4589
  %v4591 = vlaneseq
  %v4592 = vshrl.u32 %v4591, 7
  %v4593 = vsub.s32 %v4590, %v4592
  %v4594 = vrot.slane %v4578, %v4593
  %v4596 = vunpack.c.l.s4 1966171168
  %v4597 = vunpack.c.0.s8 %v4596
  %v4598 = vlaneseq
  %v4599 = vshrl.u32 %v4598, 7
  %v4600 = vsub.s32 %v4597, %v4599
  %v4601 = vrot.slane %v4579, %v4600
  %v4603 = vunpack.c.l.s4 1966171168
  %v4604 = vunpack.c.0.s8 %v4603
  %v4605 = vlaneseq
  %v4606 = vshrl.u32 %v4605, 7
  %v4607 = vsub.s32 %v4604, %v4606
  %v4608 = vrot.slane %v4580, %v4607
  %v4609 = vcombine.high %v4587, %v4587
  %v4610 = vcombine.high %v4594, %v4594
  %v4611 = vcombine.high %v4601, %v4601
  %v4612 = vcombine.high %v4608, %v4608
  %v4613 = vcombine.high %v2725, %v2725
  %v4615 = vunpack.c.l.s4 1966171168
  %v4616 = vunpack.c.0.s8 %v4615
  %v4617 = vlaneseq
  %v4618 = vshrl.u32 %v4617, 7
  %v4619 = vsub.s32 %v4616, %v4618
  %v4620 = vrot.slane %v2725, %v4619
  %v4622 = vunpack.c.l.s4 1966171168
  %v4623 = vunpack.c.0.s8 %v4622
  %v4624 = vlaneseq
  %v4625 = vshrl.u32 %v4624, 7
  %v4626 = vsub.s32 %v4623, %v4625
  %v4627 = vrot.slane %v4613, %v4626
  %v4628 = vcombine.high %v4620, %v4620
  %v4629 = vcombine.high %v4627, %v4627
  %v4631 = vunpack.c.l.s4 1966171168
  %v4632 = vunpack.c.0.s8 %v4631
  %v4633 = vlaneseq
  %v4634 = vshrl.u32 %v4633, 7
  %v4635 = vsub.s32 %v4632, %v4634
  %v4636 = vrot.slane %v4620, %v4635
  %v4638 = vunpack.c.l.s4 1966171168
  %v4639 = vunpack.c.0.s8 %v4638
  %v4640 = vlaneseq
  %v4641 = vshrl.u32 %v4640, 7
  %v4642 = vsub.s32 %v4639, %v4641
  %v4643 = vrot.slane %v4627, %v4642
  %v4645 = vunpack.c.l.s4 1966171168
  %v4646 = vunpack.c.0.s8 %v4645
  %v4647 = vlaneseq
  %v4648 = vshrl.u32 %v4647, 7
  %v4649 = vsub.s32 %v4646, %v4648
  %v4650 = vrot.slane %v4628, %v4649
  %v4652 = vunpack.c.l.s4 1966171168
  %v4653 = vunpack.c.0.s8 %v4652
  %v4654 = vlaneseq
  %v4655 = vshrl.u32 %v4654, 7
  %v4656 = vsub.s32 %v4653, %v4655
  %v4657 = vrot.slane %v4629, %v4656
  %v4658 = vcombine.high %v4636, %v4636
  %v4659 = vcombine.high %v4643, %v4643
  %v4660 = vcombine.high %v4650, %v4650
  %v4661 = vcombine.high %v4657, %v4657
  %v4662 = vcombine.high %v2726, %v2726
  %v4664 = vunpack.c.l.s4 1966171168
  %v4665 = vunpack.c.0.s8 %v4664
  %v4666 = vlaneseq
  %v4667 = vshrl.u32 %v4666, 7
  %v4668 = vsub.s32 %v4665, %v4667
  %v4669 = vrot.slane %v2726, %v4668
  %v4671 = vunpack.c.l.s4 1966171168
  %v4672 = vunpack.c.0.s8 %v4671
  %v4673 = vlaneseq
  %v4674 = vshrl.u32 %v4673, 7
  %v4675 = vsub.s32 %v4672, %v4674
  %v4676 = vrot.slane %v4662, %v4675
  %v4677 = vcombine.high %v4669, %v4669
  %v4678 = vcombine.high %v4676, %v4676
  %v4680 = vunpack.c.l.s4 1966171168
  %v4681 = vunpack.c.0.s8 %v4680
  %v4682 = vlaneseq
  %v4683 = vshrl.u32 %v4682, 7
  %v4684 = vsub.s32 %v4681, %v4683
  %v4685 = vrot.slane %v4669, %v4684
  %v4687 = vunpack.c.l.s4 1966171168
  %v4688 = vunpack.c.0.s8 %v4687
  %v4689 = vlaneseq
  %v4690 = vshrl.u32 %v4689, 7
  %v4691 = vsub.s32 %v4688, %v4690
  %v4692 = vrot.slane %v4676, %v4691
  %v4694 = vunpack.c.l.s4 1966171168
  %v4695 = vunpack.c.0.s8 %v4694
  %v4696 = vlaneseq
  %v4697 = vshrl.u32 %v4696, 7
  %v4698 = vsub.s32 %v4695, %v4697
  %v4699 = vrot.slane %v4677, %v4698
  %v4701 = vunpack.c.l.s4 1966171168
  %v4702 = vunpack.c.0.s8 %v4701
  %v4703 = vlaneseq
  %v4704 = vshrl.u32 %v4703, 7
  %v4705 = vsub.s32 %v4702, %v4704
  %v4706 = vrot.slane %v4678, %v4705
  %v4707 = vcombine.high %v4685, %v4685
  %v4708 = vcombine.high %v4692, %v4692
  %v4709 = vcombine.high %v4699, %v4699
  %v4710 = vcombine.high %v4706, %v4706
  %v4711 = vcombine.high %v2727, %v2727
  %v4713 = vunpack.c.l.s4 1966171168
  %v4714 = vunpack.c.0.s8 %v4713
  %v4715 = vlaneseq
  %v4716 = vshrl.u32 %v4715, 7
  %v4717 = vsub.s32 %v4714, %v4716
  %v4718 = vrot.slane %v2727, %v4717
  %v4720 = vunpack.c.l.s4 1966171168
  %v4721 = vunpack.c.0.s8 %v4720
  %v4722 = vlaneseq
  %v4723 = vshrl.u32 %v4722, 7
  %v4724 = vsub.s32 %v4721, %v4723
  %v4725 = vrot.slane %v4711, %v4724
  %v4726 = vcombine.high %v4718, %v4718
  %v4727 = vcombine.high %v4725, %v4725
  %v4729 = vunpack.c.l.s4 1966171168
  %v4730 = vunpack.c.0.s8 %v4729
  %v4731 = vlaneseq
  %v4732 = vshrl.u32 %v4731, 7
  %v4733 = vsub.s32 %v4730, %v4732
  %v4734 = vrot.slane %v4718, %v4733
  %v4736 = vunpack.c.l.s4 1966171168
  %v4737 = vunpack.c.0.s8 %v4736
  %v4738 = vlaneseq
  %v4739 = vshrl.u32 %v4738, 7
  %v4740 = vsub.s32 %v4737, %v4739
  %v4741 = vrot.slane %v4725, %v4740
  %v4743 = vunpack.c.l.s4 1966171168
  %v4744 = vunpack.c.0.s8 %v4743
  %v4745 = vlaneseq
  %v4746 = vshrl.u32 %v4745, 7
  %v4747 = vsub.s32 %v4744, %v4746
  %v4748 = vrot.slane %v4726, %v4747
  %v4750 = vunpack.c.l.s4 1966171168
  %v4751 = vunpack.c.0.s8 %v4750
  %v4752 = vlaneseq
  %v4753 = vshrl.u32 %v4752, 7
  %v4754 = vsub.s32 %v4751, %v4753
  %v4755 = vrot.slane %v4727, %v4754
  %v4756 = vcombine.high %v4734, %v4734
  %v4757 = vcombine.high %v4741, %v4741
  %v4758 = vcombine.high %v4748, %v4748
  %v4759 = vcombine.high %v4755, %v4755
  %v4760 = vcombine.high %v2728, %v2728
  %v4762 = vunpack.c.l.s4 1966171168
  %v4763 = vunpack.c.0.s8 %v4762
  %v4764 = vlaneseq
  %v4765 = vshrl.u32 %v4764, 7
  %v4766 = vsub.s32 %v4763, %v4765
  %v4767 = vrot.slane %v2728, %v4766
  %v4769 = vunpack.c.l.s4 1966171168
  %v4770 = vunpack.c.0.s8 %v4769
  %v4771 = vlaneseq
  %v4772 = vshrl.u32 %v4771, 7
  %v4773 = vsub.s32 %v4770, %v4772
  %v4774 = vrot.slane %v4760, %v4773
  %v4775 = vcombine.high %v4767, %v4767
  %v4776 = vcombine.high %v4774, %v4774
  %v4778 = vunpack.c.l.s4 1966171168
  %v4779 = vunpack.c.0.s8 %v4778
  %v4780 = vlaneseq
  %v4781 = vshrl.u32 %v4780, 7
  %v4782 = vsub.s32 %v4779, %v4781
  %v4783 = vrot.slane %v4767, %v4782
  %v4785 = vunpack.c.l.s4 1966171168
  %v4786 = vunpack.c.0.s8 %v4785
  %v4787 = vlaneseq
  %v4788 = vshrl.u32 %v4787, 7
  %v4789 = vsub.s32 %v4786, %v4788
  %v4790 = vrot.slane %v4774, %v4789
  %v4792 = vunpack.c.l.s4 1966171168
  %v4793 = vunpack.c.0.s8 %v4792
  %v4794 = vlaneseq
  %v4795 = vshrl.u32 %v4794, 7
  %v4796 = vsub.s32 %v4793, %v4795
  %v4797 = vrot.slane %v4775, %v4796
  %v4799 = vunpack.c.l.s4 1966171168
  %v4800 = vunpack.c.0.s8 %v4799
  %v4801 = vlaneseq
  %v4802 = vshrl.u32 %v4801, 7
  %v4803 = vsub.s32 %v4800, %v4802
  %v4804 = vrot.slane %v4776, %v4803
  %v4805 = vcombine.high %v4783, %v4783
  %v4806 = vcombine.high %v4790, %v4790
  %v4807 = vcombine.high %v4797, %v4797
  %v4808 = vcombine.high %v4804, %v4804
  %v4809 = vcombine.high %v2729, %v2729
  %v4811 = vunpack.c.l.s4 1966171168
  %v4812 = vunpack.c.0.s8 %v4811
  %v4813 = vlaneseq
  %v4814 = vshrl.u32 %v4813, 7
  %v4815 = vsub.s32 %v4812, %v4814
  %v4816 = vrot.slane %v2729, %v4815
  %v4818 = vunpack.c.l.s4 1966171168
  %v4819 = vunpack.c.0.s8 %v4818
  %v4820 = vlaneseq
  %v4821 = vshrl.u32 %v4820, 7
  %v4822 = vsub.s32 %v4819, %v4821
  %v4823 = vrot.slane %v4809, %v4822
  %v4824 = vcombine.high %v4816, %v4816
  %v4825 = vcombine.high %v4823, %v4823
  %v4827 = vunpack.c.l.s4 1966171168
  %v4828 = vunpack.c.0.s8 %v4827
  %v4829 = vlaneseq
  %v4830 = vshrl.u32 %v4829, 7
  %v4831 = vsub.s32 %v4828, %v4830
  %v4832 = vrot.slane %v4816, %v4831
  %v4834 = vunpack.c.l.s4 1966171168
  %v4835 = vunpack.c.0.s8 %v4834
  %v4836 = vlaneseq
  %v4837 = vshrl.u32 %v4836, 7
  %v4838 = vsub.s32 %v4835, %v4837
  %v4839 = vrot.slane %v4823, %v4838
  %v4841 = vunpack.c.l.s4 1966171168
  %v4842 = vunpack.c.0.s8 %v4841
  %v4843 = vlaneseq
  %v4844 = vshrl.u32 %v4843, 7
  %v4845 = vsub.s32 %v4842, %v4844
  %v4846 = vrot.slane %v4824, %v4845
  %v4848 = vunpack.c.l.s4 1966171168
  %v4849 = vunpack.c.0.s8 %v4848
  %v4850 = vlaneseq
  %v4851 = vshrl.u32 %v4850, 7
  %v4852 = vsub.s32 %v4849, %v4851
  %v4853 = vrot.slane %v4825, %v4852
  %v4854 = vcombine.high %v4832, %v4832
  %v4855 = vcombine.high %v4839, %v4839
  %v4856 = vcombine.high %v4846, %v4846
  %v4857 = vcombine.high %v4853, %v4853
  %v4858 = vcombine.high %v2730, %v2730
  %v4860 = vunpack.c.l.s4 1966171168
  %v4861 = vunpack.c.0.s8 %v4860
  %v4862 = vlaneseq
  %v4863 = vshrl.u32 %v4862, 7
  %v4864 = vsub.s32 %v4861, %v4863
  %v4865 = vrot.slane %v2730, %v4864
  %v4867 = vunpack.c.l.s4 1966171168
  %v4868 = vunpack.c.0.s8 %v4867
  %v4869 = vlaneseq
  %v4870 = vshrl.u32 %v4869, 7
  %v4871 = vsub.s32 %v4868, %v4870
  %v4872 = vrot.slane %v4858, %v4871
  %v4873 = vcombine.high %v4865, %v4865
  %v4874 = vcombine.high %v4872, %v4872
  %v4876 = vunpack.c.l.s4 1966171168
  %v4877 = vunpack.c.0.s8 %v4876
  %v4878 = vlaneseq
  %v4879 = vshrl.u32 %v4878, 7
  %v4880 = vsub.s32 %v4877, %v4879
  %v4881 = vrot.slane %v4865, %v4880
  %v4883 = vunpack.c.l.s4 1966171168
  %v4884 = vunpack.c.0.s8 %v4883
  %v4885 = vlaneseq
  %v4886 = vshrl.u32 %v4885, 7
  %v4887 = vsub.s32 %v4884, %v4886
  %v4888 = vrot.slane %v4872, %v4887
  %v4890 = vunpack.c.l.s4 1966171168
  %v4891 = vunpack.c.0.s8 %v4890
  %v4892 = vlaneseq
  %v4893 = vshrl.u32 %v4892, 7
  %v4894 = vsub.s32 %v4891, %v4893
  %v4895 = vrot.slane %v4873, %v4894
  %v4897 = vunpack.c.l.s4 1966171168
  %v4898 = vunpack.c.0.s8 %v4897
  %v4899 = vlaneseq
  %v4900 = vshrl.u32 %v4899, 7
  %v4901 = vsub.s32 %v4898, %v4900
  %v4902 = vrot.slane %v4874, %v4901
  %v4903 = vcombine.high %v4881, %v4881
  %v4904 = vcombine.high %v4888, %v4888
  %v4905 = vcombine.high %v4895, %v4895
  %v4906 = vcombine.high %v4902, %v4902
  %v4907 = vcombine.high %v2731, %v2731
  %v4909 = vunpack.c.l.s4 1966171168
  %v4910 = vunpack.c.0.s8 %v4909
  %v4911 = vlaneseq
  %v4912 = vshrl.u32 %v4911, 7
  %v4913 = vsub.s32 %v4910, %v4912
  %v4914 = vrot.slane %v2731, %v4913
  %v4916 = vunpack.c.l.s4 1966171168
  %v4917 = vunpack.c.0.s8 %v4916
  %v4918 = vlaneseq
  %v4919 = vshrl.u32 %v4918, 7
  %v4920 = vsub.s32 %v4917, %v4919
  %v4921 = vrot.slane %v4907, %v4920
  %v4922 = vcombine.high %v4914, %v4914
  %v4923 = vcombine.high %v4921, %v4921
  %v4925 = vunpack.c.l.s4 1966171168
  %v4926 = vunpack.c.0.s8 %v4925
  %v4927 = vlaneseq
  %v4928 = vshrl.u32 %v4927, 7
  %v4929 = vsub.s32 %v4926, %v4928
  %v4930 = vrot.slane %v4914, %v4929
  %v4932 = vunpack.c.l.s4 1966171168
  %v4933 = vunpack.c.0.s8 %v4932
  %v4934 = vlaneseq
  %v4935 = vshrl.u32 %v4934, 7
  %v4936 = vsub.s32 %v4933, %v4935
  %v4937 = vrot.slane %v4921, %v4936
  %v4939 = vunpack.c.l.s4 1966171168
  %v4940 = vunpack.c.0.s8 %v4939
  %v4941 = vlaneseq
  %v4942 = vshrl.u32 %v4941, 7
  %v4943 = vsub.s32 %v4940, %v4942
  %v4944 = vrot.slane %v4922, %v4943
  %v4946 = vunpack.c.l.s4 1966171168
  %v4947 = vunpack.c.0.s8 %v4946
  %v4948 = vlaneseq
  %v4949 = vshrl.u32 %v4948, 7
  %v4950 = vsub.s32 %v4947, %v4949
  %v4951 = vrot.slane %v4923, %v4950
  %v4952 = vcombine.high %v4930, %v4930
  %v4953 = vcombine.high %v4937, %v4937
  %v4954 = vcombine.high %v4944, %v4944
  %v4955 = vcombine.high %v4951, %v4951
  %v4956 = vlaneseq
  %v4957 = vshrl.u32 %v4956, 7
  %v4958 = vsub.s32 0, %v4957
  %v4959 = vrot.slane %v4195, %v4958
  %v4960 = vlaneseq
  %v4961 = vshrl.u32 %v4960, 7
  %v4962 = vsub.s32 0, %v4961
  %v4963 = vrot.slane %v4209, %v4962
  %v4964 = vlaneseq
  %v4965 = vshrl.u32 %v4964, 7
  %v4966 = vsub.s32 0, %v4965
  %v4967 = vrot.slane %v4217, %v4966
  %v4968 = vlaneseq
  %v4969 = vshrl.u32 %v4968, 7
  %v4970 = vsub.s32 0, %v4969
  %v4971 = vrot.slane %v4219, %v4970
  %v4972 = vlaneseq
  %v4973 = vshrl.u32 %v4972, 7
  %v4974 = vsub.s32 0, %v4973
  %v4975 = vrot.slane %v4202, %v4974
  %v4976 = vlaneseq
  %v4977 = vshrl.u32 %v4976, 7
  %v4978 = vsub.s32 0, %v4977
  %v4979 = vrot.slane %v4216, %v4978
  %v4980 = vlaneseq
  %v4981 = vshrl.u32 %v4980, 7
  %v4982 = vsub.s32 0, %v4981
  %v4983 = vrot.slane %v4218, %v4982
  %v4984 = vlaneseq
  %v4985 = vshrl.u32 %v4984, 7
  %v4986 = vsub.s32 0, %v4985
  %v4987 = vrot.slane %v4220, %v4986
  %v4988 = vlaneseq
  %v4989 = vshrl.u32 %v4988, 7
  %v4990 = vsub.s32 0, %v4989
  %v4991 = vrot.slane %v4244, %v4990
  %v4992 = vlaneseq
  %v4993 = vshrl.u32 %v4992, 7
  %v4994 = vsub.s32 0, %v4993
  %v4995 = vrot.slane %v4258, %v4994
  %v4996 = vlaneseq
  %v4997 = vshrl.u32 %v4996, 7
  %v4998 = vsub.s32 0, %v4997
  %v4999 = vrot.slane %v4266, %v4998
  %v5000 = vlaneseq
  %v5001 = vshrl.u32 %v5000, 7
  %v5002 = vsub.s32 0, %v5001
  %v5003 = vrot.slane %v4268, %v5002
  %v5004 = vlaneseq
  %v5005 = vshrl.u32 %v5004, 7
  %v5006 = vsub.s32 0, %v5005
  %v5007 = vrot.slane %v4251, %v5006
  %v5008 = vlaneseq
  %v5009 = vshrl.u32 %v5008, 7
  %v5010 = vsub.s32 0, %v5009
  %v5011 = vrot.slane %v4265, %v5010
  %v5012 = vlaneseq
  %v5013 = vshrl.u32 %v5012, 7
  %v5014 = vsub.s32 0, %v5013
  %v5015 = vrot.slane %v4267, %v5014
  %v5016 = vlaneseq
  %v5017 = vshrl.u32 %v5016, 7
  %v5018 = vsub.s32 0, %v5017
  %v5019 = vrot.slane %v4269, %v5018
  %v5020 = vlaneseq
  %v5021 = vshrl.u32 %v5020, 7
  %v5022 = vsub.s32 0, %v5021
  %v5023 = vrot.slane %v4293, %v5022
  %v5024 = vlaneseq
  %v5025 = vshrl.u32 %v5024, 7
  %v5026 = vsub.s32 0, %v5025
  %v5027 = vrot.slane %v4307, %v5026
  %v5028 = vlaneseq
  %v5029 = vshrl.u32 %v5028, 7
  %v5030 = vsub.s32 0, %v5029
  %v5031 = vrot.slane %v4315, %v5030
  %v5032 = vlaneseq
  %v5033 = vshrl.u32 %v5032, 7
  %v5034 = vsub.s32 0, %v5033
  %v5035 = vrot.slane %v4317, %v5034
  %v5036 = vlaneseq
  %v5037 = vshrl.u32 %v5036, 7
  %v5038 = vsub.s32 0, %v5037
  %v5039 = vrot.slane %v4300, %v5038
  %v5040 = vlaneseq
  %v5041 = vshrl.u32 %v5040, 7
  %v5042 = vsub.s32 0, %v5041
  %v5043 = vrot.slane %v4314, %v5042
  %v5044 = vlaneseq
  %v5045 = vshrl.u32 %v5044, 7
  %v5046 = vsub.s32 0, %v5045
  %v5047 = vrot.slane %v4316, %v5046
  %v5048 = vlaneseq
  %v5049 = vshrl.u32 %v5048, 7
  %v5050 = vsub.s32 0, %v5049
  %v5051 = vrot.slane %v4318, %v5050
  %v5052 = vlaneseq
  %v5053 = vshrl.u32 %v5052, 7
  %v5054 = vsub.s32 0, %v5053
  %v5055 = vrot.slane %v4342, %v5054
  %v5056 = vlaneseq
  %v5057 = vshrl.u32 %v5056, 7
  %v5058 = vsub.s32 0, %v5057
  %v5059 = vrot.slane %v4356, %v5058
  %v5060 = vlaneseq
  %v5061 = vshrl.u32 %v5060, 7
  %v5062 = vsub.s32 0, %v5061
  %v5063 = vrot.slane %v4364, %v5062
  %v5064 = vlaneseq
  %v5065 = vshrl.u32 %v5064, 7
  %v5066 = vsub.s32 0, %v5065
  %v5067 = vrot.slane %v4366, %v5066
  %v5068 = vlaneseq
  %v5069 = vshrl.u32 %v5068, 7
  %v5070 = vsub.s32 0, %v5069
  %v5071 = vrot.slane %v4349, %v5070
  %v5072 = vlaneseq
  %v5073 = vshrl.u32 %v5072, 7
  %v5074 = vsub.s32 0, %v5073
  %v5075 = vrot.slane %v4363, %v5074
  %v5076 = vlaneseq
  %v5077 = vshrl.u32 %v5076, 7
  %v5078 = vsub.s32 0, %v5077
  %v5079 = vrot.slane %v4365, %v5078
  %v5080 = vlaneseq
  %v5081 = vshrl.u32 %v5080, 7
  %v5082 = vsub.s32 0, %v5081
  %v5083 = vrot.slane %v4367, %v5082
  %v5084 = vlaneseq
  %v5085 = vshrl.u32 %v5084, 7
  %v5086 = vsub.s32 0, %v5085
  %v5087 = vrot.slane %v4391, %v5086
  %v5088 = vlaneseq
  %v5089 = vshrl.u32 %v5088, 7
  %v5090 = vsub.s32 0, %v5089
  %v5091 = vrot.slane %v4405, %v5090
  %v5092 = vlaneseq
  %v5093 = vshrl.u32 %v5092, 7
  %v5094 = vsub.s32 0, %v5093
  %v5095 = vrot.slane %v4413, %v5094
  %v5096 = vlaneseq
  %v5097 = vshrl.u32 %v5096, 7
  %v5098 = vsub.s32 0, %v5097
  %v5099 = vrot.slane %v4415, %v5098
  %v5100 = vlaneseq
  %v5101 = vshrl.u32 %v5100, 7
  %v5102 = vsub.s32 0, %v5101
  %v5103 = vrot.slane %v4398, %v5102
  %v5104 = vlaneseq
  %v5105 = vshrl.u32 %v5104, 7
  %v5106 = vsub.s32 0, %v5105
  %v5107 = vrot.slane %v4412, %v5106
  %v5108 = vlaneseq
  %v5109 = vshrl.u32 %v5108, 7
  %v5110 = vsub.s32 0, %v5109
  %v5111 = vrot.slane %v4414, %v5110
  %v5112 = vlaneseq
  %v5113 = vshrl.u32 %v5112, 7
  %v5114 = vsub.s32 0, %v5113
  %v5115 = vrot.slane %v4416, %v5114
  %v5116 = vlaneseq
  %v5117 = vshrl.u32 %v5116, 7
  %v5118 = vsub.s32 0, %v5117
  %v5119 = vrot.slane %v4440, %v5118
  %v5120 = vlaneseq
  %v5121 = vshrl.u32 %v5120, 7
  %v5122 = vsub.s32 0, %v5121
  %v5123 = vrot.slane %v4454, %v5122
  %v5124 = vlaneseq
  %v5125 = vshrl.u32 %v5124, 7
  %v5126 = vsub.s32 0, %v5125
  %v5127 = vrot.slane %v4462, %v5126
  %v5128 = vlaneseq
  %v5129 = vshrl.u32 %v5128, 7
  %v5130 = vsub.s32 0, %v5129
  %v5131 = vrot.slane %v4464, %v5130
  %v5132 = vlaneseq
  %v5133 = vshrl.u32 %v5132, 7
  %v5134 = vsub.s32 0, %v5133
  %v5135 = vrot.slane %v4447, %v5134
  %v5136 = vlaneseq
  %v5137 = vshrl.u32 %v5136, 7
  %v5138 = vsub.s32 0, %v5137
  %v5139 = vrot.slane %v4461, %v5138
  %v5140 = vlaneseq
  %v5141 = vshrl.u32 %v5140, 7
  %v5142 = vsub.s32 0, %v5141
  %v5143 = vrot.slane %v4463, %v5142
  %v5144 = vlaneseq
  %v5145 = vshrl.u32 %v5144, 7
  %v5146 = vsub.s32 0, %v5145
  %v5147 = vrot.slane %v4465, %v5146
  %v5148 = vlaneseq
  %v5149 = vshrl.u32 %v5148, 7
  %v5150 = vsub.s32 0, %v5149
  %v5151 = vrot.slane %v4489, %v5150
  %v5152 = vlaneseq
  %v5153 = vshrl.u32 %v5152, 7
  %v5154 = vsub.s32 0, %v5153
  %v5155 = vrot.slane %v4503, %v5154
  %v5156 = vlaneseq
  %v5157 = vshrl.u32 %v5156, 7
  %v5158 = vsub.s32 0, %v5157
  %v5159 = vrot.slane %v4511, %v5158
  %v5160 = vlaneseq
  %v5161 = vshrl.u32 %v5160, 7
  %v5162 = vsub.s32 0, %v5161
  %v5163 = vrot.slane %v4513, %v5162
  %v5164 = vlaneseq
  %v5165 = vshrl.u32 %v5164, 7
  %v5166 = vsub.s32 0, %v5165
  %v5167 = vrot.slane %v4496, %v5166
  %v5168 = vlaneseq
  %v5169 = vshrl.u32 %v5168, 7
  %v5170 = vsub.s32 0, %v5169
  %v5171 = vrot.slane %v4510, %v5170
  %v5172 = vlaneseq
  %v5173 = vshrl.u32 %v5172, 7
  %v5174 = vsub.s32 0, %v5173
  %v5175 = vrot.slane %v4512, %v5174
  %v5176 = vlaneseq
  %v5177 = vshrl.u32 %v5176, 7
  %v5178 = vsub.s32 0, %v5177
  %v5179 = vrot.slane %v4514, %v5178
  %v5180 = vlaneseq
  %v5181 = vshrl.u32 %v5180, 7
  %v5182 = vsub.s32 0, %v5181
  %v5183 = vrot.slane %v4538, %v5182
  %v5184 = vlaneseq
  %v5185 = vshrl.u32 %v5184, 7
  %v5186 = vsub.s32 0, %v5185
  %v5187 = vrot.slane %v4552, %v5186
  %v5188 = vlaneseq
  %v5189 = vshrl.u32 %v5188, 7
  %v5190 = vsub.s32 0, %v5189
  %v5191 = vrot.slane %v4560, %v5190
  %v5192 = vlaneseq
  %v5193 = vshrl.u32 %v5192, 7
  %v5194 = vsub.s32 0, %v5193
  %v5195 = vrot.slane %v4562, %v5194
  %v5196 = vlaneseq
  %v5197 = vshrl.u32 %v5196, 7
  %v5198 = vsub.s32 0, %v5197
  %v5199 = vrot.slane %v4545, %v5198
  %v5200 = vlaneseq
  %v5201 = vshrl.u32 %v5200, 7
  %v5202 = vsub.s32 0, %v5201
  %v5203 = vrot.slane %v4559, %v5202
  %v5204 = vlaneseq
  %v5205 = vshrl.u32 %v5204, 7
  %v5206 = vsub.s32 0, %v5205
  %v5207 = vrot.slane %v4561, %v5206
  %v5208 = vlaneseq
  %v5209 = vshrl.u32 %v5208, 7
  %v5210 = vsub.s32 0, %v5209
  %v5211 = vrot.slane %v4563, %v5210
  %v5212 = vlaneseq
  %v5213 = vshrl.u32 %v5212, 7
  %v5214 = vsub.s32 0, %v5213
  %v5215 = vrot.slane %v4587, %v5214
  %v5216 = vlaneseq
  %v5217 = vshrl.u32 %v5216, 7
  %v5218 = vsub.s32 0, %v5217
  %v5219 = vrot.slane %v4601, %v5218
  %v5220 = vlaneseq
  %v5221 = vshrl.u32 %v5220, 7
  %v5222 = vsub.s32 0, %v5221
  %v5223 = vrot.slane %v4609, %v5222
  %v5224 = vlaneseq
  %v5225 = vshrl.u32 %v5224, 7
  %v5226 = vsub.s32 0, %v5225
  %v5227 = vrot.slane %v4611, %v5226
  %v5228 = vlaneseq
  %v5229 = vshrl.u32 %v5228, 7
  %v5230 = vsub.s32 0, %v5229
  %v5231 = vrot.slane %v4594, %v5230
  %v5232 = vlaneseq
  %v5233 = vshrl.u32 %v5232, 7
  %v5234 = vsub.s32 0, %v5233
  %v5235 = vrot.slane %v4608, %v5234
  %v5236 = vlaneseq
  %v5237 = vshrl.u32 %v5236, 7
  %v5238 = vsub.s32 0, %v5237
  %v5239 = vrot.slane %v4610, %v5238
  %v5240 = vlaneseq
  %v5241 = vshrl.u32 %v5240, 7
  %v5242 = vsub.s32 0, %v5241
  %v5243 = vrot.slane %v4612, %v5242
  %v5244 = vlaneseq
  %v5245 = vshrl.u32 %v5244, 7
  %v5246 = vsub.s32 0, %v5245
  %v5247 = vrot.slane %v4636, %v5246
  %v5248 = vlaneseq
  %v5249 = vshrl.u32 %v5248, 7
  %v5250 = vsub.s32 0, %v5249
  %v5251 = vrot.slane %v4650, %v5250
  %v5252 = vlaneseq
  %v5253 = vshrl.u32 %v5252, 7
  %v5254 = vsub.s32 0, %v5253
  %v5255 = vrot.slane %v4658, %v5254
  %v5256 = vlaneseq
  %v5257 = vshrl.u32 %v5256, 7
  %v5258 = vsub.s32 0, %v5257
  %v5259 = vrot.slane %v4660, %v5258
  %v5260 = vlaneseq
  %v5261 = vshrl.u32 %v5260, 7
  %v5262 = vsub.s32 0, %v5261
  %v5263 = vrot.slane %v4643, %v5262
  %v5264 = vlaneseq
  %v5265 = vshrl.u32 %v5264, 7
  %v5266 = vsub.s32 0, %v5265
  %v5267 = vrot.slane %v4657, %v5266
  %v5268 = vlaneseq
  %v5269 = vshrl.u32 %v5268, 7
  %v5270 = vsub.s32 0, %v5269
  %v5271 = vrot.slane %v4659, %v5270
  %v5272 = vlaneseq
  %v5273 = vshrl.u32 %v5272, 7
  %v5274 = vsub.s32 0, %v5273
  %v5275 = vrot.slane %v4661, %v5274
  %v5276 = vlaneseq
  %v5277 = vshrl.u32 %v5276, 7
  %v5278 = vsub.s32 0, %v5277
  %v5279 = vrot.slane %v4685, %v5278
  %v5280 = vlaneseq
  %v5281 = vshrl.u32 %v5280, 7
  %v5282 = vsub.s32 0, %v5281
  %v5283 = vrot.slane %v4699, %v5282
  %v5284 = vlaneseq
  %v5285 = vshrl.u32 %v5284, 7
  %v5286 = vsub.s32 0, %v5285
  %v5287 = vrot.slane %v4707, %v5286
  %v5288 = vlaneseq
  %v5289 = vshrl.u32 %v5288, 7
  %v5290 = vsub.s32 0, %v5289
  %v5291 = vrot.slane %v4709, %v5290
  %v5292 = vlaneseq
  %v5293 = vshrl.u32 %v5292, 7
  %v5294 = vsub.s32 0, %v5293
  %v5295 = vrot.slane %v4692, %v5294
  %v5296 = vlaneseq
  %v5297 = vshrl.u32 %v5296, 7
  %v5298 = vsub.s32 0, %v5297
  %v5299 = vrot.slane %v4706, %v5298
  %v5300 = vlaneseq
  %v5301 = vshrl.u32 %v5300, 7
  %v5302 = vsub.s32 0, %v5301
  %v5303 = vrot.slane %v4708, %v5302
  %v5304 = vlaneseq
  %v5305 = vshrl.u32 %v5304, 7
  %v5306 = vsub.s32 0, %v5305
  %v5307 = vrot.slane %v4710, %v5306
  %v5308 = vlaneseq
  %v5309 = vshrl.u32 %v5308, 7
  %v5310 = vsub.s32 0, %v5309
  %v5311 = vrot.slane %v4734, %v5310
  %v5312 = vlaneseq
  %v5313 = vshrl.u32 %v5312, 7
  %v5314 = vsub.s32 0, %v5313
  %v5315 = vrot.slane %v4748, %v5314
  %v5316 = vlaneseq
  %v5317 = vshrl.u32 %v5316, 7
  %v5318 = vsub.s32 0, %v5317
  %v5319 = vrot.slane %v4756, %v5318
  %v5320 = vlaneseq
  %v5321 = vshrl.u32 %v5320, 7
  %v5322 = vsub.s32 0, %v5321
  %v5323 = vrot.slane %v4758, %v5322
  %v5324 = vlaneseq
  %v5325 = vshrl.u32 %v5324, 7
  %v5326 = vsub.s32 0, %v5325
  %v5327 = vrot.slane %v4741, %v5326
  %v5328 = vlaneseq
  %v5329 = vshrl.u32 %v5328, 7
  %v5330 = vsub.s32 0, %v5329
  %v5331 = vrot.slane %v4755, %v5330
  %v5332 = vlaneseq
  %v5333 = vshrl.u32 %v5332, 7
  %v5334 = vsub.s32 0, %v5333
  %v5335 = vrot.slane %v4757, %v5334
  %v5336 = vlaneseq
  %v5337 = vshrl.u32 %v5336, 7
  %v5338 = vsub.s32 0, %v5337
  %v5339 = vrot.slane %v4759, %v5338
  %v5340 = vlaneseq
  %v5341 = vshrl.u32 %v5340, 7
  %v5342 = vsub.s32 0, %v5341
  %v5343 = vrot.slane %v4783, %v5342
  %v5344 = vlaneseq
  %v5345 = vshrl.u32 %v5344, 7
  %v5346 = vsub.s32 0, %v5345
  %v5347 = vrot.slane %v4797, %v5346
  %v5348 = vlaneseq
  %v5349 = vshrl.u32 %v5348, 7
  %v5350 = vsub.s32 0, %v5349
  %v5351 = vrot.slane %v4805, %v5350
  %v5352 = vlaneseq
  %v5353 = vshrl.u32 %v5352, 7
  %v5354 = vsub.s32 0, %v5353
  %v5355 = vrot.slane %v4807, %v5354
  %v5356 = vlaneseq
  %v5357 = vshrl.u32 %v5356, 7
  %v5358 = vsub.s32 0, %v5357
  %v5359 = vrot.slane %v4790, %v5358
  %v5360 = vlaneseq
  %v5361 = vshrl.u32 %v5360, 7
  %v5362 = vsub.s32 0, %v5361
  %v5363 = vrot.slane %v4804, %v5362
  %v5364 = vlaneseq
  %v5365 = vshrl.u32 %v5364, 7
  %v5366 = vsub.s32 0, %v5365
  %v5367 = vrot.slane %v4806, %v5366
  %v5368 = vlaneseq
  %v5369 = vshrl.u32 %v5368, 7
  %v5370 = vsub.s32 0, %v5369
  %v5371 = vrot.slane %v4808, %v5370
  %v5372 = vlaneseq
  %v5373 = vshrl.u32 %v5372, 7
  %v5374 = vsub.s32 0, %v5373
  %v5375 = vrot.slane %v4832, %v5374
  %v5376 = vlaneseq
  %v5377 = vshrl.u32 %v5376, 7
  %v5378 = vsub.s32 0, %v5377
  %v5379 = vrot.slane %v4846, %v5378
  %v5380 = vlaneseq
  %v5381 = vshrl.u32 %v5380, 7
  %v5382 = vsub.s32 0, %v5381
  %v5383 = vrot.slane %v4854, %v5382
  %v5384 = vlaneseq
  %v5385 = vshrl.u32 %v5384, 7
  %v5386 = vsub.s32 0, %v5385
  %v5387 = vrot.slane %v4856, %v5386
  %v5388 = vlaneseq
  %v5389 = vshrl.u32 %v5388, 7
  %v5390 = vsub.s32 0, %v5389
  %v5391 = vrot.slane %v4839, %v5390
  %v5392 = vlaneseq
  %v5393 = vshrl.u32 %v5392, 7
  %v5394 = vsub.s32 0, %v5393
  %v5395 = vrot.slane %v4853, %v5394
  %v5396 = vlaneseq
  %v5397 = vshrl.u32 %v5396, 7
  %v5398 = vsub.s32 0, %v5397
  %v5399 = vrot.slane %v4855, %v5398
  %v5400 = vlaneseq
  %v5401 = vshrl.u32 %v5400, 7
  %v5402 = vsub.s32 0, %v5401
  %v5403 = vrot.slane %v4857, %v5402
  %v5404 = vlaneseq
  %v5405 = vshrl.u32 %v5404, 7
  %v5406 = vsub.s32 0, %v5405
  %v5407 = vrot.slane %v4881, %v5406
  %v5408 = vlaneseq
  %v5409 = vshrl.u32 %v5408, 7
  %v5410 = vsub.s32 0, %v5409
  %v5411 = vrot.slane %v4895, %v5410
  %v5412 = vlaneseq
  %v5413 = vshrl.u32 %v5412, 7
  %v5414 = vsub.s32 0, %v5413
  %v5415 = vrot.slane %v4903, %v5414
  %v5416 = vlaneseq
  %v5417 = vshrl.u32 %v5416, 7
  %v5418 = vsub.s32 0, %v5417
  %v5419 = vrot.slane %v4905, %v5418
  %v5420 = vlaneseq
  %v5421 = vshrl.u32 %v5420, 7
  %v5422 = vsub.s32 0, %v5421
  %v5423 = vrot.slane %v4888, %v5422
  %v5424 = vlaneseq
  %v5425 = vshrl.u32 %v5424, 7
  %v5426 = vsub.s32 0, %v5425
  %v5427 = vrot.slane %v4902, %v5426
  %v5428 = vlaneseq
  %v5429 = vshrl.u32 %v5428, 7
  %v5430 = vsub.s32 0, %v5429
  %v5431 = vrot.slane %v4904, %v5430
  %v5432 = vlaneseq
  %v5433 = vshrl.u32 %v5432, 7
  %v5434 = vsub.s32 0, %v5433
  %v5435 = vrot.slane %v4906, %v5434
  %v5436 = vlaneseq
  %v5437 = vshrl.u32 %v5436, 7
  %v5438 = vsub.s32 0, %v5437
  %v5439 = vrot.slane %v4930, %v5438
  %v5440 = vlaneseq
  %v5441 = vshrl.u32 %v5440, 7
  %v5442 = vsub.s32 0, %v5441
  %v5443 = vrot.slane %v4944, %v5442
  %v5444 = vlaneseq
  %v5445 = vshrl.u32 %v5444, 7
  %v5446 = vsub.s32 0, %v5445
  %v5447 = vrot.slane %v4952, %v5446
  %v5448 = vlaneseq
  %v5449 = vshrl.u32 %v5448, 7
  %v5450 = vsub.s32 0, %v5449
  %v5451 = vrot.slane %v4954, %v5450
  %v5452 = vlaneseq
  %v5453 = vshrl.u32 %v5452, 7
  %v5454 = vsub.s32 0, %v5453
  %v5455 = vrot.slane %v4937, %v5454
  %v5456 = vlaneseq
  %v5457 = vshrl.u32 %v5456, 7
  %v5458 = vsub.s32 0, %v5457
  %v5459 = vrot.slane %v4951, %v5458
  %v5460 = vlaneseq
  %v5461 = vshrl.u32 %v5460, 7
  %v5462 = vsub.s32 0, %v5461
  %v5463 = vrot.slane %v4953, %v5462
  %v5464 = vlaneseq
  %v5465 = vshrl.u32 %v5464, 7
  %v5466 = vsub.s32 0, %v5465
  %v5467 = vrot.slane %v4955, %v5466
  %v5468 = vadd.s32 %v766, 16
  %v5469 = vadd.s32 %v766, 32
  %v5470 = vadd.s32 %v766, 48
  %v5471 = vadd.s32 %v765, 64
  %v5472 = vadd.s32 %v766, 64
  %v5473 = vadd.s32 %v765, 80
  %v5474 = vadd.s32 %v766, 80
  %v5475 = vadd.s32 %v765, 96
  %v5476 = vadd.s32 %v766, 96
  %v5477 = vadd.s32 %v765, 112
  %v5478 = vadd.s32 %v766, 112
  %v5479 = vadd.s32 %v765, 128
  %v5480 = vadd.s32 %v766, 128
  %v5481 = vadd.s32 %v765, 144
  %v5482 = vadd.s32 %v766, 144
  %v5483 = vadd.s32 %v765, 160
  %v5484 = vadd.s32 %v766, 160
  %v5485 = vadd.s32 %v765, 176
  %v5486 = vadd.s32 %v766, 176
  %v5487 = vadd.s32 %v765, 192
  %v5488 = vadd.s32 %v766, 192
  %v5489 = vadd.s32 %v765, 208
  %v5490 = vadd.s32 %v766, 208
  %v5491 = vadd.s32 %v765, 224
  %v5492 = vadd.s32 %v766, 224
  %v5493 = vadd.s32 %v765, 240
  %v5494 = vadd.s32 %v766, 240
  %v5496 = vunpack.c.l.s4 269488144
  %v5497 = vunpack.c.0.s8 %v5496
  %v5498 = vlaneseq
  %v5499 = vshrl.u32 %v5498, 7
  %v5500 = vsub.s32 %v5497, %v5499
  %v5501 = vrot.slane %v5468, %v5500
  %v5503 = vunpack.c.l.s4 842150450
  %v5504 = vunpack.c.0.s8 %v5503
  %v5505 = vlaneseq
  %v5506 = vshrl.u32 %v5505, 7
  %v5507 = vsub.s32 %v5504, %v5506
  %v5508 = vrot.slane %v5468, %v5507
  %v5510 = vunpack.c.l.s4 1414812756
  %v5511 = vunpack.c.0.s8 %v5510
  %v5512 = vlaneseq
  %v5513 = vshrl.u32 %v5512, 7
  %v5514 = vsub.s32 %v5511, %v5513
  %v5515 = vrot.slane %v5468, %v5514
  %v5517 = vunpack.c.l.s4 1987475062
  %v5518 = vunpack.c.0.s8 %v5517
  %v5519 = vlaneseq
  %v5520 = vshrl.u32 %v5519, 7
  %v5521 = vsub.s32 %v5518, %v5520
  %v5522 = vrot.slane %v5468, %v5521
  %v5524 = vunpack.c.l.s4 269488144
  %v5525 = vunpack.c.0.s8 %v5524
  %v5526 = vlaneseq
  %v5527 = vshrl.u32 %v5526, 7
  %v5528 = vsub.s32 %v5525, %v5527
  %v5529 = vrot.slane %v5469, %v5528
  %v5531 = vunpack.c.l.s4 842150450
  %v5532 = vunpack.c.0.s8 %v5531
  %v5533 = vlaneseq
  %v5534 = vshrl.u32 %v5533, 7
  %v5535 = vsub.s32 %v5532, %v5534
  %v5536 = vrot.slane %v5469, %v5535
  %v5538 = vunpack.c.l.s4 1414812756
  %v5539 = vunpack.c.0.s8 %v5538
  %v5540 = vlaneseq
  %v5541 = vshrl.u32 %v5540, 7
  %v5542 = vsub.s32 %v5539, %v5541
  %v5543 = vrot.slane %v5469, %v5542
  %v5545 = vunpack.c.l.s4 1987475062
  %v5546 = vunpack.c.0.s8 %v5545
  %v5547 = vlaneseq
  %v5548 = vshrl.u32 %v5547, 7
  %v5549 = vsub.s32 %v5546, %v5548
  %v5550 = vrot.slane %v5469, %v5549
  %v5552 = vunpack.c.l.s4 269488144
  %v5553 = vunpack.c.0.s8 %v5552
  %v5554 = vlaneseq
  %v5555 = vshrl.u32 %v5554, 7
  %v5556 = vsub.s32 %v5553, %v5555
  %v5557 = vrot.slane %v5470, %v5556
  %v5559 = vunpack.c.l.s4 842150450
  %v5560 = vunpack.c.0.s8 %v5559
  %v5561 = vlaneseq
  %v5562 = vshrl.u32 %v5561, 7
  %v5563 = vsub.s32 %v5560, %v5562
  %v5564 = vrot.slane %v5470, %v5563
  %v5566 = vunpack.c.l.s4 1414812756
  %v5567 = vunpack.c.0.s8 %v5566
  %v5568 = vlaneseq
  %v5569 = vshrl.u32 %v5568, 7
  %v5570 = vsub.s32 %v5567, %v5569
  %v5571 = vrot.slane %v5470, %v5570
  %v5573 = vunpack.c.l.s4 1987475062
  %v5574 = vunpack.c.0.s8 %v5573
  %v5575 = vlaneseq
  %v5576 = vshrl.u32 %v5575, 7
  %v5577 = vsub.s32 %v5574, %v5576
  %v5578 = vrot.slane %v5470, %v5577
  %v5580 = vunpack.c.l.s4 269488144
  %v5581 = vunpack.c.0.s8 %v5580
  %v5582 = vlaneseq
  %v5583 = vshrl.u32 %v5582, 7
  %v5584 = vsub.s32 %v5581, %v5583
  %v5585 = vrot.slane %v5471, %v5584
  %v5587 = vunpack.c.l.s4 842150450
  %v5588 = vunpack.c.0.s8 %v5587
  %v5589 = vlaneseq
  %v5590 = vshrl.u32 %v5589, 7
  %v5591 = vsub.s32 %v5588, %v5590
  %v5592 = vrot.slane %v5471, %v5591
  %v5594 = vunpack.c.l.s4 1414812756
  %v5595 = vunpack.c.0.s8 %v5594
  %v5596 = vlaneseq
  %v5597 = vshrl.u32 %v5596, 7
  %v5598 = vsub.s32 %v5595, %v5597
  %v5599 = vrot.slane %v5471, %v5598
  %v5601 = vunpack.c.l.s4 1987475062
  %v5602 = vunpack.c.0.s8 %v5601
  %v5603 = vlaneseq
  %v5604 = vshrl.u32 %v5603, 7
  %v5605 = vsub.s32 %v5602, %v5604
  %v5606 = vrot.slane %v5471, %v5605
  %v5608 = vunpack.c.l.s4 269488144
  %v5609 = vunpack.c.0.s8 %v5608
  %v5610 = vlaneseq
  %v5611 = vshrl.u32 %v5610, 7
  %v5612 = vsub.s32 %v5609, %v5611
  %v5613 = vrot.slane %v5472, %v5612
  %v5615 = vunpack.c.l.s4 842150450
  %v5616 = vunpack.c.0.s8 %v5615
  %v5617 = vlaneseq
  %v5618 = vshrl.u32 %v5617, 7
  %v5619 = vsub.s32 %v5616, %v5618
  %v5620 = vrot.slane %v5472, %v5619
  %v5622 = vunpack.c.l.s4 1414812756
  %v5623 = vunpack.c.0.s8 %v5622
  %v5624 = vlaneseq
  %v5625 = vshrl.u32 %v5624, 7
  %v5626 = vsub.s32 %v5623, %v5625
  %v5627 = vrot.slane %v5472, %v5626
  %v5629 = vunpack.c.l.s4 1987475062
  %v5630 = vunpack.c.0.s8 %v5629
  %v5631 = vlaneseq
  %v5632 = vshrl.u32 %v5631, 7
  %v5633 = vsub.s32 %v5630, %v5632
  %v5634 = vrot.slane %v5472, %v5633
  %v5636 = vunpack.c.l.s4 269488144
  %v5637 = vunpack.c.0.s8 %v5636
  %v5638 = vlaneseq
  %v5639 = vshrl.u32 %v5638, 7
  %v5640 = vsub.s32 %v5637, %v5639
  %v5641 = vrot.slane %v5473, %v5640
  %v5643 = vunpack.c.l.s4 842150450
  %v5644 = vunpack.c.0.s8 %v5643
  %v5645 = vlaneseq
  %v5646 = vshrl.u32 %v5645, 7
  %v5647 = vsub.s32 %v5644, %v5646
  %v5648 = vrot.slane %v5473, %v5647
  %v5650 = vunpack.c.l.s4 1414812756
  %v5651 = vunpack.c.0.s8 %v5650
  %v5652 = vlaneseq
  %v5653 = vshrl.u32 %v5652, 7
  %v5654 = vsub.s32 %v5651, %v5653
  %v5655 = vrot.slane %v5473, %v5654
  %v5657 = vunpack.c.l.s4 1987475062
  %v5658 = vunpack.c.0.s8 %v5657
  %v5659 = vlaneseq
  %v5660 = vshrl.u32 %v5659, 7
  %v5661 = vsub.s32 %v5658, %v5660
  %v5662 = vrot.slane %v5473, %v5661
  %v5664 = vunpack.c.l.s4 269488144
  %v5665 = vunpack.c.0.s8 %v5664
  %v5666 = vlaneseq
  %v5667 = vshrl.u32 %v5666, 7
  %v5668 = vsub.s32 %v5665, %v5667
  %v5669 = vrot.slane %v5474, %v5668
  %v5671 = vunpack.c.l.s4 842150450
  %v5672 = vunpack.c.0.s8 %v5671
  %v5673 = vlaneseq
  %v5674 = vshrl.u32 %v5673, 7
  %v5675 = vsub.s32 %v5672, %v5674
  %v5676 = vrot.slane %v5474, %v5675
  %v5678 = vunpack.c.l.s4 1414812756
  %v5679 = vunpack.c.0.s8 %v5678
  %v5680 = vlaneseq
  %v5681 = vshrl.u32 %v5680, 7
  %v5682 = vsub.s32 %v5679, %v5681
  %v5683 = vrot.slane %v5474, %v5682
  %v5685 = vunpack.c.l.s4 1987475062
  %v5686 = vunpack.c.0.s8 %v5685
  %v5687 = vlaneseq
  %v5688 = vshrl.u32 %v5687, 7
  %v5689 = vsub.s32 %v5686, %v5688
  %v5690 = vrot.slane %v5474, %v5689
  %v5692 = vunpack.c.l.s4 269488144
  %v5693 = vunpack.c.0.s8 %v5692
  %v5694 = vlaneseq
  %v5695 = vshrl.u32 %v5694, 7
  %v5696 = vsub.s32 %v5693, %v5695
  %v5697 = vrot.slane %v5475, %v5696
  %v5699 = vunpack.c.l.s4 842150450
  %v5700 = vunpack.c.0.s8 %v5699
  %v5701 = vlaneseq
  %v5702 = vshrl.u32 %v5701, 7
  %v5703 = vsub.s32 %v5700, %v5702
  %v5704 = vrot.slane %v5475, %v5703
  %v5706 = vunpack.c.l.s4 1414812756
  %v5707 = vunpack.c.0.s8 %v5706
  %v5708 = vlaneseq
  %v5709 = vshrl.u32 %v5708, 7
  %v5710 = vsub.s32 %v5707, %v5709
  %v5711 = vrot.slane %v5475, %v5710
  %v5713 = vunpack.c.l.s4 1987475062
  %v5714 = vunpack.c.0.s8 %v5713
  %v5715 = vlaneseq
  %v5716 = vshrl.u32 %v5715, 7
  %v5717 = vsub.s32 %v5714, %v5716
  %v5718 = vrot.slane %v5475, %v5717
  %v5720 = vunpack.c.l.s4 269488144
  %v5721 = vunpack.c.0.s8 %v5720
  %v5722 = vlaneseq
  %v5723 = vshrl.u32 %v5722, 7
  %v5724 = vsub.s32 %v5721, %v5723
  %v5725 = vrot.slane %v5476, %v5724
  %v5727 = vunpack.c.l.s4 842150450
  %v5728 = vunpack.c.0.s8 %v5727
  %v5729 = vlaneseq
  %v5730 = vshrl.u32 %v5729, 7
  %v5731 = vsub.s32 %v5728, %v5730
  %v5732 = vrot.slane %v5476, %v5731
  %v5734 = vunpack.c.l.s4 1414812756
  %v5735 = vunpack.c.0.s8 %v5734
  %v5736 = vlaneseq
  %v5737 = vshrl.u32 %v5736, 7
  %v5738 = vsub.s32 %v5735, %v5737
  %v5739 = vrot.slane %v5476, %v5738
  %v5741 = vunpack.c.l.s4 1987475062
  %v5742 = vunpack.c.0.s8 %v5741
  %v5743 = vlaneseq
  %v5744 = vshrl.u32 %v5743, 7
  %v5745 = vsub.s32 %v5742, %v5744
  %v5746 = vrot.slane %v5476, %v5745
  %v5748 = vunpack.c.l.s4 269488144
  %v5749 = vunpack.c.0.s8 %v5748
  %v5750 = vlaneseq
  %v5751 = vshrl.u32 %v5750, 7
  %v5752 = vsub.s32 %v5749, %v5751
  %v5753 = vrot.slane %v5477, %v5752
  %v5755 = vunpack.c.l.s4 842150450
  %v5756 = vunpack.c.0.s8 %v5755
  %v5757 = vlaneseq
  %v5758 = vshrl.u32 %v5757, 7
  %v5759 = vsub.s32 %v5756, %v5758
  %v5760 = vrot.slane %v5477, %v5759
  %v5762 = vunpack.c.l.s4 1414812756
  %v5763 = vunpack.c.0.s8 %v5762
  %v5764 = vlaneseq
  %v5765 = vshrl.u32 %v5764, 7
  %v5766 = vsub.s32 %v5763, %v5765
  %v5767 = vrot.slane %v5477, %v5766
  %v5769 = vunpack.c.l.s4 1987475062
  %v5770 = vunpack.c.0.s8 %v5769
  %v5771 = vlaneseq
  %v5772 = vshrl.u32 %v5771, 7
  %v5773 = vsub.s32 %v5770, %v5772
  %v5774 = vrot.slane %v5477, %v5773
  %v5776 = vunpack.c.l.s4 269488144
  %v5777 = vunpack.c.0.s8 %v5776
  %v5778 = vlaneseq
  %v5779 = vshrl.u32 %v5778, 7
  %v5780 = vsub.s32 %v5777, %v5779
  %v5781 = vrot.slane %v5478, %v5780
  %v5783 = vunpack.c.l.s4 842150450
  %v5784 = vunpack.c.0.s8 %v5783
  %v5785 = vlaneseq
  %v5786 = vshrl.u32 %v5785, 7
  %v5787 = vsub.s32 %v5784, %v5786
  %v5788 = vrot.slane %v5478, %v5787
  %v5790 = vunpack.c.l.s4 1414812756
  %v5791 = vunpack.c.0.s8 %v5790
  %v5792 = vlaneseq
  %v5793 = vshrl.u32 %v5792, 7
  %v5794 = vsub.s32 %v5791, %v5793
  %v5795 = vrot.slane %v5478, %v5794
  %v5797 = vunpack.c.l.s4 1987475062
  %v5798 = vunpack.c.0.s8 %v5797
  %v5799 = vlaneseq
  %v5800 = vshrl.u32 %v5799, 7
  %v5801 = vsub.s32 %v5798, %v5800
  %v5802 = vrot.slane %v5478, %v5801
  %v5804 = vunpack.c.l.s4 269488144
  %v5805 = vunpack.c.0.s8 %v5804
  %v5806 = vlaneseq
  %v5807 = vshrl.u32 %v5806, 7
  %v5808 = vsub.s32 %v5805, %v5807
  %v5809 = vrot.slane %v5479, %v5808
  %v5811 = vunpack.c.l.s4 842150450
  %v5812 = vunpack.c.0.s8 %v5811
  %v5813 = vlaneseq
  %v5814 = vshrl.u32 %v5813, 7
  %v5815 = vsub.s32 %v5812, %v5814
  %v5816 = vrot.slane %v5479, %v5815
  %v5818 = vunpack.c.l.s4 1414812756
  %v5819 = vunpack.c.0.s8 %v5818
  %v5820 = vlaneseq
  %v5821 = vshrl.u32 %v5820, 7
  %v5822 = vsub.s32 %v5819, %v5821
  %v5823 = vrot.slane %v5479, %v5822
  %v5825 = vunpack.c.l.s4 1987475062
  %v5826 = vunpack.c.0.s8 %v5825
  %v5827 = vlaneseq
  %v5828 = vshrl.u32 %v5827, 7
  %v5829 = vsub.s32 %v5826, %v5828
  %v5830 = vrot.slane %v5479, %v5829
  %v5832 = vunpack.c.l.s4 269488144
  %v5833 = vunpack.c.0.s8 %v5832
  %v5834 = vlaneseq
  %v5835 = vshrl.u32 %v5834, 7
  %v5836 = vsub.s32 %v5833, %v5835
  %v5837 = vrot.slane %v5480, %v5836
  %v5839 = vunpack.c.l.s4 842150450
  %v5840 = vunpack.c.0.s8 %v5839
  %v5841 = vlaneseq
  %v5842 = vshrl.u32 %v5841, 7
  %v5843 = vsub.s32 %v5840, %v5842
  %v5844 = vrot.slane %v5480, %v5843
  %v5846 = vunpack.c.l.s4 1414812756
  %v5847 = vunpack.c.0.s8 %v5846
  %v5848 = vlaneseq
  %v5849 = vshrl.u32 %v5848, 7
  %v5850 = vsub.s32 %v5847, %v5849
  %v5851 = vrot.slane %v5480, %v5850
  %v5853 = vunpack.c.l.s4 1987475062
  %v5854 = vunpack.c.0.s8 %v5853
  %v5855 = vlaneseq
  %v5856 = vshrl.u32 %v5855, 7
  %v5857 = vsub.s32 %v5854, %v5856
  %v5858 = vrot.slane %v5480, %v5857
  %v5860 = vunpack.c.l.s4 269488144
  %v5861 = vunpack.c.0.s8 %v5860
  %v5862 = vlaneseq
  %v5863 = vshrl.u32 %v5862, 7
  %v5864 = vsub.s32 %v5861, %v5863
  %v5865 = vrot.slane %v5481, %v5864
  %v5867 = vunpack.c.l.s4 842150450
  %v5868 = vunpack.c.0.s8 %v5867
  %v5869 = vlaneseq
  %v5870 = vshrl.u32 %v5869, 7
  %v5871 = vsub.s32 %v5868, %v5870
  %v5872 = vrot.slane %v5481, %v5871
  %v5874 = vunpack.c.l.s4 1414812756
  %v5875 = vunpack.c.0.s8 %v5874
  %v5876 = vlaneseq
  %v5877 = vshrl.u32 %v5876, 7
  %v5878 = vsub.s32 %v5875, %v5877
  %v5879 = vrot.slane %v5481, %v5878
  %v5881 = vunpack.c.l.s4 1987475062
  %v5882 = vunpack.c.0.s8 %v5881
  %v5883 = vlaneseq
  %v5884 = vshrl.u32 %v5883, 7
  %v5885 = vsub.s32 %v5882, %v5884
  %v5886 = vrot.slane %v5481, %v5885
  %v5888 = vunpack.c.l.s4 269488144
  %v5889 = vunpack.c.0.s8 %v5888
  %v5890 = vlaneseq
  %v5891 = vshrl.u32 %v5890, 7
  %v5892 = vsub.s32 %v5889, %v5891
  %v5893 = vrot.slane %v5482, %v5892
  %v5895 = vunpack.c.l.s4 842150450
  %v5896 = vunpack.c.0.s8 %v5895
  %v5897 = vlaneseq
  %v5898 = vshrl.u32 %v5897, 7
  %v5899 = vsub.s32 %v5896, %v5898
  %v5900 = vrot.slane %v5482, %v5899
  %v5902 = vunpack.c.l.s4 1414812756
  %v5903 = vunpack.c.0.s8 %v5902
  %v5904 = vlaneseq
  %v5905 = vshrl.u32 %v5904, 7
  %v5906 = vsub.s32 %v5903, %v5905
  %v5907 = vrot.slane %v5482, %v5906
  %v5909 = vunpack.c.l.s4 1987475062
  %v5910 = vunpack.c.0.s8 %v5909
  %v5911 = vlaneseq
  %v5912 = vshrl.u32 %v5911, 7
  %v5913 = vsub.s32 %v5910, %v5912
  %v5914 = vrot.slane %v5482, %v5913
  %v5916 = vunpack.c.l.s4 269488144
  %v5917 = vunpack.c.0.s8 %v5916
  %v5918 = vlaneseq
  %v5919 = vshrl.u32 %v5918, 7
  %v5920 = vsub.s32 %v5917, %v5919
  %v5921 = vrot.slane %v5483, %v5920
  %v5923 = vunpack.c.l.s4 842150450
  %v5924 = vunpack.c.0.s8 %v5923
  %v5925 = vlaneseq
  %v5926 = vshrl.u32 %v5925, 7
  %v5927 = vsub.s32 %v5924, %v5926
  %v5928 = vrot.slane %v5483, %v5927
  %v5930 = vunpack.c.l.s4 1414812756
  %v5931 = vunpack.c.0.s8 %v5930
  %v5932 = vlaneseq
  %v5933 = vshrl.u32 %v5932, 7
  %v5934 = vsub.s32 %v5931, %v5933
  %v5935 = vrot.slane %v5483, %v5934
  %v5937 = vunpack.c.l.s4 1987475062
  %v5938 = vunpack.c.0.s8 %v5937
  %v5939 = vlaneseq
  %v5940 = vshrl.u32 %v5939, 7
  %v5941 = vsub.s32 %v5938, %v5940
  %v5942 = vrot.slane %v5483, %v5941
  %v5944 = vunpack.c.l.s4 269488144
  %v5945 = vunpack.c.0.s8 %v5944
  %v5946 = vlaneseq
  %v5947 = vshrl.u32 %v5946, 7
  %v5948 = vsub.s32 %v5945, %v5947
  %v5949 = vrot.slane %v5484, %v5948
  %v5951 = vunpack.c.l.s4 842150450
  %v5952 = vunpack.c.0.s8 %v5951
  %v5953 = vlaneseq
  %v5954 = vshrl.u32 %v5953, 7
  %v5955 = vsub.s32 %v5952, %v5954
  %v5956 = vrot.slane %v5484, %v5955
  %v5958 = vunpack.c.l.s4 1414812756
  %v5959 = vunpack.c.0.s8 %v5958
  %v5960 = vlaneseq
  %v5961 = vshrl.u32 %v5960, 7
  %v5962 = vsub.s32 %v5959, %v5961
  %v5963 = vrot.slane %v5484, %v5962
  %v5965 = vunpack.c.l.s4 1987475062
  %v5966 = vunpack.c.0.s8 %v5965
  %v5967 = vlaneseq
  %v5968 = vshrl.u32 %v5967, 7
  %v5969 = vsub.s32 %v5966, %v5968
  %v5970 = vrot.slane %v5484, %v5969
  %v5972 = vunpack.c.l.s4 269488144
  %v5973 = vunpack.c.0.s8 %v5972
  %v5974 = vlaneseq
  %v5975 = vshrl.u32 %v5974, 7
  %v5976 = vsub.s32 %v5973, %v5975
  %v5977 = vrot.slane %v5485, %v5976
  %v5979 = vunpack.c.l.s4 842150450
  %v5980 = vunpack.c.0.s8 %v5979
  %v5981 = vlaneseq
  %v5982 = vshrl.u32 %v5981, 7
  %v5983 = vsub.s32 %v5980, %v5982
  %v5984 = vrot.slane %v5485, %v5983
  %v5986 = vunpack.c.l.s4 1414812756
  %v5987 = vunpack.c.0.s8 %v5986
  %v5988 = vlaneseq
  %v5989 = vshrl.u32 %v5988, 7
  %v5990 = vsub.s32 %v5987, %v5989
  %v5991 = vrot.slane %v5485, %v5990
  %v5993 = vunpack.c.l.s4 1987475062
  %v5994 = vunpack.c.0.s8 %v5993
  %v5995 = vlaneseq
  %v5996 = vshrl.u32 %v5995, 7
  %v5997 = vsub.s32 %v5994, %v5996
  %v5998 = vrot.slane %v5485, %v5997
  %v6000 = vunpack.c.l.s4 269488144
  %v6001 = vunpack.c.0.s8 %v6000
  %v6002 = vlaneseq
  %v6003 = vshrl.u32 %v6002, 7
  %v6004 = vsub.s32 %v6001, %v6003
  %v6005 = vrot.slane %v5486, %v6004
  %v6007 = vunpack.c.l.s4 842150450
  %v6008 = vunpack.c.0.s8 %v6007
  %v6009 = vlaneseq
  %v6010 = vshrl.u32 %v6009, 7
  %v6011 = vsub.s32 %v6008, %v6010
  %v6012 = vrot.slane %v5486, %v6011
  %v6014 = vunpack.c.l.s4 1414812756
  %v6015 = vunpack.c.0.s8 %v6014
  %v6016 = vlaneseq
  %v6017 = vshrl.u32 %v6016, 7
  %v6018 = vsub.s32 %v6015, %v6017
  %v6019 = vrot.slane %v5486, %v6018
  %v6021 = vunpack.c.l.s4 1987475062
  %v6022 = vunpack.c.0.s8 %v6021
  %v6023 = vlaneseq
  %v6024 = vshrl.u32 %v6023, 7
  %v6025 = vsub.s32 %v6022, %v6024
  %v6026 = vrot.slane %v5486, %v6025
  %v6028 = vunpack.c.l.s4 269488144
  %v6029 = vunpack.c.0.s8 %v6028
  %v6030 = vlaneseq
  %v6031 = vshrl.u32 %v6030, 7
  %v6032 = vsub.s32 %v6029, %v6031
  %v6033 = vrot.slane %v5487, %v6032
  %v6035 = vunpack.c.l.s4 842150450
  %v6036 = vunpack.c.0.s8 %v6035
  %v6037 = vlaneseq
  %v6038 = vshrl.u32 %v6037, 7
  %v6039 = vsub.s32 %v6036, %v6038
  %v6040 = vrot.slane %v5487, %v6039
  %v6042 = vunpack.c.l.s4 1414812756
  %v6043 = vunpack.c.0.s8 %v6042
  %v6044 = vlaneseq
  %v6045 = vshrl.u32 %v6044, 7
  %v6046 = vsub.s32 %v6043, %v6045
  %v6047 = vrot.slane %v5487, %v6046
  %v6049 = vunpack.c.l.s4 1987475062
  %v6050 = vunpack.c.0.s8 %v6049
  %v6051 = vlaneseq
  %v6052 = vshrl.u32 %v6051, 7
  %v6053 = vsub.s32 %v6050, %v6052
  %v6054 = vrot.slane %v5487, %v6053
  %v6056 = vunpack.c.l.s4 269488144
  %v6057 = vunpack.c.0.s8 %v6056
  %v6058 = vlaneseq
  %v6059 = vshrl.u32 %v6058, 7
  %v6060 = vsub.s32 %v6057, %v6059
  %v6061 = vrot.slane %v5488, %v6060
  %v6063 = vunpack.c.l.s4 842150450
  %v6064 = vunpack.c.0.s8 %v6063
  %v6065 = vlaneseq
  %v6066 = vshrl.u32 %v6065, 7
  %v6067 = vsub.s32 %v6064, %v6066
  %v6068 = vrot.slane %v5488, %v6067
  %v6070 = vunpack.c.l.s4 1414812756
  %v6071 = vunpack.c.0.s8 %v6070
  %v6072 = vlaneseq
  %v6073 = vshrl.u32 %v6072, 7
  %v6074 = vsub.s32 %v6071, %v6073
  %v6075 = vrot.slane %v5488, %v6074
  %v6077 = vunpack.c.l.s4 1987475062
  %v6078 = vunpack.c.0.s8 %v6077
  %v6079 = vlaneseq
  %v6080 = vshrl.u32 %v6079, 7
  %v6081 = vsub.s32 %v6078, %v6080
  %v6082 = vrot.slane %v5488, %v6081
  %v6084 = vunpack.c.l.s4 269488144
  %v6085 = vunpack.c.0.s8 %v6084
  %v6086 = vlaneseq
  %v6087 = vshrl.u32 %v6086, 7
  %v6088 = vsub.s32 %v6085, %v6087
  %v6089 = vrot.slane %v5489, %v6088
  %v6091 = vunpack.c.l.s4 842150450
  %v6092 = vunpack.c.0.s8 %v6091
  %v6093 = vlaneseq
  %v6094 = vshrl.u32 %v6093, 7
  %v6095 = vsub.s32 %v6092, %v6094
  %v6096 = vrot.slane %v5489, %v6095
  %v6098 = vunpack.c.l.s4 1414812756
  %v6099 = vunpack.c.0.s8 %v6098
  %v6100 = vlaneseq
  %v6101 = vshrl.u32 %v6100, 7
  %v6102 = vsub.s32 %v6099, %v6101
  %v6103 = vrot.slane %v5489, %v6102
  %v6105 = vunpack.c.l.s4 1987475062
  %v6106 = vunpack.c.0.s8 %v6105
  %v6107 = vlaneseq
  %v6108 = vshrl.u32 %v6107, 7
  %v6109 = vsub.s32 %v6106, %v6108
  %v6110 = vrot.slane %v5489, %v6109
  %v6112 = vunpack.c.l.s4 269488144
  %v6113 = vunpack.c.0.s8 %v6112
  %v6114 = vlaneseq
  %v6115 = vshrl.u32 %v6114, 7
  %v6116 = vsub.s32 %v6113, %v6115
  %v6117 = vrot.slane %v5490, %v6116
  %v6119 = vunpack.c.l.s4 842150450
  %v6120 = vunpack.c.0.s8 %v6119
  %v6121 = vlaneseq
  %v6122 = vshrl.u32 %v6121, 7
  %v6123 = vsub.s32 %v6120, %v6122
  %v6124 = vrot.slane %v5490, %v6123
  %v6126 = vunpack.c.l.s4 1414812756
  %v6127 = vunpack.c.0.s8 %v6126
  %v6128 = vlaneseq
  %v6129 = vshrl.u32 %v6128, 7
  %v6130 = vsub.s32 %v6127, %v6129
  %v6131 = vrot.slane %v5490, %v6130
  %v6133 = vunpack.c.l.s4 1987475062
  %v6134 = vunpack.c.0.s8 %v6133
  %v6135 = vlaneseq
  %v6136 = vshrl.u32 %v6135, 7
  %v6137 = vsub.s32 %v6134, %v6136
  %v6138 = vrot.slane %v5490, %v6137
  %v6140 = vunpack.c.l.s4 269488144
  %v6141 = vunpack.c.0.s8 %v6140
  %v6142 = vlaneseq
  %v6143 = vshrl.u32 %v6142, 7
  %v6144 = vsub.s32 %v6141, %v6143
  %v6145 = vrot.slane %v5491, %v6144
  %v6147 = vunpack.c.l.s4 842150450
  %v6148 = vunpack.c.0.s8 %v6147
  %v6149 = vlaneseq
  %v6150 = vshrl.u32 %v6149, 7
  %v6151 = vsub.s32 %v6148, %v6150
  %v6152 = vrot.slane %v5491, %v6151
  %v6154 = vunpack.c.l.s4 1414812756
  %v6155 = vunpack.c.0.s8 %v6154
  %v6156 = vlaneseq
  %v6157 = vshrl.u32 %v6156, 7
  %v6158 = vsub.s32 %v6155, %v6157
  %v6159 = vrot.slane %v5491, %v6158
  %v6161 = vunpack.c.l.s4 1987475062
  %v6162 = vunpack.c.0.s8 %v6161
  %v6163 = vlaneseq
  %v6164 = vshrl.u32 %v6163, 7
  %v6165 = vsub.s32 %v6162, %v6164
  %v6166 = vrot.slane %v5491, %v6165
  %v6168 = vunpack.c.l.s4 269488144
  %v6169 = vunpack.c.0.s8 %v6168
  %v6170 = vlaneseq
  %v6171 = vshrl.u32 %v6170, 7
  %v6172 = vsub.s32 %v6169, %v6171
  %v6173 = vrot.slane %v5492, %v6172
  %v6175 = vunpack.c.l.s4 842150450
  %v6176 = vunpack.c.0.s8 %v6175
  %v6177 = vlaneseq
  %v6178 = vshrl.u32 %v6177, 7
  %v6179 = vsub.s32 %v6176, %v6178
  %v6180 = vrot.slane %v5492, %v6179
  %v6182 = vunpack.c.l.s4 1414812756
  %v6183 = vunpack.c.0.s8 %v6182
  %v6184 = vlaneseq
  %v6185 = vshrl.u32 %v6184, 7
  %v6186 = vsub.s32 %v6183, %v6185
  %v6187 = vrot.slane %v5492, %v6186
  %v6189 = vunpack.c.l.s4 1987475062
  %v6190 = vunpack.c.0.s8 %v6189
  %v6191 = vlaneseq
  %v6192 = vshrl.u32 %v6191, 7
  %v6193 = vsub.s32 %v6190, %v6192
  %v6194 = vrot.slane %v5492, %v6193
  %v6196 = vunpack.c.l.s4 269488144
  %v6197 = vunpack.c.0.s8 %v6196
  %v6198 = vlaneseq
  %v6199 = vshrl.u32 %v6198, 7
  %v6200 = vsub.s32 %v6197, %v6199
  %v6201 = vrot.slane %v5493, %v6200
  %v6203 = vunpack.c.l.s4 842150450
  %v6204 = vunpack.c.0.s8 %v6203
  %v6205 = vlaneseq
  %v6206 = vshrl.u32 %v6205, 7
  %v6207 = vsub.s32 %v6204, %v6206
  %v6208 = vrot.slane %v5493, %v6207
  %v6210 = vunpack.c.l.s4 1414812756
  %v6211 = vunpack.c.0.s8 %v6210
  %v6212 = vlaneseq
  %v6213 = vshrl.u32 %v6212, 7
  %v6214 = vsub.s32 %v6211, %v6213
  %v6215 = vrot.slane %v5493, %v6214
  %v6217 = vunpack.c.l.s4 1987475062
  %v6218 = vunpack.c.0.s8 %v6217
  %v6219 = vlaneseq
  %v6220 = vshrl.u32 %v6219, 7
  %v6221 = vsub.s32 %v6218, %v6220
  %v6222 = vrot.slane %v5493, %v6221
  %v6224 = vunpack.c.l.s4 269488144
  %v6225 = vunpack.c.0.s8 %v6224
  %v6226 = vlaneseq
  %v6227 = vshrl.u32 %v6226, 7
  %v6228 = vsub.s32 %v6225, %v6227
  %v6229 = vrot.slane %v5494, %v6228
  %v6231 = vunpack.c.l.s4 842150450
  %v6232 = vunpack.c.0.s8 %v6231
  %v6233 = vlaneseq
  %v6234 = vshrl.u32 %v6233, 7
  %v6235 = vsub.s32 %v6232, %v6234
  %v6236 = vrot.slane %v5494, %v6235
  %v6238 = vunpack.c.l.s4 1414812756
  %v6239 = vunpack.c.0.s8 %v6238
  %v6240 = vlaneseq
  %v6241 = vshrl.u32 %v6240, 7
  %v6242 = vsub.s32 %v6239, %v6241
  %v6243 = vrot.slane %v5494, %v6242
  %v6245 = vunpack.c.l.s4 1987475062
  %v6246 = vunpack.c.0.s8 %v6245
  %v6247 = vlaneseq
  %v6248 = vshrl.u32 %v6247, 7
  %v6249 = vsub.s32 %v6246, %v6248
  %v6250 = vrot.slane %v5494, %v6249
  %vm6251 = vcmp.eq.s32.totalorder %v4959, %v779
  %vm6252 = vcmp.eq.s32.totalorder %v4963, %v786
  %vm6253 = vcmp.eq.s32.totalorder %v4967, %v793
  %vm6254 = vcmp.eq.s32.totalorder %v4971, %v800
  %vm6255 = vcmp.eq.s32.totalorder %v4975, %v807
  %vm6256 = vcmp.eq.s32.totalorder %v4979, %v814
  %vm6257 = vcmp.eq.s32.totalorder %v4983, %v821
  %vm6258 = vcmp.eq.s32.totalorder %v4987, %v828
  %vm6259 = vcmp.eq.s32.totalorder %v4959, %v835
  %vm6260 = vcmp.eq.s32.totalorder %v4963, %v842
  %vm6261 = vcmp.eq.s32.totalorder %v4967, %v849
  %vm6262 = vcmp.eq.s32.totalorder %v4971, %v856
  %vm6263 = vcmp.eq.s32.totalorder %v4975, %v5501
  %vm6264 = vcmp.eq.s32.totalorder %v4979, %v5508
  %vm6265 = vcmp.eq.s32.totalorder %v4983, %v5515
  %vm6266 = vcmp.eq.s32.totalorder %v4987, %v5522
  %vm6267 = vcmp.eq.s32.totalorder %v4991, %v891
  %vm6268 = vcmp.eq.s32.totalorder %v4995, %v898
  %vm6269 = vcmp.eq.s32.totalorder %v4999, %v905
  %vm6270 = vcmp.eq.s32.totalorder %v5003, %v912
  %vm6271 = vcmp.eq.s32.totalorder %v5007, %v5529
  %vm6272 = vcmp.eq.s32.totalorder %v5011, %v5536
  %vm6273 = vcmp.eq.s32.totalorder %v5015, %v5543
  %vm6274 = vcmp.eq.s32.totalorder %v5019, %v5550
  %vm6275 = vcmp.eq.s32.totalorder %v4991, %v947
  %vm6276 = vcmp.eq.s32.totalorder %v4995, %v954
  %vm6277 = vcmp.eq.s32.totalorder %v4999, %v961
  %vm6278 = vcmp.eq.s32.totalorder %v5003, %v968
  %vm6279 = vcmp.eq.s32.totalorder %v5007, %v5557
  %vm6280 = vcmp.eq.s32.totalorder %v5011, %v5564
  %vm6281 = vcmp.eq.s32.totalorder %v5015, %v5571
  %vm6282 = vcmp.eq.s32.totalorder %v5019, %v5578
  %vm6283 = vcmp.eq.s32.totalorder %v5023, %v5585
  %vm6284 = vcmp.eq.s32.totalorder %v5027, %v5592
  %vm6285 = vcmp.eq.s32.totalorder %v5031, %v5599
  %vm6286 = vcmp.eq.s32.totalorder %v5035, %v5606
  %vm6287 = vcmp.eq.s32.totalorder %v5039, %v5613
  %vm6288 = vcmp.eq.s32.totalorder %v5043, %v5620
  %vm6289 = vcmp.eq.s32.totalorder %v5047, %v5627
  %vm6290 = vcmp.eq.s32.totalorder %v5051, %v5634
  %vm6291 = vcmp.eq.s32.totalorder %v5023, %v5641
  %vm6292 = vcmp.eq.s32.totalorder %v5027, %v5648
  %vm6293 = vcmp.eq.s32.totalorder %v5031, %v5655
  %vm6294 = vcmp.eq.s32.totalorder %v5035, %v5662
  %vm6295 = vcmp.eq.s32.totalorder %v5039, %v5669
  %vm6296 = vcmp.eq.s32.totalorder %v5043, %v5676
  %vm6297 = vcmp.eq.s32.totalorder %v5047, %v5683
  %vm6298 = vcmp.eq.s32.totalorder %v5051, %v5690
  %vm6299 = vcmp.eq.s32.totalorder %v5055, %v5697
  %vm6300 = vcmp.eq.s32.totalorder %v5059, %v5704
  %vm6301 = vcmp.eq.s32.totalorder %v5063, %v5711
  %vm6302 = vcmp.eq.s32.totalorder %v5067, %v5718
  %vm6303 = vcmp.eq.s32.totalorder %v5071, %v5725
  %vm6304 = vcmp.eq.s32.totalorder %v5075, %v5732
  %vm6305 = vcmp.eq.s32.totalorder %v5079, %v5739
  %vm6306 = vcmp.eq.s32.totalorder %v5083, %v5746
  %vm6307 = vcmp.eq.s32.totalorder %v5055, %v5753
  %vm6308 = vcmp.eq.s32.totalorder %v5059, %v5760
  %vm6309 = vcmp.eq.s32.totalorder %v5063, %v5767
  %vm6310 = vcmp.eq.s32.totalorder %v5067, %v5774
  %vm6311 = vcmp.eq.s32.totalorder %v5071, %v5781
  %vm6312 = vcmp.eq.s32.totalorder %v5075, %v5788
  %vm6313 = vcmp.eq.s32.totalorder %v5079, %v5795
  %vm6314 = vcmp.eq.s32.totalorder %v5083, %v5802
  %vm6315 = vcmp.eq.s32.totalorder %v5087, %v5809
  %vm6316 = vcmp.eq.s32.totalorder %v5091, %v5816
  %vm6317 = vcmp.eq.s32.totalorder %v5095, %v5823
  %vm6318 = vcmp.eq.s32.totalorder %v5099, %v5830
  %vm6319 = vcmp.eq.s32.totalorder %v5103, %v5837
  %vm6320 = vcmp.eq.s32.totalorder %v5107, %v5844
  %vm6321 = vcmp.eq.s32.totalorder %v5111, %v5851
  %vm6322 = vcmp.eq.s32.totalorder %v5115, %v5858
  %vm6323 = vcmp.eq.s32.totalorder %v5087, %v5865
  %vm6324 = vcmp.eq.s32.totalorder %v5091, %v5872
  %vm6325 = vcmp.eq.s32.totalorder %v5095, %v5879
  %vm6326 = vcmp.eq.s32.totalorder %v5099, %v5886
  %vm6327 = vcmp.eq.s32.totalorder %v5103, %v5893
  %vm6328 = vcmp.eq.s32.totalorder %v5107, %v5900
  %vm6329 = vcmp.eq.s32.totalorder %v5111, %v5907
  %vm6330 = vcmp.eq.s32.totalorder %v5115, %v5914
  %vm6331 = vcmp.eq.s32.totalorder %v5119, %v5921
  %vm6332 = vcmp.eq.s32.totalorder %v5123, %v5928
  %vm6333 = vcmp.eq.s32.totalorder %v5127, %v5935
  %vm6334 = vcmp.eq.s32.totalorder %v5131, %v5942
  %vm6335 = vcmp.eq.s32.totalorder %v5135, %v5949
  %vm6336 = vcmp.eq.s32.totalorder %v5139, %v5956
  %vm6337 = vcmp.eq.s32.totalorder %v5143, %v5963
  %vm6338 = vcmp.eq.s32.totalorder %v5147, %v5970
  %vm6339 = vcmp.eq.s32.totalorder %v5119, %v5977
  %vm6340 = vcmp.eq.s32.totalorder %v5123, %v5984
  %vm6341 = vcmp.eq.s32.totalorder %v5127, %v5991
  %vm6342 = vcmp.eq.s32.totalorder %v5131, %v5998
  %vm6343 = vcmp.eq.s32.totalorder %v5135, %v6005
  %vm6344 = vcmp.eq.s32.totalorder %v5139, %v6012
  %vm6345 = vcmp.eq.s32.totalorder %v5143, %v6019
  %vm6346 = vcmp.eq.s32.totalorder %v5147, %v6026
  %vm6347 = vcmp.eq.s32.totalorder %v5151, %v6033
  %vm6348 = vcmp.eq.s32.totalorder %v5155, %v6040
  %vm6349 = vcmp.eq.s32.totalorder %v5159, %v6047
  %vm6350 = vcmp.eq.s32.totalorder %v5163, %v6054
  %vm6351 = vcmp.eq.s32.totalorder %v5167, %v6061
  %vm6352 = vcmp.eq.s32.totalorder %v5171, %v6068
  %vm6353 = vcmp.eq.s32.totalorder %v5175, %v6075
  %vm6354 = vcmp.eq.s32.totalorder %v5179, %v6082
  %vm6355 = vcmp.eq.s32.totalorder %v5151, %v6089
  %vm6356 = vcmp.eq.s32.totalorder %v5155, %v6096
  %vm6357 = vcmp.eq.s32.totalorder %v5159, %v6103
  %vm6358 = vcmp.eq.s32.totalorder %v5163, %v6110
  %vm6359 = vcmp.eq.s32.totalorder %v5167, %v6117
  %vm6360 = vcmp.eq.s32.totalorder %v5171, %v6124
  %vm6361 = vcmp.eq.s32.totalorder %v5175, %v6131
  %vm6362 = vcmp.eq.s32.totalorder %v5179, %v6138
  %vm6363 = vcmp.eq.s32.totalorder %v5183, %v6145
  %vm6364 = vcmp.eq.s32.totalorder %v5187, %v6152
  %vm6365 = vcmp.eq.s32.totalorder %v5191, %v6159
  %vm6366 = vcmp.eq.s32.totalorder %v5195, %v6166
  %vm6367 = vcmp.eq.s32.totalorder %v5199, %v6173
  %vm6368 = vcmp.eq.s32.totalorder %v5203, %v6180
  %vm6369 = vcmp.eq.s32.totalorder %v5207, %v6187
  %vm6370 = vcmp.eq.s32.totalorder %v5211, %v6194
  %vm6371 = vcmp.eq.s32.totalorder %v5183, %v6201
  %vm6372 = vcmp.eq.s32.totalorder %v5187, %v6208
  %vm6373 = vcmp.eq.s32.totalorder %v5191, %v6215
  %vm6374 = vcmp.eq.s32.totalorder %v5195, %v6222
  %vm6375 = vcmp.eq.s32.totalorder %v5199, %v6229
  %vm6376 = vcmp.eq.s32.totalorder %v5203, %v6236
  %vm6377 = vcmp.eq.s32.totalorder %v5207, %v6243
  %vm6378 = vcmp.eq.s32.totalorder %v5211, %v6250
  %vm6379 = vcmp.eq.s32.totalorder %v5215, %v779
  %vm6380 = vcmp.eq.s32.totalorder %v5219, %v786
  %vm6381 = vcmp.eq.s32.totalorder %v5223, %v793
  %vm6382 = vcmp.eq.s32.totalorder %v5227, %v800
  %vm6383 = vcmp.eq.s32.totalorder %v5231, %v807
  %vm6384 = vcmp.eq.s32.totalorder %v5235, %v814
  %vm6385 = vcmp.eq.s32.totalorder %v5239, %v821
  %vm6386 = vcmp.eq.s32.totalorder %v5243, %v828
  %vm6387 = vcmp.eq.s32.totalorder %v5215, %v835
  %vm6388 = vcmp.eq.s32.totalorder %v5219, %v842
  %vm6389 = vcmp.eq.s32.totalorder %v5223, %v849
  %vm6390 = vcmp.eq.s32.totalorder %v5227, %v856
  %vm6391 = vcmp.eq.s32.totalorder %v5231, %v5501
  %vm6392 = vcmp.eq.s32.totalorder %v5235, %v5508
  %vm6393 = vcmp.eq.s32.totalorder %v5239, %v5515
  %vm6394 = vcmp.eq.s32.totalorder %v5243, %v5522
  %vm6395 = vcmp.eq.s32.totalorder %v5247, %v891
  %vm6396 = vcmp.eq.s32.totalorder %v5251, %v898
  %vm6397 = vcmp.eq.s32.totalorder %v5255, %v905
  %vm6398 = vcmp.eq.s32.totalorder %v5259, %v912
  %vm6399 = vcmp.eq.s32.totalorder %v5263, %v5529
  %vm6400 = vcmp.eq.s32.totalorder %v5267, %v5536
  %vm6401 = vcmp.eq.s32.totalorder %v5271, %v5543
  %vm6402 = vcmp.eq.s32.totalorder %v5275, %v5550
  %vm6403 = vcmp.eq.s32.totalorder %v5247, %v947
  %vm6404 = vcmp.eq.s32.totalorder %v5251, %v954
  %vm6405 = vcmp.eq.s32.totalorder %v5255, %v961
  %vm6406 = vcmp.eq.s32.totalorder %v5259, %v968
  %vm6407 = vcmp.eq.s32.totalorder %v5263, %v5557
  %vm6408 = vcmp.eq.s32.totalorder %v5267, %v5564
  %vm6409 = vcmp.eq.s32.totalorder %v5271, %v5571
  %vm6410 = vcmp.eq.s32.totalorder %v5275, %v5578
  %vm6411 = vcmp.eq.s32.totalorder %v5279, %v5585
  %vm6412 = vcmp.eq.s32.totalorder %v5283, %v5592
  %vm6413 = vcmp.eq.s32.totalorder %v5287, %v5599
  %vm6414 = vcmp.eq.s32.totalorder %v5291, %v5606
  %vm6415 = vcmp.eq.s32.totalorder %v5295, %v5613
  %vm6416 = vcmp.eq.s32.totalorder %v5299, %v5620
  %vm6417 = vcmp.eq.s32.totalorder %v5303, %v5627
  %vm6418 = vcmp.eq.s32.totalorder %v5307, %v5634
  %vm6419 = vcmp.eq.s32.totalorder %v5279, %v5641
  %vm6420 = vcmp.eq.s32.totalorder %v5283, %v5648
  %vm6421 = vcmp.eq.s32.totalorder %v5287, %v5655
  %vm6422 = vcmp.eq.s32.totalorder %v5291, %v5662
  %vm6423 = vcmp.eq.s32.totalorder %v5295, %v5669
  %vm6424 = vcmp.eq.s32.totalorder %v5299, %v5676
  %vm6425 = vcmp.eq.s32.totalorder %v5303, %v5683
  %vm6426 = vcmp.eq.s32.totalorder %v5307, %v5690
  %vm6427 = vcmp.eq.s32.totalorder %v5311, %v5697
  %vm6428 = vcmp.eq.s32.totalorder %v5315, %v5704
  %vm6429 = vcmp.eq.s32.totalorder %v5319, %v5711
  %vm6430 = vcmp.eq.s32.totalorder %v5323, %v5718
  %vm6431 = vcmp.eq.s32.totalorder %v5327, %v5725
  %vm6432 = vcmp.eq.s32.totalorder %v5331, %v5732
  %vm6433 = vcmp.eq.s32.totalorder %v5335, %v5739
  %vm6434 = vcmp.eq.s32.totalorder %v5339, %v5746
  %vm6435 = vcmp.eq.s32.totalorder %v5311, %v5753
  %vm6436 = vcmp.eq.s32.totalorder %v5315, %v5760
  %vm6437 = vcmp.eq.s32.totalorder %v5319, %v5767
  %vm6438 = vcmp.eq.s32.totalorder %v5323, %v5774
  %vm6439 = vcmp.eq.s32.totalorder %v5327, %v5781
  %vm6440 = vcmp.eq.s32.totalorder %v5331, %v5788
  %vm6441 = vcmp.eq.s32.totalorder %v5335, %v5795
  %vm6442 = vcmp.eq.s32.totalorder %v5339, %v5802
  %vm6443 = vcmp.eq.s32.totalorder %v5343, %v5809
  %vm6444 = vcmp.eq.s32.totalorder %v5347, %v5816
  %vm6445 = vcmp.eq.s32.totalorder %v5351, %v5823
  %vm6446 = vcmp.eq.s32.totalorder %v5355, %v5830
  %vm6447 = vcmp.eq.s32.totalorder %v5359, %v5837
  %vm6448 = vcmp.eq.s32.totalorder %v5363, %v5844
  %vm6449 = vcmp.eq.s32.totalorder %v5367, %v5851
  %vm6450 = vcmp.eq.s32.totalorder %v5371, %v5858
  %vm6451 = vcmp.eq.s32.totalorder %v5343, %v5865
  %vm6452 = vcmp.eq.s32.totalorder %v5347, %v5872
  %vm6453 = vcmp.eq.s32.totalorder %v5351, %v5879
  %vm6454 = vcmp.eq.s32.totalorder %v5355, %v5886
  %vm6455 = vcmp.eq.s32.totalorder %v5359, %v5893
  %vm6456 = vcmp.eq.s32.totalorder %v5363, %v5900
  %vm6457 = vcmp.eq.s32.totalorder %v5367, %v5907
  %vm6458 = vcmp.eq.s32.totalorder %v5371, %v5914
  %vm6459 = vcmp.eq.s32.totalorder %v5375, %v5921
  %vm6460 = vcmp.eq.s32.totalorder %v5379, %v5928
  %vm6461 = vcmp.eq.s32.totalorder %v5383, %v5935
  %vm6462 = vcmp.eq.s32.totalorder %v5387, %v5942
  %vm6463 = vcmp.eq.s32.totalorder %v5391, %v5949
  %vm6464 = vcmp.eq.s32.totalorder %v5395, %v5956
  %vm6465 = vcmp.eq.s32.totalorder %v5399, %v5963
  %vm6466 = vcmp.eq.s32.totalorder %v5403, %v5970
  %vm6467 = vcmp.eq.s32.totalorder %v5375, %v5977
  %vm6468 = vcmp.eq.s32.totalorder %v5379, %v5984
  %vm6469 = vcmp.eq.s32.totalorder %v5383, %v5991
  %vm6470 = vcmp.eq.s32.totalorder %v5387, %v5998
  %vm6471 = vcmp.eq.s32.totalorder %v5391, %v6005
  %vm6472 = vcmp.eq.s32.totalorder %v5395, %v6012
  %vm6473 = vcmp.eq.s32.totalorder %v5399, %v6019
  %vm6474 = vcmp.eq.s32.totalorder %v5403, %v6026
  %vm6475 = vcmp.eq.s32.totalorder %v5407, %v6033
  %vm6476 = vcmp.eq.s32.totalorder %v5411, %v6040
  %vm6477 = vcmp.eq.s32.totalorder %v5415, %v6047
  %vm6478 = vcmp.eq.s32.totalorder %v5419, %v6054
  %vm6479 = vcmp.eq.s32.totalorder %v5423, %v6061
  %vm6480 = vcmp.eq.s32.totalorder %v5427, %v6068
  %vm6481 = vcmp.eq.s32.totalorder %v5431, %v6075
  %vm6482 = vcmp.eq.s32.totalorder %v5435, %v6082
  %vm6483 = vcmp.eq.s32.totalorder %v5407, %v6089
  %vm6484 = vcmp.eq.s32.totalorder %v5411, %v6096
  %vm6485 = vcmp.eq.s32.totalorder %v5415, %v6103
  %vm6486 = vcmp.eq.s32.totalorder %v5419, %v6110
  %vm6487 = vcmp.eq.s32.totalorder %v5423, %v6117
  %vm6488 = vcmp.eq.s32.totalorder %v5427, %v6124
  %vm6489 = vcmp.eq.s32.totalorder %v5431, %v6131
  %vm6490 = vcmp.eq.s32.totalorder %v5435, %v6138
  %vm6491 = vcmp.eq.s32.totalorder %v5439, %v6145
  %vm6492 = vcmp.eq.s32.totalorder %v5443, %v6152
  %vm6493 = vcmp.eq.s32.totalorder %v5447, %v6159
  %vm6494 = vcmp.eq.s32.totalorder %v5451, %v6166
  %vm6495 = vcmp.eq.s32.totalorder %v5455, %v6173
  %vm6496 = vcmp.eq.s32.totalorder %v5459, %v6180
  %vm6497 = vcmp.eq.s32.totalorder %v5463, %v6187
  %vm6498 = vcmp.eq.s32.totalorder %v5467, %v6194
  %vm6499 = vcmp.eq.s32.totalorder %v5439, %v6201
  %vm6500 = vcmp.eq.s32.totalorder %v5443, %v6208
  %vm6501 = vcmp.eq.s32.totalorder %v5447, %v6215
  %vm6502 = vcmp.eq.s32.totalorder %v5451, %v6222
  %vm6503 = vcmp.eq.s32.totalorder %v5455, %v6229
  %vm6504 = vcmp.eq.s32.totalorder %v5459, %v6236
  %vm6505 = vcmp.eq.s32.totalorder %v5463, %v6243
  %vm6506 = vcmp.eq.s32.totalorder %v5467, %v6250
  %v6507 = vsel %vm6251, %v3535, 0.0
  %v6508 = vsel %vm6252, %v3539, 0.0
  %v6509 = vsel %vm6253, %v3543, 0.0
  %v6510 = vsel %vm6254, %v3547, 0.0
  %v6511 = vsel %vm6255, %v3551, 0.0
  %v6512 = vsel %vm6256, %v3555, 0.0
  %v6513 = vsel %vm6257, %v3559, 0.0
  %v6514 = vsel %vm6258, %v3563, 0.0
  %v6515 = vsel %vm6259, %v3535, 0.0
  %v6516 = vsel %vm6260, %v3539, 0.0
  %v6517 = vsel %vm6261, %v3543, 0.0
  %v6518 = vsel %vm6262, %v3547, 0.0
  %v6519 = vsel %vm6263, %v3551, 0.0
  %v6520 = vsel %vm6264, %v3555, 0.0
  %v6521 = vsel %vm6265, %v3559, 0.0
  %v6522 = vsel %vm6266, %v3563, 0.0
  %v6523 = vsel %vm6267, %v3567, 0.0
  %v6524 = vsel %vm6268, %v3571, 0.0
  %v6525 = vsel %vm6269, %v3575, 0.0
  %v6526 = vsel %vm6270, %v3579, 0.0
  %v6527 = vsel %vm6271, %v3583, 0.0
  %v6528 = vsel %vm6272, %v3587, 0.0
  %v6529 = vsel %vm6273, %v3591, 0.0
  %v6530 = vsel %vm6274, %v3595, 0.0
  %v6531 = vsel %vm6275, %v3567, 0.0
  %v6532 = vsel %vm6276, %v3571, 0.0
  %v6533 = vsel %vm6277, %v3575, 0.0
  %v6534 = vsel %vm6278, %v3579, 0.0
  %v6535 = vsel %vm6279, %v3583, 0.0
  %v6536 = vsel %vm6280, %v3587, 0.0
  %v6537 = vsel %vm6281, %v3591, 0.0
  %v6538 = vsel %vm6282, %v3595, 0.0
  %v6539 = vsel %vm6283, %v3599, 0.0
  %v6540 = vsel %vm6284, %v3603, 0.0
  %v6541 = vsel %vm6285, %v3607, 0.0
  %v6542 = vsel %vm6286, %v3611, 0.0
  %v6543 = vsel %vm6287, %v3615, 0.0
  %v6544 = vsel %vm6288, %v3619, 0.0
  %v6545 = vsel %vm6289, %v3623, 0.0
  %v6546 = vsel %vm6290, %v3627, 0.0
  %v6547 = vsel %vm6291, %v3599, 0.0
  %v6548 = vsel %vm6292, %v3603, 0.0
  %v6549 = vsel %vm6293, %v3607, 0.0
  %v6550 = vsel %vm6294, %v3611, 0.0
  %v6551 = vsel %vm6295, %v3615, 0.0
  %v6552 = vsel %vm6296, %v3619, 0.0
  %v6553 = vsel %vm6297, %v3623, 0.0
  %v6554 = vsel %vm6298, %v3627, 0.0
  %v6555 = vsel %vm6299, %v3631, 0.0
  %v6556 = vsel %vm6300, %v3635, 0.0
  %v6557 = vsel %vm6301, %v3639, 0.0
  %v6558 = vsel %vm6302, %v3643, 0.0
  %v6559 = vsel %vm6303, %v3647, 0.0
  %v6560 = vsel %vm6304, %v3651, 0.0
  %v6561 = vsel %vm6305, %v3655, 0.0
  %v6562 = vsel %vm6306, %v3659, 0.0
  %v6563 = vsel %vm6307, %v3631, 0.0
  %v6564 = vsel %vm6308, %v3635, 0.0
  %v6565 = vsel %vm6309, %v3639, 0.0
  %v6566 = vsel %vm6310, %v3643, 0.0
  %v6567 = vsel %vm6311, %v3647, 0.0
  %v6568 = vsel %vm6312, %v3651, 0.0
  %v6569 = vsel %vm6313, %v3655, 0.0
  %v6570 = vsel %vm6314, %v3659, 0.0
  %v6571 = vsel %vm6315, %v3663, 0.0
  %v6572 = vsel %vm6316, %v3667, 0.0
  %v6573 = vsel %vm6317, %v3671, 0.0
  %v6574 = vsel %vm6318, %v3675, 0.0
  %v6575 = vsel %vm6319, %v3679, 0.0
  %v6576 = vsel %vm6320, %v3683, 0.0
  %v6577 = vsel %vm6321, %v3687, 0.0
  %v6578 = vsel %vm6322, %v3691, 0.0
  %v6579 = vsel %vm6323, %v3663, 0.0
  %v6580 = vsel %vm6324, %v3667, 0.0
  %v6581 = vsel %vm6325, %v3671, 0.0
  %v6582 = vsel %vm6326, %v3675, 0.0
  %v6583 = vsel %vm6327, %v3679, 0.0
  %v6584 = vsel %vm6328, %v3683, 0.0
  %v6585 = vsel %vm6329, %v3687, 0.0
  %v6586 = vsel %vm6330, %v3691, 0.0
  %v6587 = vsel %vm6331, %v3695, 0.0
  %v6588 = vsel %vm6332, %v3699, 0.0
  %v6589 = vsel %vm6333, %v3703, 0.0
  %v6590 = vsel %vm6334, %v3707, 0.0
  %v6591 = vsel %vm6335, %v3711, 0.0
  %v6592 = vsel %vm6336, %v3715, 0.0
  %v6593 = vsel %vm6337, %v3719, 0.0
  %v6594 = vsel %vm6338, %v3723, 0.0
  %v6595 = vsel %vm6339, %v3695, 0.0
  %v6596 = vsel %vm6340, %v3699, 0.0
  %v6597 = vsel %vm6341, %v3703, 0.0
  %v6598 = vsel %vm6342, %v3707, 0.0
  %v6599 = vsel %vm6343, %v3711, 0.0
  %v6600 = vsel %vm6344, %v3715, 0.0
  %v6601 = vsel %vm6345, %v3719, 0.0
  %v6602 = vsel %vm6346, %v3723, 0.0
  %v6603 = vsel %vm6347, %v3727, 0.0
  %v6604 = vsel %vm6348, %v3731, 0.0
  %v6605 = vsel %vm6349, %v3735, 0.0
  %v6606 = vsel %vm6350, %v3739, 0.0
  %v6607 = vsel %vm6351, %v3743, 0.0
  %v6608 = vsel %vm6352, %v3747, 0.0
  %v6609 = vsel %vm6353, %v3751, 0.0
  %v6610 = vsel %vm6354, %v3755, 0.0
  %v6611 = vsel %vm6355, %v3727, 0.0
  %v6612 = vsel %vm6356, %v3731, 0.0
  %v6613 = vsel %vm6357, %v3735, 0.0
  %v6614 = vsel %vm6358, %v3739, 0.0
  %v6615 = vsel %vm6359, %v3743, 0.0
  %v6616 = vsel %vm6360, %v3747, 0.0
  %v6617 = vsel %vm6361, %v3751, 0.0
  %v6618 = vsel %vm6362, %v3755, 0.0
  %v6619 = vsel %vm6363, %v3759, 0.0
  %v6620 = vsel %vm6364, %v3763, 0.0
  %v6621 = vsel %vm6365, %v3767, 0.0
  %v6622 = vsel %vm6366, %v3771, 0.0
  %v6623 = vsel %vm6367, %v3775, 0.0
  %v6624 = vsel %vm6368, %v3779, 0.0
  %v6625 = vsel %vm6369, %v3783, 0.0
  %v6626 = vsel %vm6370, %v3787, 0.0
  %v6627 = vsel %vm6371, %v3759, 0.0
  %v6628 = vsel %vm6372, %v3763, 0.0
  %v6629 = vsel %vm6373, %v3767, 0.0
  %v6630 = vsel %vm6374, %v3771, 0.0
  %v6631 = vsel %vm6375, %v3775, 0.0
  %v6632 = vsel %vm6376, %v3779, 0.0
  %v6633 = vsel %vm6377, %v3783, 0.0
  %v6634 = vsel %vm6378, %v3787, 0.0
  %v6635 = vsel %vm6379, %v3791, 0.0
  %v6636 = vsel %vm6380, %v3795, 0.0
  %v6637 = vsel %vm6381, %v3799, 0.0
  %v6638 = vsel %vm6382, %v3803, 0.0
  %v6639 = vsel %vm6383, %v3807, 0.0
  %v6640 = vsel %vm6384, %v3811, 0.0
  %v6641 = vsel %vm6385, %v3815, 0.0
  %v6642 = vsel %vm6386, %v3819, 0.0
  %v6643 = vsel %vm6387, %v3791, 0.0
  %v6644 = vsel %vm6388, %v3795, 0.0
  %v6645 = vsel %vm6389, %v3799, 0.0
  %v6646 = vsel %vm6390, %v3803, 0.0
  %v6647 = vsel %vm6391, %v3807, 0.0
  %v6648 = vsel %vm6392, %v3811, 0.0
  %v6649 = vsel %vm6393, %v3815, 0.0
  %v6650 = vsel %vm6394, %v3819, 0.0
  %v6651 = vsel %vm6395, %v3823, 0.0
  %v6652 = vsel %vm6396, %v3827, 0.0
  %v6653 = vsel %vm6397, %v3831, 0.0
  %v6654 = vsel %vm6398, %v3835, 0.0
  %v6655 = vsel %vm6399, %v3839, 0.0
  %v6656 = vsel %vm6400, %v3843, 0.0
  %v6657 = vsel %vm6401, %v3847, 0.0
  %v6658 = vsel %vm6402, %v3851, 0.0
  %v6659 = vsel %vm6403, %v3823, 0.0
  %v6660 = vsel %vm6404, %v3827, 0.0
  %v6661 = vsel %vm6405, %v3831, 0.0
  %v6662 = vsel %vm6406, %v3835, 0.0
  %v6663 = vsel %vm6407, %v3839, 0.0
  %v6664 = vsel %vm6408, %v3843, 0.0
  %v6665 = vsel %vm6409, %v3847, 0.0
  %v6666 = vsel %vm6410, %v3851, 0.0
  %v6667 = vsel %vm6411, %v3855, 0.0
  %v6668 = vsel %vm6412, %v3859, 0.0
  %v6669 = vsel %vm6413, %v3863, 0.0
  %v6670 = vsel %vm6414, %v3867, 0.0
  %v6671 = vsel %vm6415, %v3871, 0.0
  %v6672 = vsel %vm6416, %v3875, 0.0
  %v6673 = vsel %vm6417, %v3879, 0.0
  %v6674 = vsel %vm6418, %v3883, 0.0
  %v6675 = vsel %vm6419, %v3855, 0.0
  %v6676 = vsel %vm6420, %v3859, 0.0
  %v6677 = vsel %vm6421, %v3863, 0.0
  %v6678 = vsel %vm6422, %v3867, 0.0
  %v6679 = vsel %vm6423, %v3871, 0.0
  %v6680 = vsel %vm6424, %v3875, 0.0
  %v6681 = vsel %vm6425, %v3879, 0.0
  %v6682 = vsel %vm6426, %v3883, 0.0
  %v6683 = vsel %vm6427, %v3887, 0.0
  %v6684 = vsel %vm6428, %v3891, 0.0
  %v6685 = vsel %vm6429, %v3895, 0.0
  %v6686 = vsel %vm6430, %v3899, 0.0
  %v6687 = vsel %vm6431, %v3903, 0.0
  %v6688 = vsel %vm6432, %v3907, 0.0
  %v6689 = vsel %vm6433, %v3911, 0.0
  %v6690 = vsel %vm6434, %v3915, 0.0
  %v6691 = vsel %vm6435, %v3887, 0.0
  %v6692 = vsel %vm6436, %v3891, 0.0
  %v6693 = vsel %vm6437, %v3895, 0.0
  %v6694 = vsel %vm6438, %v3899, 0.0
  %v6695 = vsel %vm6439, %v3903, 0.0
  %v6696 = vsel %vm6440, %v3907, 0.0
  %v6697 = vsel %vm6441, %v3911, 0.0
  %v6698 = vsel %vm6442, %v3915, 0.0
  %v6699 = vsel %vm6443, %v3919, 0.0
  %v6700 = vsel %vm6444, %v3923, 0.0
  %v6701 = vsel %vm6445, %v3927, 0.0
  %v6702 = vsel %vm6446, %v3931, 0.0
  %v6703 = vsel %vm6447, %v3935, 0.0
  %v6704 = vsel %vm6448, %v3939, 0.0
  %v6705 = vsel %vm6449, %v3943, 0.0
  %v6706 = vsel %vm6450, %v3947, 0.0
  %v6707 = vsel %vm6451, %v3919, 0.0
  %v6708 = vsel %vm6452, %v3923, 0.0
  %v6709 = vsel %vm6453, %v3927, 0.0
  %v6710 = vsel %vm6454, %v3931, 0.0
  %v6711 = vsel %vm6455, %v3935, 0.0
  %v6712 = vsel %vm6456, %v3939, 0.0
  %v6713 = vsel %vm6457, %v3943, 0.0
  %v6714 = vsel %vm6458, %v3947, 0.0
  %v6715 = vsel %vm6459, %v3951, 0.0
  %v6716 = vsel %vm6460, %v3955, 0.0
  %v6717 = vsel %vm6461, %v3959, 0.0
  %v6718 = vsel %vm6462, %v3963, 0.0
  %v6719 = vsel %vm6463, %v3967, 0.0
  %v6720 = vsel %vm6464, %v3971, 0.0
  %v6721 = vsel %vm6465, %v3975, 0.0
  %v6722 = vsel %vm6466, %v3979, 0.0
  %v6723 = vsel %vm6467, %v3951, 0.0
  %v6724 = vsel %vm6468, %v3955, 0.0
  %v6725 = vsel %vm6469, %v3959, 0.0
  %v6726 = vsel %vm6470, %v3963, 0.0
  %v6727 = vsel %vm6471, %v3967, 0.0
  %v6728 = vsel %vm6472, %v3971, 0.0
  %v6729 = vsel %vm6473, %v3975, 0.0
  %v6730 = vsel %vm6474, %v3979, 0.0
  %v6731 = vsel %vm6475, %v3983, 0.0
  %v6732 = vsel %vm6476, %v3987, 0.0
  %v6733 = vsel %vm6477, %v3991, 0.0
  %v6734 = vsel %vm6478, %v3995, 0.0
  %v6735 = vsel %vm6479, %v3999, 0.0
  %v6736 = vsel %vm6480, %v4003, 0.0
  %v6737 = vsel %vm6481, %v4007, 0.0
  %v6738 = vsel %vm6482, %v4011, 0.0
  %v6739 = vsel %vm6483, %v3983, 0.0
  %v6740 = vsel %vm6484, %v3987, 0.0
  %v6741 = vsel %vm6485, %v3991, 0.0
  %v6742 = vsel %vm6486, %v3995, 0.0
  %v6743 = vsel %vm6487, %v3999, 0.0
  %v6744 = vsel %vm6488, %v4003, 0.0
  %v6745 = vsel %vm6489, %v4007, 0.0
  %v6746 = vsel %vm6490, %v4011, 0.0
  %v6747 = vsel %vm6491, %v4015, 0.0
  %v6748 = vsel %vm6492, %v4019, 0.0
  %v6749 = vsel %vm6493, %v4023, 0.0
  %v6750 = vsel %vm6494, %v4027, 0.0
  %v6751 = vsel %vm6495, %v4031, 0.0
  %v6752 = vsel %vm6496, %v4035, 0.0
  %v6753 = vsel %vm6497, %v4039, 0.0
  %v6754 = vsel %vm6498, %v4043, 0.0
  %v6755 = vsel %vm6499, %v4015, 0.0
  %v6756 = vsel %vm6500, %v4019, 0.0
  %v6757 = vsel %vm6501, %v4023, 0.0
  %v6758 = vsel %vm6502, %v4027, 0.0
  %v6759 = vsel %vm6503, %v4031, 0.0
  %v6760 = vsel %vm6504, %v4035, 0.0
  %v6761 = vsel %vm6505, %v4039, 0.0
  %v6762 = vsel %vm6506, %v4043, 0.0
  %v7019 = vcombine.low %v6507, %v6508
  %v7020 = vcombine.low %v6509, %v6510
  %v7022 = vunpack.c.l.s4 1983009808
  %v7023 = vunpack.c.0.s8 %v7022
  %v7024 = vlaneseq
  %v7025 = vshrl.u32 %v7024, 7
  %v7026 = vsub.s32 %v7023, %v7025
  %v7027 = vrot.slane %v7019, %v7026
  %v7029 = vunpack.c.l.s4 1983009808
  %v7030 = vunpack.c.0.s8 %v7029
  %v7031 = vlaneseq
  %v7032 = vshrl.u32 %v7031, 7
  %v7033 = vsub.s32 %v7030, %v7032
  %v7034 = vrot.slane %v7020, %v7033
  %v7035 = vcombine.low %v7027, %v7034
  %v7036 = vcombine.low %v6511, %v6512
  %v7037 = vcombine.low %v6513, %v6514
  %v7039 = vunpack.c.l.s4 1983009808
  %v7040 = vunpack.c.0.s8 %v7039
  %v7041 = vlaneseq
  %v7042 = vshrl.u32 %v7041, 7
  %v7043 = vsub.s32 %v7040, %v7042
  %v7044 = vrot.slane %v7036, %v7043
  %v7046 = vunpack.c.l.s4 1983009808
  %v7047 = vunpack.c.0.s8 %v7046
  %v7048 = vlaneseq
  %v7049 = vshrl.u32 %v7048, 7
  %v7050 = vsub.s32 %v7047, %v7049
  %v7051 = vrot.slane %v7037, %v7050
  %v7052 = vcombine.low %v7044, %v7051
  %v7053 = vcombine.low %v6515, %v6516
  %v7054 = vcombine.low %v6517, %v6518
  %v7056 = vunpack.c.l.s4 1983009808
  %v7057 = vunpack.c.0.s8 %v7056
  %v7058 = vlaneseq
  %v7059 = vshrl.u32 %v7058, 7
  %v7060 = vsub.s32 %v7057, %v7059
  %v7061 = vrot.slane %v7053, %v7060
  %v7063 = vunpack.c.l.s4 1983009808
  %v7064 = vunpack.c.0.s8 %v7063
  %v7065 = vlaneseq
  %v7066 = vshrl.u32 %v7065, 7
  %v7067 = vsub.s32 %v7064, %v7066
  %v7068 = vrot.slane %v7054, %v7067
  %v7069 = vcombine.low %v7061, %v7068
  %v7070 = vcombine.low %v6519, %v6520
  %v7071 = vcombine.low %v6521, %v6522
  %v7073 = vunpack.c.l.s4 1983009808
  %v7074 = vunpack.c.0.s8 %v7073
  %v7075 = vlaneseq
  %v7076 = vshrl.u32 %v7075, 7
  %v7077 = vsub.s32 %v7074, %v7076
  %v7078 = vrot.slane %v7070, %v7077
  %v7080 = vunpack.c.l.s4 1983009808
  %v7081 = vunpack.c.0.s8 %v7080
  %v7082 = vlaneseq
  %v7083 = vshrl.u32 %v7082, 7
  %v7084 = vsub.s32 %v7081, %v7083
  %v7085 = vrot.slane %v7071, %v7084
  %v7086 = vcombine.low %v7078, %v7085
  %v7087 = vcombine.low %v6523, %v6524
  %v7088 = vcombine.low %v6525, %v6526
  %v7090 = vunpack.c.l.s4 1983009808
  %v7091 = vunpack.c.0.s8 %v7090
  %v7092 = vlaneseq
  %v7093 = vshrl.u32 %v7092, 7
  %v7094 = vsub.s32 %v7091, %v7093
  %v7095 = vrot.slane %v7087, %v7094
  %v7097 = vunpack.c.l.s4 1983009808
  %v7098 = vunpack.c.0.s8 %v7097
  %v7099 = vlaneseq
  %v7100 = vshrl.u32 %v7099, 7
  %v7101 = vsub.s32 %v7098, %v7100
  %v7102 = vrot.slane %v7088, %v7101
  %v7103 = vcombine.low %v7095, %v7102
  %v7104 = vcombine.low %v6527, %v6528
  %v7105 = vcombine.low %v6529, %v6530
  %v7107 = vunpack.c.l.s4 1983009808
  %v7108 = vunpack.c.0.s8 %v7107
  %v7109 = vlaneseq
  %v7110 = vshrl.u32 %v7109, 7
  %v7111 = vsub.s32 %v7108, %v7110
  %v7112 = vrot.slane %v7104, %v7111
  %v7114 = vunpack.c.l.s4 1983009808
  %v7115 = vunpack.c.0.s8 %v7114
  %v7116 = vlaneseq
  %v7117 = vshrl.u32 %v7116, 7
  %v7118 = vsub.s32 %v7115, %v7117
  %v7119 = vrot.slane %v7105, %v7118
  %v7120 = vcombine.low %v7112, %v7119
  %v7121 = vcombine.low %v6531, %v6532
  %v7122 = vcombine.low %v6533, %v6534
  %v7124 = vunpack.c.l.s4 1983009808
  %v7125 = vunpack.c.0.s8 %v7124
  %v7126 = vlaneseq
  %v7127 = vshrl.u32 %v7126, 7
  %v7128 = vsub.s32 %v7125, %v7127
  %v7129 = vrot.slane %v7121, %v7128
  %v7131 = vunpack.c.l.s4 1983009808
  %v7132 = vunpack.c.0.s8 %v7131
  %v7133 = vlaneseq
  %v7134 = vshrl.u32 %v7133, 7
  %v7135 = vsub.s32 %v7132, %v7134
  %v7136 = vrot.slane %v7122, %v7135
  %v7137 = vcombine.low %v7129, %v7136
  %v7138 = vcombine.low %v6535, %v6536
  %v7139 = vcombine.low %v6537, %v6538
  %v7141 = vunpack.c.l.s4 1983009808
  %v7142 = vunpack.c.0.s8 %v7141
  %v7143 = vlaneseq
  %v7144 = vshrl.u32 %v7143, 7
  %v7145 = vsub.s32 %v7142, %v7144
  %v7146 = vrot.slane %v7138, %v7145
  %v7148 = vunpack.c.l.s4 1983009808
  %v7149 = vunpack.c.0.s8 %v7148
  %v7150 = vlaneseq
  %v7151 = vshrl.u32 %v7150, 7
  %v7152 = vsub.s32 %v7149, %v7151
  %v7153 = vrot.slane %v7139, %v7152
  %v7154 = vcombine.low %v7146, %v7153
  %v7155 = vcombine.low %v6539, %v6540
  %v7156 = vcombine.low %v6541, %v6542
  %v7158 = vunpack.c.l.s4 1983009808
  %v7159 = vunpack.c.0.s8 %v7158
  %v7160 = vlaneseq
  %v7161 = vshrl.u32 %v7160, 7
  %v7162 = vsub.s32 %v7159, %v7161
  %v7163 = vrot.slane %v7155, %v7162
  %v7165 = vunpack.c.l.s4 1983009808
  %v7166 = vunpack.c.0.s8 %v7165
  %v7167 = vlaneseq
  %v7168 = vshrl.u32 %v7167, 7
  %v7169 = vsub.s32 %v7166, %v7168
  %v7170 = vrot.slane %v7156, %v7169
  %v7171 = vcombine.low %v7163, %v7170
  %v7172 = vcombine.low %v6543, %v6544
  %v7173 = vcombine.low %v6545, %v6546
  %v7175 = vunpack.c.l.s4 1983009808
  %v7176 = vunpack.c.0.s8 %v7175
  %v7177 = vlaneseq
  %v7178 = vshrl.u32 %v7177, 7
  %v7179 = vsub.s32 %v7176, %v7178
  %v7180 = vrot.slane %v7172, %v7179
  %v7182 = vunpack.c.l.s4 1983009808
  %v7183 = vunpack.c.0.s8 %v7182
  %v7184 = vlaneseq
  %v7185 = vshrl.u32 %v7184, 7
  %v7186 = vsub.s32 %v7183, %v7185
  %v7187 = vrot.slane %v7173, %v7186
  %v7188 = vcombine.low %v7180, %v7187
  %v7189 = vcombine.low %v6547, %v6548
  %v7190 = vcombine.low %v6549, %v6550
  %v7192 = vunpack.c.l.s4 1983009808
  %v7193 = vunpack.c.0.s8 %v7192
  %v7194 = vlaneseq
  %v7195 = vshrl.u32 %v7194, 7
  %v7196 = vsub.s32 %v7193, %v7195
  %v7197 = vrot.slane %v7189, %v7196
  %v7199 = vunpack.c.l.s4 1983009808
  %v7200 = vunpack.c.0.s8 %v7199
  %v7201 = vlaneseq
  %v7202 = vshrl.u32 %v7201, 7
  %v7203 = vsub.s32 %v7200, %v7202
  %v7204 = vrot.slane %v7190, %v7203
  %v7205 = vcombine.low %v7197, %v7204
  %v7206 = vcombine.low %v6551, %v6552
  %v7207 = vcombine.low %v6553, %v6554
  %v7209 = vunpack.c.l.s4 1983009808
  %v7210 = vunpack.c.0.s8 %v7209
  %v7211 = vlaneseq
  %v7212 = vshrl.u32 %v7211, 7
  %v7213 = vsub.s32 %v7210, %v7212
  %v7214 = vrot.slane %v7206, %v7213
  %v7216 = vunpack.c.l.s4 1983009808
  %v7217 = vunpack.c.0.s8 %v7216
  %v7218 = vlaneseq
  %v7219 = vshrl.u32 %v7218, 7
  %v7220 = vsub.s32 %v7217, %v7219
  %v7221 = vrot.slane %v7207, %v7220
  %v7222 = vcombine.low %v7214, %v7221
  %v7223 = vcombine.low %v6555, %v6556
  %v7224 = vcombine.low %v6557, %v6558
  %v7226 = vunpack.c.l.s4 1983009808
  %v7227 = vunpack.c.0.s8 %v7226
  %v7228 = vlaneseq
  %v7229 = vshrl.u32 %v7228, 7
  %v7230 = vsub.s32 %v7227, %v7229
  %v7231 = vrot.slane %v7223, %v7230
  %v7233 = vunpack.c.l.s4 1983009808
  %v7234 = vunpack.c.0.s8 %v7233
  %v7235 = vlaneseq
  %v7236 = vshrl.u32 %v7235, 7
  %v7237 = vsub.s32 %v7234, %v7236
  %v7238 = vrot.slane %v7224, %v7237
  %v7239 = vcombine.low %v7231, %v7238
  %v7240 = vcombine.low %v6559, %v6560
  %v7241 = vcombine.low %v6561, %v6562
  %v7243 = vunpack.c.l.s4 1983009808
  %v7244 = vunpack.c.0.s8 %v7243
  %v7245 = vlaneseq
  %v7246 = vshrl.u32 %v7245, 7
  %v7247 = vsub.s32 %v7244, %v7246
  %v7248 = vrot.slane %v7240, %v7247
  %v7250 = vunpack.c.l.s4 1983009808
  %v7251 = vunpack.c.0.s8 %v7250
  %v7252 = vlaneseq
  %v7253 = vshrl.u32 %v7252, 7
  %v7254 = vsub.s32 %v7251, %v7253
  %v7255 = vrot.slane %v7241, %v7254
  %v7256 = vcombine.low %v7248, %v7255
  %v7257 = vcombine.low %v6563, %v6564
  %v7258 = vcombine.low %v6565, %v6566
  %v7260 = vunpack.c.l.s4 1983009808
  %v7261 = vunpack.c.0.s8 %v7260
  %v7262 = vlaneseq
  %v7263 = vshrl.u32 %v7262, 7
  %v7264 = vsub.s32 %v7261, %v7263
  %v7265 = vrot.slane %v7257, %v7264
  %v7267 = vunpack.c.l.s4 1983009808
  %v7268 = vunpack.c.0.s8 %v7267
  %v7269 = vlaneseq
  %v7270 = vshrl.u32 %v7269, 7
  %v7271 = vsub.s32 %v7268, %v7270
  %v7272 = vrot.slane %v7258, %v7271
  %v7273 = vcombine.low %v7265, %v7272
  %v7274 = vcombine.low %v6567, %v6568
  %v7275 = vcombine.low %v6569, %v6570
  %v7277 = vunpack.c.l.s4 1983009808
  %v7278 = vunpack.c.0.s8 %v7277
  %v7279 = vlaneseq
  %v7280 = vshrl.u32 %v7279, 7
  %v7281 = vsub.s32 %v7278, %v7280
  %v7282 = vrot.slane %v7274, %v7281
  %v7284 = vunpack.c.l.s4 1983009808
  %v7285 = vunpack.c.0.s8 %v7284
  %v7286 = vlaneseq
  %v7287 = vshrl.u32 %v7286, 7
  %v7288 = vsub.s32 %v7285, %v7287
  %v7289 = vrot.slane %v7275, %v7288
  %v7290 = vcombine.low %v7282, %v7289
  %v7291 = vcombine.low %v6571, %v6572
  %v7292 = vcombine.low %v6573, %v6574
  %v7294 = vunpack.c.l.s4 1983009808
  %v7295 = vunpack.c.0.s8 %v7294
  %v7296 = vlaneseq
  %v7297 = vshrl.u32 %v7296, 7
  %v7298 = vsub.s32 %v7295, %v7297
  %v7299 = vrot.slane %v7291, %v7298
  %v7301 = vunpack.c.l.s4 1983009808
  %v7302 = vunpack.c.0.s8 %v7301
  %v7303 = vlaneseq
  %v7304 = vshrl.u32 %v7303, 7
  %v7305 = vsub.s32 %v7302, %v7304
  %v7306 = vrot.slane %v7292, %v7305
  %v7307 = vcombine.low %v7299, %v7306
  %v7308 = vcombine.low %v6575, %v6576
  %v7309 = vcombine.low %v6577, %v6578
  %v7311 = vunpack.c.l.s4 1983009808
  %v7312 = vunpack.c.0.s8 %v7311
  %v7313 = vlaneseq
  %v7314 = vshrl.u32 %v7313, 7
  %v7315 = vsub.s32 %v7312, %v7314
  %v7316 = vrot.slane %v7308, %v7315
  %v7318 = vunpack.c.l.s4 1983009808
  %v7319 = vunpack.c.0.s8 %v7318
  %v7320 = vlaneseq
  %v7321 = vshrl.u32 %v7320, 7
  %v7322 = vsub.s32 %v7319, %v7321
  %v7323 = vrot.slane %v7309, %v7322
  %v7324 = vcombine.low %v7316, %v7323
  %v7325 = vcombine.low %v6579, %v6580
  %v7326 = vcombine.low %v6581, %v6582
  %v7328 = vunpack.c.l.s4 1983009808
  %v7329 = vunpack.c.0.s8 %v7328
  %v7330 = vlaneseq
  %v7331 = vshrl.u32 %v7330, 7
  %v7332 = vsub.s32 %v7329, %v7331
  %v7333 = vrot.slane %v7325, %v7332
  %v7335 = vunpack.c.l.s4 1983009808
  %v7336 = vunpack.c.0.s8 %v7335
  %v7337 = vlaneseq
  %v7338 = vshrl.u32 %v7337, 7
  %v7339 = vsub.s32 %v7336, %v7338
  %v7340 = vrot.slane %v7326, %v7339
  %v7341 = vcombine.low %v7333, %v7340
  %v7342 = vcombine.low %v6583, %v6584
  %v7343 = vcombine.low %v6585, %v6586
  %v7345 = vunpack.c.l.s4 1983009808
  %v7346 = vunpack.c.0.s8 %v7345
  %v7347 = vlaneseq
  %v7348 = vshrl.u32 %v7347, 7
  %v7349 = vsub.s32 %v7346, %v7348
  %v7350 = vrot.slane %v7342, %v7349
  %v7352 = vunpack.c.l.s4 1983009808
  %v7353 = vunpack.c.0.s8 %v7352
  %v7354 = vlaneseq
  %v7355 = vshrl.u32 %v7354, 7
  %v7356 = vsub.s32 %v7353, %v7355
  %v7357 = vrot.slane %v7343, %v7356
  %v7358 = vcombine.low %v7350, %v7357
  %v7359 = vcombine.low %v6587, %v6588
  %v7360 = vcombine.low %v6589, %v6590
  %v7362 = vunpack.c.l.s4 1983009808
  %v7363 = vunpack.c.0.s8 %v7362
  %v7364 = vlaneseq
  %v7365 = vshrl.u32 %v7364, 7
  %v7366 = vsub.s32 %v7363, %v7365
  %v7367 = vrot.slane %v7359, %v7366
  %v7369 = vunpack.c.l.s4 1983009808
  %v7370 = vunpack.c.0.s8 %v7369
  %v7371 = vlaneseq
  %v7372 = vshrl.u32 %v7371, 7
  %v7373 = vsub.s32 %v7370, %v7372
  %v7374 = vrot.slane %v7360, %v7373
  %v7375 = vcombine.low %v7367, %v7374
  %v7376 = vcombine.low %v6591, %v6592
  %v7377 = vcombine.low %v6593, %v6594
  %v7379 = vunpack.c.l.s4 1983009808
  %v7380 = vunpack.c.0.s8 %v7379
  %v7381 = vlaneseq
  %v7382 = vshrl.u32 %v7381, 7
  %v7383 = vsub.s32 %v7380, %v7382
  %v7384 = vrot.slane %v7376, %v7383
  %v7386 = vunpack.c.l.s4 1983009808
  %v7387 = vunpack.c.0.s8 %v7386
  %v7388 = vlaneseq
  %v7389 = vshrl.u32 %v7388, 7
  %v7390 = vsub.s32 %v7387, %v7389
  %v7391 = vrot.slane %v7377, %v7390
  %v7392 = vcombine.low %v7384, %v7391
  %v7393 = vcombine.low %v6595, %v6596
  %v7394 = vcombine.low %v6597, %v6598
  %v7396 = vunpack.c.l.s4 1983009808
  %v7397 = vunpack.c.0.s8 %v7396
  %v7398 = vlaneseq
  %v7399 = vshrl.u32 %v7398, 7
  %v7400 = vsub.s32 %v7397, %v7399
  %v7401 = vrot.slane %v7393, %v7400
  %v7403 = vunpack.c.l.s4 1983009808
  %v7404 = vunpack.c.0.s8 %v7403
  %v7405 = vlaneseq
  %v7406 = vshrl.u32 %v7405, 7
  %v7407 = vsub.s32 %v7404, %v7406
  %v7408 = vrot.slane %v7394, %v7407
  %v7409 = vcombine.low %v7401, %v7408
  %v7410 = vcombine.low %v6599, %v6600
  %v7411 = vcombine.low %v6601, %v6602
  %v7413 = vunpack.c.l.s4 1983009808
  %v7414 = vunpack.c.0.s8 %v7413
  %v7415 = vlaneseq
  %v7416 = vshrl.u32 %v7415, 7
  %v7417 = vsub.s32 %v7414, %v7416
  %v7418 = vrot.slane %v7410, %v7417
  %v7420 = vunpack.c.l.s4 1983009808
  %v7421 = vunpack.c.0.s8 %v7420
  %v7422 = vlaneseq
  %v7423 = vshrl.u32 %v7422, 7
  %v7424 = vsub.s32 %v7421, %v7423
  %v7425 = vrot.slane %v7411, %v7424
  %v7426 = vcombine.low %v7418, %v7425
  %v7427 = vcombine.low %v6603, %v6604
  %v7428 = vcombine.low %v6605, %v6606
  %v7430 = vunpack.c.l.s4 1983009808
  %v7431 = vunpack.c.0.s8 %v7430
  %v7432 = vlaneseq
  %v7433 = vshrl.u32 %v7432, 7
  %v7434 = vsub.s32 %v7431, %v7433
  %v7435 = vrot.slane %v7427, %v7434
  %v7437 = vunpack.c.l.s4 1983009808
  %v7438 = vunpack.c.0.s8 %v7437
  %v7439 = vlaneseq
  %v7440 = vshrl.u32 %v7439, 7
  %v7441 = vsub.s32 %v7438, %v7440
  %v7442 = vrot.slane %v7428, %v7441
  %v7443 = vcombine.low %v7435, %v7442
  %v7444 = vcombine.low %v6607, %v6608
  %v7445 = vcombine.low %v6609, %v6610
  %v7447 = vunpack.c.l.s4 1983009808
  %v7448 = vunpack.c.0.s8 %v7447
  %v7449 = vlaneseq
  %v7450 = vshrl.u32 %v7449, 7
  %v7451 = vsub.s32 %v7448, %v7450
  %v7452 = vrot.slane %v7444, %v7451
  %v7454 = vunpack.c.l.s4 1983009808
  %v7455 = vunpack.c.0.s8 %v7454
  %v7456 = vlaneseq
  %v7457 = vshrl.u32 %v7456, 7
  %v7458 = vsub.s32 %v7455, %v7457
  %v7459 = vrot.slane %v7445, %v7458
  %v7460 = vcombine.low %v7452, %v7459
  %v7461 = vcombine.low %v6611, %v6612
  %v7462 = vcombine.low %v6613, %v6614
  %v7464 = vunpack.c.l.s4 1983009808
  %v7465 = vunpack.c.0.s8 %v7464
  %v7466 = vlaneseq
  %v7467 = vshrl.u32 %v7466, 7
  %v7468 = vsub.s32 %v7465, %v7467
  %v7469 = vrot.slane %v7461, %v7468
  %v7471 = vunpack.c.l.s4 1983009808
  %v7472 = vunpack.c.0.s8 %v7471
  %v7473 = vlaneseq
  %v7474 = vshrl.u32 %v7473, 7
  %v7475 = vsub.s32 %v7472, %v7474
  %v7476 = vrot.slane %v7462, %v7475
  %v7477 = vcombine.low %v7469, %v7476
  %v7478 = vcombine.low %v6615, %v6616
  %v7479 = vcombine.low %v6617, %v6618
  %v7481 = vunpack.c.l.s4 1983009808
  %v7482 = vunpack.c.0.s8 %v7481
  %v7483 = vlaneseq
  %v7484 = vshrl.u32 %v7483, 7
  %v7485 = vsub.s32 %v7482, %v7484
  %v7486 = vrot.slane %v7478, %v7485
  %v7488 = vunpack.c.l.s4 1983009808
  %v7489 = vunpack.c.0.s8 %v7488
  %v7490 = vlaneseq
  %v7491 = vshrl.u32 %v7490, 7
  %v7492 = vsub.s32 %v7489, %v7491
  %v7493 = vrot.slane %v7479, %v7492
  %v7494 = vcombine.low %v7486, %v7493
  %v7495 = vcombine.low %v6619, %v6620
  %v7496 = vcombine.low %v6621, %v6622
  %v7498 = vunpack.c.l.s4 1983009808
  %v7499 = vunpack.c.0.s8 %v7498
  %v7500 = vlaneseq
  %v7501 = vshrl.u32 %v7500, 7
  %v7502 = vsub.s32 %v7499, %v7501
  %v7503 = vrot.slane %v7495, %v7502
  %v7505 = vunpack.c.l.s4 1983009808
  %v7506 = vunpack.c.0.s8 %v7505
  %v7507 = vlaneseq
  %v7508 = vshrl.u32 %v7507, 7
  %v7509 = vsub.s32 %v7506, %v7508
  %v7510 = vrot.slane %v7496, %v7509
  %v7511 = vcombine.low %v7503, %v7510
  %v7512 = vcombine.low %v6623, %v6624
  %v7513 = vcombine.low %v6625, %v6626
  %v7515 = vunpack.c.l.s4 1983009808
  %v7516 = vunpack.c.0.s8 %v7515
  %v7517 = vlaneseq
  %v7518 = vshrl.u32 %v7517, 7
  %v7519 = vsub.s32 %v7516, %v7518
  %v7520 = vrot.slane %v7512, %v7519
  %v7522 = vunpack.c.l.s4 1983009808
  %v7523 = vunpack.c.0.s8 %v7522
  %v7524 = vlaneseq
  %v7525 = vshrl.u32 %v7524, 7
  %v7526 = vsub.s32 %v7523, %v7525
  %v7527 = vrot.slane %v7513, %v7526
  %v7528 = vcombine.low %v7520, %v7527
  %v7529 = vcombine.low %v6627, %v6628
  %v7530 = vcombine.low %v6629, %v6630
  %v7532 = vunpack.c.l.s4 1983009808
  %v7533 = vunpack.c.0.s8 %v7532
  %v7534 = vlaneseq
  %v7535 = vshrl.u32 %v7534, 7
  %v7536 = vsub.s32 %v7533, %v7535
  %v7537 = vrot.slane %v7529, %v7536
  %v7539 = vunpack.c.l.s4 1983009808
  %v7540 = vunpack.c.0.s8 %v7539
  %v7541 = vlaneseq
  %v7542 = vshrl.u32 %v7541, 7
  %v7543 = vsub.s32 %v7540, %v7542
  %v7544 = vrot.slane %v7530, %v7543
  %v7545 = vcombine.low %v7537, %v7544
  %v7546 = vcombine.low %v6631, %v6632
  %v7547 = vcombine.low %v6633, %v6634
  %v7549 = vunpack.c.l.s4 1983009808
  %v7550 = vunpack.c.0.s8 %v7549
  %v7551 = vlaneseq
  %v7552 = vshrl.u32 %v7551, 7
  %v7553 = vsub.s32 %v7550, %v7552
  %v7554 = vrot.slane %v7546, %v7553
  %v7556 = vunpack.c.l.s4 1983009808
  %v7557 = vunpack.c.0.s8 %v7556
  %v7558 = vlaneseq
  %v7559 = vshrl.u32 %v7558, 7
  %v7560 = vsub.s32 %v7557, %v7559
  %v7561 = vrot.slane %v7547, %v7560
  %v7562 = vcombine.low %v7554, %v7561
  %v7563 = vcombine.low %v6635, %v6636
  %v7564 = vcombine.low %v6637, %v6638
  %v7566 = vunpack.c.l.s4 1983009808
  %v7567 = vunpack.c.0.s8 %v7566
  %v7568 = vlaneseq
  %v7569 = vshrl.u32 %v7568, 7
  %v7570 = vsub.s32 %v7567, %v7569
  %v7571 = vrot.slane %v7563, %v7570
  %v7573 = vunpack.c.l.s4 1983009808
  %v7574 = vunpack.c.0.s8 %v7573
  %v7575 = vlaneseq
  %v7576 = vshrl.u32 %v7575, 7
  %v7577 = vsub.s32 %v7574, %v7576
  %v7578 = vrot.slane %v7564, %v7577
  %v7579 = vcombine.low %v7571, %v7578
  %v7580 = vcombine.low %v6639, %v6640
  %v7581 = vcombine.low %v6641, %v6642
  %v7583 = vunpack.c.l.s4 1983009808
  %v7584 = vunpack.c.0.s8 %v7583
  %v7585 = vlaneseq
  %v7586 = vshrl.u32 %v7585, 7
  %v7587 = vsub.s32 %v7584, %v7586
  %v7588 = vrot.slane %v7580, %v7587
  %v7590 = vunpack.c.l.s4 1983009808
  %v7591 = vunpack.c.0.s8 %v7590
  %v7592 = vlaneseq
  %v7593 = vshrl.u32 %v7592, 7
  %v7594 = vsub.s32 %v7591, %v7593
  %v7595 = vrot.slane %v7581, %v7594
  %v7596 = vcombine.low %v7588, %v7595
  %v7597 = vcombine.low %v6643, %v6644
  %v7598 = vcombine.low %v6645, %v6646
  %v7600 = vunpack.c.l.s4 1983009808
  %v7601 = vunpack.c.0.s8 %v7600
  %v7602 = vlaneseq
  %v7603 = vshrl.u32 %v7602, 7
  %v7604 = vsub.s32 %v7601, %v7603
  %v7605 = vrot.slane %v7597, %v7604
  %v7607 = vunpack.c.l.s4 1983009808
  %v7608 = vunpack.c.0.s8 %v7607
  %v7609 = vlaneseq
  %v7610 = vshrl.u32 %v7609, 7
  %v7611 = vsub.s32 %v7608, %v7610
  %v7612 = vrot.slane %v7598, %v7611
  %v7613 = vcombine.low %v7605, %v7612
  %v7614 = vcombine.low %v6647, %v6648
  %v7615 = vcombine.low %v6649, %v6650
  %v7617 = vunpack.c.l.s4 1983009808
  %v7618 = vunpack.c.0.s8 %v7617
  %v7619 = vlaneseq
  %v7620 = vshrl.u32 %v7619, 7
  %v7621 = vsub.s32 %v7618, %v7620
  %v7622 = vrot.slane %v7614, %v7621
  %v7624 = vunpack.c.l.s4 1983009808
  %v7625 = vunpack.c.0.s8 %v7624
  %v7626 = vlaneseq
  %v7627 = vshrl.u32 %v7626, 7
  %v7628 = vsub.s32 %v7625, %v7627
  %v7629 = vrot.slane %v7615, %v7628
  %v7630 = vcombine.low %v7622, %v7629
  %v7631 = vcombine.low %v6651, %v6652
  %v7632 = vcombine.low %v6653, %v6654
  %v7634 = vunpack.c.l.s4 1983009808
  %v7635 = vunpack.c.0.s8 %v7634
  %v7636 = vlaneseq
  %v7637 = vshrl.u32 %v7636, 7
  %v7638 = vsub.s32 %v7635, %v7637
  %v7639 = vrot.slane %v7631, %v7638
  %v7641 = vunpack.c.l.s4 1983009808
  %v7642 = vunpack.c.0.s8 %v7641
  %v7643 = vlaneseq
  %v7644 = vshrl.u32 %v7643, 7
  %v7645 = vsub.s32 %v7642, %v7644
  %v7646 = vrot.slane %v7632, %v7645
  %v7647 = vcombine.low %v7639, %v7646
  %v7648 = vcombine.low %v6655, %v6656
  %v7649 = vcombine.low %v6657, %v6658
  %v7651 = vunpack.c.l.s4 1983009808
  %v7652 = vunpack.c.0.s8 %v7651
  %v7653 = vlaneseq
  %v7654 = vshrl.u32 %v7653, 7
  %v7655 = vsub.s32 %v7652, %v7654
  %v7656 = vrot.slane %v7648, %v7655
  %v7658 = vunpack.c.l.s4 1983009808
  %v7659 = vunpack.c.0.s8 %v7658
  %v7660 = vlaneseq
  %v7661 = vshrl.u32 %v7660, 7
  %v7662 = vsub.s32 %v7659, %v7661
  %v7663 = vrot.slane %v7649, %v7662
  %v7664 = vcombine.low %v7656, %v7663
  %v7665 = vcombine.low %v6659, %v6660
  %v7666 = vcombine.low %v6661, %v6662
  %v7668 = vunpack.c.l.s4 1983009808
  %v7669 = vunpack.c.0.s8 %v7668
  %v7670 = vlaneseq
  %v7671 = vshrl.u32 %v7670, 7
  %v7672 = vsub.s32 %v7669, %v7671
  %v7673 = vrot.slane %v7665, %v7672
  %v7675 = vunpack.c.l.s4 1983009808
  %v7676 = vunpack.c.0.s8 %v7675
  %v7677 = vlaneseq
  %v7678 = vshrl.u32 %v7677, 7
  %v7679 = vsub.s32 %v7676, %v7678
  %v7680 = vrot.slane %v7666, %v7679
  %v7681 = vcombine.low %v7673, %v7680
  %v7682 = vcombine.low %v6663, %v6664
  %v7683 = vcombine.low %v6665, %v6666
  %v7685 = vunpack.c.l.s4 1983009808
  %v7686 = vunpack.c.0.s8 %v7685
  %v7687 = vlaneseq
  %v7688 = vshrl.u32 %v7687, 7
  %v7689 = vsub.s32 %v7686, %v7688
  %v7690 = vrot.slane %v7682, %v7689
  %v7692 = vunpack.c.l.s4 1983009808
  %v7693 = vunpack.c.0.s8 %v7692
  %v7694 = vlaneseq
  %v7695 = vshrl.u32 %v7694, 7
  %v7696 = vsub.s32 %v7693, %v7695
  %v7697 = vrot.slane %v7683, %v7696
  %v7698 = vcombine.low %v7690, %v7697
  %v7699 = vcombine.low %v6667, %v6668
  %v7700 = vcombine.low %v6669, %v6670
  %v7702 = vunpack.c.l.s4 1983009808
  %v7703 = vunpack.c.0.s8 %v7702
  %v7704 = vlaneseq
  %v7705 = vshrl.u32 %v7704, 7
  %v7706 = vsub.s32 %v7703, %v7705
  %v7707 = vrot.slane %v7699, %v7706
  %v7709 = vunpack.c.l.s4 1983009808
  %v7710 = vunpack.c.0.s8 %v7709
  %v7711 = vlaneseq
  %v7712 = vshrl.u32 %v7711, 7
  %v7713 = vsub.s32 %v7710, %v7712
  %v7714 = vrot.slane %v7700, %v7713
  %v7715 = vcombine.low %v7707, %v7714
  %v7716 = vcombine.low %v6671, %v6672
  %v7717 = vcombine.low %v6673, %v6674
  %v7719 = vunpack.c.l.s4 1983009808
  %v7720 = vunpack.c.0.s8 %v7719
  %v7721 = vlaneseq
  %v7722 = vshrl.u32 %v7721, 7
  %v7723 = vsub.s32 %v7720, %v7722
  %v7724 = vrot.slane %v7716, %v7723
  %v7726 = vunpack.c.l.s4 1983009808
  %v7727 = vunpack.c.0.s8 %v7726
  %v7728 = vlaneseq
  %v7729 = vshrl.u32 %v7728, 7
  %v7730 = vsub.s32 %v7727, %v7729
  %v7731 = vrot.slane %v7717, %v7730
  %v7732 = vcombine.low %v7724, %v7731
  %v7733 = vcombine.low %v6675, %v6676
  %v7734 = vcombine.low %v6677, %v6678
  %v7736 = vunpack.c.l.s4 1983009808
  %v7737 = vunpack.c.0.s8 %v7736
  %v7738 = vlaneseq
  %v7739 = vshrl.u32 %v7738, 7
  %v7740 = vsub.s32 %v7737, %v7739
  %v7741 = vrot.slane %v7733, %v7740
  %v7743 = vunpack.c.l.s4 1983009808
  %v7744 = vunpack.c.0.s8 %v7743
  %v7745 = vlaneseq
  %v7746 = vshrl.u32 %v7745, 7
  %v7747 = vsub.s32 %v7744, %v7746
  %v7748 = vrot.slane %v7734, %v7747
  %v7749 = vcombine.low %v7741, %v7748
  %v7750 = vcombine.low %v6679, %v6680
  %v7751 = vcombine.low %v6681, %v6682
  %v7753 = vunpack.c.l.s4 1983009808
  %v7754 = vunpack.c.0.s8 %v7753
  %v7755 = vlaneseq
  %v7756 = vshrl.u32 %v7755, 7
  %v7757 = vsub.s32 %v7754, %v7756
  %v7758 = vrot.slane %v7750, %v7757
  %v7760 = vunpack.c.l.s4 1983009808
  %v7761 = vunpack.c.0.s8 %v7760
  %v7762 = vlaneseq
  %v7763 = vshrl.u32 %v7762, 7
  %v7764 = vsub.s32 %v7761, %v7763
  %v7765 = vrot.slane %v7751, %v7764
  %v7766 = vcombine.low %v7758, %v7765
  %v7767 = vcombine.low %v6683, %v6684
  %v7768 = vcombine.low %v6685, %v6686
  %v7770 = vunpack.c.l.s4 1983009808
  %v7771 = vunpack.c.0.s8 %v7770
  %v7772 = vlaneseq
  %v7773 = vshrl.u32 %v7772, 7
  %v7774 = vsub.s32 %v7771, %v7773
  %v7775 = vrot.slane %v7767, %v7774
  %v7777 = vunpack.c.l.s4 1983009808
  %v7778 = vunpack.c.0.s8 %v7777
  %v7779 = vlaneseq
  %v7780 = vshrl.u32 %v7779, 7
  %v7781 = vsub.s32 %v7778, %v7780
  %v7782 = vrot.slane %v7768, %v7781
  %v7783 = vcombine.low %v7775, %v7782
  %v7784 = vcombine.low %v6687, %v6688
  %v7785 = vcombine.low %v6689, %v6690
  %v7787 = vunpack.c.l.s4 1983009808
  %v7788 = vunpack.c.0.s8 %v7787
  %v7789 = vlaneseq
  %v7790 = vshrl.u32 %v7789, 7
  %v7791 = vsub.s32 %v7788, %v7790
  %v7792 = vrot.slane %v7784, %v7791
  %v7794 = vunpack.c.l.s4 1983009808
  %v7795 = vunpack.c.0.s8 %v7794
  %v7796 = vlaneseq
  %v7797 = vshrl.u32 %v7796, 7
  %v7798 = vsub.s32 %v7795, %v7797
  %v7799 = vrot.slane %v7785, %v7798
  %v7800 = vcombine.low %v7792, %v7799
  %v7801 = vcombine.low %v6691, %v6692
  %v7802 = vcombine.low %v6693, %v6694
  %v7804 = vunpack.c.l.s4 1983009808
  %v7805 = vunpack.c.0.s8 %v7804
  %v7806 = vlaneseq
  %v7807 = vshrl.u32 %v7806, 7
  %v7808 = vsub.s32 %v7805, %v7807
  %v7809 = vrot.slane %v7801, %v7808
  %v7811 = vunpack.c.l.s4 1983009808
  %v7812 = vunpack.c.0.s8 %v7811
  %v7813 = vlaneseq
  %v7814 = vshrl.u32 %v7813, 7
  %v7815 = vsub.s32 %v7812, %v7814
  %v7816 = vrot.slane %v7802, %v7815
  %v7817 = vcombine.low %v7809, %v7816
  %v7818 = vcombine.low %v6695, %v6696
  %v7819 = vcombine.low %v6697, %v6698
  %v7821 = vunpack.c.l.s4 1983009808
  %v7822 = vunpack.c.0.s8 %v7821
  %v7823 = vlaneseq
  %v7824 = vshrl.u32 %v7823, 7
  %v7825 = vsub.s32 %v7822, %v7824
  %v7826 = vrot.slane %v7818, %v7825
  %v7828 = vunpack.c.l.s4 1983009808
  %v7829 = vunpack.c.0.s8 %v7828
  %v7830 = vlaneseq
  %v7831 = vshrl.u32 %v7830, 7
  %v7832 = vsub.s32 %v7829, %v7831
  %v7833 = vrot.slane %v7819, %v7832
  %v7834 = vcombine.low %v7826, %v7833
  %v7835 = vcombine.low %v6699, %v6700
  %v7836 = vcombine.low %v6701, %v6702
  %v7838 = vunpack.c.l.s4 1983009808
  %v7839 = vunpack.c.0.s8 %v7838
  %v7840 = vlaneseq
  %v7841 = vshrl.u32 %v7840, 7
  %v7842 = vsub.s32 %v7839, %v7841
  %v7843 = vrot.slane %v7835, %v7842
  %v7845 = vunpack.c.l.s4 1983009808
  %v7846 = vunpack.c.0.s8 %v7845
  %v7847 = vlaneseq
  %v7848 = vshrl.u32 %v7847, 7
  %v7849 = vsub.s32 %v7846, %v7848
  %v7850 = vrot.slane %v7836, %v7849
  %v7851 = vcombine.low %v7843, %v7850
  %v7852 = vcombine.low %v6703, %v6704
  %v7853 = vcombine.low %v6705, %v6706
  %v7855 = vunpack.c.l.s4 1983009808
  %v7856 = vunpack.c.0.s8 %v7855
  %v7857 = vlaneseq
  %v7858 = vshrl.u32 %v7857, 7
  %v7859 = vsub.s32 %v7856, %v7858
  %v7860 = vrot.slane %v7852, %v7859
  %v7862 = vunpack.c.l.s4 1983009808
  %v7863 = vunpack.c.0.s8 %v7862
  %v7864 = vlaneseq
  %v7865 = vshrl.u32 %v7864, 7
  %v7866 = vsub.s32 %v7863, %v7865
  %v7867 = vrot.slane %v7853, %v7866
  %v7868 = vcombine.low %v7860, %v7867
  %v7869 = vcombine.low %v6707, %v6708
  %v7870 = vcombine.low %v6709, %v6710
  %v7872 = vunpack.c.l.s4 1983009808
  %v7873 = vunpack.c.0.s8 %v7872
  %v7874 = vlaneseq
  %v7875 = vshrl.u32 %v7874, 7
  %v7876 = vsub.s32 %v7873, %v7875
  %v7877 = vrot.slane %v7869, %v7876
  %v7879 = vunpack.c.l.s4 1983009808
  %v7880 = vunpack.c.0.s8 %v7879
  %v7881 = vlaneseq
  %v7882 = vshrl.u32 %v7881, 7
  %v7883 = vsub.s32 %v7880, %v7882
  %v7884 = vrot.slane %v7870, %v7883
  %v7885 = vcombine.low %v7877, %v7884
  %v7886 = vcombine.low %v6711, %v6712
  %v7887 = vcombine.low %v6713, %v6714
  %v7889 = vunpack.c.l.s4 1983009808
  %v7890 = vunpack.c.0.s8 %v7889
  %v7891 = vlaneseq
  %v7892 = vshrl.u32 %v7891, 7
  %v7893 = vsub.s32 %v7890, %v7892
  %v7894 = vrot.slane %v7886, %v7893
  %v7896 = vunpack.c.l.s4 1983009808
  %v7897 = vunpack.c.0.s8 %v7896
  %v7898 = vlaneseq
  %v7899 = vshrl.u32 %v7898, 7
  %v7900 = vsub.s32 %v7897, %v7899
  %v7901 = vrot.slane %v7887, %v7900
  %v7902 = vcombine.low %v7894, %v7901
  %v7903 = vcombine.low %v6715, %v6716
  %v7904 = vcombine.low %v6717, %v6718
  %v7906 = vunpack.c.l.s4 1983009808
  %v7907 = vunpack.c.0.s8 %v7906
  %v7908 = vlaneseq
  %v7909 = vshrl.u32 %v7908, 7
  %v7910 = vsub.s32 %v7907, %v7909
  %v7911 = vrot.slane %v7903, %v7910
  %v7913 = vunpack.c.l.s4 1983009808
  %v7914 = vunpack.c.0.s8 %v7913
  %v7915 = vlaneseq
  %v7916 = vshrl.u32 %v7915, 7
  %v7917 = vsub.s32 %v7914, %v7916
  %v7918 = vrot.slane %v7904, %v7917
  %v7919 = vcombine.low %v7911, %v7918
  %v7920 = vcombine.low %v6719, %v6720
  %v7921 = vcombine.low %v6721, %v6722
  %v7923 = vunpack.c.l.s4 1983009808
  %v7924 = vunpack.c.0.s8 %v7923
  %v7925 = vlaneseq
  %v7926 = vshrl.u32 %v7925, 7
  %v7927 = vsub.s32 %v7924, %v7926
  %v7928 = vrot.slane %v7920, %v7927
  %v7930 = vunpack.c.l.s4 1983009808
  %v7931 = vunpack.c.0.s8 %v7930
  %v7932 = vlaneseq
  %v7933 = vshrl.u32 %v7932, 7
  %v7934 = vsub.s32 %v7931, %v7933
  %v7935 = vrot.slane %v7921, %v7934
  %v7936 = vcombine.low %v7928, %v7935
  %v7937 = vcombine.low %v6723, %v6724
  %v7938 = vcombine.low %v6725, %v6726
  %v7940 = vunpack.c.l.s4 1983009808
  %v7941 = vunpack.c.0.s8 %v7940
  %v7942 = vlaneseq
  %v7943 = vshrl.u32 %v7942, 7
  %v7944 = vsub.s32 %v7941, %v7943
  %v7945 = vrot.slane %v7937, %v7944
  %v7947 = vunpack.c.l.s4 1983009808
  %v7948 = vunpack.c.0.s8 %v7947
  %v7949 = vlaneseq
  %v7950 = vshrl.u32 %v7949, 7
  %v7951 = vsub.s32 %v7948, %v7950
  %v7952 = vrot.slane %v7938, %v7951
  %v7953 = vcombine.low %v7945, %v7952
  %v7954 = vcombine.low %v6727, %v6728
  %v7955 = vcombine.low %v6729, %v6730
  %v7957 = vunpack.c.l.s4 1983009808
  %v7958 = vunpack.c.0.s8 %v7957
  %v7959 = vlaneseq
  %v7960 = vshrl.u32 %v7959, 7
  %v7961 = vsub.s32 %v7958, %v7960
  %v7962 = vrot.slane %v7954, %v7961
  %v7964 = vunpack.c.l.s4 1983009808
  %v7965 = vunpack.c.0.s8 %v7964
  %v7966 = vlaneseq
  %v7967 = vshrl.u32 %v7966, 7
  %v7968 = vsub.s32 %v7965, %v7967
  %v7969 = vrot.slane %v7955, %v7968
  %v7970 = vcombine.low %v7962, %v7969
  %v7971 = vcombine.low %v6731, %v6732
  %v7972 = vcombine.low %v6733, %v6734
  %v7974 = vunpack.c.l.s4 1983009808
  %v7975 = vunpack.c.0.s8 %v7974
  %v7976 = vlaneseq
  %v7977 = vshrl.u32 %v7976, 7
  %v7978 = vsub.s32 %v7975, %v7977
  %v7979 = vrot.slane %v7971, %v7978
  %v7981 = vunpack.c.l.s4 1983009808
  %v7982 = vunpack.c.0.s8 %v7981
  %v7983 = vlaneseq
  %v7984 = vshrl.u32 %v7983, 7
  %v7985 = vsub.s32 %v7982, %v7984
  %v7986 = vrot.slane %v7972, %v7985
  %v7987 = vcombine.low %v7979, %v7986
  %v7988 = vcombine.low %v6735, %v6736
  %v7989 = vcombine.low %v6737, %v6738
  %v7991 = vunpack.c.l.s4 1983009808
  %v7992 = vunpack.c.0.s8 %v7991
  %v7993 = vlaneseq
  %v7994 = vshrl.u32 %v7993, 7
  %v7995 = vsub.s32 %v7992, %v7994
  %v7996 = vrot.slane %v7988, %v7995
  %v7998 = vunpack.c.l.s4 1983009808
  %v7999 = vunpack.c.0.s8 %v7998
  %v8000 = vlaneseq
  %v8001 = vshrl.u32 %v8000, 7
  %v8002 = vsub.s32 %v7999, %v8001
  %v8003 = vrot.slane %v7989, %v8002
  %v8004 = vcombine.low %v7996, %v8003
  %v8005 = vcombine.low %v6739, %v6740
  %v8006 = vcombine.low %v6741, %v6742
  %v8008 = vunpack.c.l.s4 1983009808
  %v8009 = vunpack.c.0.s8 %v8008
  %v8010 = vlaneseq
  %v8011 = vshrl.u32 %v8010, 7
  %v8012 = vsub.s32 %v8009, %v8011
  %v8013 = vrot.slane %v8005, %v8012
  %v8015 = vunpack.c.l.s4 1983009808
  %v8016 = vunpack.c.0.s8 %v8015
  %v8017 = vlaneseq
  %v8018 = vshrl.u32 %v8017, 7
  %v8019 = vsub.s32 %v8016, %v8018
  %v8020 = vrot.slane %v8006, %v8019
  %v8021 = vcombine.low %v8013, %v8020
  %v8022 = vcombine.low %v6743, %v6744
  %v8023 = vcombine.low %v6745, %v6746
  %v8025 = vunpack.c.l.s4 1983009808
  %v8026 = vunpack.c.0.s8 %v8025
  %v8027 = vlaneseq
  %v8028 = vshrl.u32 %v8027, 7
  %v8029 = vsub.s32 %v8026, %v8028
  %v8030 = vrot.slane %v8022, %v8029
  %v8032 = vunpack.c.l.s4 1983009808
  %v8033 = vunpack.c.0.s8 %v8032
  %v8034 = vlaneseq
  %v8035 = vshrl.u32 %v8034, 7
  %v8036 = vsub.s32 %v8033, %v8035
  %v8037 = vrot.slane %v8023, %v8036
  %v8038 = vcombine.low %v8030, %v8037
  %v8039 = vcombine.low %v6747, %v6748
  %v8040 = vcombine.low %v6749, %v6750
  %v8042 = vunpack.c.l.s4 1983009808
  %v8043 = vunpack.c.0.s8 %v8042
  %v8044 = vlaneseq
  %v8045 = vshrl.u32 %v8044, 7
  %v8046 = vsub.s32 %v8043, %v8045
  %v8047 = vrot.slane %v8039, %v8046
  %v8049 = vunpack.c.l.s4 1983009808
  %v8050 = vunpack.c.0.s8 %v8049
  %v8051 = vlaneseq
  %v8052 = vshrl.u32 %v8051, 7
  %v8053 = vsub.s32 %v8050, %v8052
  %v8054 = vrot.slane %v8040, %v8053
  %v8055 = vcombine.low %v8047, %v8054
  %v8056 = vcombine.low %v6751, %v6752
  %v8057 = vcombine.low %v6753, %v6754
  %v8059 = vunpack.c.l.s4 1983009808
  %v8060 = vunpack.c.0.s8 %v8059
  %v8061 = vlaneseq
  %v8062 = vshrl.u32 %v8061, 7
  %v8063 = vsub.s32 %v8060, %v8062
  %v8064 = vrot.slane %v8056, %v8063
  %v8066 = vunpack.c.l.s4 1983009808
  %v8067 = vunpack.c.0.s8 %v8066
  %v8068 = vlaneseq
  %v8069 = vshrl.u32 %v8068, 7
  %v8070 = vsub.s32 %v8067, %v8069
  %v8071 = vrot.slane %v8057, %v8070
  %v8072 = vcombine.low %v8064, %v8071
  %v8073 = vcombine.low %v6755, %v6756
  %v8074 = vcombine.low %v6757, %v6758
  %v8076 = vunpack.c.l.s4 1983009808
  %v8077 = vunpack.c.0.s8 %v8076
  %v8078 = vlaneseq
  %v8079 = vshrl.u32 %v8078, 7
  %v8080 = vsub.s32 %v8077, %v8079
  %v8081 = vrot.slane %v8073, %v8080
  %v8083 = vunpack.c.l.s4 1983009808
  %v8084 = vunpack.c.0.s8 %v8083
  %v8085 = vlaneseq
  %v8086 = vshrl.u32 %v8085, 7
  %v8087 = vsub.s32 %v8084, %v8086
  %v8088 = vrot.slane %v8074, %v8087
  %v8089 = vcombine.low %v8081, %v8088
  %v8090 = vcombine.low %v6759, %v6760
  %v8091 = vcombine.low %v6761, %v6762
  %v8093 = vunpack.c.l.s4 1983009808
  %v8094 = vunpack.c.0.s8 %v8093
  %v8095 = vlaneseq
  %v8096 = vshrl.u32 %v8095, 7
  %v8097 = vsub.s32 %v8094, %v8096
  %v8098 = vrot.slane %v8090, %v8097
  %v8100 = vunpack.c.l.s4 1983009808
  %v8101 = vunpack.c.0.s8 %v8100
  %v8102 = vlaneseq
  %v8103 = vshrl.u32 %v8102, 7
  %v8104 = vsub.s32 %v8101, %v8103
  %v8105 = vrot.slane %v8091, %v8104
  %v8106 = vcombine.low %v8098, %v8105
  %s8171 = scalar_lea.vmem [#allocation3], 24
  %8172 = vst.msk [vmem:[%s8171 + $0x1] sm:$0xff] %vm2421, %v7035
  %8173 = vst.msk [vmem:[%s8171 + $0x9] sm:$0xff] %vm2421, %v7052
  %8174 = vst.msk [vmem:[%s8171 + $0x19] sm:$0xff] %vm2421, %v7069
  %8175 = vst.msk [vmem:[%s8171 + $0x21] sm:$0xff] %vm2421, %v7086
  %8176 = vst.msk [vmem:[%s8171 + $0x31] sm:$0xff] %vm2421, %v7103
  %8177 = vst.msk [vmem:[%s8171 + $0x39] sm:$0xff] %vm2421, %v7120
  %8178 = vst.msk [vmem:[%s8171 + $0x49] sm:$0xff] %vm2421, %v7137
  %8179 = vst.msk [vmem:[%s8171 + $0x51] sm:$0xff] %vm2421, %v7154
  %8180 = vst.msk [vmem:[%s8171 + $0x61] sm:$0xff] %vm2421, %v7171
  %8181 = vst.msk [vmem:[%s8171 + $0x69] sm:$0xff] %vm2421, %v7188
  %8182 = vst.msk [vmem:[%s8171 + $0x79] sm:$0xff] %vm2421, %v7205
  %8183 = vst.msk [vmem:[%s8171 + $0x81] sm:$0xff] %vm2421, %v7222
  %8184 = vst.msk [vmem:[%s8171 + $0x91] sm:$0xff] %vm2421, %v7239
  %8185 = vst.msk [vmem:[%s8171 + $0x99] sm:$0xff] %vm2421, %v7256
  %8186 = vst.msk [vmem:[%s8171 + $0xa9] sm:$0xff] %vm2421, %v7273
  %8187 = vst.msk [vmem:[%s8171 + $0xb1] sm:$0xff] %vm2421, %v7290
  %8188 = vst.msk [vmem:[%s8171 + $0xc1] sm:$0xff] %vm2421, %v7307
  %8189 = vst.msk [vmem:[%s8171 + $0xc9] sm:$0xff] %vm2421, %v7324
  %8190 = vst.msk [vmem:[%s8171 + $0xd9] sm:$0xff] %vm2421, %v7341
  %8191 = vst.msk [vmem:[%s8171 + $0xe1] sm:$0xff] %vm2421, %v7358
  %8192 = vst.msk [vmem:[%s8171 + $0xf1] sm:$0xff] %vm2421, %v7375
  %8193 = vst.msk [vmem:[%s8171 + $0xf9] sm:$0xff] %vm2421, %v7392
  %8194 = vst.msk [vmem:[%s8171 + $0x109] sm:$0xff] %vm2421, %v7409
  %8195 = vst.msk [vmem:[%s8171 + $0x111] sm:$0xff] %vm2421, %v7426
  %8196 = vst.msk [vmem:[%s8171 + $0x121] sm:$0xff] %vm2421, %v7443
  %8197 = vst.msk [vmem:[%s8171 + $0x129] sm:$0xff] %vm2421, %v7460
  %8198 = vst.msk [vmem:[%s8171 + $0x139] sm:$0xff] %vm2421, %v7477
  %8199 = vst.msk [vmem:[%s8171 + $0x141] sm:$0xff] %vm2421, %v7494
  %8200 = vst.msk [vmem:[%s8171 + $0x151] sm:$0xff] %vm2421, %v7511
  %8201 = vst.msk [vmem:[%s8171 + $0x159] sm:$0xff] %vm2421, %v7528
  %8202 = vst.msk [vmem:[%s8171 + $0x169] sm:$0xff] %vm2421, %v7545
  %8203 = vst.msk [vmem:[%s8171 + $0x171] sm:$0xff] %vm2421, %v7562
  %8204 = vst.msk [vmem:[%s8171 + $0x1b1] sm:$0xff] %vm2421, %v7579
  %8205 = vst.msk [vmem:[%s8171 + $0x1b9] sm:$0xff] %vm2421, %v7596
  %8206 = vst.msk [vmem:[%s8171 + $0x1c9] sm:$0xff] %vm2421, %v7613
  %8207 = vst.msk [vmem:[%s8171 + $0x1d1] sm:$0xff] %vm2421, %v7630
  %8208 = vst.msk [vmem:[%s8171 + $0x1e1] sm:$0xff] %vm2421, %v7647
  %8209 = vst.msk [vmem:[%s8171 + $0x1e9] sm:$0xff] %vm2421, %v7664
  %8210 = vst.msk [vmem:[%s8171 + $0x1f9] sm:$0xff] %vm2421, %v7681
  %8211 = vst.msk [vmem:[%s8171 + $0x201] sm:$0xff] %vm2421, %v7698
  %8212 = vst.msk [vmem:[%s8171 + $0x211] sm:$0xff] %vm2421, %v7715
  %8213 = vst.msk [vmem:[%s8171 + $0x219] sm:$0xff] %vm2421, %v7732
  %8214 = vst.msk [vmem:[%s8171 + $0x229] sm:$0xff] %vm2421, %v7749
  %8215 = vst.msk [vmem:[%s8171 + $0x231] sm:$0xff] %vm2421, %v7766
  %8216 = vst.msk [vmem:[%s8171 + $0x241] sm:$0xff] %vm2421, %v7783
  %8217 = vst.msk [vmem:[%s8171 + $0x249] sm:$0xff] %vm2421, %v7800
  %8218 = vst.msk [vmem:[%s8171 + $0x259] sm:$0xff] %vm2421, %v7817
  %8219 = vst.msk [vmem:[%s8171 + $0x261] sm:$0xff] %vm2421, %v7834
  %8220 = vst.msk [vmem:[%s8171 + $0x271] sm:$0xff] %vm2421, %v7851
  %8221 = vst.msk [vmem:[%s8171 + $0x279] sm:$0xff] %vm2421, %v7868
  %8222 = vst.msk [vmem:[%s8171 + $0x289] sm:$0xff] %vm2421, %v7885
  %8223 = vst.msk [vmem:[%s8171 + $0x291] sm:$0xff] %vm2421, %v7902
  %8224 = vst.msk [vmem:[%s8171 + $0x2a1] sm:$0xff] %vm2421, %v7919
  %8225 = vst.msk [vmem:[%s8171 + $0x2a9] sm:$0xff] %vm2421, %v7936
  %8226 = vst.msk [vmem:[%s8171 + $0x2b9] sm:$0xff] %vm2421, %v7953
  %8227 = vst.msk [vmem:[%s8171 + $0x2c1] sm:$0xff] %vm2421, %v7970
  %8228 = vst.msk [vmem:[%s8171 + $0x2d1] sm:$0xff] %vm2421, %v7987
  %8229 = vst.msk [vmem:[%s8171 + $0x2d9] sm:$0xff] %vm2421, %v8004
  %8230 = vst.msk [vmem:[%s8171 + $0x2e9] sm:$0xff] %vm2421, %v8021
  %8231 = vst.msk [vmem:[%s8171 + $0x2f1] sm:$0xff] %vm2421, %v8038
  %8232 = vst.msk [vmem:[%s8171 + $0x301] sm:$0xff] %vm2421, %v8055
  %8233 = vst.msk [vmem:[%s8171 + $0x309] sm:$0xff] %vm2421, %v8072
  %8234 = vst.msk [vmem:[%s8171 + $0x319] sm:$0xff] %vm2421, %v8089
  %8235 = vst.msk [vmem:[%s8171 + $0x321] sm:$0xff] %vm2421, %v8106
  %v8236 = vld [vmem:[#allocation3] sm:$0xff]
  %v8237 = vld [vmem:[#allocation3 + $0x8] sm:$0xff]
  %v8238 = vld [vmem:[#allocation3 + $0x18] sm:$0xff]
  %v8239 = vld [vmem:[#allocation3 + $0x20] sm:$0xff]
  %v8240 = vld [vmem:[#allocation3 + $0x30] sm:$0xff]
  %v8241 = vld [vmem:[#allocation3 + $0x38] sm:$0xff]
  %v8242 = vld [vmem:[#allocation3 + $0x48] sm:$0xff]
  %v8243 = vld [vmem:[#allocation3 + $0x50] sm:$0xff]
  %v8244 = vld [vmem:[#allocation3 + $0x60] sm:$0xff]
  %v8245 = vld [vmem:[#allocation3 + $0x68] sm:$0xff]
  %v8246 = vld [vmem:[#allocation3 + $0x78] sm:$0xff]
  %v8247 = vld [vmem:[#allocation3 + $0x80] sm:$0xff]
  %v8248 = vld [vmem:[#allocation3 + $0x90] sm:$0xff]
  %v8249 = vld [vmem:[#allocation3 + $0x98] sm:$0xff]
  %v8250 = vld [vmem:[#allocation3 + $0xa8] sm:$0xff]
  %v8251 = vld [vmem:[#allocation3 + $0xb0] sm:$0xff]
  %v8252 = vld [vmem:[#allocation3 + $0xc0] sm:$0xff]
  %v8253 = vld [vmem:[#allocation3 + $0xc8] sm:$0xff]
  %v8254 = vld [vmem:[#allocation3 + $0xd8] sm:$0xff]
  %v8255 = vld [vmem:[#allocation3 + $0xe0] sm:$0xff]
  %v8256 = vld [vmem:[#allocation3 + $0xf0] sm:$0xff]
  %v8257 = vld [vmem:[#allocation3 + $0xf8] sm:$0xff]
  %v8258 = vld [vmem:[#allocation3 + $0x108] sm:$0xff]
  %v8259 = vld [vmem:[#allocation3 + $0x110] sm:$0xff]
  %v8260 = vld [vmem:[#allocation3 + $0x120] sm:$0xff]
  %v8261 = vld [vmem:[#allocation3 + $0x128] sm:$0xff]
  %v8262 = vld [vmem:[#allocation3 + $0x138] sm:$0xff]
  %v8263 = vld [vmem:[#allocation3 + $0x140] sm:$0xff]
  %v8264 = vld [vmem:[#allocation3 + $0x150] sm:$0xff]
  %v8265 = vld [vmem:[#allocation3 + $0x158] sm:$0xff]
  %v8266 = vld [vmem:[#allocation3 + $0x168] sm:$0xff]
  %v8267 = vld [vmem:[#allocation3 + $0x170] sm:$0xff]
  %v8268 = vld [vmem:[#allocation3 + $0x1b0] sm:$0xff]
  %v8269 = vld [vmem:[#allocation3 + $0x1b8] sm:$0xff]
  %v8270 = vld [vmem:[#allocation3 + $0x1c8] sm:$0xff]
  %v8271 = vld [vmem:[#allocation3 + $0x1d0] sm:$0xff]
  %v8272 = vld [vmem:[#allocation3 + $0x1e0] sm:$0xff]
  %v8273 = vld [vmem:[#allocation3 + $0x1e8] sm:$0xff]
  %v8274 = vld [vmem:[#allocation3 + $0x1f8] sm:$0xff]
  %v8275 = vld [vmem:[#allocation3 + $0x200] sm:$0xff]
  %v8276 = vld [vmem:[#allocation3 + $0x210] sm:$0xff]
  %v8277 = vld [vmem:[#allocation3 + $0x218] sm:$0xff]
  %v8278 = vld [vmem:[#allocation3 + $0x228] sm:$0xff]
  %v8279 = vld [vmem:[#allocation3 + $0x230] sm:$0xff]
  %v8280 = vld [vmem:[#allocation3 + $0x240] sm:$0xff]
  %v8281 = vld [vmem:[#allocation3 + $0x248] sm:$0xff]
  %v8282 = vld [vmem:[#allocation3 + $0x258] sm:$0xff]
  %v8283 = vld [vmem:[#allocation3 + $0x260] sm:$0xff]
  %v8284 = vld [vmem:[#allocation3 + $0x270] sm:$0xff]
  %v8285 = vld [vmem:[#allocation3 + $0x278] sm:$0xff]
  %v8286 = vld [vmem:[#allocation3 + $0x288] sm:$0xff]
  %v8287 = vld [vmem:[#allocation3 + $0x290] sm:$0xff]
  %v8288 = vld [vmem:[#allocation3 + $0x2a0] sm:$0xff]
  %v8289 = vld [vmem:[#allocation3 + $0x2a8] sm:$0xff]
  %v8290 = vld [vmem:[#allocation3 + $0x2b8] sm:$0xff]
  %v8291 = vld [vmem:[#allocation3 + $0x2c0] sm:$0xff]
  %v8292 = vld [vmem:[#allocation3 + $0x2d0] sm:$0xff]
  %v8293 = vld [vmem:[#allocation3 + $0x2d8] sm:$0xff]
  %v8294 = vld [vmem:[#allocation3 + $0x2e8] sm:$0xff]
  %v8295 = vld [vmem:[#allocation3 + $0x2f0] sm:$0xff]
  %v8296 = vld [vmem:[#allocation3 + $0x300] sm:$0xff]
  %v8297 = vld [vmem:[#allocation3 + $0x308] sm:$0xff]
  %v8298 = vld [vmem:[#allocation3 + $0x318] sm:$0xff]
  %v8299 = vld [vmem:[#allocation3 + $0x320] sm:$0xff]
  %v8300 = vld [vmem:[#allocation3 + $0x1] sm:$0xff]
  %v8301 = vld [vmem:[#allocation3 + $0x9] sm:$0xff]
  %v8302 = vld [vmem:[#allocation3 + $0x19] sm:$0xff]
  %v8303 = vld [vmem:[#allocation3 + $0x21] sm:$0xff]
  %v8304 = vld [vmem:[#allocation3 + $0x31] sm:$0xff]
  %v8305 = vld [vmem:[#allocation3 + $0x39] sm:$0xff]
  %v8306 = vld [vmem:[#allocation3 + $0x49] sm:$0xff]
  %v8307 = vld [vmem:[#allocation3 + $0x51] sm:$0xff]
  %v8308 = vld [vmem:[#allocation3 + $0x61] sm:$0xff]
  %v8309 = vld [vmem:[#allocation3 + $0x69] sm:$0xff]
  %v8310 = vld [vmem:[#allocation3 + $0x79] sm:$0xff]
  %v8311 = vld [vmem:[#allocation3 + $0x81] sm:$0xff]
  %v8312 = vld [vmem:[#allocation3 + $0x91] sm:$0xff]
  %v8313 = vld [vmem:[#allocation3 + $0x99] sm:$0xff]
  %v8314 = vld [vmem:[#allocation3 + $0xa9] sm:$0xff]
  %v8315 = vld [vmem:[#allocation3 + $0xb1] sm:$0xff]
  %v8316 = vld [vmem:[#allocation3 + $0xc1] sm:$0xff]
  %v8317 = vld [vmem:[#allocation3 + $0xc9] sm:$0xff]
  %v8318 = vld [vmem:[#allocation3 + $0xd9] sm:$0xff]
  %v8319 = vld [vmem:[#allocation3 + $0xe1] sm:$0xff]
  %v8320 = vld [vmem:[#allocation3 + $0xf1] sm:$0xff]
  %v8321 = vld [vmem:[#allocation3 + $0xf9] sm:$0xff]
  %v8322 = vld [vmem:[#allocation3 + $0x109] sm:$0xff]
  %v8323 = vld [vmem:[#allocation3 + $0x111] sm:$0xff]
  %v8324 = vld [vmem:[#allocation3 + $0x121] sm:$0xff]
  %v8325 = vld [vmem:[#allocation3 + $0x129] sm:$0xff]
  %v8326 = vld [vmem:[#allocation3 + $0x139] sm:$0xff]
  %v8327 = vld [vmem:[#allocation3 + $0x141] sm:$0xff]
  %v8328 = vld [vmem:[#allocation3 + $0x151] sm:$0xff]
  %v8329 = vld [vmem:[#allocation3 + $0x159] sm:$0xff]
  %v8330 = vld [vmem:[#allocation3 + $0x169] sm:$0xff]
  %v8331 = vld [vmem:[#allocation3 + $0x171] sm:$0xff]
  %v8332 = vld [vmem:[#allocation3 + $0x1b1] sm:$0xff]
  %v8333 = vld [vmem:[#allocation3 + $0x1b9] sm:$0xff]
  %v8334 = vld [vmem:[#allocation3 + $0x1c9] sm:$0xff]
  %v8335 = vld [vmem:[#allocation3 + $0x1d1] sm:$0xff]
  %v8336 = vld [vmem:[#allocation3 + $0x1e1] sm:$0xff]
  %v8337 = vld [vmem:[#allocation3 + $0x1e9] sm:$0xff]
  %v8338 = vld [vmem:[#allocation3 + $0x1f9] sm:$0xff]
  %v8339 = vld [vmem:[#allocation3 + $0x201] sm:$0xff]
  %v8340 = vld [vmem:[#allocation3 + $0x211] sm:$0xff]
  %v8341 = vld [vmem:[#allocation3 + $0x219] sm:$0xff]
  %v8342 = vld [vmem:[#allocation3 + $0x229] sm:$0xff]
  %v8343 = vld [vmem:[#allocation3 + $0x231] sm:$0xff]
  %v8344 = vld [vmem:[#allocation3 + $0x241] sm:$0xff]
  %v8345 = vld [vmem:[#allocation3 + $0x249] sm:$0xff]
  %v8346 = vld [vmem:[#allocation3 + $0x259] sm:$0xff]
  %v8347 = vld [vmem:[#allocation3 + $0x261] sm:$0xff]
  %v8348 = vld [vmem:[#allocation3 + $0x271] sm:$0xff]
  %v8349 = vld [vmem:[#allocation3 + $0x279] sm:$0xff]
  %v8350 = vld [vmem:[#allocation3 + $0x289] sm:$0xff]
  %v8351 = vld [vmem:[#allocation3 + $0x291] sm:$0xff]
  %v8352 = vld [vmem:[#allocation3 + $0x2a1] sm:$0xff]
  %v8353 = vld [vmem:[#allocation3 + $0x2a9] sm:$0xff]
  %v8354 = vld [vmem:[#allocation3 + $0x2b9] sm:$0xff]
  %v8355 = vld [vmem:[#allocation3 + $0x2c1] sm:$0xff]
  %v8356 = vld [vmem:[#allocation3 + $0x2d1] sm:$0xff]
  %v8357 = vld [vmem:[#allocation3 + $0x2d9] sm:$0xff]
  %v8358 = vld [vmem:[#allocation3 + $0x2e9] sm:$0xff]
  %v8359 = vld [vmem:[#allocation3 + $0x2f1] sm:$0xff]
  %v8360 = vld [vmem:[#allocation3 + $0x301] sm:$0xff]
  %v8361 = vld [vmem:[#allocation3 + $0x309] sm:$0xff]
  %v8362 = vld [vmem:[#allocation3 + $0x319] sm:$0xff]
  %v8363 = vld [vmem:[#allocation3 + $0x321] sm:$0xff]
  %v8364 = vld [vmem:[#allocation3 + $0x2] sm:$0xff]
  %v8365 = vld [vmem:[#allocation3 + $0xa] sm:$0xff]
  %v8366 = vld [vmem:[#allocation3 + $0x1a] sm:$0xff]
  %v8367 = vld [vmem:[#allocation3 + $0x22] sm:$0xff]
  %v8368 = vld [vmem:[#allocation3 + $0x32] sm:$0xff]
  %v8369 = vld [vmem:[#allocation3 + $0x3a] sm:$0xff]
  %v8370 = vld [vmem:[#allocation3 + $0x4a] sm:$0xff]
  %v8371 = vld [vmem:[#allocation3 + $0x52] sm:$0xff]
  %v8372 = vld [vmem:[#allocation3 + $0x62] sm:$0xff]
  %v8373 = vld [vmem:[#allocation3 + $0x6a] sm:$0xff]
  %v8374 = vld [vmem:[#allocation3 + $0x7a] sm:$0xff]
  %v8375 = vld [vmem:[#allocation3 + $0x82] sm:$0xff]
  %v8376 = vld [vmem:[#allocation3 + $0x92] sm:$0xff]
  %v8377 = vld [vmem:[#allocation3 + $0x9a] sm:$0xff]
  %v8378 = vld [vmem:[#allocation3 + $0xaa] sm:$0xff]
  %v8379 = vld [vmem:[#allocation3 + $0xb2] sm:$0xff]
  %v8380 = vld [vmem:[#allocation3 + $0xc2] sm:$0xff]
  %v8381 = vld [vmem:[#allocation3 + $0xca] sm:$0xff]
  %v8382 = vld [vmem:[#allocation3 + $0xda] sm:$0xff]
  %v8383 = vld [vmem:[#allocation3 + $0xe2] sm:$0xff]
  %v8384 = vld [vmem:[#allocation3 + $0xf2] sm:$0xff]
  %v8385 = vld [vmem:[#allocation3 + $0xfa] sm:$0xff]
  %v8386 = vld [vmem:[#allocation3 + $0x10a] sm:$0xff]
  %v8387 = vld [vmem:[#allocation3 + $0x112] sm:$0xff]
  %v8388 = vld [vmem:[#allocation3 + $0x122] sm:$0xff]
  %v8389 = vld [vmem:[#allocation3 + $0x12a] sm:$0xff]
  %v8390 = vld [vmem:[#allocation3 + $0x13a] sm:$0xff]
  %v8391 = vld [vmem:[#allocation3 + $0x142] sm:$0xff]
  %v8392 = vld [vmem:[#allocation3 + $0x152] sm:$0xff]
  %v8393 = vld [vmem:[#allocation3 + $0x15a] sm:$0xff]
  %v8394 = vld [vmem:[#allocation3 + $0x16a] sm:$0xff]
  %v8395 = vld [vmem:[#allocation3 + $0x172] sm:$0xff]
  %v8396 = vld [vmem:[#allocation3 + $0x1b2] sm:$0xff]
  %v8397 = vld [vmem:[#allocation3 + $0x1ba] sm:$0xff]
  %v8398 = vld [vmem:[#allocation3 + $0x1ca] sm:$0xff]
  %v8399 = vld [vmem:[#allocation3 + $0x1d2] sm:$0xff]
  %v8400 = vld [vmem:[#allocation3 + $0x1e2] sm:$0xff]
  %v8401 = vld [vmem:[#allocation3 + $0x1ea] sm:$0xff]
  %v8402 = vld [vmem:[#allocation3 + $0x1fa] sm:$0xff]
  %v8403 = vld [vmem:[#allocation3 + $0x202] sm:$0xff]
  %v8404 = vld [vmem:[#allocation3 + $0x212] sm:$0xff]
  %v8405 = vld [vmem:[#allocation3 + $0x21a] sm:$0xff]
  %v8406 = vld [vmem:[#allocation3 + $0x22a] sm:$0xff]
  %v8407 = vld [vmem:[#allocation3 + $0x232] sm:$0xff]
  %v8408 = vld [vmem:[#allocation3 + $0x242] sm:$0xff]
  %v8409 = vld [vmem:[#allocation3 + $0x24a] sm:$0xff]
  %v8410 = vld [vmem:[#allocation3 + $0x25a] sm:$0xff]
  %v8411 = vld [vmem:[#allocation3 + $0x262] sm:$0xff]
  %v8412 = vld [vmem:[#allocation3 + $0x272] sm:$0xff]
  %v8413 = vld [vmem:[#allocation3 + $0x27a] sm:$0xff]
  %v8414 = vld [vmem:[#allocation3 + $0x28a] sm:$0xff]
  %v8415 = vld [vmem:[#allocation3 + $0x292] sm:$0xff]
  %v8416 = vld [vmem:[#allocation3 + $0x2a2] sm:$0xff]
  %v8417 = vld [vmem:[#allocation3 + $0x2aa] sm:$0xff]
  %v8418 = vld [vmem:[#allocation3 + $0x2ba] sm:$0xff]
  %v8419 = vld [vmem:[#allocation3 + $0x2c2] sm:$0xff]
  %v8420 = vld [vmem:[#allocation3 + $0x2d2] sm:$0xff]
  %v8421 = vld [vmem:[#allocation3 + $0x2da] sm:$0xff]
  %v8422 = vld [vmem:[#allocation3 + $0x2ea] sm:$0xff]
  %v8423 = vld [vmem:[#allocation3 + $0x2f2] sm:$0xff]
  %v8424 = vld [vmem:[#allocation3 + $0x302] sm:$0xff]
  %v8425 = vld [vmem:[#allocation3 + $0x30a] sm:$0xff]
  %v8426 = vld [vmem:[#allocation3 + $0x31a] sm:$0xff]
  %v8427 = vld [vmem:[#allocation3 + $0x322] sm:$0xff]
  %v8428 = vld [vmem:[%s8171] sm:$0xff]
  %v8429 = vld [vmem:[%s8171 + $0x8] sm:$0xff]
  %v8430 = vld [vmem:[%s8171 + $0x18] sm:$0xff]
  %v8431 = vld [vmem:[%s8171 + $0x20] sm:$0xff]
  %v8432 = vld [vmem:[%s8171 + $0x30] sm:$0xff]
  %v8433 = vld [vmem:[%s8171 + $0x38] sm:$0xff]
  %v8434 = vld [vmem:[%s8171 + $0x48] sm:$0xff]
  %v8435 = vld [vmem:[%s8171 + $0x50] sm:$0xff]
  %v8436 = vld [vmem:[%s8171 + $0x60] sm:$0xff]
  %v8437 = vld [vmem:[%s8171 + $0x68] sm:$0xff]
  %v8438 = vld [vmem:[%s8171 + $0x78] sm:$0xff]
  %v8439 = vld [vmem:[%s8171 + $0x80] sm:$0xff]
  %v8440 = vld [vmem:[%s8171 + $0x90] sm:$0xff]
  %v8441 = vld [vmem:[%s8171 + $0x98] sm:$0xff]
  %v8442 = vld [vmem:[%s8171 + $0xa8] sm:$0xff]
  %v8443 = vld [vmem:[%s8171 + $0xb0] sm:$0xff]
  %v8444 = vld [vmem:[%s8171 + $0xc0] sm:$0xff]
  %v8445 = vld [vmem:[%s8171 + $0xc8] sm:$0xff]
  %v8446 = vld [vmem:[%s8171 + $0xd8] sm:$0xff]
  %v8447 = vld [vmem:[%s8171 + $0xe0] sm:$0xff]
  %v8448 = vld [vmem:[%s8171 + $0xf0] sm:$0xff]
  %v8449 = vld [vmem:[%s8171 + $0xf8] sm:$0xff]
  %v8450 = vld [vmem:[%s8171 + $0x108] sm:$0xff]
  %v8451 = vld [vmem:[%s8171 + $0x110] sm:$0xff]
  %v8452 = vld [vmem:[%s8171 + $0x120] sm:$0xff]
  %v8453 = vld [vmem:[%s8171 + $0x128] sm:$0xff]
  %v8454 = vld [vmem:[%s8171 + $0x138] sm:$0xff]
  %v8455 = vld [vmem:[%s8171 + $0x140] sm:$0xff]
  %v8456 = vld [vmem:[%s8171 + $0x150] sm:$0xff]
  %v8457 = vld [vmem:[%s8171 + $0x158] sm:$0xff]
  %v8458 = vld [vmem:[%s8171 + $0x168] sm:$0xff]
  %v8459 = vld [vmem:[%s8171 + $0x170] sm:$0xff]
  %v8460 = vld [vmem:[%s8171 + $0x1b0] sm:$0xff]
  %v8461 = vld [vmem:[%s8171 + $0x1b8] sm:$0xff]
  %v8462 = vld [vmem:[%s8171 + $0x1c8] sm:$0xff]
  %v8463 = vld [vmem:[%s8171 + $0x1d0] sm:$0xff]
  %v8464 = vld [vmem:[%s8171 + $0x1e0] sm:$0xff]
  %v8465 = vld [vmem:[%s8171 + $0x1e8] sm:$0xff]
  %v8466 = vld [vmem:[%s8171 + $0x1f8] sm:$0xff]
  %v8467 = vld [vmem:[%s8171 + $0x200] sm:$0xff]
  %v8468 = vld [vmem:[%s8171 + $0x210] sm:$0xff]
  %v8469 = vld [vmem:[%s8171 + $0x218] sm:$0xff]
  %v8470 = vld [vmem:[%s8171 + $0x228] sm:$0xff]
  %v8471 = vld [vmem:[%s8171 + $0x230] sm:$0xff]
  %v8472 = vld [vmem:[%s8171 + $0x240] sm:$0xff]
  %v8473 = vld [vmem:[%s8171 + $0x248] sm:$0xff]
  %v8474 = vld [vmem:[%s8171 + $0x258] sm:$0xff]
  %v8475 = vld [vmem:[%s8171 + $0x260] sm:$0xff]
  %v8476 = vld [vmem:[%s8171 + $0x270] sm:$0xff]
  %v8477 = vld [vmem:[%s8171 + $0x278] sm:$0xff]
  %v8478 = vld [vmem:[%s8171 + $0x288] sm:$0xff]
  %v8479 = vld [vmem:[%s8171 + $0x290] sm:$0xff]
  %v8480 = vld [vmem:[%s8171 + $0x2a0] sm:$0xff]
  %v8481 = vld [vmem:[%s8171 + $0x2a8] sm:$0xff]
  %v8482 = vld [vmem:[%s8171 + $0x2b8] sm:$0xff]
  %v8483 = vld [vmem:[%s8171 + $0x2c0] sm:$0xff]
  %v8484 = vld [vmem:[%s8171 + $0x2d0] sm:$0xff]
  %v8485 = vld [vmem:[%s8171 + $0x2d8] sm:$0xff]
  %v8486 = vld [vmem:[%s8171 + $0x2e8] sm:$0xff]
  %v8487 = vld [vmem:[%s8171 + $0x2f0] sm:$0xff]
  %v8488 = vld [vmem:[%s8171 + $0x300] sm:$0xff]
  %v8489 = vld [vmem:[%s8171 + $0x308] sm:$0xff]
  %v8490 = vld [vmem:[%s8171 + $0x318] sm:$0xff]
  %v8491 = vld [vmem:[%s8171 + $0x320] sm:$0xff]
  %v8492 = vld [vmem:[%s8171 + $0x1] sm:$0xff]
  %v8493 = vld [vmem:[%s8171 + $0x9] sm:$0xff]
  %v8494 = vld [vmem:[%s8171 + $0x19] sm:$0xff]
  %v8495 = vld [vmem:[%s8171 + $0x21] sm:$0xff]
  %v8496 = vld [vmem:[%s8171 + $0x31] sm:$0xff]
  %v8497 = vld [vmem:[%s8171 + $0x39] sm:$0xff]
  %v8498 = vld [vmem:[%s8171 + $0x49] sm:$0xff]
  %v8499 = vld [vmem:[%s8171 + $0x51] sm:$0xff]
  %v8500 = vld [vmem:[%s8171 + $0x61] sm:$0xff]
  %v8501 = vld [vmem:[%s8171 + $0x69] sm:$0xff]
  %v8502 = vld [vmem:[%s8171 + $0x79] sm:$0xff]
  %v8503 = vld [vmem:[%s8171 + $0x81] sm:$0xff]
  %v8504 = vld [vmem:[%s8171 + $0x91] sm:$0xff]
  %v8505 = vld [vmem:[%s8171 + $0x99] sm:$0xff]
  %v8506 = vld [vmem:[%s8171 + $0xa9] sm:$0xff]
  %v8507 = vld [vmem:[%s8171 + $0xb1] sm:$0xff]
  %v8508 = vld [vmem:[%s8171 + $0xc1] sm:$0xff]
  %v8509 = vld [vmem:[%s8171 + $0xc9] sm:$0xff]
  %v8510 = vld [vmem:[%s8171 + $0xd9] sm:$0xff]
  %v8511 = vld [vmem:[%s8171 + $0xe1] sm:$0xff]
  %v8512 = vld [vmem:[%s8171 + $0xf1] sm:$0xff]
  %v8513 = vld [vmem:[%s8171 + $0xf9] sm:$0xff]
  %v8514 = vld [vmem:[%s8171 + $0x109] sm:$0xff]
  %v8515 = vld [vmem:[%s8171 + $0x111] sm:$0xff]
  %v8516 = vld [vmem:[%s8171 + $0x121] sm:$0xff]
  %v8517 = vld [vmem:[%s8171 + $0x129] sm:$0xff]
  %v8518 = vld [vmem:[%s8171 + $0x139] sm:$0xff]
  %v8519 = vld [vmem:[%s8171 + $0x141] sm:$0xff]
  %v8520 = vld [vmem:[%s8171 + $0x151] sm:$0xff]
  %v8521 = vld [vmem:[%s8171 + $0x159] sm:$0xff]
  %v8522 = vld [vmem:[%s8171 + $0x169] sm:$0xff]
  %v8523 = vld [vmem:[%s8171 + $0x171] sm:$0xff]
  %v8524 = vld [vmem:[%s8171 + $0x1b1] sm:$0xff]
  %v8525 = vld [vmem:[%s8171 + $0x1b9] sm:$0xff]
  %v8526 = vld [vmem:[%s8171 + $0x1c9] sm:$0xff]
  %v8527 = vld [vmem:[%s8171 + $0x1d1] sm:$0xff]
  %v8528 = vld [vmem:[%s8171 + $0x1e1] sm:$0xff]
  %v8529 = vld [vmem:[%s8171 + $0x1e9] sm:$0xff]
  %v8530 = vld [vmem:[%s8171 + $0x1f9] sm:$0xff]
  %v8531 = vld [vmem:[%s8171 + $0x201] sm:$0xff]
  %v8532 = vld [vmem:[%s8171 + $0x211] sm:$0xff]
  %v8533 = vld [vmem:[%s8171 + $0x219] sm:$0xff]
  %v8534 = vld [vmem:[%s8171 + $0x229] sm:$0xff]
  %v8535 = vld [vmem:[%s8171 + $0x231] sm:$0xff]
  %v8536 = vld [vmem:[%s8171 + $0x241] sm:$0xff]
  %v8537 = vld [vmem:[%s8171 + $0x249] sm:$0xff]
  %v8538 = vld [vmem:[%s8171 + $0x259] sm:$0xff]
  %v8539 = vld [vmem:[%s8171 + $0x261] sm:$0xff]
  %v8540 = vld [vmem:[%s8171 + $0x271] sm:$0xff]
  %v8541 = vld [vmem:[%s8171 + $0x279] sm:$0xff]
  %v8542 = vld [vmem:[%s8171 + $0x289] sm:$0xff]
  %v8543 = vld [vmem:[%s8171 + $0x291] sm:$0xff]
  %v8544 = vld [vmem:[%s8171 + $0x2a1] sm:$0xff]
  %v8545 = vld [vmem:[%s8171 + $0x2a9] sm:$0xff]
  %v8546 = vld [vmem:[%s8171 + $0x2b9] sm:$0xff]
  %v8547 = vld [vmem:[%s8171 + $0x2c1] sm:$0xff]
  %v8548 = vld [vmem:[%s8171 + $0x2d1] sm:$0xff]
  %v8549 = vld [vmem:[%s8171 + $0x2d9] sm:$0xff]
  %v8550 = vld [vmem:[%s8171 + $0x2e9] sm:$0xff]
  %v8551 = vld [vmem:[%s8171 + $0x2f1] sm:$0xff]
  %v8552 = vld [vmem:[%s8171 + $0x301] sm:$0xff]
  %v8553 = vld [vmem:[%s8171 + $0x309] sm:$0xff]
  %v8554 = vld [vmem:[%s8171 + $0x319] sm:$0xff]
  %v8555 = vld [vmem:[%s8171 + $0x321] sm:$0xff]
  %v8556 = vld [vmem:[%s8171 + $0x2] sm:$0xff]
  %v8557 = vld [vmem:[%s8171 + $0xa] sm:$0xff]
  %v8558 = vld [vmem:[%s8171 + $0x1a] sm:$0xff]
  %v8559 = vld [vmem:[%s8171 + $0x22] sm:$0xff]
  %v8560 = vld [vmem:[%s8171 + $0x32] sm:$0xff]
  %v8561 = vld [vmem:[%s8171 + $0x3a] sm:$0xff]
  %v8562 = vld [vmem:[%s8171 + $0x4a] sm:$0xff]
  %v8563 = vld [vmem:[%s8171 + $0x52] sm:$0xff]
  %v8564 = vld [vmem:[%s8171 + $0x62] sm:$0xff]
  %v8565 = vld [vmem:[%s8171 + $0x6a] sm:$0xff]
  %v8566 = vld [vmem:[%s8171 + $0x7a] sm:$0xff]
  %v8567 = vld [vmem:[%s8171 + $0x82] sm:$0xff]
  %v8568 = vld [vmem:[%s8171 + $0x92] sm:$0xff]
  %v8569 = vld [vmem:[%s8171 + $0x9a] sm:$0xff]
  %v8570 = vld [vmem:[%s8171 + $0xaa] sm:$0xff]
  %v8571 = vld [vmem:[%s8171 + $0xb2] sm:$0xff]
  %v8572 = vld [vmem:[%s8171 + $0xc2] sm:$0xff]
  %v8573 = vld [vmem:[%s8171 + $0xca] sm:$0xff]
  %v8574 = vld [vmem:[%s8171 + $0xda] sm:$0xff]
  %v8575 = vld [vmem:[%s8171 + $0xe2] sm:$0xff]
  %v8576 = vld [vmem:[%s8171 + $0xf2] sm:$0xff]
  %v8577 = vld [vmem:[%s8171 + $0xfa] sm:$0xff]
  %v8578 = vld [vmem:[%s8171 + $0x10a] sm:$0xff]
  %v8579 = vld [vmem:[%s8171 + $0x112] sm:$0xff]
  %v8580 = vld [vmem:[%s8171 + $0x122] sm:$0xff]
  %v8581 = vld [vmem:[%s8171 + $0x12a] sm:$0xff]
  %v8582 = vld [vmem:[%s8171 + $0x13a] sm:$0xff]
  %v8583 = vld [vmem:[%s8171 + $0x142] sm:$0xff]
  %v8584 = vld [vmem:[%s8171 + $0x152] sm:$0xff]
  %v8585 = vld [vmem:[%s8171 + $0x15a] sm:$0xff]
  %v8586 = vld [vmem:[%s8171 + $0x16a] sm:$0xff]
  %v8587 = vld [vmem:[%s8171 + $0x172] sm:$0xff]
  %v8588 = vld [vmem:[%s8171 + $0x1b2] sm:$0xff]
  %v8589 = vld [vmem:[%s8171 + $0x1ba] sm:$0xff]
  %v8590 = vld [vmem:[%s8171 + $0x1ca] sm:$0xff]
  %v8591 = vld [vmem:[%s8171 + $0x1d2] sm:$0xff]
  %v8592 = vld [vmem:[%s8171 + $0x1e2] sm:$0xff]
  %v8593 = vld [vmem:[%s8171 + $0x1ea] sm:$0xff]
  %v8594 = vld [vmem:[%s8171 + $0x1fa] sm:$0xff]
  %v8595 = vld [vmem:[%s8171 + $0x202] sm:$0xff]
  %v8596 = vld [vmem:[%s8171 + $0x212] sm:$0xff]
  %v8597 = vld [vmem:[%s8171 + $0x21a] sm:$0xff]
  %v8598 = vld [vmem:[%s8171 + $0x22a] sm:$0xff]
  %v8599 = vld [vmem:[%s8171 + $0x232] sm:$0xff]
  %v8600 = vld [vmem:[%s8171 + $0x242] sm:$0xff]
  %v8601 = vld [vmem:[%s8171 + $0x24a] sm:$0xff]
  %v8602 = vld [vmem:[%s8171 + $0x25a] sm:$0xff]
  %v8603 = vld [vmem:[%s8171 + $0x262] sm:$0xff]
  %v8604 = vld [vmem:[%s8171 + $0x272] sm:$0xff]
  %v8605 = vld [vmem:[%s8171 + $0x27a] sm:$0xff]
  %v8606 = vld [vmem:[%s8171 + $0x28a] sm:$0xff]
  %v8607 = vld [vmem:[%s8171 + $0x292] sm:$0xff]
  %v8608 = vld [vmem:[%s8171 + $0x2a2] sm:$0xff]
  %v8609 = vld [vmem:[%s8171 + $0x2aa] sm:$0xff]
  %v8610 = vld [vmem:[%s8171 + $0x2ba] sm:$0xff]
  %v8611 = vld [vmem:[%s8171 + $0x2c2] sm:$0xff]
  %v8612 = vld [vmem:[%s8171 + $0x2d2] sm:$0xff]
  %v8613 = vld [vmem:[%s8171 + $0x2da] sm:$0xff]
  %v8614 = vld [vmem:[%s8171 + $0x2ea] sm:$0xff]
  %v8615 = vld [vmem:[%s8171 + $0x2f2] sm:$0xff]
  %v8616 = vld [vmem:[%s8171 + $0x302] sm:$0xff]
  %v8617 = vld [vmem:[%s8171 + $0x30a] sm:$0xff]
  %v8618 = vld [vmem:[%s8171 + $0x31a] sm:$0xff]
  %v8619 = vld [vmem:[%s8171 + $0x322] sm:$0xff]
  %s8620 = scalar_lea.vmem [#allocation3], 48
  %v8621 = vld [vmem:[%s8620] sm:$0xff]
  %v8622 = vld [vmem:[%s8620 + $0x8] sm:$0xff]
  %v8623 = vld [vmem:[%s8620 + $0x18] sm:$0xff]
  %v8624 = vld [vmem:[%s8620 + $0x20] sm:$0xff]
  %v8625 = vld [vmem:[%s8620 + $0x30] sm:$0xff]
  %v8626 = vld [vmem:[%s8620 + $0x38] sm:$0xff]
  %v8627 = vld [vmem:[%s8620 + $0x48] sm:$0xff]
  %v8628 = vld [vmem:[%s8620 + $0x50] sm:$0xff]
  %v8629 = vld [vmem:[%s8620 + $0x60] sm:$0xff]
  %v8630 = vld [vmem:[%s8620 + $0x68] sm:$0xff]
  %v8631 = vld [vmem:[%s8620 + $0x78] sm:$0xff]
  %v8632 = vld [vmem:[%s8620 + $0x80] sm:$0xff]
  %v8633 = vld [vmem:[%s8620 + $0x90] sm:$0xff]
  %v8634 = vld [vmem:[%s8620 + $0x98] sm:$0xff]
  %v8635 = vld [vmem:[%s8620 + $0xa8] sm:$0xff]
  %v8636 = vld [vmem:[%s8620 + $0xb0] sm:$0xff]
  %v8637 = vld [vmem:[%s8620 + $0xc0] sm:$0xff]
  %v8638 = vld [vmem:[%s8620 + $0xc8] sm:$0xff]
  %v8639 = vld [vmem:[%s8620 + $0xd8] sm:$0xff]
  %v8640 = vld [vmem:[%s8620 + $0xe0] sm:$0xff]
  %v8641 = vld [vmem:[%s8620 + $0xf0] sm:$0xff]
  %v8642 = vld [vmem:[%s8620 + $0xf8] sm:$0xff]
  %v8643 = vld [vmem:[%s8620 + $0x108] sm:$0xff]
  %v8644 = vld [vmem:[%s8620 + $0x110] sm:$0xff]
  %v8645 = vld [vmem:[%s8620 + $0x120] sm:$0xff]
  %v8646 = vld [vmem:[%s8620 + $0x128] sm:$0xff]
  %v8647 = vld [vmem:[%s8620 + $0x138] sm:$0xff]
  %v8648 = vld [vmem:[%s8620 + $0x140] sm:$0xff]
  %v8649 = vld [vmem:[%s8620 + $0x150] sm:$0xff]
  %v8650 = vld [vmem:[%s8620 + $0x158] sm:$0xff]
  %v8651 = vld [vmem:[%s8620 + $0x168] sm:$0xff]
  %v8652 = vld [vmem:[%s8620 + $0x170] sm:$0xff]
  %v8653 = vld [vmem:[%s8620 + $0x1b0] sm:$0xff]
  %v8654 = vld [vmem:[%s8620 + $0x1b8] sm:$0xff]
  %v8655 = vld [vmem:[%s8620 + $0x1c8] sm:$0xff]
  %v8656 = vld [vmem:[%s8620 + $0x1d0] sm:$0xff]
  %v8657 = vld [vmem:[%s8620 + $0x1e0] sm:$0xff]
  %v8658 = vld [vmem:[%s8620 + $0x1e8] sm:$0xff]
  %v8659 = vld [vmem:[%s8620 + $0x1f8] sm:$0xff]
  %v8660 = vld [vmem:[%s8620 + $0x200] sm:$0xff]
  %v8661 = vld [vmem:[%s8620 + $0x210] sm:$0xff]
  %v8662 = vld [vmem:[%s8620 + $0x218] sm:$0xff]
  %v8663 = vld [vmem:[%s8620 + $0x228] sm:$0xff]
  %v8664 = vld [vmem:[%s8620 + $0x230] sm:$0xff]
  %v8665 = vld [vmem:[%s8620 + $0x240] sm:$0xff]
  %v8666 = vld [vmem:[%s8620 + $0x248] sm:$0xff]
  %v8667 = vld [vmem:[%s8620 + $0x258] sm:$0xff]
  %v8668 = vld [vmem:[%s8620 + $0x260] sm:$0xff]
  %v8669 = vld [vmem:[%s8620 + $0x270] sm:$0xff]
  %v8670 = vld [vmem:[%s8620 + $0x278] sm:$0xff]
  %v8671 = vld [vmem:[%s8620 + $0x288] sm:$0xff]
  %v8672 = vld [vmem:[%s8620 + $0x290] sm:$0xff]
  %v8673 = vld [vmem:[%s8620 + $0x2a0] sm:$0xff]
  %v8674 = vld [vmem:[%s8620 + $0x2a8] sm:$0xff]
  %v8675 = vld [vmem:[%s8620 + $0x2b8] sm:$0xff]
  %v8676 = vld [vmem:[%s8620 + $0x2c0] sm:$0xff]
  %v8677 = vld [vmem:[%s8620 + $0x2d0] sm:$0xff]
  %v8678 = vld [vmem:[%s8620 + $0x2d8] sm:$0xff]
  %v8679 = vld [vmem:[%s8620 + $0x2e8] sm:$0xff]
  %v8680 = vld [vmem:[%s8620 + $0x2f0] sm:$0xff]
  %v8681 = vld [vmem:[%s8620 + $0x300] sm:$0xff]
  %v8682 = vld [vmem:[%s8620 + $0x308] sm:$0xff]
  %v8683 = vld [vmem:[%s8620 + $0x318] sm:$0xff]
  %v8684 = vld [vmem:[%s8620 + $0x320] sm:$0xff]
  %v8685 = vld [vmem:[%s8620 + $0x1] sm:$0xff]
  %v8686 = vld [vmem:[%s8620 + $0x9] sm:$0xff]
  %v8687 = vld [vmem:[%s8620 + $0x19] sm:$0xff]
  %v8688 = vld [vmem:[%s8620 + $0x21] sm:$0xff]
  %v8689 = vld [vmem:[%s8620 + $0x31] sm:$0xff]
  %v8690 = vld [vmem:[%s8620 + $0x39] sm:$0xff]
  %v8691 = vld [vmem:[%s8620 + $0x49] sm:$0xff]
  %v8692 = vld [vmem:[%s8620 + $0x51] sm:$0xff]
  %v8693 = vld [vmem:[%s8620 + $0x61] sm:$0xff]
  %v8694 = vld [vmem:[%s8620 + $0x69] sm:$0xff]
  %v8695 = vld [vmem:[%s8620 + $0x79] sm:$0xff]
  %v8696 = vld [vmem:[%s8620 + $0x81] sm:$0xff]
  %v8697 = vld [vmem:[%s8620 + $0x91] sm:$0xff]
  %v8698 = vld [vmem:[%s8620 + $0x99] sm:$0xff]
  %v8699 = vld [vmem:[%s8620 + $0xa9] sm:$0xff]
  %v8700 = vld [vmem:[%s8620 + $0xb1] sm:$0xff]
  %v8701 = vld [vmem:[%s8620 + $0xc1] sm:$0xff]
  %v8702 = vld [vmem:[%s8620 + $0xc9] sm:$0xff]
  %v8703 = vld [vmem:[%s8620 + $0xd9] sm:$0xff]
  %v8704 = vld [vmem:[%s8620 + $0xe1] sm:$0xff]
  %v8705 = vld [vmem:[%s8620 + $0xf1] sm:$0xff]
  %v8706 = vld [vmem:[%s8620 + $0xf9] sm:$0xff]
  %v8707 = vld [vmem:[%s8620 + $0x109] sm:$0xff]
  %v8708 = vld [vmem:[%s8620 + $0x111] sm:$0xff]
  %v8709 = vld [vmem:[%s8620 + $0x121] sm:$0xff]
  %v8710 = vld [vmem:[%s8620 + $0x129] sm:$0xff]
  %v8711 = vld [vmem:[%s8620 + $0x139] sm:$0xff]
  %v8712 = vld [vmem:[%s8620 + $0x141] sm:$0xff]
  %v8713 = vld [vmem:[%s8620 + $0x151] sm:$0xff]
  %v8714 = vld [vmem:[%s8620 + $0x159] sm:$0xff]
  %v8715 = vld [vmem:[%s8620 + $0x169] sm:$0xff]
  %v8716 = vld [vmem:[%s8620 + $0x171] sm:$0xff]
  %v8717 = vld [vmem:[%s8620 + $0x1b1] sm:$0xff]
  %v8718 = vld [vmem:[%s8620 + $0x1b9] sm:$0xff]
  %v8719 = vld [vmem:[%s8620 + $0x1c9] sm:$0xff]
  %v8720 = vld [vmem:[%s8620 + $0x1d1] sm:$0xff]
  %v8721 = vld [vmem:[%s8620 + $0x1e1] sm:$0xff]
  %v8722 = vld [vmem:[%s8620 + $0x1e9] sm:$0xff]
  %v8723 = vld [vmem:[%s8620 + $0x1f9] sm:$0xff]
  %v8724 = vld [vmem:[%s8620 + $0x201] sm:$0xff]
  %v8725 = vld [vmem:[%s8620 + $0x211] sm:$0xff]
  %v8726 = vld [vmem:[%s8620 + $0x219] sm:$0xff]
  %v8727 = vld [vmem:[%s8620 + $0x229] sm:$0xff]
  %v8728 = vld [vmem:[%s8620 + $0x231] sm:$0xff]
  %v8729 = vld [vmem:[%s8620 + $0x241] sm:$0xff]
  %v8730 = vld [vmem:[%s8620 + $0x249] sm:$0xff]
  %v8731 = vld [vmem:[%s8620 + $0x259] sm:$0xff]
  %v8732 = vld [vmem:[%s8620 + $0x261] sm:$0xff]
  %v8733 = vld [vmem:[%s8620 + $0x271] sm:$0xff]
  %v8734 = vld [vmem:[%s8620 + $0x279] sm:$0xff]
  %v8735 = vld [vmem:[%s8620 + $0x289] sm:$0xff]
  %v8736 = vld [vmem:[%s8620 + $0x291] sm:$0xff]
  %v8737 = vld [vmem:[%s8620 + $0x2a1] sm:$0xff]
  %v8738 = vld [vmem:[%s8620 + $0x2a9] sm:$0xff]
  %v8739 = vld [vmem:[%s8620 + $0x2b9] sm:$0xff]
  %v8740 = vld [vmem:[%s8620 + $0x2c1] sm:$0xff]
  %v8741 = vld [vmem:[%s8620 + $0x2d1] sm:$0xff]
  %v8742 = vld [vmem:[%s8620 + $0x2d9] sm:$0xff]
  %v8743 = vld [vmem:[%s8620 + $0x2e9] sm:$0xff]
  %v8744 = vld [vmem:[%s8620 + $0x2f1] sm:$0xff]
  %v8745 = vld [vmem:[%s8620 + $0x301] sm:$0xff]
  %v8746 = vld [vmem:[%s8620 + $0x309] sm:$0xff]
  %v8747 = vld [vmem:[%s8620 + $0x319] sm:$0xff]
  %v8748 = vld [vmem:[%s8620 + $0x321] sm:$0xff]
  %v8749 = vld [vmem:[%s8620 + $0x2] sm:$0xff]
  %v8750 = vld [vmem:[%s8620 + $0xa] sm:$0xff]
  %v8751 = vld [vmem:[%s8620 + $0x1a] sm:$0xff]
  %v8752 = vld [vmem:[%s8620 + $0x22] sm:$0xff]
  %v8753 = vld [vmem:[%s8620 + $0x32] sm:$0xff]
  %v8754 = vld [vmem:[%s8620 + $0x3a] sm:$0xff]
  %v8755 = vld [vmem:[%s8620 + $0x4a] sm:$0xff]
  %v8756 = vld [vmem:[%s8620 + $0x52] sm:$0xff]
  %v8757 = vld [vmem:[%s8620 + $0x62] sm:$0xff]
  %v8758 = vld [vmem:[%s8620 + $0x6a] sm:$0xff]
  %v8759 = vld [vmem:[%s8620 + $0x7a] sm:$0xff]
  %v8760 = vld [vmem:[%s8620 + $0x82] sm:$0xff]
  %v8761 = vld [vmem:[%s8620 + $0x92] sm:$0xff]
  %v8762 = vld [vmem:[%s8620 + $0x9a] sm:$0xff]
  %v8763 = vld [vmem:[%s8620 + $0xaa] sm:$0xff]
  %v8764 = vld [vmem:[%s8620 + $0xb2] sm:$0xff]
  %v8765 = vld [vmem:[%s8620 + $0xc2] sm:$0xff]
  %v8766 = vld [vmem:[%s8620 + $0xca] sm:$0xff]
  %v8767 = vld [vmem:[%s8620 + $0xda] sm:$0xff]
  %v8768 = vld [vmem:[%s8620 + $0xe2] sm:$0xff]
  %v8769 = vld [vmem:[%s8620 + $0xf2] sm:$0xff]
  %v8770 = vld [vmem:[%s8620 + $0xfa] sm:$0xff]
  %v8771 = vld [vmem:[%s8620 + $0x10a] sm:$0xff]
  %v8772 = vld [vmem:[%s8620 + $0x112] sm:$0xff]
  %v8773 = vld [vmem:[%s8620 + $0x122] sm:$0xff]
  %v8774 = vld [vmem:[%s8620 + $0x12a] sm:$0xff]
  %v8775 = vld [vmem:[%s8620 + $0x13a] sm:$0xff]
  %v8776 = vld [vmem:[%s8620 + $0x142] sm:$0xff]
  %v8777 = vld [vmem:[%s8620 + $0x152] sm:$0xff]
  %v8778 = vld [vmem:[%s8620 + $0x15a] sm:$0xff]
  %v8779 = vld [vmem:[%s8620 + $0x16a] sm:$0xff]
  %v8780 = vld [vmem:[%s8620 + $0x172] sm:$0xff]
  %v8781 = vld [vmem:[%s8620 + $0x1b2] sm:$0xff]
  %v8782 = vld [vmem:[%s8620 + $0x1ba] sm:$0xff]
  %v8783 = vld [vmem:[%s8620 + $0x1ca] sm:$0xff]
  %v8784 = vld [vmem:[%s8620 + $0x1d2] sm:$0xff]
  %v8785 = vld [vmem:[%s8620 + $0x1e2] sm:$0xff]
  %v8786 = vld [vmem:[%s8620 + $0x1ea] sm:$0xff]
  %v8787 = vld [vmem:[%s8620 + $0x1fa] sm:$0xff]
  %v8788 = vld [vmem:[%s8620 + $0x202] sm:$0xff]
  %v8789 = vld [vmem:[%s8620 + $0x212] sm:$0xff]
  %v8790 = vld [vmem:[%s8620 + $0x21a] sm:$0xff]
  %v8791 = vld [vmem:[%s8620 + $0x22a] sm:$0xff]
  %v8792 = vld [vmem:[%s8620 + $0x232] sm:$0xff]
  %v8793 = vld [vmem:[%s8620 + $0x242] sm:$0xff]
  %v8794 = vld [vmem:[%s8620 + $0x24a] sm:$0xff]
  %v8795 = vld [vmem:[%s8620 + $0x25a] sm:$0xff]
  %v8796 = vld [vmem:[%s8620 + $0x262] sm:$0xff]
  %v8797 = vld [vmem:[%s8620 + $0x272] sm:$0xff]
  %v8798 = vld [vmem:[%s8620 + $0x27a] sm:$0xff]
  %v8799 = vld [vmem:[%s8620 + $0x28a] sm:$0xff]
  %v8800 = vld [vmem:[%s8620 + $0x292] sm:$0xff]
  %v8801 = vld [vmem:[%s8620 + $0x2a2] sm:$0xff]
  %v8802 = vld [vmem:[%s8620 + $0x2aa] sm:$0xff]
  %v8803 = vld [vmem:[%s8620 + $0x2ba] sm:$0xff]
  %v8804 = vld [vmem:[%s8620 + $0x2c2] sm:$0xff]
  %v8805 = vld [vmem:[%s8620 + $0x2d2] sm:$0xff]
  %v8806 = vld [vmem:[%s8620 + $0x2da] sm:$0xff]
  %v8807 = vld [vmem:[%s8620 + $0x2ea] sm:$0xff]
  %v8808 = vld [vmem:[%s8620 + $0x2f2] sm:$0xff]
  %v8809 = vld [vmem:[%s8620 + $0x302] sm:$0xff]
  %v8810 = vld [vmem:[%s8620 + $0x30a] sm:$0xff]
  %v8811 = vld [vmem:[%s8620 + $0x31a] sm:$0xff]
  %v8812 = vld [vmem:[%s8620 + $0x322] sm:$0xff]
  %8877 = vrot.lane.b32.xlu0 %v8300, 8
  %v8878 = vpop.permute.xlu0 %8877
  %8879 = vrot.lane.b32.xlu0 %v8301, 8
  %v8880 = vpop.permute.xlu0 %8879
  %8881 = vrot.lane.b32.xlu0 %v8302, 8
  %v8882 = vpop.permute.xlu0 %8881
  %8883 = vrot.lane.b32.xlu0 %v8303, 8
  %v8884 = vpop.permute.xlu0 %8883
  %8885 = vrot.lane.b32.xlu0 %v8304, 8
  %v8886 = vpop.permute.xlu0 %8885
  %8887 = vrot.lane.b32.xlu0 %v8305, 8
  %v8888 = vpop.permute.xlu0 %8887
  %8889 = vrot.lane.b32.xlu0 %v8306, 8
  %v8890 = vpop.permute.xlu0 %8889
  %8891 = vrot.lane.b32.xlu0 %v8307, 8
  %v8892 = vpop.permute.xlu0 %8891
  %8893 = vrot.lane.b32.xlu0 %v8308, 8
  %v8894 = vpop.permute.xlu0 %8893
  %8895 = vrot.lane.b32.xlu0 %v8309, 8
  %v8896 = vpop.permute.xlu0 %8895
  %8897 = vrot.lane.b32.xlu0 %v8310, 8
  %v8898 = vpop.permute.xlu0 %8897
  %8899 = vrot.lane.b32.xlu0 %v8311, 8
  %v8900 = vpop.permute.xlu0 %8899
  %8901 = vrot.lane.b32.xlu0 %v8312, 8
  %v8902 = vpop.permute.xlu0 %8901
  %8903 = vrot.lane.b32.xlu0 %v8313, 8
  %v8904 = vpop.permute.xlu0 %8903
  %8905 = vrot.lane.b32.xlu0 %v8314, 8
  %v8906 = vpop.permute.xlu0 %8905
  %8907 = vrot.lane.b32.xlu0 %v8315, 8
  %v8908 = vpop.permute.xlu0 %8907
  %8909 = vrot.lane.b32.xlu0 %v8316, 8
  %v8910 = vpop.permute.xlu0 %8909
  %8911 = vrot.lane.b32.xlu0 %v8317, 8
  %v8912 = vpop.permute.xlu0 %8911
  %8913 = vrot.lane.b32.xlu0 %v8318, 8
  %v8914 = vpop.permute.xlu0 %8913
  %8915 = vrot.lane.b32.xlu0 %v8319, 8
  %v8916 = vpop.permute.xlu0 %8915
  %8917 = vrot.lane.b32.xlu0 %v8320, 8
  %v8918 = vpop.permute.xlu0 %8917
  %8919 = vrot.lane.b32.xlu0 %v8321, 8
  %v8920 = vpop.permute.xlu0 %8919
  %8921 = vrot.lane.b32.xlu0 %v8322, 8
  %v8922 = vpop.permute.xlu0 %8921
  %8923 = vrot.lane.b32.xlu0 %v8323, 8
  %v8924 = vpop.permute.xlu0 %8923
  %8925 = vrot.lane.b32.xlu0 %v8324, 8
  %v8926 = vpop.permute.xlu0 %8925
  %8927 = vrot.lane.b32.xlu0 %v8325, 8
  %v8928 = vpop.permute.xlu0 %8927
  %8929 = vrot.lane.b32.xlu0 %v8326, 8
  %v8930 = vpop.permute.xlu0 %8929
  %8931 = vrot.lane.b32.xlu0 %v8327, 8
  %v8932 = vpop.permute.xlu0 %8931
  %8933 = vrot.lane.b32.xlu0 %v8328, 8
  %v8934 = vpop.permute.xlu0 %8933
  %8935 = vrot.lane.b32.xlu0 %v8329, 8
  %v8936 = vpop.permute.xlu0 %8935
  %8937 = vrot.lane.b32.xlu0 %v8330, 8
  %v8938 = vpop.permute.xlu0 %8937
  %8939 = vrot.lane.b32.xlu0 %v8331, 8
  %v8940 = vpop.permute.xlu0 %8939
  %8941 = vrot.lane.b32.xlu0 %v8332, 8
  %v8942 = vpop.permute.xlu0 %8941
  %8943 = vrot.lane.b32.xlu0 %v8333, 8
  %v8944 = vpop.permute.xlu0 %8943
  %8945 = vrot.lane.b32.xlu0 %v8334, 8
  %v8946 = vpop.permute.xlu0 %8945
  %8947 = vrot.lane.b32.xlu0 %v8335, 8
  %v8948 = vpop.permute.xlu0 %8947
  %8949 = vrot.lane.b32.xlu0 %v8336, 8
  %v8950 = vpop.permute.xlu0 %8949
  %8951 = vrot.lane.b32.xlu0 %v8337, 8
  %v8952 = vpop.permute.xlu0 %8951
  %8953 = vrot.lane.b32.xlu0 %v8338, 8
  %v8954 = vpop.permute.xlu0 %8953
  %8955 = vrot.lane.b32.xlu0 %v8339, 8
  %v8956 = vpop.permute.xlu0 %8955
  %8957 = vrot.lane.b32.xlu0 %v8340, 8
  %v8958 = vpop.permute.xlu0 %8957
  %8959 = vrot.lane.b32.xlu0 %v8341, 8
  %v8960 = vpop.permute.xlu0 %8959
  %8961 = vrot.lane.b32.xlu0 %v8342, 8
  %v8962 = vpop.permute.xlu0 %8961
  %8963 = vrot.lane.b32.xlu0 %v8343, 8
  %v8964 = vpop.permute.xlu0 %8963
  %8965 = vrot.lane.b32.xlu0 %v8344, 8
  %v8966 = vpop.permute.xlu0 %8965
  %8967 = vrot.lane.b32.xlu0 %v8345, 8
  %v8968 = vpop.permute.xlu0 %8967
  %8969 = vrot.lane.b32.xlu0 %v8346, 8
  %v8970 = vpop.permute.xlu0 %8969
  %8971 = vrot.lane.b32.xlu0 %v8347, 8
  %v8972 = vpop.permute.xlu0 %8971
  %8973 = vrot.lane.b32.xlu0 %v8348, 8
  %v8974 = vpop.permute.xlu0 %8973
  %8975 = vrot.lane.b32.xlu0 %v8349, 8
  %v8976 = vpop.permute.xlu0 %8975
  %8977 = vrot.lane.b32.xlu0 %v8350, 8
  %v8978 = vpop.permute.xlu0 %8977
  %8979 = vrot.lane.b32.xlu0 %v8351, 8
  %v8980 = vpop.permute.xlu0 %8979
  %8981 = vrot.lane.b32.xlu0 %v8352, 8
  %v8982 = vpop.permute.xlu0 %8981
  %8983 = vrot.lane.b32.xlu0 %v8353, 8
  %v8984 = vpop.permute.xlu0 %8983
  %8985 = vrot.lane.b32.xlu0 %v8354, 8
  %v8986 = vpop.permute.xlu0 %8985
  %8987 = vrot.lane.b32.xlu0 %v8355, 8
  %v8988 = vpop.permute.xlu0 %8987
  %8989 = vrot.lane.b32.xlu0 %v8356, 8
  %v8990 = vpop.permute.xlu0 %8989
  %8991 = vrot.lane.b32.xlu0 %v8357, 8
  %v8992 = vpop.permute.xlu0 %8991
  %8993 = vrot.lane.b32.xlu0 %v8358, 8
  %v8994 = vpop.permute.xlu0 %8993
  %8995 = vrot.lane.b32.xlu0 %v8359, 8
  %v8996 = vpop.permute.xlu0 %8995
  %8997 = vrot.lane.b32.xlu0 %v8360, 8
  %v8998 = vpop.permute.xlu0 %8997
  %8999 = vrot.lane.b32.xlu0 %v8361, 8
  %v9000 = vpop.permute.xlu0 %8999
  %9001 = vrot.lane.b32.xlu0 %v8362, 8
  %v9002 = vpop.permute.xlu0 %9001
  %9003 = vrot.lane.b32.xlu0 %v8363, 8
  %v9004 = vpop.permute.xlu0 %9003
  %9133 = vrot.lane.b32.xlu0 %v8364, 16
  %v9134 = vpop.permute.xlu0 %9133
  %9135 = vrot.lane.b32.xlu0 %v8365, 16
  %v9136 = vpop.permute.xlu0 %9135
  %9137 = vrot.lane.b32.xlu0 %v8366, 16
  %v9138 = vpop.permute.xlu0 %9137
  %9139 = vrot.lane.b32.xlu0 %v8367, 16
  %v9140 = vpop.permute.xlu0 %9139
  %9141 = vrot.lane.b32.xlu0 %v8368, 16
  %v9142 = vpop.permute.xlu0 %9141
  %9143 = vrot.lane.b32.xlu0 %v8369, 16
  %v9144 = vpop.permute.xlu0 %9143
  %9145 = vrot.lane.b32.xlu0 %v8370, 16
  %v9146 = vpop.permute.xlu0 %9145
  %9147 = vrot.lane.b32.xlu0 %v8371, 16
  %v9148 = vpop.permute.xlu0 %9147
  %9149 = vrot.lane.b32.xlu0 %v8372, 16
  %v9150 = vpop.permute.xlu0 %9149
  %9151 = vrot.lane.b32.xlu0 %v8373, 16
  %v9152 = vpop.permute.xlu0 %9151
  %9153 = vrot.lane.b32.xlu0 %v8374, 16
  %v9154 = vpop.permute.xlu0 %9153
  %9155 = vrot.lane.b32.xlu0 %v8375, 16
  %v9156 = vpop.permute.xlu0 %9155
  %9157 = vrot.lane.b32.xlu0 %v8376, 16
  %v9158 = vpop.permute.xlu0 %9157
  %9159 = vrot.lane.b32.xlu0 %v8377, 16
  %v9160 = vpop.permute.xlu0 %9159
  %9161 = vrot.lane.b32.xlu0 %v8378, 16
  %v9162 = vpop.permute.xlu0 %9161
  %9163 = vrot.lane.b32.xlu0 %v8379, 16
  %v9164 = vpop.permute.xlu0 %9163
  %9165 = vrot.lane.b32.xlu0 %v8380, 16
  %v9166 = vpop.permute.xlu0 %9165
  %9167 = vrot.lane.b32.xlu0 %v8381, 16
  %v9168 = vpop.permute.xlu0 %9167
  %9169 = vrot.lane.b32.xlu0 %v8382, 16
  %v9170 = vpop.permute.xlu0 %9169
  %9171 = vrot.lane.b32.xlu0 %v8383, 16
  %v9172 = vpop.permute.xlu0 %9171
  %9173 = vrot.lane.b32.xlu0 %v8384, 16
  %v9174 = vpop.permute.xlu0 %9173
  %9175 = vrot.lane.b32.xlu0 %v8385, 16
  %v9176 = vpop.permute.xlu0 %9175
  %9177 = vrot.lane.b32.xlu0 %v8386, 16
  %v9178 = vpop.permute.xlu0 %9177
  %9179 = vrot.lane.b32.xlu0 %v8387, 16
  %v9180 = vpop.permute.xlu0 %9179
  %9181 = vrot.lane.b32.xlu0 %v8388, 16
  %v9182 = vpop.permute.xlu0 %9181
  %9183 = vrot.lane.b32.xlu0 %v8389, 16
  %v9184 = vpop.permute.xlu0 %9183
  %9185 = vrot.lane.b32.xlu0 %v8390, 16
  %v9186 = vpop.permute.xlu0 %9185
  %9187 = vrot.lane.b32.xlu0 %v8391, 16
  %v9188 = vpop.permute.xlu0 %9187
  %9189 = vrot.lane.b32.xlu0 %v8392, 16
  %v9190 = vpop.permute.xlu0 %9189
  %9191 = vrot.lane.b32.xlu0 %v8393, 16
  %v9192 = vpop.permute.xlu0 %9191
  %9193 = vrot.lane.b32.xlu0 %v8394, 16
  %v9194 = vpop.permute.xlu0 %9193
  %9195 = vrot.lane.b32.xlu0 %v8395, 16
  %v9196 = vpop.permute.xlu0 %9195
  %9197 = vrot.lane.b32.xlu0 %v8396, 16
  %v9198 = vpop.permute.xlu0 %9197
  %9199 = vrot.lane.b32.xlu0 %v8397, 16
  %v9200 = vpop.permute.xlu0 %9199
  %9201 = vrot.lane.b32.xlu0 %v8398, 16
  %v9202 = vpop.permute.xlu0 %9201
  %9203 = vrot.lane.b32.xlu0 %v8399, 16
  %v9204 = vpop.permute.xlu0 %9203
  %9205 = vrot.lane.b32.xlu0 %v8400, 16
  %v9206 = vpop.permute.xlu0 %9205
  %9207 = vrot.lane.b32.xlu0 %v8401, 16
  %v9208 = vpop.permute.xlu0 %9207
  %9209 = vrot.lane.b32.xlu0 %v8402, 16
  %v9210 = vpop.permute.xlu0 %9209
  %9211 = vrot.lane.b32.xlu0 %v8403, 16
  %v9212 = vpop.permute.xlu0 %9211
  %9213 = vrot.lane.b32.xlu0 %v8404, 16
  %v9214 = vpop.permute.xlu0 %9213
  %9215 = vrot.lane.b32.xlu0 %v8405, 16
  %v9216 = vpop.permute.xlu0 %9215
  %9217 = vrot.lane.b32.xlu0 %v8406, 16
  %v9218 = vpop.permute.xlu0 %9217
  %9219 = vrot.lane.b32.xlu0 %v8407, 16
  %v9220 = vpop.permute.xlu0 %9219
  %9221 = vrot.lane.b32.xlu0 %v8408, 16
  %v9222 = vpop.permute.xlu0 %9221
  %9223 = vrot.lane.b32.xlu0 %v8409, 16
  %v9224 = vpop.permute.xlu0 %9223
  %9225 = vrot.lane.b32.xlu0 %v8410, 16
  %v9226 = vpop.permute.xlu0 %9225
  %9227 = vrot.lane.b32.xlu0 %v8411, 16
  %v9228 = vpop.permute.xlu0 %9227
  %9229 = vrot.lane.b32.xlu0 %v8412, 16
  %v9230 = vpop.permute.xlu0 %9229
  %9231 = vrot.lane.b32.xlu0 %v8413, 16
  %v9232 = vpop.permute.xlu0 %9231
  %9233 = vrot.lane.b32.xlu0 %v8414, 16
  %v9234 = vpop.permute.xlu0 %9233
  %9235 = vrot.lane.b32.xlu0 %v8415, 16
  %v9236 = vpop.permute.xlu0 %9235
  %9237 = vrot.lane.b32.xlu0 %v8416, 16
  %v9238 = vpop.permute.xlu0 %9237
  %9239 = vrot.lane.b32.xlu0 %v8417, 16
  %v9240 = vpop.permute.xlu0 %9239
  %9241 = vrot.lane.b32.xlu0 %v8418, 16
  %v9242 = vpop.permute.xlu0 %9241
  %9243 = vrot.lane.b32.xlu0 %v8419, 16
  %v9244 = vpop.permute.xlu0 %9243
  %9245 = vrot.lane.b32.xlu0 %v8420, 16
  %v9246 = vpop.permute.xlu0 %9245
  %9247 = vrot.lane.b32.xlu0 %v8421, 16
  %v9248 = vpop.permute.xlu0 %9247
  %9249 = vrot.lane.b32.xlu0 %v8422, 16
  %v9250 = vpop.permute.xlu0 %9249
  %9251 = vrot.lane.b32.xlu0 %v8423, 16
  %v9252 = vpop.permute.xlu0 %9251
  %9253 = vrot.lane.b32.xlu0 %v8424, 16
  %v9254 = vpop.permute.xlu0 %9253
  %9255 = vrot.lane.b32.xlu0 %v8425, 16
  %v9256 = vpop.permute.xlu0 %9255
  %9257 = vrot.lane.b32.xlu0 %v8426, 16
  %v9258 = vpop.permute.xlu0 %9257
  %9259 = vrot.lane.b32.xlu0 %v8427, 16
  %v9260 = vpop.permute.xlu0 %9259
  %9389 = vrot.lane.b32.xlu0 %v8428, 24
  %v9390 = vpop.permute.xlu0 %9389
  %9391 = vrot.lane.b32.xlu0 %v8429, 24
  %v9392 = vpop.permute.xlu0 %9391
  %9393 = vrot.lane.b32.xlu0 %v8430, 24
  %v9394 = vpop.permute.xlu0 %9393
  %9395 = vrot.lane.b32.xlu0 %v8431, 24
  %v9396 = vpop.permute.xlu0 %9395
  %9397 = vrot.lane.b32.xlu0 %v8432, 24
  %v9398 = vpop.permute.xlu0 %9397
  %9399 = vrot.lane.b32.xlu0 %v8433, 24
  %v9400 = vpop.permute.xlu0 %9399
  %9401 = vrot.lane.b32.xlu0 %v8434, 24
  %v9402 = vpop.permute.xlu0 %9401
  %9403 = vrot.lane.b32.xlu0 %v8435, 24
  %v9404 = vpop.permute.xlu0 %9403
  %9405 = vrot.lane.b32.xlu0 %v8436, 24
  %v9406 = vpop.permute.xlu0 %9405
  %9407 = vrot.lane.b32.xlu0 %v8437, 24
  %v9408 = vpop.permute.xlu0 %9407
  %9409 = vrot.lane.b32.xlu0 %v8438, 24
  %v9410 = vpop.permute.xlu0 %9409
  %9411 = vrot.lane.b32.xlu0 %v8439, 24
  %v9412 = vpop.permute.xlu0 %9411
  %9413 = vrot.lane.b32.xlu0 %v8440, 24
  %v9414 = vpop.permute.xlu0 %9413
  %9415 = vrot.lane.b32.xlu0 %v8441, 24
  %v9416 = vpop.permute.xlu0 %9415
  %9417 = vrot.lane.b32.xlu0 %v8442, 24
  %v9418 = vpop.permute.xlu0 %9417
  %9419 = vrot.lane.b32.xlu0 %v8443, 24
  %v9420 = vpop.permute.xlu0 %9419
  %9421 = vrot.lane.b32.xlu0 %v8444, 24
  %v9422 = vpop.permute.xlu0 %9421
  %9423 = vrot.lane.b32.xlu0 %v8445, 24
  %v9424 = vpop.permute.xlu0 %9423
  %9425 = vrot.lane.b32.xlu0 %v8446, 24
  %v9426 = vpop.permute.xlu0 %9425
  %9427 = vrot.lane.b32.xlu0 %v8447, 24
  %v9428 = vpop.permute.xlu0 %9427
  %9429 = vrot.lane.b32.xlu0 %v8448, 24
  %v9430 = vpop.permute.xlu0 %9429
  %9431 = vrot.lane.b32.xlu0 %v8449, 24
  %v9432 = vpop.permute.xlu0 %9431
  %9433 = vrot.lane.b32.xlu0 %v8450, 24
  %v9434 = vpop.permute.xlu0 %9433
  %9435 = vrot.lane.b32.xlu0 %v8451, 24
  %v9436 = vpop.permute.xlu0 %9435
  %9437 = vrot.lane.b32.xlu0 %v8452, 24
  %v9438 = vpop.permute.xlu0 %9437
  %9439 = vrot.lane.b32.xlu0 %v8453, 24
  %v9440 = vpop.permute.xlu0 %9439
  %9441 = vrot.lane.b32.xlu0 %v8454, 24
  %v9442 = vpop.permute.xlu0 %9441
  %9443 = vrot.lane.b32.xlu0 %v8455, 24
  %v9444 = vpop.permute.xlu0 %9443
  %9445 = vrot.lane.b32.xlu0 %v8456, 24
  %v9446 = vpop.permute.xlu0 %9445
  %9447 = vrot.lane.b32.xlu0 %v8457, 24
  %v9448 = vpop.permute.xlu0 %9447
  %9449 = vrot.lane.b32.xlu0 %v8458, 24
  %v9450 = vpop.permute.xlu0 %9449
  %9451 = vrot.lane.b32.xlu0 %v8459, 24
  %v9452 = vpop.permute.xlu0 %9451
  %9453 = vrot.lane.b32.xlu0 %v8460, 24
  %v9454 = vpop.permute.xlu0 %9453
  %9455 = vrot.lane.b32.xlu0 %v8461, 24
  %v9456 = vpop.permute.xlu0 %9455
  %9457 = vrot.lane.b32.xlu0 %v8462, 24
  %v9458 = vpop.permute.xlu0 %9457
  %9459 = vrot.lane.b32.xlu0 %v8463, 24
  %v9460 = vpop.permute.xlu0 %9459
  %9461 = vrot.lane.b32.xlu0 %v8464, 24
  %v9462 = vpop.permute.xlu0 %9461
  %9463 = vrot.lane.b32.xlu0 %v8465, 24
  %v9464 = vpop.permute.xlu0 %9463
  %9465 = vrot.lane.b32.xlu0 %v8466, 24
  %v9466 = vpop.permute.xlu0 %9465
  %9467 = vrot.lane.b32.xlu0 %v8467, 24
  %v9468 = vpop.permute.xlu0 %9467
  %9469 = vrot.lane.b32.xlu0 %v8468, 24
  %v9470 = vpop.permute.xlu0 %9469
  %9471 = vrot.lane.b32.xlu0 %v8469, 24
  %v9472 = vpop.permute.xlu0 %9471
  %9473 = vrot.lane.b32.xlu0 %v8470, 24
  %v9474 = vpop.permute.xlu0 %9473
  %9475 = vrot.lane.b32.xlu0 %v8471, 24
  %v9476 = vpop.permute.xlu0 %9475
  %9477 = vrot.lane.b32.xlu0 %v8472, 24
  %v9478 = vpop.permute.xlu0 %9477
  %9479 = vrot.lane.b32.xlu0 %v8473, 24
  %v9480 = vpop.permute.xlu0 %9479
  %9481 = vrot.lane.b32.xlu0 %v8474, 24
  %v9482 = vpop.permute.xlu0 %9481
  %9483 = vrot.lane.b32.xlu0 %v8475, 24
  %v9484 = vpop.permute.xlu0 %9483
  %9485 = vrot.lane.b32.xlu0 %v8476, 24
  %v9486 = vpop.permute.xlu0 %9485
  %9487 = vrot.lane.b32.xlu0 %v8477, 24
  %v9488 = vpop.permute.xlu0 %9487
  %9489 = vrot.lane.b32.xlu0 %v8478, 24
  %v9490 = vpop.permute.xlu0 %9489
  %9491 = vrot.lane.b32.xlu0 %v8479, 24
  %v9492 = vpop.permute.xlu0 %9491
  %9493 = vrot.lane.b32.xlu0 %v8480, 24
  %v9494 = vpop.permute.xlu0 %9493
  %9495 = vrot.lane.b32.xlu0 %v8481, 24
  %v9496 = vpop.permute.xlu0 %9495
  %9497 = vrot.lane.b32.xlu0 %v8482, 24
  %v9498 = vpop.permute.xlu0 %9497
  %9499 = vrot.lane.b32.xlu0 %v8483, 24
  %v9500 = vpop.permute.xlu0 %9499
  %9501 = vrot.lane.b32.xlu0 %v8484, 24
  %v9502 = vpop.permute.xlu0 %9501
  %9503 = vrot.lane.b32.xlu0 %v8485, 24
  %v9504 = vpop.permute.xlu0 %9503
  %9505 = vrot.lane.b32.xlu0 %v8486, 24
  %v9506 = vpop.permute.xlu0 %9505
  %9507 = vrot.lane.b32.xlu0 %v8487, 24
  %v9508 = vpop.permute.xlu0 %9507
  %9509 = vrot.lane.b32.xlu0 %v8488, 24
  %v9510 = vpop.permute.xlu0 %9509
  %9511 = vrot.lane.b32.xlu0 %v8489, 24
  %v9512 = vpop.permute.xlu0 %9511
  %9513 = vrot.lane.b32.xlu0 %v8490, 24
  %v9514 = vpop.permute.xlu0 %9513
  %9515 = vrot.lane.b32.xlu0 %v8491, 24
  %v9516 = vpop.permute.xlu0 %9515
  %9645 = vrot.lane.b32.xlu0 %v8492, 32
  %v9646 = vpop.permute.xlu0 %9645
  %9647 = vrot.lane.b32.xlu0 %v8493, 32
  %v9648 = vpop.permute.xlu0 %9647
  %9649 = vrot.lane.b32.xlu0 %v8494, 32
  %v9650 = vpop.permute.xlu0 %9649
  %9651 = vrot.lane.b32.xlu0 %v8495, 32
  %v9652 = vpop.permute.xlu0 %9651
  %9653 = vrot.lane.b32.xlu0 %v8496, 32
  %v9654 = vpop.permute.xlu0 %9653
  %9655 = vrot.lane.b32.xlu0 %v8497, 32
  %v9656 = vpop.permute.xlu0 %9655
  %9657 = vrot.lane.b32.xlu0 %v8498, 32
  %v9658 = vpop.permute.xlu0 %9657
  %9659 = vrot.lane.b32.xlu0 %v8499, 32
  %v9660 = vpop.permute.xlu0 %9659
  %9661 = vrot.lane.b32.xlu0 %v8500, 32
  %v9662 = vpop.permute.xlu0 %9661
  %9663 = vrot.lane.b32.xlu0 %v8501, 32
  %v9664 = vpop.permute.xlu0 %9663
  %9665 = vrot.lane.b32.xlu0 %v8502, 32
  %v9666 = vpop.permute.xlu0 %9665
  %9667 = vrot.lane.b32.xlu0 %v8503, 32
  %v9668 = vpop.permute.xlu0 %9667
  %9669 = vrot.lane.b32.xlu0 %v8504, 32
  %v9670 = vpop.permute.xlu0 %9669
  %9671 = vrot.lane.b32.xlu0 %v8505, 32
  %v9672 = vpop.permute.xlu0 %9671
  %9673 = vrot.lane.b32.xlu0 %v8506, 32
  %v9674 = vpop.permute.xlu0 %9673
  %9675 = vrot.lane.b32.xlu0 %v8507, 32
  %v9676 = vpop.permute.xlu0 %9675
  %9677 = vrot.lane.b32.xlu0 %v8508, 32
  %v9678 = vpop.permute.xlu0 %9677
  %9679 = vrot.lane.b32.xlu0 %v8509, 32
  %v9680 = vpop.permute.xlu0 %9679
  %9681 = vrot.lane.b32.xlu0 %v8510, 32
  %v9682 = vpop.permute.xlu0 %9681
  %9683 = vrot.lane.b32.xlu0 %v8511, 32
  %v9684 = vpop.permute.xlu0 %9683
  %9685 = vrot.lane.b32.xlu0 %v8512, 32
  %v9686 = vpop.permute.xlu0 %9685
  %9687 = vrot.lane.b32.xlu0 %v8513, 32
  %v9688 = vpop.permute.xlu0 %9687
  %9689 = vrot.lane.b32.xlu0 %v8514, 32
  %v9690 = vpop.permute.xlu0 %9689
  %9691 = vrot.lane.b32.xlu0 %v8515, 32
  %v9692 = vpop.permute.xlu0 %9691
  %9693 = vrot.lane.b32.xlu0 %v8516, 32
  %v9694 = vpop.permute.xlu0 %9693
  %9695 = vrot.lane.b32.xlu0 %v8517, 32
  %v9696 = vpop.permute.xlu0 %9695
  %9697 = vrot.lane.b32.xlu0 %v8518, 32
  %v9698 = vpop.permute.xlu0 %9697
  %9699 = vrot.lane.b32.xlu0 %v8519, 32
  %v9700 = vpop.permute.xlu0 %9699
  %9701 = vrot.lane.b32.xlu0 %v8520, 32
  %v9702 = vpop.permute.xlu0 %9701
  %9703 = vrot.lane.b32.xlu0 %v8521, 32
  %v9704 = vpop.permute.xlu0 %9703
  %9705 = vrot.lane.b32.xlu0 %v8522, 32
  %v9706 = vpop.permute.xlu0 %9705
  %9707 = vrot.lane.b32.xlu0 %v8523, 32
  %v9708 = vpop.permute.xlu0 %9707
  %9709 = vrot.lane.b32.xlu0 %v8524, 32
  %v9710 = vpop.permute.xlu0 %9709
  %9711 = vrot.lane.b32.xlu0 %v8525, 32
  %v9712 = vpop.permute.xlu0 %9711
  %9713 = vrot.lane.b32.xlu0 %v8526, 32
  %v9714 = vpop.permute.xlu0 %9713
  %9715 = vrot.lane.b32.xlu0 %v8527, 32
  %v9716 = vpop.permute.xlu0 %9715
  %9717 = vrot.lane.b32.xlu0 %v8528, 32
  %v9718 = vpop.permute.xlu0 %9717
  %9719 = vrot.lane.b32.xlu0 %v8529, 32
  %v9720 = vpop.permute.xlu0 %9719
  %9721 = vrot.lane.b32.xlu0 %v8530, 32
  %v9722 = vpop.permute.xlu0 %9721
  %9723 = vrot.lane.b32.xlu0 %v8531, 32
  %v9724 = vpop.permute.xlu0 %9723
  %9725 = vrot.lane.b32.xlu0 %v8532, 32
  %v9726 = vpop.permute.xlu0 %9725
  %9727 = vrot.lane.b32.xlu0 %v8533, 32
  %v9728 = vpop.permute.xlu0 %9727
  %9729 = vrot.lane.b32.xlu0 %v8534, 32
  %v9730 = vpop.permute.xlu0 %9729
  %9731 = vrot.lane.b32.xlu0 %v8535, 32
  %v9732 = vpop.permute.xlu0 %9731
  %9733 = vrot.lane.b32.xlu0 %v8536, 32
  %v9734 = vpop.permute.xlu0 %9733
  %9735 = vrot.lane.b32.xlu0 %v8537, 32
  %v9736 = vpop.permute.xlu0 %9735
  %9737 = vrot.lane.b32.xlu0 %v8538, 32
  %v9738 = vpop.permute.xlu0 %9737
  %9739 = vrot.lane.b32.xlu0 %v8539, 32
  %v9740 = vpop.permute.xlu0 %9739
  %9741 = vrot.lane.b32.xlu0 %v8540, 32
  %v9742 = vpop.permute.xlu0 %9741
  %9743 = vrot.lane.b32.xlu0 %v8541, 32
  %v9744 = vpop.permute.xlu0 %9743
  %9745 = vrot.lane.b32.xlu0 %v8542, 32
  %v9746 = vpop.permute.xlu0 %9745
  %9747 = vrot.lane.b32.xlu0 %v8543, 32
  %v9748 = vpop.permute.xlu0 %9747
  %9749 = vrot.lane.b32.xlu0 %v8544, 32
  %v9750 = vpop.permute.xlu0 %9749
  %9751 = vrot.lane.b32.xlu0 %v8545, 32
  %v9752 = vpop.permute.xlu0 %9751
  %9753 = vrot.lane.b32.xlu0 %v8546, 32
  %v9754 = vpop.permute.xlu0 %9753
  %9755 = vrot.lane.b32.xlu0 %v8547, 32
  %v9756 = vpop.permute.xlu0 %9755
  %9757 = vrot.lane.b32.xlu0 %v8548, 32
  %v9758 = vpop.permute.xlu0 %9757
  %9759 = vrot.lane.b32.xlu0 %v8549, 32
  %v9760 = vpop.permute.xlu0 %9759
  %9761 = vrot.lane.b32.xlu0 %v8550, 32
  %v9762 = vpop.permute.xlu0 %9761
  %9763 = vrot.lane.b32.xlu0 %v8551, 32
  %v9764 = vpop.permute.xlu0 %9763
  %9765 = vrot.lane.b32.xlu0 %v8552, 32
  %v9766 = vpop.permute.xlu0 %9765
  %9767 = vrot.lane.b32.xlu0 %v8553, 32
  %v9768 = vpop.permute.xlu0 %9767
  %9769 = vrot.lane.b32.xlu0 %v8554, 32
  %v9770 = vpop.permute.xlu0 %9769
  %9771 = vrot.lane.b32.xlu0 %v8555, 32
  %v9772 = vpop.permute.xlu0 %9771
  %9901 = vrot.lane.b32.xlu0 %v8556, 40
  %v9902 = vpop.permute.xlu0 %9901
  %9903 = vrot.lane.b32.xlu0 %v8557, 40
  %v9904 = vpop.permute.xlu0 %9903
  %9905 = vrot.lane.b32.xlu0 %v8558, 40
  %v9906 = vpop.permute.xlu0 %9905
  %9907 = vrot.lane.b32.xlu0 %v8559, 40
  %v9908 = vpop.permute.xlu0 %9907
  %9909 = vrot.lane.b32.xlu0 %v8560, 40
  %v9910 = vpop.permute.xlu0 %9909
  %9911 = vrot.lane.b32.xlu0 %v8561, 40
  %v9912 = vpop.permute.xlu0 %9911
  %9913 = vrot.lane.b32.xlu0 %v8562, 40
  %v9914 = vpop.permute.xlu0 %9913
  %9915 = vrot.lane.b32.xlu0 %v8563, 40
  %v9916 = vpop.permute.xlu0 %9915
  %9917 = vrot.lane.b32.xlu0 %v8564, 40
  %v9918 = vpop.permute.xlu0 %9917
  %9919 = vrot.lane.b32.xlu0 %v8565, 40
  %v9920 = vpop.permute.xlu0 %9919
  %9921 = vrot.lane.b32.xlu0 %v8566, 40
  %v9922 = vpop.permute.xlu0 %9921
  %9923 = vrot.lane.b32.xlu0 %v8567, 40
  %v9924 = vpop.permute.xlu0 %9923
  %9925 = vrot.lane.b32.xlu0 %v8568, 40
  %v9926 = vpop.permute.xlu0 %9925
  %9927 = vrot.lane.b32.xlu0 %v8569, 40
  %v9928 = vpop.permute.xlu0 %9927
  %9929 = vrot.lane.b32.xlu0 %v8570, 40
  %v9930 = vpop.permute.xlu0 %9929
  %9931 = vrot.lane.b32.xlu0 %v8571, 40
  %v9932 = vpop.permute.xlu0 %9931
  %9933 = vrot.lane.b32.xlu0 %v8572, 40
  %v9934 = vpop.permute.xlu0 %9933
  %9935 = vrot.lane.b32.xlu0 %v8573, 40
  %v9936 = vpop.permute.xlu0 %9935
  %9937 = vrot.lane.b32.xlu0 %v8574, 40
  %v9938 = vpop.permute.xlu0 %9937
  %9939 = vrot.lane.b32.xlu0 %v8575, 40
  %v9940 = vpop.permute.xlu0 %9939
  %9941 = vrot.lane.b32.xlu0 %v8576, 40
  %v9942 = vpop.permute.xlu0 %9941
  %9943 = vrot.lane.b32.xlu0 %v8577, 40
  %v9944 = vpop.permute.xlu0 %9943
  %9945 = vrot.lane.b32.xlu0 %v8578, 40
  %v9946 = vpop.permute.xlu0 %9945
  %9947 = vrot.lane.b32.xlu0 %v8579, 40
  %v9948 = vpop.permute.xlu0 %9947
  %9949 = vrot.lane.b32.xlu0 %v8580, 40
  %v9950 = vpop.permute.xlu0 %9949
  %9951 = vrot.lane.b32.xlu0 %v8581, 40
  %v9952 = vpop.permute.xlu0 %9951
  %9953 = vrot.lane.b32.xlu0 %v8582, 40
  %v9954 = vpop.permute.xlu0 %9953
  %9955 = vrot.lane.b32.xlu0 %v8583, 40
  %v9956 = vpop.permute.xlu0 %9955
  %9957 = vrot.lane.b32.xlu0 %v8584, 40
  %v9958 = vpop.permute.xlu0 %9957
  %9959 = vrot.lane.b32.xlu0 %v8585, 40
  %v9960 = vpop.permute.xlu0 %9959
  %9961 = vrot.lane.b32.xlu0 %v8586, 40
  %v9962 = vpop.permute.xlu0 %9961
  %9963 = vrot.lane.b32.xlu0 %v8587, 40
  %v9964 = vpop.permute.xlu0 %9963
  %9965 = vrot.lane.b32.xlu0 %v8588, 40
  %v9966 = vpop.permute.xlu0 %9965
  %9967 = vrot.lane.b32.xlu0 %v8589, 40
  %v9968 = vpop.permute.xlu0 %9967
  %9969 = vrot.lane.b32.xlu0 %v8590, 40
  %v9970 = vpop.permute.xlu0 %9969
  %9971 = vrot.lane.b32.xlu0 %v8591, 40
  %v9972 = vpop.permute.xlu0 %9971
  %9973 = vrot.lane.b32.xlu0 %v8592, 40
  %v9974 = vpop.permute.xlu0 %9973
  %9975 = vrot.lane.b32.xlu0 %v8593, 40
  %v9976 = vpop.permute.xlu0 %9975
  %9977 = vrot.lane.b32.xlu0 %v8594, 40
  %v9978 = vpop.permute.xlu0 %9977
  %9979 = vrot.lane.b32.xlu0 %v8595, 40
  %v9980 = vpop.permute.xlu0 %9979
  %9981 = vrot.lane.b32.xlu0 %v8596, 40
  %v9982 = vpop.permute.xlu0 %9981
  %9983 = vrot.lane.b32.xlu0 %v8597, 40
  %v9984 = vpop.permute.xlu0 %9983
  %9985 = vrot.lane.b32.xlu0 %v8598, 40
  %v9986 = vpop.permute.xlu0 %9985
  %9987 = vrot.lane.b32.xlu0 %v8599, 40
  %v9988 = vpop.permute.xlu0 %9987
  %9989 = vrot.lane.b32.xlu0 %v8600, 40
  %v9990 = vpop.permute.xlu0 %9989
  %9991 = vrot.lane.b32.xlu0 %v8601, 40
  %v9992 = vpop.permute.xlu0 %9991
  %9993 = vrot.lane.b32.xlu0 %v8602, 40
  %v9994 = vpop.permute.xlu0 %9993
  %9995 = vrot.lane.b32.xlu0 %v8603, 40
  %v9996 = vpop.permute.xlu0 %9995
  %9997 = vrot.lane.b32.xlu0 %v8604, 40
  %v9998 = vpop.permute.xlu0 %9997
  %9999 = vrot.lane.b32.xlu0 %v8605, 40
  %v10000 = vpop.permute.xlu0 %9999
  %10001 = vrot.lane.b32.xlu0 %v8606, 40
  %v10002 = vpop.permute.xlu0 %10001
  %10003 = vrot.lane.b32.xlu0 %v8607, 40
  %v10004 = vpop.permute.xlu0 %10003
  %10005 = vrot.lane.b32.xlu0 %v8608, 40
  %v10006 = vpop.permute.xlu0 %10005
  %10007 = vrot.lane.b32.xlu0 %v8609, 40
  %v10008 = vpop.permute.xlu0 %10007
  %10009 = vrot.lane.b32.xlu0 %v8610, 40
  %v10010 = vpop.permute.xlu0 %10009
  %10011 = vrot.lane.b32.xlu0 %v8611, 40
  %v10012 = vpop.permute.xlu0 %10011
  %10013 = vrot.lane.b32.xlu0 %v8612, 40
  %v10014 = vpop.permute.xlu0 %10013
  %10015 = vrot.lane.b32.xlu0 %v8613, 40
  %v10016 = vpop.permute.xlu0 %10015
  %10017 = vrot.lane.b32.xlu0 %v8614, 40
  %v10018 = vpop.permute.xlu0 %10017
  %10019 = vrot.lane.b32.xlu0 %v8615, 40
  %v10020 = vpop.permute.xlu0 %10019
  %10021 = vrot.lane.b32.xlu0 %v8616, 40
  %v10022 = vpop.permute.xlu0 %10021
  %10023 = vrot.lane.b32.xlu0 %v8617, 40
  %v10024 = vpop.permute.xlu0 %10023
  %10025 = vrot.lane.b32.xlu0 %v8618, 40
  %v10026 = vpop.permute.xlu0 %10025
  %10027 = vrot.lane.b32.xlu0 %v8619, 40
  %v10028 = vpop.permute.xlu0 %10027
  %10157 = vrot.lane.b32.xlu0 %v8621, 48
  %v10158 = vpop.permute.xlu0 %10157
  %10159 = vrot.lane.b32.xlu0 %v8622, 48
  %v10160 = vpop.permute.xlu0 %10159
  %10161 = vrot.lane.b32.xlu0 %v8623, 48
  %v10162 = vpop.permute.xlu0 %10161
  %10163 = vrot.lane.b32.xlu0 %v8624, 48
  %v10164 = vpop.permute.xlu0 %10163
  %10165 = vrot.lane.b32.xlu0 %v8625, 48
  %v10166 = vpop.permute.xlu0 %10165
  %10167 = vrot.lane.b32.xlu0 %v8626, 48
  %v10168 = vpop.permute.xlu0 %10167
  %10169 = vrot.lane.b32.xlu0 %v8627, 48
  %v10170 = vpop.permute.xlu0 %10169
  %10171 = vrot.lane.b32.xlu0 %v8628, 48
  %v10172 = vpop.permute.xlu0 %10171
  %10173 = vrot.lane.b32.xlu0 %v8629, 48
  %v10174 = vpop.permute.xlu0 %10173
  %10175 = vrot.lane.b32.xlu0 %v8630, 48
  %v10176 = vpop.permute.xlu0 %10175
  %10177 = vrot.lane.b32.xlu0 %v8631, 48
  %v10178 = vpop.permute.xlu0 %10177
  %10179 = vrot.lane.b32.xlu0 %v8632, 48
  %v10180 = vpop.permute.xlu0 %10179
  %10181 = vrot.lane.b32.xlu0 %v8633, 48
  %v10182 = vpop.permute.xlu0 %10181
  %10183 = vrot.lane.b32.xlu0 %v8634, 48
  %v10184 = vpop.permute.xlu0 %10183
  %10185 = vrot.lane.b32.xlu0 %v8635, 48
  %v10186 = vpop.permute.xlu0 %10185
  %10187 = vrot.lane.b32.xlu0 %v8636, 48
  %v10188 = vpop.permute.xlu0 %10187
  %10189 = vrot.lane.b32.xlu0 %v8637, 48
  %v10190 = vpop.permute.xlu0 %10189
  %10191 = vrot.lane.b32.xlu0 %v8638, 48
  %v10192 = vpop.permute.xlu0 %10191
  %10193 = vrot.lane.b32.xlu0 %v8639, 48
  %v10194 = vpop.permute.xlu0 %10193
  %10195 = vrot.lane.b32.xlu0 %v8640, 48
  %v10196 = vpop.permute.xlu0 %10195
  %10197 = vrot.lane.b32.xlu0 %v8641, 48
  %v10198 = vpop.permute.xlu0 %10197
  %10199 = vrot.lane.b32.xlu0 %v8642, 48
  %v10200 = vpop.permute.xlu0 %10199
  %10201 = vrot.lane.b32.xlu0 %v8643, 48
  %v10202 = vpop.permute.xlu0 %10201
  %10203 = vrot.lane.b32.xlu0 %v8644, 48
  %v10204 = vpop.permute.xlu0 %10203
  %10205 = vrot.lane.b32.xlu0 %v8645, 48
  %v10206 = vpop.permute.xlu0 %10205
  %10207 = vrot.lane.b32.xlu0 %v8646, 48
  %v10208 = vpop.permute.xlu0 %10207
  %10209 = vrot.lane.b32.xlu0 %v8647, 48
  %v10210 = vpop.permute.xlu0 %10209
  %10211 = vrot.lane.b32.xlu0 %v8648, 48
  %v10212 = vpop.permute.xlu0 %10211
  %10213 = vrot.lane.b32.xlu0 %v8649, 48
  %v10214 = vpop.permute.xlu0 %10213
  %10215 = vrot.lane.b32.xlu0 %v8650, 48
  %v10216 = vpop.permute.xlu0 %10215
  %10217 = vrot.lane.b32.xlu0 %v8651, 48
  %v10218 = vpop.permute.xlu0 %10217
  %10219 = vrot.lane.b32.xlu0 %v8652, 48
  %v10220 = vpop.permute.xlu0 %10219
  %10221 = vrot.lane.b32.xlu0 %v8653, 48
  %v10222 = vpop.permute.xlu0 %10221
  %10223 = vrot.lane.b32.xlu0 %v8654, 48
  %v10224 = vpop.permute.xlu0 %10223
  %10225 = vrot.lane.b32.xlu0 %v8655, 48
  %v10226 = vpop.permute.xlu0 %10225
  %10227 = vrot.lane.b32.xlu0 %v8656, 48
  %v10228 = vpop.permute.xlu0 %10227
  %10229 = vrot.lane.b32.xlu0 %v8657, 48
  %v10230 = vpop.permute.xlu0 %10229
  %10231 = vrot.lane.b32.xlu0 %v8658, 48
  %v10232 = vpop.permute.xlu0 %10231
  %10233 = vrot.lane.b32.xlu0 %v8659, 48
  %v10234 = vpop.permute.xlu0 %10233
  %10235 = vrot.lane.b32.xlu0 %v8660, 48
  %v10236 = vpop.permute.xlu0 %10235
  %10237 = vrot.lane.b32.xlu0 %v8661, 48
  %v10238 = vpop.permute.xlu0 %10237
  %10239 = vrot.lane.b32.xlu0 %v8662, 48
  %v10240 = vpop.permute.xlu0 %10239
  %10241 = vrot.lane.b32.xlu0 %v8663, 48
  %v10242 = vpop.permute.xlu0 %10241
  %10243 = vrot.lane.b32.xlu0 %v8664, 48
  %v10244 = vpop.permute.xlu0 %10243
  %10245 = vrot.lane.b32.xlu0 %v8665, 48
  %v10246 = vpop.permute.xlu0 %10245
  %10247 = vrot.lane.b32.xlu0 %v8666, 48
  %v10248 = vpop.permute.xlu0 %10247
  %10249 = vrot.lane.b32.xlu0 %v8667, 48
  %v10250 = vpop.permute.xlu0 %10249
  %10251 = vrot.lane.b32.xlu0 %v8668, 48
  %v10252 = vpop.permute.xlu0 %10251
  %10253 = vrot.lane.b32.xlu0 %v8669, 48
  %v10254 = vpop.permute.xlu0 %10253
  %10255 = vrot.lane.b32.xlu0 %v8670, 48
  %v10256 = vpop.permute.xlu0 %10255
  %10257 = vrot.lane.b32.xlu0 %v8671, 48
  %v10258 = vpop.permute.xlu0 %10257
  %10259 = vrot.lane.b32.xlu0 %v8672, 48
  %v10260 = vpop.permute.xlu0 %10259
  %10261 = vrot.lane.b32.xlu0 %v8673, 48
  %v10262 = vpop.permute.xlu0 %10261
  %10263 = vrot.lane.b32.xlu0 %v8674, 48
  %v10264 = vpop.permute.xlu0 %10263
  %10265 = vrot.lane.b32.xlu0 %v8675, 48
  %v10266 = vpop.permute.xlu0 %10265
  %10267 = vrot.lane.b32.xlu0 %v8676, 48
  %v10268 = vpop.permute.xlu0 %10267
  %10269 = vrot.lane.b32.xlu0 %v8677, 48
  %v10270 = vpop.permute.xlu0 %10269
  %10271 = vrot.lane.b32.xlu0 %v8678, 48
  %v10272 = vpop.permute.xlu0 %10271
  %10273 = vrot.lane.b32.xlu0 %v8679, 48
  %v10274 = vpop.permute.xlu0 %10273
  %10275 = vrot.lane.b32.xlu0 %v8680, 48
  %v10276 = vpop.permute.xlu0 %10275
  %10277 = vrot.lane.b32.xlu0 %v8681, 48
  %v10278 = vpop.permute.xlu0 %10277
  %10279 = vrot.lane.b32.xlu0 %v8682, 48
  %v10280 = vpop.permute.xlu0 %10279
  %10281 = vrot.lane.b32.xlu0 %v8683, 48
  %v10282 = vpop.permute.xlu0 %10281
  %10283 = vrot.lane.b32.xlu0 %v8684, 48
  %v10284 = vpop.permute.xlu0 %10283
  %10413 = vrot.lane.b32.xlu0 %v8685, 56
  %v10414 = vpop.permute.xlu0 %10413
  %10415 = vrot.lane.b32.xlu0 %v8686, 56
  %v10416 = vpop.permute.xlu0 %10415
  %10417 = vrot.lane.b32.xlu0 %v8687, 56
  %v10418 = vpop.permute.xlu0 %10417
  %10419 = vrot.lane.b32.xlu0 %v8688, 56
  %v10420 = vpop.permute.xlu0 %10419
  %10421 = vrot.lane.b32.xlu0 %v8689, 56
  %v10422 = vpop.permute.xlu0 %10421
  %10423 = vrot.lane.b32.xlu0 %v8690, 56
  %v10424 = vpop.permute.xlu0 %10423
  %10425 = vrot.lane.b32.xlu0 %v8691, 56
  %v10426 = vpop.permute.xlu0 %10425
  %10427 = vrot.lane.b32.xlu0 %v8692, 56
  %v10428 = vpop.permute.xlu0 %10427
  %10429 = vrot.lane.b32.xlu0 %v8693, 56
  %v10430 = vpop.permute.xlu0 %10429
  %10431 = vrot.lane.b32.xlu0 %v8694, 56
  %v10432 = vpop.permute.xlu0 %10431
  %10433 = vrot.lane.b32.xlu0 %v8695, 56
  %v10434 = vpop.permute.xlu0 %10433
  %10435 = vrot.lane.b32.xlu0 %v8696, 56
  %v10436 = vpop.permute.xlu0 %10435
  %10437 = vrot.lane.b32.xlu0 %v8697, 56
  %v10438 = vpop.permute.xlu0 %10437
  %10439 = vrot.lane.b32.xlu0 %v8698, 56
  %v10440 = vpop.permute.xlu0 %10439
  %10441 = vrot.lane.b32.xlu0 %v8699, 56
  %v10442 = vpop.permute.xlu0 %10441
  %10443 = vrot.lane.b32.xlu0 %v8700, 56
  %v10444 = vpop.permute.xlu0 %10443
  %10445 = vrot.lane.b32.xlu0 %v8701, 56
  %v10446 = vpop.permute.xlu0 %10445
  %10447 = vrot.lane.b32.xlu0 %v8702, 56
  %v10448 = vpop.permute.xlu0 %10447
  %10449 = vrot.lane.b32.xlu0 %v8703, 56
  %v10450 = vpop.permute.xlu0 %10449
  %10451 = vrot.lane.b32.xlu0 %v8704, 56
  %v10452 = vpop.permute.xlu0 %10451
  %10453 = vrot.lane.b32.xlu0 %v8705, 56
  %v10454 = vpop.permute.xlu0 %10453
  %10455 = vrot.lane.b32.xlu0 %v8706, 56
  %v10456 = vpop.permute.xlu0 %10455
  %10457 = vrot.lane.b32.xlu0 %v8707, 56
  %v10458 = vpop.permute.xlu0 %10457
  %10459 = vrot.lane.b32.xlu0 %v8708, 56
  %v10460 = vpop.permute.xlu0 %10459
  %10461 = vrot.lane.b32.xlu0 %v8709, 56
  %v10462 = vpop.permute.xlu0 %10461
  %10463 = vrot.lane.b32.xlu0 %v8710, 56
  %v10464 = vpop.permute.xlu0 %10463
  %10465 = vrot.lane.b32.xlu0 %v8711, 56
  %v10466 = vpop.permute.xlu0 %10465
  %10467 = vrot.lane.b32.xlu0 %v8712, 56
  %v10468 = vpop.permute.xlu0 %10467
  %10469 = vrot.lane.b32.xlu0 %v8713, 56
  %v10470 = vpop.permute.xlu0 %10469
  %10471 = vrot.lane.b32.xlu0 %v8714, 56
  %v10472 = vpop.permute.xlu0 %10471
  %10473 = vrot.lane.b32.xlu0 %v8715, 56
  %v10474 = vpop.permute.xlu0 %10473
  %10475 = vrot.lane.b32.xlu0 %v8716, 56
  %v10476 = vpop.permute.xlu0 %10475
  %10477 = vrot.lane.b32.xlu0 %v8717, 56
  %v10478 = vpop.permute.xlu0 %10477
  %10479 = vrot.lane.b32.xlu0 %v8718, 56
  %v10480 = vpop.permute.xlu0 %10479
  %10481 = vrot.lane.b32.xlu0 %v8719, 56
  %v10482 = vpop.permute.xlu0 %10481
  %10483 = vrot.lane.b32.xlu0 %v8720, 56
  %v10484 = vpop.permute.xlu0 %10483
  %10485 = vrot.lane.b32.xlu0 %v8721, 56
  %v10486 = vpop.permute.xlu0 %10485
  %10487 = vrot.lane.b32.xlu0 %v8722, 56
  %v10488 = vpop.permute.xlu0 %10487
  %10489 = vrot.lane.b32.xlu0 %v8723, 56
  %v10490 = vpop.permute.xlu0 %10489
  %10491 = vrot.lane.b32.xlu0 %v8724, 56
  %v10492 = vpop.permute.xlu0 %10491
  %10493 = vrot.lane.b32.xlu0 %v8725, 56
  %v10494 = vpop.permute.xlu0 %10493
  %10495 = vrot.lane.b32.xlu0 %v8726, 56
  %v10496 = vpop.permute.xlu0 %10495
  %10497 = vrot.lane.b32.xlu0 %v8727, 56
  %v10498 = vpop.permute.xlu0 %10497
  %10499 = vrot.lane.b32.xlu0 %v8728, 56
  %v10500 = vpop.permute.xlu0 %10499
  %10501 = vrot.lane.b32.xlu0 %v8729, 56
  %v10502 = vpop.permute.xlu0 %10501
  %10503 = vrot.lane.b32.xlu0 %v8730, 56
  %v10504 = vpop.permute.xlu0 %10503
  %10505 = vrot.lane.b32.xlu0 %v8731, 56
  %v10506 = vpop.permute.xlu0 %10505
  %10507 = vrot.lane.b32.xlu0 %v8732, 56
  %v10508 = vpop.permute.xlu0 %10507
  %10509 = vrot.lane.b32.xlu0 %v8733, 56
  %v10510 = vpop.permute.xlu0 %10509
  %10511 = vrot.lane.b32.xlu0 %v8734, 56
  %v10512 = vpop.permute.xlu0 %10511
  %10513 = vrot.lane.b32.xlu0 %v8735, 56
  %v10514 = vpop.permute.xlu0 %10513
  %10515 = vrot.lane.b32.xlu0 %v8736, 56
  %v10516 = vpop.permute.xlu0 %10515
  %10517 = vrot.lane.b32.xlu0 %v8737, 56
  %v10518 = vpop.permute.xlu0 %10517
  %10519 = vrot.lane.b32.xlu0 %v8738, 56
  %v10520 = vpop.permute.xlu0 %10519
  %10521 = vrot.lane.b32.xlu0 %v8739, 56
  %v10522 = vpop.permute.xlu0 %10521
  %10523 = vrot.lane.b32.xlu0 %v8740, 56
  %v10524 = vpop.permute.xlu0 %10523
  %10525 = vrot.lane.b32.xlu0 %v8741, 56
  %v10526 = vpop.permute.xlu0 %10525
  %10527 = vrot.lane.b32.xlu0 %v8742, 56
  %v10528 = vpop.permute.xlu0 %10527
  %10529 = vrot.lane.b32.xlu0 %v8743, 56
  %v10530 = vpop.permute.xlu0 %10529
  %10531 = vrot.lane.b32.xlu0 %v8744, 56
  %v10532 = vpop.permute.xlu0 %10531
  %10533 = vrot.lane.b32.xlu0 %v8745, 56
  %v10534 = vpop.permute.xlu0 %10533
  %10535 = vrot.lane.b32.xlu0 %v8746, 56
  %v10536 = vpop.permute.xlu0 %10535
  %10537 = vrot.lane.b32.xlu0 %v8747, 56
  %v10538 = vpop.permute.xlu0 %10537
  %10539 = vrot.lane.b32.xlu0 %v8748, 56
  %v10540 = vpop.permute.xlu0 %10539
  %10669 = vrot.lane.b32.xlu0 %v8749, 64
  %v10670 = vpop.permute.xlu0 %10669
  %10671 = vrot.lane.b32.xlu0 %v8750, 64
  %v10672 = vpop.permute.xlu0 %10671
  %10673 = vrot.lane.b32.xlu0 %v8751, 64
  %v10674 = vpop.permute.xlu0 %10673
  %10675 = vrot.lane.b32.xlu0 %v8752, 64
  %v10676 = vpop.permute.xlu0 %10675
  %10677 = vrot.lane.b32.xlu0 %v8753, 64
  %v10678 = vpop.permute.xlu0 %10677
  %10679 = vrot.lane.b32.xlu0 %v8754, 64
  %v10680 = vpop.permute.xlu0 %10679
  %10681 = vrot.lane.b32.xlu0 %v8755, 64
  %v10682 = vpop.permute.xlu0 %10681
  %10683 = vrot.lane.b32.xlu0 %v8756, 64
  %v10684 = vpop.permute.xlu0 %10683
  %10685 = vrot.lane.b32.xlu0 %v8757, 64
  %v10686 = vpop.permute.xlu0 %10685
  %10687 = vrot.lane.b32.xlu0 %v8758, 64
  %v10688 = vpop.permute.xlu0 %10687
  %10689 = vrot.lane.b32.xlu0 %v8759, 64
  %v10690 = vpop.permute.xlu0 %10689
  %10691 = vrot.lane.b32.xlu0 %v8760, 64
  %v10692 = vpop.permute.xlu0 %10691
  %10693 = vrot.lane.b32.xlu0 %v8761, 64
  %v10694 = vpop.permute.xlu0 %10693
  %10695 = vrot.lane.b32.xlu0 %v8762, 64
  %v10696 = vpop.permute.xlu0 %10695
  %10697 = vrot.lane.b32.xlu0 %v8763, 64
  %v10698 = vpop.permute.xlu0 %10697
  %10699 = vrot.lane.b32.xlu0 %v8764, 64
  %v10700 = vpop.permute.xlu0 %10699
  %10701 = vrot.lane.b32.xlu0 %v8765, 64
  %v10702 = vpop.permute.xlu0 %10701
  %10703 = vrot.lane.b32.xlu0 %v8766, 64
  %v10704 = vpop.permute.xlu0 %10703
  %10705 = vrot.lane.b32.xlu0 %v8767, 64
  %v10706 = vpop.permute.xlu0 %10705
  %10707 = vrot.lane.b32.xlu0 %v8768, 64
  %v10708 = vpop.permute.xlu0 %10707
  %10709 = vrot.lane.b32.xlu0 %v8769, 64
  %v10710 = vpop.permute.xlu0 %10709
  %10711 = vrot.lane.b32.xlu0 %v8770, 64
  %v10712 = vpop.permute.xlu0 %10711
  %10713 = vrot.lane.b32.xlu0 %v8771, 64
  %v10714 = vpop.permute.xlu0 %10713
  %10715 = vrot.lane.b32.xlu0 %v8772, 64
  %v10716 = vpop.permute.xlu0 %10715
  %10717 = vrot.lane.b32.xlu0 %v8773, 64
  %v10718 = vpop.permute.xlu0 %10717
  %10719 = vrot.lane.b32.xlu0 %v8774, 64
  %v10720 = vpop.permute.xlu0 %10719
  %10721 = vrot.lane.b32.xlu0 %v8775, 64
  %v10722 = vpop.permute.xlu0 %10721
  %10723 = vrot.lane.b32.xlu0 %v8776, 64
  %v10724 = vpop.permute.xlu0 %10723
  %10725 = vrot.lane.b32.xlu0 %v8777, 64
  %v10726 = vpop.permute.xlu0 %10725
  %10727 = vrot.lane.b32.xlu0 %v8778, 64
  %v10728 = vpop.permute.xlu0 %10727
  %10729 = vrot.lane.b32.xlu0 %v8779, 64
  %v10730 = vpop.permute.xlu0 %10729
  %10731 = vrot.lane.b32.xlu0 %v8780, 64
  %v10732 = vpop.permute.xlu0 %10731
  %10733 = vrot.lane.b32.xlu0 %v8781, 64
  %v10734 = vpop.permute.xlu0 %10733
  %10735 = vrot.lane.b32.xlu0 %v8782, 64
  %v10736 = vpop.permute.xlu0 %10735
  %10737 = vrot.lane.b32.xlu0 %v8783, 64
  %v10738 = vpop.permute.xlu0 %10737
  %10739 = vrot.lane.b32.xlu0 %v8784, 64
  %v10740 = vpop.permute.xlu0 %10739
  %10741 = vrot.lane.b32.xlu0 %v8785, 64
  %v10742 = vpop.permute.xlu0 %10741
  %10743 = vrot.lane.b32.xlu0 %v8786, 64
  %v10744 = vpop.permute.xlu0 %10743
  %10745 = vrot.lane.b32.xlu0 %v8787, 64
  %v10746 = vpop.permute.xlu0 %10745
  %10747 = vrot.lane.b32.xlu0 %v8788, 64
  %v10748 = vpop.permute.xlu0 %10747
  %10749 = vrot.lane.b32.xlu0 %v8789, 64
  %v10750 = vpop.permute.xlu0 %10749
  %10751 = vrot.lane.b32.xlu0 %v8790, 64
  %v10752 = vpop.permute.xlu0 %10751
  %10753 = vrot.lane.b32.xlu0 %v8791, 64
  %v10754 = vpop.permute.xlu0 %10753
  %10755 = vrot.lane.b32.xlu0 %v8792, 64
  %v10756 = vpop.permute.xlu0 %10755
  %10757 = vrot.lane.b32.xlu0 %v8793, 64
  %v10758 = vpop.permute.xlu0 %10757
  %10759 = vrot.lane.b32.xlu0 %v8794, 64
  %v10760 = vpop.permute.xlu0 %10759
  %10761 = vrot.lane.b32.xlu0 %v8795, 64
  %v10762 = vpop.permute.xlu0 %10761
  %10763 = vrot.lane.b32.xlu0 %v8796, 64
  %v10764 = vpop.permute.xlu0 %10763
  %10765 = vrot.lane.b32.xlu0 %v8797, 64
  %v10766 = vpop.permute.xlu0 %10765
  %10767 = vrot.lane.b32.xlu0 %v8798, 64
  %v10768 = vpop.permute.xlu0 %10767
  %10769 = vrot.lane.b32.xlu0 %v8799, 64
  %v10770 = vpop.permute.xlu0 %10769
  %10771 = vrot.lane.b32.xlu0 %v8800, 64
  %v10772 = vpop.permute.xlu0 %10771
  %10773 = vrot.lane.b32.xlu0 %v8801, 64
  %v10774 = vpop.permute.xlu0 %10773
  %10775 = vrot.lane.b32.xlu0 %v8802, 64
  %v10776 = vpop.permute.xlu0 %10775
  %10777 = vrot.lane.b32.xlu0 %v8803, 64
  %v10778 = vpop.permute.xlu0 %10777
  %10779 = vrot.lane.b32.xlu0 %v8804, 64
  %v10780 = vpop.permute.xlu0 %10779
  %10781 = vrot.lane.b32.xlu0 %v8805, 64
  %v10782 = vpop.permute.xlu0 %10781
  %10783 = vrot.lane.b32.xlu0 %v8806, 64
  %v10784 = vpop.permute.xlu0 %10783
  %10785 = vrot.lane.b32.xlu0 %v8807, 64
  %v10786 = vpop.permute.xlu0 %10785
  %10787 = vrot.lane.b32.xlu0 %v8808, 64
  %v10788 = vpop.permute.xlu0 %10787
  %10789 = vrot.lane.b32.xlu0 %v8809, 64
  %v10790 = vpop.permute.xlu0 %10789
  %10791 = vrot.lane.b32.xlu0 %v8810, 64
  %v10792 = vpop.permute.xlu0 %10791
  %10793 = vrot.lane.b32.xlu0 %v8811, 64
  %v10794 = vpop.permute.xlu0 %10793
  %10795 = vrot.lane.b32.xlu0 %v8812, 64
  %v10796 = vpop.permute.xlu0 %10795
  %v10861 = vsel %vm2421, %v8236, %v8878
  %v10862 = vsel %vm2421, %v8237, %v8880
  %v10863 = vsel %vm2421, %v8238, %v8882
  %v10864 = vsel %vm2421, %v8239, %v8884
  %v10865 = vsel %vm2421, %v8240, %v8886
  %v10866 = vsel %vm2421, %v8241, %v8888
  %v10867 = vsel %vm2421, %v8242, %v8890
  %v10868 = vsel %vm2421, %v8243, %v8892
  %v10869 = vsel %vm2421, %v8244, %v8894
  %v10870 = vsel %vm2421, %v8245, %v8896
  %v10871 = vsel %vm2421, %v8246, %v8898
  %v10872 = vsel %vm2421, %v8247, %v8900
  %v10873 = vsel %vm2421, %v8248, %v8902
  %v10874 = vsel %vm2421, %v8249, %v8904
  %v10875 = vsel %vm2421, %v8250, %v8906
  %v10876 = vsel %vm2421, %v8251, %v8908
  %v10877 = vsel %vm2421, %v8252, %v8910
  %v10878 = vsel %vm2421, %v8253, %v8912
  %v10879 = vsel %vm2421, %v8254, %v8914
  %v10880 = vsel %vm2421, %v8255, %v8916
  %v10881 = vsel %vm2421, %v8256, %v8918
  %v10882 = vsel %vm2421, %v8257, %v8920
  %v10883 = vsel %vm2421, %v8258, %v8922
  %v10884 = vsel %vm2421, %v8259, %v8924
  %v10885 = vsel %vm2421, %v8260, %v8926
  %v10886 = vsel %vm2421, %v8261, %v8928
  %v10887 = vsel %vm2421, %v8262, %v8930
  %v10888 = vsel %vm2421, %v8263, %v8932
  %v10889 = vsel %vm2421, %v8264, %v8934
  %v10890 = vsel %vm2421, %v8265, %v8936
  %v10891 = vsel %vm2421, %v8266, %v8938
  %v10892 = vsel %vm2421, %v8267, %v8940
  %v10893 = vsel %vm2421, %v8268, %v8942
  %v10894 = vsel %vm2421, %v8269, %v8944
  %v10895 = vsel %vm2421, %v8270, %v8946
  %v10896 = vsel %vm2421, %v8271, %v8948
  %v10897 = vsel %vm2421, %v8272, %v8950
  %v10898 = vsel %vm2421, %v8273, %v8952
  %v10899 = vsel %vm2421, %v8274, %v8954
  %v10900 = vsel %vm2421, %v8275, %v8956
  %v10901 = vsel %vm2421, %v8276, %v8958
  %v10902 = vsel %vm2421, %v8277, %v8960
  %v10903 = vsel %vm2421, %v8278, %v8962
  %v10904 = vsel %vm2421, %v8279, %v8964
  %v10905 = vsel %vm2421, %v8280, %v8966
  %v10906 = vsel %vm2421, %v8281, %v8968
  %v10907 = vsel %vm2421, %v8282, %v8970
  %v10908 = vsel %vm2421, %v8283, %v8972
  %v10909 = vsel %vm2421, %v8284, %v8974
  %v10910 = vsel %vm2421, %v8285, %v8976
  %v10911 = vsel %vm2421, %v8286, %v8978
  %v10912 = vsel %vm2421, %v8287, %v8980
  %v10913 = vsel %vm2421, %v8288, %v8982
  %v10914 = vsel %vm2421, %v8289, %v8984
  %v10915 = vsel %vm2421, %v8290, %v8986
  %v10916 = vsel %vm2421, %v8291, %v8988
  %v10917 = vsel %vm2421, %v8292, %v8990
  %v10918 = vsel %vm2421, %v8293, %v8992
  %v10919 = vsel %vm2421, %v8294, %v8994
  %v10920 = vsel %vm2421, %v8295, %v8996
  %v10921 = vsel %vm2421, %v8296, %v8998
  %v10922 = vsel %vm2421, %v8297, %v9000
  %v10923 = vsel %vm2421, %v8298, %v9002
  %v10924 = vsel %vm2421, %v8299, %v9004
  %v10925 = vsel %vm26, %v10861, %v9134
  %v10926 = vsel %vm26, %v10862, %v9136
  %v10927 = vsel %vm26, %v10863, %v9138
  %v10928 = vsel %vm26, %v10864, %v9140
  %v10929 = vsel %vm26, %v10865, %v9142
  %v10930 = vsel %vm26, %v10866, %v9144
  %v10931 = vsel %vm26, %v10867, %v9146
  %v10932 = vsel %vm26, %v10868, %v9148
  %v10933 = vsel %vm26, %v10869, %v9150
  %v10934 = vsel %vm26, %v10870, %v9152
  %v10935 = vsel %vm26, %v10871, %v9154
  %v10936 = vsel %vm26, %v10872, %v9156
  %v10937 = vsel %vm26, %v10873, %v9158
  %v10938 = vsel %vm26, %v10874, %v9160
  %v10939 = vsel %vm26, %v10875, %v9162
  %v10940 = vsel %vm26, %v10876, %v9164
  %v10941 = vsel %vm26, %v10877, %v9166
  %v10942 = vsel %vm26, %v10878, %v9168
  %v10943 = vsel %vm26, %v10879, %v9170
  %v10944 = vsel %vm26, %v10880, %v9172
  %v10945 = vsel %vm26, %v10881, %v9174
  %v10946 = vsel %vm26, %v10882, %v9176
  %v10947 = vsel %vm26, %v10883, %v9178
  %v10948 = vsel %vm26, %v10884, %v9180
  %v10949 = vsel %vm26, %v10885, %v9182
  %v10950 = vsel %vm26, %v10886, %v9184
  %v10951 = vsel %vm26, %v10887, %v9186
  %v10952 = vsel %vm26, %v10888, %v9188
  %v10953 = vsel %vm26, %v10889, %v9190
  %v10954 = vsel %vm26, %v10890, %v9192
  %v10955 = vsel %vm26, %v10891, %v9194
  %v10956 = vsel %vm26, %v10892, %v9196
  %v10957 = vsel %vm26, %v10893, %v9198
  %v10958 = vsel %vm26, %v10894, %v9200
  %v10959 = vsel %vm26, %v10895, %v9202
  %v10960 = vsel %vm26, %v10896, %v9204
  %v10961 = vsel %vm26, %v10897, %v9206
  %v10962 = vsel %vm26, %v10898, %v9208
  %v10963 = vsel %vm26, %v10899, %v9210
  %v10964 = vsel %vm26, %v10900, %v9212
  %v10965 = vsel %vm26, %v10901, %v9214
  %v10966 = vsel %vm26, %v10902, %v9216
  %v10967 = vsel %vm26, %v10903, %v9218
  %v10968 = vsel %vm26, %v10904, %v9220
  %v10969 = vsel %vm26, %v10905, %v9222
  %v10970 = vsel %vm26, %v10906, %v9224
  %v10971 = vsel %vm26, %v10907, %v9226
  %v10972 = vsel %vm26, %v10908, %v9228
  %v10973 = vsel %vm26, %v10909, %v9230
  %v10974 = vsel %vm26, %v10910, %v9232
  %v10975 = vsel %vm26, %v10911, %v9234
  %v10976 = vsel %vm26, %v10912, %v9236
  %v10977 = vsel %vm26, %v10913, %v9238
  %v10978 = vsel %vm26, %v10914, %v9240
  %v10979 = vsel %vm26, %v10915, %v9242
  %v10980 = vsel %vm26, %v10916, %v9244
  %v10981 = vsel %vm26, %v10917, %v9246
  %v10982 = vsel %vm26, %v10918, %v9248
  %v10983 = vsel %vm26, %v10919, %v9250
  %v10984 = vsel %vm26, %v10920, %v9252
  %v10985 = vsel %vm26, %v10921, %v9254
  %v10986 = vsel %vm26, %v10922, %v9256
  %v10987 = vsel %vm26, %v10923, %v9258
  %v10988 = vsel %vm26, %v10924, %v9260
  %vm10989 = vcmask 195584
  %v10990 = vsel %vm10989, %v10925, %v9390
  %v10991 = vsel %vm10989, %v10926, %v9392
  %v10992 = vsel %vm10989, %v10927, %v9394
  %v10993 = vsel %vm10989, %v10928, %v9396
  %v10994 = vsel %vm10989, %v10929, %v9398
  %v10995 = vsel %vm10989, %v10930, %v9400
  %v10996 = vsel %vm10989, %v10931, %v9402
  %v10997 = vsel %vm10989, %v10932, %v9404
  %v10998 = vsel %vm10989, %v10933, %v9406
  %v10999 = vsel %vm10989, %v10934, %v9408
  %v11000 = vsel %vm10989, %v10935, %v9410
  %v11001 = vsel %vm10989, %v10936, %v9412
  %v11002 = vsel %vm10989, %v10937, %v9414
  %v11003 = vsel %vm10989, %v10938, %v9416
  %v11004 = vsel %vm10989, %v10939, %v9418
  %v11005 = vsel %vm10989, %v10940, %v9420
  %v11006 = vsel %vm10989, %v10941, %v9422
  %v11007 = vsel %vm10989, %v10942, %v9424
  %v11008 = vsel %vm10989, %v10943, %v9426
  %v11009 = vsel %vm10989, %v10944, %v9428
  %v11010 = vsel %vm10989, %v10945, %v9430
  %v11011 = vsel %vm10989, %v10946, %v9432
  %v11012 = vsel %vm10989, %v10947, %v9434
  %v11013 = vsel %vm10989, %v10948, %v9436
  %v11014 = vsel %vm10989, %v10949, %v9438
  %v11015 = vsel %vm10989, %v10950, %v9440
  %v11016 = vsel %vm10989, %v10951, %v9442
  %v11017 = vsel %vm10989, %v10952, %v9444
  %v11018 = vsel %vm10989, %v10953, %v9446
  %v11019 = vsel %vm10989, %v10954, %v9448
  %v11020 = vsel %vm10989, %v10955, %v9450
  %v11021 = vsel %vm10989, %v10956, %v9452
  %v11022 = vsel %vm10989, %v10957, %v9454
  %v11023 = vsel %vm10989, %v10958, %v9456
  %v11024 = vsel %vm10989, %v10959, %v9458
  %v11025 = vsel %vm10989, %v10960, %v9460
  %v11026 = vsel %vm10989, %v10961, %v9462
  %v11027 = vsel %vm10989, %v10962, %v9464
  %v11028 = vsel %vm10989, %v10963, %v9466
  %v11029 = vsel %vm10989, %v10964, %v9468
  %v11030 = vsel %vm10989, %v10965, %v9470
  %v11031 = vsel %vm10989, %v10966, %v9472
  %v11032 = vsel %vm10989, %v10967, %v9474
  %v11033 = vsel %vm10989, %v10968, %v9476
  %v11034 = vsel %vm10989, %v10969, %v9478
  %v11035 = vsel %vm10989, %v10970, %v9480
  %v11036 = vsel %vm10989, %v10971, %v9482
  %v11037 = vsel %vm10989, %v10972, %v9484
  %v11038 = vsel %vm10989, %v10973, %v9486
  %v11039 = vsel %vm10989, %v10974, %v9488
  %v11040 = vsel %vm10989, %v10975, %v9490
  %v11041 = vsel %vm10989, %v10976, %v9492
  %v11042 = vsel %vm10989, %v10977, %v9494
  %v11043 = vsel %vm10989, %v10978, %v9496
  %v11044 = vsel %vm10989, %v10979, %v9498
  %v11045 = vsel %vm10989, %v10980, %v9500
  %v11046 = vsel %vm10989, %v10981, %v9502
  %v11047 = vsel %vm10989, %v10982, %v9504
  %v11048 = vsel %vm10989, %v10983, %v9506
  %v11049 = vsel %vm10989, %v10984, %v9508
  %v11050 = vsel %vm10989, %v10985, %v9510
  %v11051 = vsel %vm10989, %v10986, %v9512
  %v11052 = vsel %vm10989, %v10987, %v9514
  %v11053 = vsel %vm10989, %v10988, %v9516
  %v11054 = vsel %vm2103, %v10990, %v9646
  %v11055 = vsel %vm2103, %v10991, %v9648
  %v11056 = vsel %vm2103, %v10992, %v9650
  %v11057 = vsel %vm2103, %v10993, %v9652
  %v11058 = vsel %vm2103, %v10994, %v9654
  %v11059 = vsel %vm2103, %v10995, %v9656
  %v11060 = vsel %vm2103, %v10996, %v9658
  %v11061 = vsel %vm2103, %v10997, %v9660
  %v11062 = vsel %vm2103, %v10998, %v9662
  %v11063 = vsel %vm2103, %v10999, %v9664
  %v11064 = vsel %vm2103, %v11000, %v9666
  %v11065 = vsel %vm2103, %v11001, %v9668
  %v11066 = vsel %vm2103, %v11002, %v9670
  %v11067 = vsel %vm2103, %v11003, %v9672
  %v11068 = vsel %vm2103, %v11004, %v9674
  %v11069 = vsel %vm2103, %v11005, %v9676
  %v11070 = vsel %vm2103, %v11006, %v9678
  %v11071 = vsel %vm2103, %v11007, %v9680
  %v11072 = vsel %vm2103, %v11008, %v9682
  %v11073 = vsel %vm2103, %v11009, %v9684
  %v11074 = vsel %vm2103, %v11010, %v9686
  %v11075 = vsel %vm2103, %v11011, %v9688
  %v11076 = vsel %vm2103, %v11012, %v9690
  %v11077 = vsel %vm2103, %v11013, %v9692
  %v11078 = vsel %vm2103, %v11014, %v9694
  %v11079 = vsel %vm2103, %v11015, %v9696
  %v11080 = vsel %vm2103, %v11016, %v9698
  %v11081 = vsel %vm2103, %v11017, %v9700
  %v11082 = vsel %vm2103, %v11018, %v9702
  %v11083 = vsel %vm2103, %v11019, %v9704
  %v11084 = vsel %vm2103, %v11020, %v9706
  %v11085 = vsel %vm2103, %v11021, %v9708
  %v11086 = vsel %vm2103, %v11022, %v9710
  %v11087 = vsel %vm2103, %v11023, %v9712
  %v11088 = vsel %vm2103, %v11024, %v9714
  %v11089 = vsel %vm2103, %v11025, %v9716
  %v11090 = vsel %vm2103, %v11026, %v9718
  %v11091 = vsel %vm2103, %v11027, %v9720
  %v11092 = vsel %vm2103, %v11028, %v9722
  %v11093 = vsel %vm2103, %v11029, %v9724
  %v11094 = vsel %vm2103, %v11030, %v9726
  %v11095 = vsel %vm2103, %v11031, %v9728
  %v11096 = vsel %vm2103, %v11032, %v9730
  %v11097 = vsel %vm2103, %v11033, %v9732
  %v11098 = vsel %vm2103, %v11034, %v9734
  %v11099 = vsel %vm2103, %v11035, %v9736
  %v11100 = vsel %vm2103, %v11036, %v9738
  %v11101 = vsel %vm2103, %v11037, %v9740
  %v11102 = vsel %vm2103, %v11038, %v9742
  %v11103 = vsel %vm2103, %v11039, %v9744
  %v11104 = vsel %vm2103, %v11040, %v9746
  %v11105 = vsel %vm2103, %v11041, %v9748
  %v11106 = vsel %vm2103, %v11042, %v9750
  %v11107 = vsel %vm2103, %v11043, %v9752
  %v11108 = vsel %vm2103, %v11044, %v9754
  %v11109 = vsel %vm2103, %v11045, %v9756
  %v11110 = vsel %vm2103, %v11046, %v9758
  %v11111 = vsel %vm2103, %v11047, %v9760
  %v11112 = vsel %vm2103, %v11048, %v9762
  %v11113 = vsel %vm2103, %v11049, %v9764
  %v11114 = vsel %vm2103, %v11050, %v9766
  %v11115 = vsel %vm2103, %v11051, %v9768
  %v11116 = vsel %vm2103, %v11052, %v9770
  %v11117 = vsel %vm2103, %v11053, %v9772
  %vm11118 = vcmask 326656
  %v11119 = vsel %vm11118, %v11054, %v9902
  %v11120 = vsel %vm11118, %v11055, %v9904
  %v11121 = vsel %vm11118, %v11056, %v9906
  %v11122 = vsel %vm11118, %v11057, %v9908
  %v11123 = vsel %vm11118, %v11058, %v9910
  %v11124 = vsel %vm11118, %v11059, %v9912
  %v11125 = vsel %vm11118, %v11060, %v9914
  %v11126 = vsel %vm11118, %v11061, %v9916
  %v11127 = vsel %vm11118, %v11062, %v9918
  %v11128 = vsel %vm11118, %v11063, %v9920
  %v11129 = vsel %vm11118, %v11064, %v9922
  %v11130 = vsel %vm11118, %v11065, %v9924
  %v11131 = vsel %vm11118, %v11066, %v9926
  %v11132 = vsel %vm11118, %v11067, %v9928
  %v11133 = vsel %vm11118, %v11068, %v9930
  %v11134 = vsel %vm11118, %v11069, %v9932
  %v11135 = vsel %vm11118, %v11070, %v9934
  %v11136 = vsel %vm11118, %v11071, %v9936
  %v11137 = vsel %vm11118, %v11072, %v9938
  %v11138 = vsel %vm11118, %v11073, %v9940
  %v11139 = vsel %vm11118, %v11074, %v9942
  %v11140 = vsel %vm11118, %v11075, %v9944
  %v11141 = vsel %vm11118, %v11076, %v9946
  %v11142 = vsel %vm11118, %v11077, %v9948
  %v11143 = vsel %vm11118, %v11078, %v9950
  %v11144 = vsel %vm11118, %v11079, %v9952
  %v11145 = vsel %vm11118, %v11080, %v9954
  %v11146 = vsel %vm11118, %v11081, %v9956
  %v11147 = vsel %vm11118, %v11082, %v9958
  %v11148 = vsel %vm11118, %v11083, %v9960
  %v11149 = vsel %vm11118, %v11084, %v9962
  %v11150 = vsel %vm11118, %v11085, %v9964
  %v11151 = vsel %vm11118, %v11086, %v9966
  %v11152 = vsel %vm11118, %v11087, %v9968
  %v11153 = vsel %vm11118, %v11088, %v9970
  %v11154 = vsel %vm11118, %v11089, %v9972
  %v11155 = vsel %vm11118, %v11090, %v9974
  %v11156 = vsel %vm11118, %v11091, %v9976
  %v11157 = vsel %vm11118, %v11092, %v9978
  %v11158 = vsel %vm11118, %v11093, %v9980
  %v11159 = vsel %vm11118, %v11094, %v9982
  %v11160 = vsel %vm11118, %v11095, %v9984
  %v11161 = vsel %vm11118, %v11096, %v9986
  %v11162 = vsel %vm11118, %v11097, %v9988
  %v11163 = vsel %vm11118, %v11098, %v9990
  %v11164 = vsel %vm11118, %v11099, %v9992
  %v11165 = vsel %vm11118, %v11100, %v9994
  %v11166 = vsel %vm11118, %v11101, %v9996
  %v11167 = vsel %vm11118, %v11102, %v9998
  %v11168 = vsel %vm11118, %v11103, %v10000
  %v11169 = vsel %vm11118, %v11104, %v10002
  %v11170 = vsel %vm11118, %v11105, %v10004
  %v11171 = vsel %vm11118, %v11106, %v10006
  %v11172 = vsel %vm11118, %v11107, %v10008
  %v11173 = vsel %vm11118, %v11108, %v10010
  %v11174 = vsel %vm11118, %v11109, %v10012
  %v11175 = vsel %vm11118, %v11110, %v10014
  %v11176 = vsel %vm11118, %v11111, %v10016
  %v11177 = vsel %vm11118, %v11112, %v10018
  %v11178 = vsel %vm11118, %v11113, %v10020
  %v11179 = vsel %vm11118, %v11114, %v10022
  %v11180 = vsel %vm11118, %v11115, %v10024
  %v11181 = vsel %vm11118, %v11116, %v10026
  %v11182 = vsel %vm11118, %v11117, %v10028
  %v11183 = vsel %vm2120, %v11119, %v10158
  %v11184 = vsel %vm2120, %v11120, %v10160
  %v11185 = vsel %vm2120, %v11121, %v10162
  %v11186 = vsel %vm2120, %v11122, %v10164
  %v11187 = vsel %vm2120, %v11123, %v10166
  %v11188 = vsel %vm2120, %v11124, %v10168
  %v11189 = vsel %vm2120, %v11125, %v10170
  %v11190 = vsel %vm2120, %v11126, %v10172
  %v11191 = vsel %vm2120, %v11127, %v10174
  %v11192 = vsel %vm2120, %v11128, %v10176
  %v11193 = vsel %vm2120, %v11129, %v10178
  %v11194 = vsel %vm2120, %v11130, %v10180
  %v11195 = vsel %vm2120, %v11131, %v10182
  %v11196 = vsel %vm2120, %v11132, %v10184
  %v11197 = vsel %vm2120, %v11133, %v10186
  %v11198 = vsel %vm2120, %v11134, %v10188
  %v11199 = vsel %vm2120, %v11135, %v10190
  %v11200 = vsel %vm2120, %v11136, %v10192
  %v11201 = vsel %vm2120, %v11137, %v10194
  %v11202 = vsel %vm2120, %v11138, %v10196
  %v11203 = vsel %vm2120, %v11139, %v10198
  %v11204 = vsel %vm2120, %v11140, %v10200
  %v11205 = vsel %vm2120, %v11141, %v10202
  %v11206 = vsel %vm2120, %v11142, %v10204
  %v11207 = vsel %vm2120, %v11143, %v10206
  %v11208 = vsel %vm2120, %v11144, %v10208
  %v11209 = vsel %vm2120, %v11145, %v10210
  %v11210 = vsel %vm2120, %v11146, %v10212
  %v11211 = vsel %vm2120, %v11147, %v10214
  %v11212 = vsel %vm2120, %v11148, %v10216
  %v11213 = vsel %vm2120, %v11149, %v10218
  %v11214 = vsel %vm2120, %v11150, %v10220
  %v11215 = vsel %vm2120, %v11151, %v10222
  %v11216 = vsel %vm2120, %v11152, %v10224
  %v11217 = vsel %vm2120, %v11153, %v10226
  %v11218 = vsel %vm2120, %v11154, %v10228
  %v11219 = vsel %vm2120, %v11155, %v10230
  %v11220 = vsel %vm2120, %v11156, %v10232
  %v11221 = vsel %vm2120, %v11157, %v10234
  %v11222 = vsel %vm2120, %v11158, %v10236
  %v11223 = vsel %vm2120, %v11159, %v10238
  %v11224 = vsel %vm2120, %v11160, %v10240
  %v11225 = vsel %vm2120, %v11161, %v10242
  %v11226 = vsel %vm2120, %v11162, %v10244
  %v11227 = vsel %vm2120, %v11163, %v10246
  %v11228 = vsel %vm2120, %v11164, %v10248
  %v11229 = vsel %vm2120, %v11165, %v10250
  %v11230 = vsel %vm2120, %v11166, %v10252
  %v11231 = vsel %vm2120, %v11167, %v10254
  %v11232 = vsel %vm2120, %v11168, %v10256
  %v11233 = vsel %vm2120, %v11169, %v10258
  %v11234 = vsel %vm2120, %v11170, %v10260
  %v11235 = vsel %vm2120, %v11171, %v10262
  %v11236 = vsel %vm2120, %v11172, %v10264
  %v11237 = vsel %vm2120, %v11173, %v10266
  %v11238 = vsel %vm2120, %v11174, %v10268
  %v11239 = vsel %vm2120, %v11175, %v10270
  %v11240 = vsel %vm2120, %v11176, %v10272
  %v11241 = vsel %vm2120, %v11177, %v10274
  %v11242 = vsel %vm2120, %v11178, %v10276
  %v11243 = vsel %vm2120, %v11179, %v10278
  %v11244 = vsel %vm2120, %v11180, %v10280
  %v11245 = vsel %vm2120, %v11181, %v10282
  %v11246 = vsel %vm2120, %v11182, %v10284
  %vm11247 = vcmask 457728
  %v11248 = vsel %vm11247, %v11183, %v10414
  %v11249 = vsel %vm11247, %v11184, %v10416
  %v11250 = vsel %vm11247, %v11185, %v10418
  %v11251 = vsel %vm11247, %v11186, %v10420
  %v11252 = vsel %vm11247, %v11187, %v10422
  %v11253 = vsel %vm11247, %v11188, %v10424
  %v11254 = vsel %vm11247, %v11189, %v10426
  %v11255 = vsel %vm11247, %v11190, %v10428
  %v11256 = vsel %vm11247, %v11191, %v10430
  %v11257 = vsel %vm11247, %v11192, %v10432
  %v11258 = vsel %vm11247, %v11193, %v10434
  %v11259 = vsel %vm11247, %v11194, %v10436
  %v11260 = vsel %vm11247, %v11195, %v10438
  %v11261 = vsel %vm11247, %v11196, %v10440
  %v11262 = vsel %vm11247, %v11197, %v10442
  %v11263 = vsel %vm11247, %v11198, %v10444
  %v11264 = vsel %vm11247, %v11199, %v10446
  %v11265 = vsel %vm11247, %v11200, %v10448
  %v11266 = vsel %vm11247, %v11201, %v10450
  %v11267 = vsel %vm11247, %v11202, %v10452
  %v11268 = vsel %vm11247, %v11203, %v10454
  %v11269 = vsel %vm11247, %v11204, %v10456
  %v11270 = vsel %vm11247, %v11205, %v10458
  %v11271 = vsel %vm11247, %v11206, %v10460
  %v11272 = vsel %vm11247, %v11207, %v10462
  %v11273 = vsel %vm11247, %v11208, %v10464
  %v11274 = vsel %vm11247, %v11209, %v10466
  %v11275 = vsel %vm11247, %v11210, %v10468
  %v11276 = vsel %vm11247, %v11211, %v10470
  %v11277 = vsel %vm11247, %v11212, %v10472
  %v11278 = vsel %vm11247, %v11213, %v10474
  %v11279 = vsel %vm11247, %v11214, %v10476
  %v11280 = vsel %vm11247, %v11215, %v10478
  %v11281 = vsel %vm11247, %v11216, %v10480
  %v11282 = vsel %vm11247, %v11217, %v10482
  %v11283 = vsel %vm11247, %v11218, %v10484
  %v11284 = vsel %vm11247, %v11219, %v10486
  %v11285 = vsel %vm11247, %v11220, %v10488
  %v11286 = vsel %vm11247, %v11221, %v10490
  %v11287 = vsel %vm11247, %v11222, %v10492
  %v11288 = vsel %vm11247, %v11223, %v10494
  %v11289 = vsel %vm11247, %v11224, %v10496
  %v11290 = vsel %vm11247, %v11225, %v10498
  %v11291 = vsel %vm11247, %v11226, %v10500
  %v11292 = vsel %vm11247, %v11227, %v10502
  %v11293 = vsel %vm11247, %v11228, %v10504
  %v11294 = vsel %vm11247, %v11229, %v10506
  %v11295 = vsel %vm11247, %v11230, %v10508
  %v11296 = vsel %vm11247, %v11231, %v10510
  %v11297 = vsel %vm11247, %v11232, %v10512
  %v11298 = vsel %vm11247, %v11233, %v10514
  %v11299 = vsel %vm11247, %v11234, %v10516
  %v11300 = vsel %vm11247, %v11235, %v10518
  %v11301 = vsel %vm11247, %v11236, %v10520
  %v11302 = vsel %vm11247, %v11237, %v10522
  %v11303 = vsel %vm11247, %v11238, %v10524
  %v11304 = vsel %vm11247, %v11239, %v10526
  %v11305 = vsel %vm11247, %v11240, %v10528
  %v11306 = vsel %vm11247, %v11241, %v10530
  %v11307 = vsel %vm11247, %v11242, %v10532
  %v11308 = vsel %vm11247, %v11243, %v10534
  %v11309 = vsel %vm11247, %v11244, %v10536
  %v11310 = vsel %vm11247, %v11245, %v10538
  %v11311 = vsel %vm11247, %v11246, %v10540
  %v11312 = vsel %vm2137, %v11248, %v10670
  %v11313 = vsel %vm2137, %v11249, %v10672
  %v11314 = vsel %vm2137, %v11250, %v10674
  %v11315 = vsel %vm2137, %v11251, %v10676
  %v11316 = vsel %vm2137, %v11252, %v10678
  %v11317 = vsel %vm2137, %v11253, %v10680
  %v11318 = vsel %vm2137, %v11254, %v10682
  %v11319 = vsel %vm2137, %v11255, %v10684
  %v11320 = vsel %vm2137, %v11256, %v10686
  %v11321 = vsel %vm2137, %v11257, %v10688
  %v11322 = vsel %vm2137, %v11258, %v10690
  %v11323 = vsel %vm2137, %v11259, %v10692
  %v11324 = vsel %vm2137, %v11260, %v10694
  %v11325 = vsel %vm2137, %v11261, %v10696
  %v11326 = vsel %vm2137, %v11262, %v10698
  %v11327 = vsel %vm2137, %v11263, %v10700
  %v11328 = vsel %vm2137, %v11264, %v10702
  %v11329 = vsel %vm2137, %v11265, %v10704
  %v11330 = vsel %vm2137, %v11266, %v10706
  %v11331 = vsel %vm2137, %v11267, %v10708
  %v11332 = vsel %vm2137, %v11268, %v10710
  %v11333 = vsel %vm2137, %v11269, %v10712
  %v11334 = vsel %vm2137, %v11270, %v10714
  %v11335 = vsel %vm2137, %v11271, %v10716
  %v11336 = vsel %vm2137, %v11272, %v10718
  %v11337 = vsel %vm2137, %v11273, %v10720
  %v11338 = vsel %vm2137, %v11274, %v10722
  %v11339 = vsel %vm2137, %v11275, %v10724
  %v11340 = vsel %vm2137, %v11276, %v10726
  %v11341 = vsel %vm2137, %v11277, %v10728
  %v11342 = vsel %vm2137, %v11278, %v10730
  %v11343 = vsel %vm2137, %v11279, %v10732
  %v11344 = vsel %vm2137, %v11280, %v10734
  %v11345 = vsel %vm2137, %v11281, %v10736
  %v11346 = vsel %vm2137, %v11282, %v10738
  %v11347 = vsel %vm2137, %v11283, %v10740
  %v11348 = vsel %vm2137, %v11284, %v10742
  %v11349 = vsel %vm2137, %v11285, %v10744
  %v11350 = vsel %vm2137, %v11286, %v10746
  %v11351 = vsel %vm2137, %v11287, %v10748
  %v11352 = vsel %vm2137, %v11288, %v10750
  %v11353 = vsel %vm2137, %v11289, %v10752
  %v11354 = vsel %vm2137, %v11290, %v10754
  %v11355 = vsel %vm2137, %v11291, %v10756
  %v11356 = vsel %vm2137, %v11292, %v10758
  %v11357 = vsel %vm2137, %v11293, %v10760
  %v11358 = vsel %vm2137, %v11294, %v10762
  %v11359 = vsel %vm2137, %v11295, %v10764
  %v11360 = vsel %vm2137, %v11296, %v10766
  %v11361 = vsel %vm2137, %v11297, %v10768
  %v11362 = vsel %vm2137, %v11298, %v10770
  %v11363 = vsel %vm2137, %v11299, %v10772
  %v11364 = vsel %vm2137, %v11300, %v10774
  %v11365 = vsel %vm2137, %v11301, %v10776
  %v11366 = vsel %vm2137, %v11302, %v10778
  %v11367 = vsel %vm2137, %v11303, %v10780
  %v11368 = vsel %vm2137, %v11304, %v10782
  %v11369 = vsel %vm2137, %v11305, %v10784
  %v11370 = vsel %vm2137, %v11306, %v10786
  %v11371 = vsel %vm2137, %v11307, %v10788
  %v11372 = vsel %vm2137, %v11308, %v10790
  %v11373 = vsel %vm2137, %v11309, %v10792
  %v11374 = vsel %vm2137, %v11310, %v10794
  %v11375 = vsel %vm2137, %v11311, %v10796
  %v11376 = vld [vmem:[%s5] sm:$0xf]
  %v11377 = vld [vmem:[%s6] sm:$0xf]
  %11379 = vset.pattern.permute.xlu0 0
  %11380 = vperm.xlu0 %11379, %v11377
  %v11381 = vpop.permute.xlu0 %11380
  %vm11383 = vcmask 588800
  %v11385 = vsel %vm11383, %v11376, 0
  %v11388 = vsel %vm11383, %v11312, 0
  %v11391 = vsel %vm11383, %v11313, 0
  %v11394 = vsel %vm11383, %v11314, 0
  %v11397 = vsel %vm11383, %v11315, 0
  %v11400 = vsel %vm11383, %v11316, 0
  %v11403 = vsel %vm11383, %v11317, 0
  %v11406 = vsel %vm11383, %v11318, 0
  %v11409 = vsel %vm11383, %v11319, 0
  %v11412 = vsel %vm11383, %v11320, 0
  %v11415 = vsel %vm11383, %v11321, 0
  %v11418 = vsel %vm11383, %v11322, 0
  %v11421 = vsel %vm11383, %v11323, 0
  %v11424 = vsel %vm11383, %v11324, 0
  %v11427 = vsel %vm11383, %v11325, 0
  %v11430 = vsel %vm11383, %v11326, 0
  %v11433 = vsel %vm11383, %v11327, 0
  %v11436 = vsel %vm11383, %v11328, 0
  %v11439 = vsel %vm11383, %v11329, 0
  %v11442 = vsel %vm11383, %v11330, 0
  %v11445 = vsel %vm11383, %v11331, 0
  %v11448 = vsel %vm11383, %v11332, 0
  %v11451 = vsel %vm11383, %v11333, 0
  %v11454 = vsel %vm11383, %v11334, 0
  %v11457 = vsel %vm11383, %v11335, 0
  %v11460 = vsel %vm11383, %v11336, 0
  %v11463 = vsel %vm11383, %v11337, 0
  %v11466 = vsel %vm11383, %v11338, 0
  %v11469 = vsel %vm11383, %v11339, 0
  %v11472 = vsel %vm11383, %v11340, 0
  %v11475 = vsel %vm11383, %v11341, 0
  %v11478 = vsel %vm11383, %v11342, 0
  %v11481 = vsel %vm11383, %v11343, 0
  %v11484 = vsel %vm11383, %v11344, 0
  %v11487 = vsel %vm11383, %v11345, 0
  %v11490 = vsel %vm11383, %v11346, 0
  %v11493 = vsel %vm11383, %v11347, 0
  %v11496 = vsel %vm11383, %v11348, 0
  %v11499 = vsel %vm11383, %v11349, 0
  %v11502 = vsel %vm11383, %v11350, 0
  %v11505 = vsel %vm11383, %v11351, 0
  %v11508 = vsel %vm11383, %v11352, 0
  %v11511 = vsel %vm11383, %v11353, 0
  %v11514 = vsel %vm11383, %v11354, 0
  %v11517 = vsel %vm11383, %v11355, 0
  %v11520 = vsel %vm11383, %v11356, 0
  %v11523 = vsel %vm11383, %v11357, 0
  %v11526 = vsel %vm11383, %v11358, 0
  %v11529 = vsel %vm11383, %v11359, 0
  %v11532 = vsel %vm11383, %v11360, 0
  %v11535 = vsel %vm11383, %v11361, 0
  %v11538 = vsel %vm11383, %v11362, 0
  %v11541 = vsel %vm11383, %v11363, 0
  %v11544 = vsel %vm11383, %v11364, 0
  %v11547 = vsel %vm11383, %v11365, 0
  %v11550 = vsel %vm11383, %v11366, 0
  %v11553 = vsel %vm11383, %v11367, 0
  %v11556 = vsel %vm11383, %v11368, 0
  %v11559 = vsel %vm11383, %v11369, 0
  %v11562 = vsel %vm11383, %v11370, 0
  %v11565 = vsel %vm11383, %v11371, 0
  %v11568 = vsel %vm11383, %v11372, 0
  %v11571 = vsel %vm11383, %v11373, 0
  %v11574 = vsel %vm11383, %v11374, 0
  %v11577 = vsel %vm11383, %v11375, 0
  %11579 = vmatprep.subr.mxu0 0.0
  %11580 = vmatpush1.xpose.msra.mxu0 %v11388
  %11581 = vmatprep.subr.mxu0 0.0
  %11582 = vmatpush1.xpose.msra.mxu0 %v11391
  %11583 = vmatprep.subr.mxu0 0.0
  %11584 = vmatpush1.xpose.msra.mxu0 %v11394
  %11585 = vmatprep.subr.mxu0 0.0
  %11586 = vmatpush1.xpose.msra.mxu0 %v11397
  %11587 = vmatprep.subr.mxu0 0.0
  %11588 = vmatpush1.xpose.msra.mxu0 %v11400
  %11589 = vmatprep.subr.mxu0 0.0
  %11590 = vmatpush1.xpose.msra.mxu0 %v11403
  %11591 = vmatprep.subr.mxu0 0.0
  %11592 = vmatpush1.xpose.msra.mxu0 %v11406
  %11593 = vmatprep.subr.mxu0 0.0
  %11594 = vmatpush1.xpose.msra.mxu0 %v11409
  %11595 = vmatprep.subr.mxu0 0.0
  %11596 = vmatpush1.xpose.msra.mxu0 %v11412
  %11597 = vmatprep.subr.mxu0 0.0
  %11598 = vmatpush1.xpose.msra.mxu0 %v11415
  %11599 = vmatprep.subr.mxu0 0.0
  %11600 = vmatpush1.xpose.msra.mxu0 %v11418
  %11601 = vmatprep.subr.mxu0 0.0
  %11602 = vmatpush1.xpose.msra.mxu0 %v11421
  %11603 = vmatprep.subr.mxu0 0.0
  %11604 = vmatpush1.xpose.msra.mxu0 %v11424
  %11605 = vmatprep.subr.mxu0 0.0
  %11606 = vmatpush1.xpose.msra.mxu0 %v11427
  %11607 = vmatprep.subr.mxu0 0.0
  %11608 = vmatpush1.xpose.msra.mxu0 %v11430
  %11609 = vmatprep.subr.mxu0 0.0
  %11610 = vmatpush1.xpose.msra.mxu0 %v11433
  %11611 = vmatprep.subr.mxu0 0.0
  %11612 = vmatpush1.xpose.msra.mxu0 %v11436
  %11613 = vmatprep.subr.mxu0 0.0
  %11614 = vmatpush1.xpose.msra.mxu0 %v11439
  %11615 = vmatprep.subr.mxu0 0.0
  %11616 = vmatpush1.xpose.msra.mxu0 %v11442
  %11617 = vmatprep.subr.mxu0 0.0
  %11618 = vmatpush1.xpose.msra.mxu0 %v11445
  %11619 = vmatprep.subr.mxu0 0.0
  %11620 = vmatpush1.xpose.msra.mxu0 %v11448
  %11621 = vmatprep.subr.mxu0 0.0
  %11622 = vmatpush1.xpose.msra.mxu0 %v11451
  %11623 = vmatprep.subr.mxu0 0.0
  %11624 = vmatpush1.xpose.msra.mxu0 %v11454
  %11625 = vmatprep.subr.mxu0 0.0
  %11626 = vmatpush1.xpose.msra.mxu0 %v11457
  %11627 = vmatprep.subr.mxu0 0.0
  %11628 = vmatpush1.xpose.msra.mxu0 %v11460
  %11629 = vmatprep.subr.mxu0 0.0
  %11630 = vmatpush1.xpose.msra.mxu0 %v11463
  %11631 = vmatprep.subr.mxu0 0.0
  %11632 = vmatpush1.xpose.msra.mxu0 %v11466
  %11633 = vmatprep.subr.mxu0 0.0
  %11634 = vmatpush1.xpose.msra.mxu0 %v11469
  %11635 = vmatprep.subr.mxu0 0.0
  %11636 = vmatpush1.xpose.msra.mxu0 %v11472
  %11637 = vmatprep.subr.mxu0 0.0
  %11638 = vmatpush1.xpose.msra.mxu0 %v11475
  %11639 = vmatprep.subr.mxu0 0.0
  %11640 = vmatpush1.xpose.msra.mxu0 %v11478
  %11641 = vmatprep.subr.mxu0 0.0
  %11642 = vmatpush1.xpose.msra.mxu0 %v11481
  %11643 = vmatprep.mubr.f32.mxu0 0.0
  %11644 = vmatmul.mubr.f32.gmra.mrb[0].mxu0 %v11385
  %v11645 = vpop.f32.mrb[0].mxu0
  %v11646 = vadd.f32 %v11381, %v11645
  %v11647 = vpop.f32.mrb[0].mxu0
  %v11648 = vadd.f32 %v11381, %v11647
  %11649 = vdwg.mxu0
  %11650 = vmatprep.subr.mxu0 0.0
  %11651 = vmatpush1.xpose.msra.mxu0 %v11484
  %11652 = vmatprep.subr.mxu0 0.0
  %11653 = vmatpush1.xpose.msra.mxu0 %v11487
  %11654 = vmatprep.subr.mxu0 0.0
  %11655 = vmatpush1.xpose.msra.mxu0 %v11490
  %11656 = vmatprep.subr.mxu0 0.0
  %11657 = vmatpush1.xpose.msra.mxu0 %v11493
  %11658 = vmatprep.subr.mxu0 0.0
  %11659 = vmatpush1.xpose.msra.mxu0 %v11496
  %11660 = vmatprep.subr.mxu0 0.0
  %11661 = vmatpush1.xpose.msra.mxu0 %v11499
  %11662 = vmatprep.subr.mxu0 0.0
  %11663 = vmatpush1.xpose.msra.mxu0 %v11502
  %11664 = vmatprep.subr.mxu0 0.0
  %11665 = vmatpush1.xpose.msra.mxu0 %v11505
  %11666 = vmatprep.subr.mxu0 0.0
  %11667 = vmatpush1.xpose.msra.mxu0 %v11508
  %11668 = vmatprep.subr.mxu0 0.0
  %11669 = vmatpush1.xpose.msra.mxu0 %v11511
  %11670 = vmatprep.subr.mxu0 0.0
  %11671 = vmatpush1.xpose.msra.mxu0 %v11514
  %11672 = vmatprep.subr.mxu0 0.0
  %11673 = vmatpush1.xpose.msra.mxu0 %v11517
  %11674 = vmatprep.subr.mxu0 0.0
  %11675 = vmatpush1.xpose.msra.mxu0 %v11520
  %11676 = vmatprep.subr.mxu0 0.0
  %11677 = vmatpush1.xpose.msra.mxu0 %v11523
  %11678 = vmatprep.subr.mxu0 0.0
  %11679 = vmatpush1.xpose.msra.mxu0 %v11526
  %11680 = vmatprep.subr.mxu0 0.0
  %11681 = vmatpush1.xpose.msra.mxu0 %v11529
  %11682 = vmatprep.subr.mxu0 0.0
  %11683 = vmatpush1.xpose.msra.mxu0 %v11532
  %11684 = vmatprep.subr.mxu0 0.0
  %11685 = vmatpush1.xpose.msra.mxu0 %v11535
  %11686 = vmatprep.subr.mxu0 0.0
  %11687 = vmatpush1.xpose.msra.mxu0 %v11538
  %11688 = vmatprep.subr.mxu0 0.0
  %11689 = vmatpush1.xpose.msra.mxu0 %v11541
  %11690 = vmatprep.subr.mxu0 0.0
  %11691 = vmatpush1.xpose.msra.mxu0 %v11544
  %11692 = vmatprep.subr.mxu0 0.0
  %11693 = vmatpush1.xpose.msra.mxu0 %v11547
  %11694 = vmatprep.subr.mxu0 0.0
  %11695 = vmatpush1.xpose.msra.mxu0 %v11550
  %11696 = vmatprep.subr.mxu0 0.0
  %11697 = vmatpush1.xpose.msra.mxu0 %v11553
  %11698 = vmatprep.subr.mxu0 0.0
  %11699 = vmatpush1.xpose.msra.mxu0 %v11556
  %11700 = vmatprep.subr.mxu0 0.0
  %11701 = vmatpush1.xpose.msra.mxu0 %v11559
  %11702 = vmatprep.subr.mxu0 0.0
  %11703 = vmatpush1.xpose.msra.mxu0 %v11562
  %11704 = vmatprep.subr.mxu0 0.0
  %11705 = vmatpush1.xpose.msra.mxu0 %v11565
  %11706 = vmatprep.subr.mxu0 0.0
  %11707 = vmatpush1.xpose.msra.mxu0 %v11568
  %11708 = vmatprep.subr.mxu0 0.0
  %11709 = vmatpush1.xpose.msra.mxu0 %v11571
  %11710 = vmatprep.subr.mxu0 0.0
  %11711 = vmatpush1.xpose.msra.mxu0 %v11574
  %11712 = vmatprep.subr.mxu0 0.0
  %11713 = vmatpush1.xpose.msra.mxu0 %v11577
  %11714 = vmatprep.mubr.f32.mxu0 0.0
  %11715 = vmatmul.mubr.f32.gmra.mrb[0].mxu0 %v11385
  %v11716 = vpop.f32.mrb[0].mxu0
  %v11717 = vadd.f32 %v11381, %v11716
  %v11718 = vpop.f32.mrb[0].mxu0
  %v11719 = vadd.f32 %v11381, %v11718
  %11720 = vdwg.mxu0
  %vm11721 = vcmask 1043456
  %v11722 = vsel %vm11721, %v11646, 0.0
  %v11723 = vsel %vm11721, %v11648, 0.0
  %v11724 = vadd.f32 %v11722, %v11723
  %v11725 = vsel %vm11721, %v11717, 0.0
  %v11726 = vadd.f32 %v11724, %v11725
  %v11727 = vsel %vm11721, %v11719, 0.0
  %v11728 = vadd.f32 %v11726, %v11727
  %11729 = vadd.xlane.f32.xlu0 %v11728
  %v11730 = vpop.xlane.xlu0 %11729
  %v11731 = vrcp.pop 512.0
  %v11732 = vmul.f32 %v11730, %v11731
  %v11733 = vsub.f32 %v11646, %v11732
  %v11734 = vsub.f32 %v11648, %v11732
  %v11735 = vsub.f32 %v11717, %v11732
  %v11736 = vsub.f32 %v11719, %v11732
  %v11737 = vmul.f32 %v11733, %v11733
  %v11738 = vmul.f32 %v11734, %v11734
  %v11739 = vmul.f32 %v11735, %v11735
  %v11740 = vmul.f32 %v11736, %v11736
  %v11741 = vsel %vm11721, %v11737, 0.0
  %v11742 = vsel %vm11721, %v11738, 0.0
  %v11743 = vadd.f32 %v11741, %v11742
  %v11744 = vsel %vm11721, %v11739, 0.0
  %v11745 = vadd.f32 %v11743, %v11744
  %v11746 = vsel %vm11721, %v11740, 0.0
  %v11747 = vadd.f32 %v11745, %v11746
  %11748 = vadd.xlane.f32.xlu0 %v11747
  %v11749 = vpop.xlane.xlu0 %11748
  %v11750 = vmul.f32 %v11749, %v11731
  %v11751 = vadd.f32 %v11750, 1e-05
  %v11752 = vrsqrt.pop %v11751
  %v11753 = vmul.f32 %v11733, %v11752
  %v11754 = vmul.f32 %v11734, %v11752
  %v11755 = vmul.f32 %v11735, %v11752
  %v11756 = vmul.f32 %v11736, %v11752
  %11757 = vset.pattern.permute.xlu0 1
  %11758 = vperm.xlu0 %11757, %v11377
  %v11759 = vpop.permute.xlu0 %11758
  %v11761 = vmul.f32 %v11753, %v11759
  %v11762 = vmul.f32 %v11754, %v11759
  %v11763 = vmul.f32 %v11755, %v11759
  %v11764 = vmul.f32 %v11756, %v11759
  %11765 = vset.pattern.permute.xlu0 2
  %11766 = vperm.xlu0 %11765, %v11377
  %v11767 = vpop.permute.xlu0 %11766
  %v11769 = vadd.f32 %v11761, %v11767
  %v11770 = vadd.f32 %v11762, %v11767
  %v11771 = vadd.f32 %v11763, %v11767
  %v11772 = vadd.f32 %v11764, %v11767
  %v11773 = vmax.f32 %v11769, 0.0
  %v11774 = vmax.f32 %v11770, 0.0
  %v11775 = vmax.f32 %v11771, 0.0
  %v11776 = vmax.f32 %v11772, 0.0
  %v11781 = vcombine.low %v11773, %v11774
  %v11782 = vcombine.low %v11775, %v11776
  %11785 = vst [vmem:[%s7] sm:$0xff] %v11781
  %11786 = vst [vmem:[%s7 + $0x8] sm:$0xff] %v11782
  // Predicated region
  $region30: #{ae_decoder_forward.1} parent=0 // pred_check
    _
  $region31: #{ae_decoder_forward.1} parent=0 // pred_check_branch
    %11788 = sbr.rel (0) target = $region33
  $region32: #{ae_decoder_forward.1} parent=0 // pred_region
    _
  $region33: #{ae_decoder_forward.1} parent=0 // pred_fallthru
    _
  // Predicated region
  $region34: #{ae_decoder_forward.1} parent=0 // pred_check
    _
  $region35: #{ae_decoder_forward.1} parent=0 // pred_check_branch
    %11790 = sbr.rel (0) target = $region37
  $region36: #{ae_decoder_forward.1} parent=0 // pred_region
    _
  $region37: #{ae_decoder_forward.1} parent=0 // pred_fallthru
    _

</llo_original>
